<compile_context>
chip_gen: v7x
topology: tpu7x:2x2x1
jax: 0.10.0
libtpu: 0.0.40
codegen_flags: <defaults>
</compile_context>

<pallas_src>
import functools

import jax
import jax.numpy as jnp
from jax.experimental import pallas as pl
from jax.experimental.pallas import tpu as pltpu


def _round_up(x, m):
    return ((x + m - 1) // m) * m


# --------------------------------------------------------------------------------------
# Fused BasicBlock kernel (one grid step == one image)
# --------------------------------------------------------------------------------------
def _basic_block_kernel(xe_ref, w1_ref, b1_ref, w2_ref, ws_ref, b2_ref, mask_ref,
                        o_ref, y1e_ref, *, Wp, MP, EXT, MEXT):
    cmid = y1e_ref.shape[-1]

    # ---- conv1 (3x3, pad 1) + BN1 (scale folded into w1) + ReLU ----------------------
    acc1 = jnp.zeros((MP, cmid), jnp.float32)
    for t in range(9):
        off = (t // 3) * Wp + (t % 3)            # row shift for tap (dy, dx)
        acc1 = acc1 + jnp.dot(xe_ref[pl.ds(off, MP), :], w1_ref[t],
                              preferred_element_type=jnp.float32)
    # zero the padded-border rows so they act as conv2's implicit zero padding
    y1 = jnp.maximum(acc1 + b1_ref[...], 0.0) * mask_ref[...]

    # stage padded y1 (plus zero extension rows) in VMEM for conv2's taps
    y1e_ref[pl.ds(0, EXT), :] = jnp.zeros((EXT, cmid), y1e_ref.dtype)
    tail = MEXT - EXT - MP
    y1e_ref[pl.ds(EXT + MP, tail), :] = jnp.zeros((tail, cmid), y1e_ref.dtype)
    y1e_ref[pl.ds(EXT, MP), :] = y1.astype(y1e_ref.dtype)

    # ---- shortcut: 1x1 conv + BN (scale folded into ws) ------------------------------
    acc2 = jnp.dot(xe_ref[pl.ds(EXT, MP), :], ws_ref[...],
                   preferred_element_type=jnp.float32)

    # ---- conv2 (3x3, pad 1) + BN2 + residual add + ReLU ------------------------------
    for t in range(9):
        off = (t // 3) * Wp + (t % 3)
        acc2 = acc2 + jnp.dot(y1e_ref[pl.ds(off, MP), :], w2_ref[t],
                              preferred_element_type=jnp.float32)
    o_ref[...] = jnp.maximum(acc2 + b2_ref[...], 0.0).astype(o_ref.dtype)


# --------------------------------------------------------------------------------------
# Parameter preparation (BN fold, weight layout, channel padding) — pure JAX glue
# --------------------------------------------------------------------------------------
def _fold_bn(gamma, beta, mean, var, eps):
    scale = gamma / jnp.sqrt(var + eps)
    return scale, beta - mean * scale


def _prep_conv3x3(w_oihw, scale, cin_pad, cout_pad):
    # (O, I, 3, 3) -> (9 taps, I, O), BN scale folded, channels zero-padded, bf16.
    O, I = w_oihw.shape[:2]
    w = jnp.transpose(w_oihw, (2, 3, 1, 0)).reshape(9, I, O) * scale[None, None, :]
    w = jnp.pad(w, ((0, 0), (0, cin_pad - I), (0, cout_pad - O)))
    return w.astype(jnp.bfloat16)


def _prep_conv1x1(w_oihw, scale, cout_pad):
    O, I = w_oihw.shape[:2]
    w = jnp.transpose(w_oihw[:, :, 0, 0], (1, 0)) * scale[None, :]
    w = jnp.pad(w, ((0, 0), (0, cout_pad - O)))
    return w.astype(jnp.bfloat16)


def _pad_bias(b, cpad):
    return jnp.pad(b, (0, cpad - b.shape[0])).reshape(1, cpad).astype(jnp.float32)


# --------------------------------------------------------------------------------------
# BasicBlock forward (Pallas path)
# --------------------------------------------------------------------------------------
def basic_block_pallas(x_nchw, p, stride=1, eps=1e-5):
    if stride != 1:
        # TODO(synk): stride > 1 not supported by the fused row-shift formulation.
        raise NotImplementedError("fused Pallas BasicBlock currently supports stride=1")

    N, Cin, H, W = x_nchw.shape
    Cmid = p["w1"].shape[0]
    Cout = p["w2"].shape[0]

    Hp, Wp = H + 2, W + 2
    Mp = Hp * Wp                       # padded spatial positions (rows of the matmul)
    MP = _round_up(Mp, 8)              # sublane-aligned row count computed per image
    EXT = Wp + 1                       # zero-row extension so all 9 taps stay in bounds
    MEXT = _round_up(MP + 2 * EXT, 8)
    CMID_P = _round_up(Cmid, 128)      # lane-dense intermediate channels
    COUT_P = _round_up(Cout, 128)      # lane-dense output channels

    # NCHW -> NHWC, spatial zero-pad, flatten rows, add EXT zero rows each side, bf16.
    x = jnp.transpose(x_nchw, (0, 2, 3, 1))
    xp = jnp.pad(x, ((0, 0), (1, 1), (1, 1), (0, 0))).reshape(N, Mp, Cin)
    xe = jnp.pad(xp, ((0, 0), (EXT, MEXT - EXT - Mp), (0, 0))).astype(jnp.bfloat16)

    # Fold BN into weights/biases.
    s1, b1 = _fold_bn(p["g1"], p["b1"], p["m1"], p["v1"], eps)
    s2, b2 = _fold_bn(p["g2"], p["b2"], p["m2"], p["v2"], eps)
    w1 = _prep_conv3x3(p["w1"], s1, Cin, CMID_P)
    w2 = _prep_conv3x3(p["w2"], s2, CMID_P, COUT_P)
    b1p = _pad_bias(b1, CMID_P)

    if "ws" in p:
        ss, bs = _fold_bn(p["gs"], p["bs"], p["ms"], p["vs"], eps)
        ws = _prep_conv1x1(p["ws"], ss, COUT_P)
    else:
        assert Cin == Cout, "identity shortcut requires matching channels"
        ws = jnp.pad(jnp.eye(Cin, dtype=jnp.float32),
                     ((0, 0), (0, COUT_P - Cout))).astype(jnp.bfloat16)
        bs = jnp.zeros((Cout,), jnp.float32)
    b2sp = _pad_bias(b2 + bs, COUT_P)   # conv2 bias + shortcut bias folded together

    # Interior-row mask (1.0 for real output positions, 0.0 for padded-border rows).
    r = jnp.arange(MP)
    yi, xi = r // Wp, r % Wp
    mask = (((yi >= 1) & (yi <= Hp - 2) & (xi >= 1) & (xi <= Wp - 2))
            .astype(jnp.float32).reshape(MP, 1))

    kernel = functools.partial(_basic_block_kernel, Wp=Wp, MP=MP, EXT=EXT, MEXT=MEXT)

    out = pl.pallas_call(
        kernel,
        out_shape=jax.ShapeDtypeStruct((N, MP, COUT_P), jnp.float32),
        grid=(N,),
        in_specs=[
            pl.BlockSpec((None, MEXT, Cin), lambda n: (n, 0, 0)),      # x (flattened)
            pl.BlockSpec((9, Cin, CMID_P), lambda n: (0, 0, 0)),       # w1 (scale-folded)
            pl.BlockSpec((1, CMID_P), lambda n: (0, 0)),               # b1
            pl.BlockSpec((9, CMID_P, COUT_P), lambda n: (0, 0, 0)),    # w2 (scale-folded)
            pl.BlockSpec((Cin, COUT_P), lambda n: (0, 0)),             # shortcut 1x1 w
            pl.BlockSpec((1, COUT_P), lambda n: (0, 0)),               # b2 + shortcut b
            pl.BlockSpec((MP, 1), lambda n: (0, 0)),                   # interior mask
        ],
        out_specs=pl.BlockSpec((None, MP, COUT_P), lambda n: (n, 0, 0)),
        scratch_shapes=[pltpu.VMEM((MEXT, CMID_P), jnp.bfloat16)],     # padded y1
        compiler_params=pltpu.CompilerParams(
            dimension_semantics=("parallel",),
            vmem_limit_bytes=64 * 1024 * 1024),
    )(xe, w1, b1p, w2, ws, b2sp, mask)

    out = out[:, :Mp, :Cout].reshape(N, Hp, Wp, Cout)[:, 1:-1, 1:-1, :]
    return jnp.transpose(out, (0, 3, 1, 2))  # -> NCHW


# --------------------------------------------------------------------------------------
# Pure-JAX reference (mirrors the PyTorch module in eval mode) for verification
# --------------------------------------------------------------------------------------
def basic_block_ref(x_nchw, p, stride=1, eps=1e-5):
    def conv(x, w, s, pad):
        return jax.lax.conv_general_dilated(
            x, w, window_strides=(s, s), padding=[(pad, pad), (pad, pad)],
            dimension_numbers=("NCHW", "OIHW", "NCHW"))

    def bn(x, g, b, m, v):
        g, b, m, v = (a[None, :, None, None] for a in (g, b, m, v))
        return (x - m) / jnp.sqrt(v + eps) * g + b

    r = conv(x_nchw, p["w1"], stride, 1)
    r = jnp.maximum(bn(r, p["g1"], p["b1"], p["m1"], p["v1"]), 0.0)
    r = conv(r, p["w2"], 1, 1)
    r = bn(r, p["g2"], p["b2"], p["m2"], p["v2"])
    if "ws" in p:
        s = conv(x_nchw, p["ws"], stride, 0)
        s = bn(s, p["gs"], p["bs"], p["ms"], p["vs"])
    else:
        s = x_nchw
    return jnp.maximum(r + s, 0.0)


# --------------------------------------------------------------------------------------
# Main
# --------------------------------------------------------------------------------------
if __name__ == "__main__":
    key = jax.random.PRNGKey(0)
    ks = jax.random.split(key, 20)

    N, Cin, H, W = 2, 4, 16, 16
    Cout = 8
    stride = 1  # in_channels != out_channels -> shortcut = 1x1 conv + BN

    def bn_params(k0, k1, k2, k3, c):
        return (1.0 + 0.1 * jax.random.normal(k0, (c,), jnp.float32),            # gamma
                0.1 * jax.random.normal(k1, (c,), jnp.float32),                   # beta
                0.05 * jax.random.normal(k2, (c,), jnp.float32),                  # running_mean
                1.0 + 0.1 * jnp.abs(jax.random.normal(k3, (c,), jnp.float32)))    # running_var

    g1, b1, m1, v1 = bn_params(ks[1], ks[2], ks[3], ks[4], Cout)
    g2, b2, m2, v2 = bn_params(ks[6], ks[7], ks[8], ks[9], Cout)
    gs, bs, ms, vs = bn_params(ks[11], ks[12], ks[13], ks[14], Cout)

    params = {
        "w1": 0.1 * jax.random.normal(ks[0], (Cout, Cin, 3, 3), jnp.float32),
        "g1": g1, "b1": b1, "m1": m1, "v1": v1,
        "w2": 0.1 * jax.random.normal(ks[5], (Cout, Cout, 3, 3), jnp.float32),
        "g2": g2, "b2": b2, "m2": m2, "v2": v2,
        "ws": 0.1 * jax.random.normal(ks[10], (Cout, Cin, 1, 1), jnp.float32),
        "gs": gs, "bs": bs, "ms": ms, "vs": vs,
    }

    x = jax.random.normal(ks[15], (N, Cin, H, W), jnp.float32)

    out = jax.block_until_ready(basic_block_pallas(x, params, stride=stride))
    ref = jax.block_until_ready(basic_block_ref(x, params, stride=stride))

    err = float(jnp.max(jnp.abs(out - ref)))
    assert out.shape == (N, Cout, H, W), out.shape
    assert err < 5e-2, f"max abs error {err}"  # bf16 MXU path vs f32 reference
    print("KERNEL_OK")
</pallas_src>

<mosaic_0001>
module attributes {stable_mosaic.version = 11 : i64} {
  func.func @_basic_block_kernel(%arg0: i32, %arg1: memref<1x368x4xbf16, #tpu.memory_space<vmem>>, %arg2: memref<9x4x128xbf16, #tpu.memory_space<vmem>>, %arg3: memref<1x128xf32, #tpu.memory_space<vmem>>, %arg4: memref<9x128x128xbf16, #tpu.memory_space<vmem>>, %arg5: memref<4x128xbf16, #tpu.memory_space<vmem>>, %arg6: memref<1x128xf32, #tpu.memory_space<vmem>>, %arg7: memref<328x1xf32, #tpu.memory_space<vmem>>, %arg8: memref<1x328x128xf32, #tpu.memory_space<vmem>>, %arg9: memref<368x128xbf16, #tpu.memory_space<vmem>>) attributes {dimension_semantics = [#tpu.dimension_semantics<parallel>], iteration_bounds = array<i64: 2>, scalar_prefetch = 0 : i64, scratch_operands = 1 : i64, tpu.core_type = #tpu.core_type<tc>, window_params = [{transform_indices = @transform_0, window_bounds = array<i64: 1, 368, 4>}, {pipeline_mode = #tpu.pipeline_mode<synchronous>, transform_indices = @transform_1, window_bounds = array<i64: 9, 4, 128>}, {pipeline_mode = #tpu.pipeline_mode<synchronous>, transform_indices = @transform_2, window_bounds = array<i64: 1, 128>}, {pipeline_mode = #tpu.pipeline_mode<synchronous>, transform_indices = @transform_3, window_bounds = array<i64: 9, 128, 128>}, {pipeline_mode = #tpu.pipeline_mode<synchronous>, transform_indices = @transform_4, window_bounds = array<i64: 4, 128>}, {pipeline_mode = #tpu.pipeline_mode<synchronous>, transform_indices = @transform_5, window_bounds = array<i64: 1, 128>}, {pipeline_mode = #tpu.pipeline_mode<synchronous>, transform_indices = @transform_6, window_bounds = array<i64: 328, 1>}, {transform_indices = @transform_7, window_bounds = array<i64: 1, 328, 128>}]} {
    %cst = arith.constant 0.000000e+00 : f32
    %0 = vector.broadcast %cst : f32 to vector<328x128xf32>
    %c0 = arith.constant 0 : index
    %c0_0 = arith.constant 0 : index
    %c0_1 = arith.constant 0 : index
    %1 = vector.load %arg1[%c0, %c0_0, %c0_1] : memref<1x368x4xbf16, #tpu.memory_space<vmem>>, vector<1x328x4xbf16>
    %2 = vector.shape_cast %1 : vector<1x328x4xbf16> to vector<328x4xbf16>
    %c0_2 = arith.constant 0 : index
    %c0_3 = arith.constant 0 : index
    %c0_4 = arith.constant 0 : index
    %3 = vector.load %arg2[%c0_2, %c0_3, %c0_4] : memref<9x4x128xbf16, #tpu.memory_space<vmem>>, vector<1x4x128xbf16>
    %4 = vector.shape_cast %3 : vector<1x4x128xbf16> to vector<4x128xbf16>
    %cst_5 = arith.constant dense<0.000000e+00> : vector<328x128xf32>
    %5 = tpu.matmul %2, %4, %cst_5 {dimension_numbers = #tpu.dot_dimension_numbers<[1], [0], [0], [1], [0, 0, 1, 1], [], []>} : vector<328x4xbf16>, vector<4x128xbf16>, vector<328x128xf32> -> vector<328x128xf32>
    %6 = arith.addf %0, %5 : vector<328x128xf32>
    %c0_6 = arith.constant 0 : index
    %c1 = arith.constant 1 : index
    %c0_7 = arith.constant 0 : index
    %7 = vector.load %arg1[%c0_6, %c1, %c0_7] : memref<1x368x4xbf16, #tpu.memory_space<vmem>>, vector<1x328x4xbf16>
    %8 = vector.shape_cast %7 : vector<1x328x4xbf16> to vector<328x4xbf16>
    %c1_8 = arith.constant 1 : index
    %c0_9 = arith.constant 0 : index
    %c0_10 = arith.constant 0 : index
    %9 = vector.load %arg2[%c1_8, %c0_9, %c0_10] : memref<9x4x128xbf16, #tpu.memory_space<vmem>>, vector<1x4x128xbf16>
    %10 = vector.shape_cast %9 : vector<1x4x128xbf16> to vector<4x128xbf16>
    %cst_11 = arith.constant dense<0.000000e+00> : vector<328x128xf32>
    %11 = tpu.matmul %8, %10, %cst_11 {dimension_numbers = #tpu.dot_dimension_numbers<[1], [0], [0], [1], [0, 0, 1, 1], [], []>} : vector<328x4xbf16>, vector<4x128xbf16>, vector<328x128xf32> -> vector<328x128xf32>
    %12 = arith.addf %6, %11 : vector<328x128xf32>
    %c0_12 = arith.constant 0 : index
    %c2 = arith.constant 2 : index
    %c0_13 = arith.constant 0 : index
    %13 = vector.load %arg1[%c0_12, %c2, %c0_13] : memref<1x368x4xbf16, #tpu.memory_space<vmem>>, vector<1x328x4xbf16>
    %14 = vector.shape_cast %13 : vector<1x328x4xbf16> to vector<328x4xbf16>
    %c2_14 = arith.constant 2 : index
    %c0_15 = arith.constant 0 : index
    %c0_16 = arith.constant 0 : index
    %15 = vector.load %arg2[%c2_14, %c0_15, %c0_16] : memref<9x4x128xbf16, #tpu.memory_space<vmem>>, vector<1x4x128xbf16>
    %16 = vector.shape_cast %15 : vector<1x4x128xbf16> to vector<4x128xbf16>
    %cst_17 = arith.constant dense<0.000000e+00> : vector<328x128xf32>
    %17 = tpu.matmul %14, %16, %cst_17 {dimension_numbers = #tpu.dot_dimension_numbers<[1], [0], [0], [1], [0, 0, 1, 1], [], []>} : vector<328x4xbf16>, vector<4x128xbf16>, vector<328x128xf32> -> vector<328x128xf32>
    %18 = arith.addf %12, %17 : vector<328x128xf32>
    %c0_18 = arith.constant 0 : index
    %c18 = arith.constant 18 : index
    %c0_19 = arith.constant 0 : index
    %19 = vector.load %arg1[%c0_18, %c18, %c0_19] : memref<1x368x4xbf16, #tpu.memory_space<vmem>>, vector<1x328x4xbf16>
    %20 = vector.shape_cast %19 : vector<1x328x4xbf16> to vector<328x4xbf16>
    %c3 = arith.constant 3 : index
    %c0_20 = arith.constant 0 : index
    %c0_21 = arith.constant 0 : index
    %21 = vector.load %arg2[%c3, %c0_20, %c0_21] : memref<9x4x128xbf16, #tpu.memory_space<vmem>>, vector<1x4x128xbf16>
    %22 = vector.shape_cast %21 : vector<1x4x128xbf16> to vector<4x128xbf16>
    %cst_22 = arith.constant dense<0.000000e+00> : vector<328x128xf32>
    %23 = tpu.matmul %20, %22, %cst_22 {dimension_numbers = #tpu.dot_dimension_numbers<[1], [0], [0], [1], [0, 0, 1, 1], [], []>} : vector<328x4xbf16>, vector<4x128xbf16>, vector<328x128xf32> -> vector<328x128xf32>
    %24 = arith.addf %18, %23 : vector<328x128xf32>
    %c0_23 = arith.constant 0 : index
    %c19 = arith.constant 19 : index
    %c0_24 = arith.constant 0 : index
    %25 = vector.load %arg1[%c0_23, %c19, %c0_24] : memref<1x368x4xbf16, #tpu.memory_space<vmem>>, vector<1x328x4xbf16>
    %26 = vector.shape_cast %25 : vector<1x328x4xbf16> to vector<328x4xbf16>
    %c4 = arith.constant 4 : index
    %c0_25 = arith.constant 0 : index
    %c0_26 = arith.constant 0 : index
    %27 = vector.load %arg2[%c4, %c0_25, %c0_26] : memref<9x4x128xbf16, #tpu.memory_space<vmem>>, vector<1x4x128xbf16>
    %28 = vector.shape_cast %27 : vector<1x4x128xbf16> to vector<4x128xbf16>
    %cst_27 = arith.constant dense<0.000000e+00> : vector<328x128xf32>
    %29 = tpu.matmul %26, %28, %cst_27 {dimension_numbers = #tpu.dot_dimension_numbers<[1], [0], [0], [1], [0, 0, 1, 1], [], []>} : vector<328x4xbf16>, vector<4x128xbf16>, vector<328x128xf32> -> vector<328x128xf32>
    %30 = arith.addf %24, %29 : vector<328x128xf32>
    %c0_28 = arith.constant 0 : index
    %c20 = arith.constant 20 : index
    %c0_29 = arith.constant 0 : index
    %31 = vector.load %arg1[%c0_28, %c20, %c0_29] : memref<1x368x4xbf16, #tpu.memory_space<vmem>>, vector<1x328x4xbf16>
    %32 = vector.shape_cast %31 : vector<1x328x4xbf16> to vector<328x4xbf16>
    %c5 = arith.constant 5 : index
    %c0_30 = arith.constant 0 : index
    %c0_31 = arith.constant 0 : index
    %33 = vector.load %arg2[%c5, %c0_30, %c0_31] : memref<9x4x128xbf16, #tpu.memory_space<vmem>>, vector<1x4x128xbf16>
    %34 = vector.shape_cast %33 : vector<1x4x128xbf16> to vector<4x128xbf16>
    %cst_32 = arith.constant dense<0.000000e+00> : vector<328x128xf32>
    %35 = tpu.matmul %32, %34, %cst_32 {dimension_numbers = #tpu.dot_dimension_numbers<[1], [0], [0], [1], [0, 0, 1, 1], [], []>} : vector<328x4xbf16>, vector<4x128xbf16>, vector<328x128xf32> -> vector<328x128xf32>
    %36 = arith.addf %30, %35 : vector<328x128xf32>
    %c0_33 = arith.constant 0 : index
    %c36 = arith.constant 36 : index
    %c0_34 = arith.constant 0 : index
    %37 = vector.load %arg1[%c0_33, %c36, %c0_34] : memref<1x368x4xbf16, #tpu.memory_space<vmem>>, vector<1x328x4xbf16>
    %38 = vector.shape_cast %37 : vector<1x328x4xbf16> to vector<328x4xbf16>
    %c6 = arith.constant 6 : index
    %c0_35 = arith.constant 0 : index
    %c0_36 = arith.constant 0 : index
    %39 = vector.load %arg2[%c6, %c0_35, %c0_36] : memref<9x4x128xbf16, #tpu.memory_space<vmem>>, vector<1x4x128xbf16>
    %40 = vector.shape_cast %39 : vector<1x4x128xbf16> to vector<4x128xbf16>
    %cst_37 = arith.constant dense<0.000000e+00> : vector<328x128xf32>
    %41 = tpu.matmul %38, %40, %cst_37 {dimension_numbers = #tpu.dot_dimension_numbers<[1], [0], [0], [1], [0, 0, 1, 1], [], []>} : vector<328x4xbf16>, vector<4x128xbf16>, vector<328x128xf32> -> vector<328x128xf32>
    %42 = arith.addf %36, %41 : vector<328x128xf32>
    %c0_38 = arith.constant 0 : index
    %c37 = arith.constant 37 : index
    %c0_39 = arith.constant 0 : index
    %43 = vector.load %arg1[%c0_38, %c37, %c0_39] : memref<1x368x4xbf16, #tpu.memory_space<vmem>>, vector<1x328x4xbf16>
    %44 = vector.shape_cast %43 : vector<1x328x4xbf16> to vector<328x4xbf16>
    %c7 = arith.constant 7 : index
    %c0_40 = arith.constant 0 : index
    %c0_41 = arith.constant 0 : index
    %45 = vector.load %arg2[%c7, %c0_40, %c0_41] : memref<9x4x128xbf16, #tpu.memory_space<vmem>>, vector<1x4x128xbf16>
    %46 = vector.shape_cast %45 : vector<1x4x128xbf16> to vector<4x128xbf16>
    %cst_42 = arith.constant dense<0.000000e+00> : vector<328x128xf32>
    %47 = tpu.matmul %44, %46, %cst_42 {dimension_numbers = #tpu.dot_dimension_numbers<[1], [0], [0], [1], [0, 0, 1, 1], [], []>} : vector<328x4xbf16>, vector<4x128xbf16>, vector<328x128xf32> -> vector<328x128xf32>
    %48 = arith.addf %42, %47 : vector<328x128xf32>
    %c0_43 = arith.constant 0 : index
    %c38 = arith.constant 38 : index
    %c0_44 = arith.constant 0 : index
    %49 = vector.load %arg1[%c0_43, %c38, %c0_44] : memref<1x368x4xbf16, #tpu.memory_space<vmem>>, vector<1x328x4xbf16>
    %50 = vector.shape_cast %49 : vector<1x328x4xbf16> to vector<328x4xbf16>
    %c8 = arith.constant 8 : index
    %c0_45 = arith.constant 0 : index
    %c0_46 = arith.constant 0 : index
    %51 = vector.load %arg2[%c8, %c0_45, %c0_46] : memref<9x4x128xbf16, #tpu.memory_space<vmem>>, vector<1x4x128xbf16>
    %52 = vector.shape_cast %51 : vector<1x4x128xbf16> to vector<4x128xbf16>
    %cst_47 = arith.constant dense<0.000000e+00> : vector<328x128xf32>
    %53 = tpu.matmul %50, %52, %cst_47 {dimension_numbers = #tpu.dot_dimension_numbers<[1], [0], [0], [1], [0, 0, 1, 1], [], []>} : vector<328x4xbf16>, vector<4x128xbf16>, vector<328x128xf32> -> vector<328x128xf32>
    %54 = arith.addf %48, %53 : vector<328x128xf32>
    %c0_48 = arith.constant 0 : index
    %c0_49 = arith.constant 0 : index
    %55 = vector.load %arg3[%c0_48, %c0_49] : memref<1x128xf32, #tpu.memory_space<vmem>>, vector<1x128xf32>
    %56 = vector.broadcast %55 : vector<1x128xf32> to vector<328x128xf32>
    %57 = arith.addf %54, %56 : vector<328x128xf32>
    %cst_50 = arith.constant 0.000000e+00 : f32
    %58 = vector.broadcast %cst_50 : f32 to vector<328x128xf32>
    %59 = arith.maximumf %57, %58 : vector<328x128xf32>
    %c0_51 = arith.constant 0 : index
    %c0_52 = arith.constant 0 : index
    %60 = vector.load %arg7[%c0_51, %c0_52] : memref<328x1xf32, #tpu.memory_space<vmem>>, vector<328x1xf32>
    %61 = vector.broadcast %60 : vector<328x1xf32> to vector<328x128xf32>
    %62 = arith.mulf %59, %61 : vector<328x128xf32>
    %cst_53 = arith.constant 0.000000e+00 : bf16
    %63 = vector.broadcast %cst_53 : bf16 to vector<19x128xbf16>
    %c0_54 = arith.constant 0 : index
    %c0_55 = arith.constant 0 : index
    %64 = vector.load %arg9[%c0_54, %c0_55] : memref<368x128xbf16, #tpu.memory_space<vmem>>, vector<19x128xbf16>
    tpu.vector_store %arg9[%c0_54, %c0_55], %63 {strides = array<i32>} : memref<368x128xbf16, #tpu.memory_space<vmem>>, vector<19x128xbf16>,
    %cst_56 = arith.constant 0.000000e+00 : bf16
    %65 = vector.broadcast %cst_56 : bf16 to vector<21x128xbf16>
    %c347 = arith.constant 347 : index
    %c0_57 = arith.constant 0 : index
    %66 = vector.load %arg9[%c347, %c0_57] : memref<368x128xbf16, #tpu.memory_space<vmem>>, vector<21x128xbf16>
    tpu.vector_store %arg9[%c347, %c0_57], %65 {strides = array<i32>} : memref<368x128xbf16, #tpu.memory_space<vmem>>, vector<21x128xbf16>,
    %67 = arith.truncf %62 : vector<328x128xf32> to vector<328x128xbf16>
    %c19_58 = arith.constant 19 : index
    %c0_59 = arith.constant 0 : index
    %68 = vector.load %arg9[%c19_58, %c0_59] : memref<368x128xbf16, #tpu.memory_space<vmem>>, vector<328x128xbf16>
    tpu.vector_store %arg9[%c19_58, %c0_59], %67 {strides = array<i32>} : memref<368x128xbf16, #tpu.memory_space<vmem>>, vector<328x128xbf16>,
    %c0_60 = arith.constant 0 : index
    %c19_61 = arith.constant 19 : index
    %c0_62 = arith.constant 0 : index
    %69 = vector.load %arg1[%c0_60, %c19_61, %c0_62] : memref<1x368x4xbf16, #tpu.memory_space<vmem>>, vector<1x328x4xbf16>
    %70 = vector.shape_cast %69 : vector<1x328x4xbf16> to vector<328x4xbf16>
    %c0_63 = arith.constant 0 : index
    %c0_64 = arith.constant 0 : index
    %71 = vector.load %arg5[%c0_63, %c0_64] : memref<4x128xbf16, #tpu.memory_space<vmem>>, vector<4x128xbf16>
    %cst_65 = arith.constant dense<0.000000e+00> : vector<328x128xf32>
    %72 = tpu.matmul %70, %71, %cst_65 {dimension_numbers = #tpu.dot_dimension_numbers<[1], [0], [0], [1], [0, 0, 1, 1], [], []>} : vector<328x4xbf16>, vector<4x128xbf16>, vector<328x128xf32> -> vector<328x128xf32>
    %c0_66 = arith.constant 0 : index
    %c0_67 = arith.constant 0 : index
    %73 = vector.load %arg9[%c0_66, %c0_67] : memref<368x128xbf16, #tpu.memory_space<vmem>>, vector<328x128xbf16>
    %c0_68 = arith.constant 0 : index
    %c0_69 = arith.constant 0 : index
    %c0_70 = arith.constant 0 : index
    %74 = vector.load %arg4[%c0_68, %c0_69, %c0_70] : memref<9x128x128xbf16, #tpu.memory_space<vmem>>, vector<1x128x128xbf16>
    %75 = vector.shape_cast %74 : vector<1x128x128xbf16> to vector<128x128xbf16>
    %cst_71 = arith.constant dense<0.000000e+00> : vector<328x128xf32>
    %76 = tpu.matmul %73, %75, %cst_71 {dimension_numbers = #tpu.dot_dimension_numbers<[1], [0], [0], [1], [0, 0, 1, 1], [], []>} : vector<328x128xbf16>, vector<128x128xbf16>, vector<328x128xf32> -> vector<328x128xf32>
    %77 = arith.addf %72, %76 : vector<328x128xf32>
    %c1_72 = arith.constant 1 : index
    %c0_73 = arith.constant 0 : index
    %78 = vector.load %arg9[%c1_72, %c0_73] : memref<368x128xbf16, #tpu.memory_space<vmem>>, vector<328x128xbf16>
    %c1_74 = arith.constant 1 : index
    %c0_75 = arith.constant 0 : index
    %c0_76 = arith.constant 0 : index
    %79 = vector.load %arg4[%c1_74, %c0_75, %c0_76] : memref<9x128x128xbf16, #tpu.memory_space<vmem>>, vector<1x128x128xbf16>
    %80 = vector.shape_cast %79 : vector<1x128x128xbf16> to vector<128x128xbf16>
    %cst_77 = arith.constant dense<0.000000e+00> : vector<328x128xf32>
    %81 = tpu.matmul %78, %80, %cst_77 {dimension_numbers = #tpu.dot_dimension_numbers<[1], [0], [0], [1], [0, 0, 1, 1], [], []>} : vector<328x128xbf16>, vector<128x128xbf16>, vector<328x128xf32> -> vector<328x128xf32>
    %82 = arith.addf %77, %81 : vector<328x128xf32>
    %c2_78 = arith.constant 2 : index
    %c0_79 = arith.constant 0 : index
    %83 = vector.load %arg9[%c2_78, %c0_79] : memref<368x128xbf16, #tpu.memory_space<vmem>>, vector<328x128xbf16>
    %c2_80 = arith.constant 2 : index
    %c0_81 = arith.constant 0 : index
    %c0_82 = arith.constant 0 : index
    %84 = vector.load %arg4[%c2_80, %c0_81, %c0_82] : memref<9x128x128xbf16, #tpu.memory_space<vmem>>, vector<1x128x128xbf16>
    %85 = vector.shape_cast %84 : vector<1x128x128xbf16> to vector<128x128xbf16>
    %cst_83 = arith.constant dense<0.000000e+00> : vector<328x128xf32>
    %86 = tpu.matmul %83, %85, %cst_83 {dimension_numbers = #tpu.dot_dimension_numbers<[1], [0], [0], [1], [0, 0, 1, 1], [], []>} : vector<328x128xbf16>, vector<128x128xbf16>, vector<328x128xf32> -> vector<328x128xf32>
    %87 = arith.addf %82, %86 : vector<328x128xf32>
    %c18_84 = arith.constant 18 : index
    %c0_85 = arith.constant 0 : index
    %88 = vector.load %arg9[%c18_84, %c0_85] : memref<368x128xbf16, #tpu.memory_space<vmem>>, vector<328x128xbf16>
    %c3_86 = arith.constant 3 : index
    %c0_87 = arith.constant 0 : index
    %c0_88 = arith.constant 0 : index
    %89 = vector.load %arg4[%c3_86, %c0_87, %c0_88] : memref<9x128x128xbf16, #tpu.memory_space<vmem>>, vector<1x128x128xbf16>
    %90 = vector.shape_cast %89 : vector<1x128x128xbf16> to vector<128x128xbf16>
    %cst_89 = arith.constant dense<0.000000e+00> : vector<328x128xf32>
    %91 = tpu.matmul %88, %90, %cst_89 {dimension_numbers = #tpu.dot_dimension_numbers<[1], [0], [0], [1], [0, 0, 1, 1], [], []>} : vector<328x128xbf16>, vector<128x128xbf16>, vector<328x128xf32> -> vector<328x128xf32>
    %92 = arith.addf %87, %91 : vector<328x128xf32>
    %c19_90 = arith.constant 19 : index
    %c0_91 = arith.constant 0 : index
    %93 = vector.load %arg9[%c19_90, %c0_91] : memref<368x128xbf16, #tpu.memory_space<vmem>>, vector<328x128xbf16>
    %c4_92 = arith.constant 4 : index
    %c0_93 = arith.constant 0 : index
    %c0_94 = arith.constant 0 : index
    %94 = vector.load %arg4[%c4_92, %c0_93, %c0_94] : memref<9x128x128xbf16, #tpu.memory_space<vmem>>, vector<1x128x128xbf16>
    %95 = vector.shape_cast %94 : vector<1x128x128xbf16> to vector<128x128xbf16>
    %cst_95 = arith.constant dense<0.000000e+00> : vector<328x128xf32>
    %96 = tpu.matmul %93, %95, %cst_95 {dimension_numbers = #tpu.dot_dimension_numbers<[1], [0], [0], [1], [0, 0, 1, 1], [], []>} : vector<328x128xbf16>, vector<128x128xbf16>, vector<328x128xf32> -> vector<328x128xf32>
    %97 = arith.addf %92, %96 : vector<328x128xf32>
    %c20_96 = arith.constant 20 : index
    %c0_97 = arith.constant 0 : index
    %98 = vector.load %arg9[%c20_96, %c0_97] : memref<368x128xbf16, #tpu.memory_space<vmem>>, vector<328x128xbf16>
    %c5_98 = arith.constant 5 : index
    %c0_99 = arith.constant 0 : index
    %c0_100 = arith.constant 0 : index
    %99 = vector.load %arg4[%c5_98, %c0_99, %c0_100] : memref<9x128x128xbf16, #tpu.memory_space<vmem>>, vector<1x128x128xbf16>
    %100 = vector.shape_cast %99 : vector<1x128x128xbf16> to vector<128x128xbf16>
    %cst_101 = arith.constant dense<0.000000e+00> : vector<328x128xf32>
    %101 = tpu.matmul %98, %100, %cst_101 {dimension_numbers = #tpu.dot_dimension_numbers<[1], [0], [0], [1], [0, 0, 1, 1], [], []>} : vector<328x128xbf16>, vector<128x128xbf16>, vector<328x128xf32> -> vector<328x128xf32>
    %102 = arith.addf %97, %101 : vector<328x128xf32>
    %c36_102 = arith.constant 36 : index
    %c0_103 = arith.constant 0 : index
    %103 = vector.load %arg9[%c36_102, %c0_103] : memref<368x128xbf16, #tpu.memory_space<vmem>>, vector<328x128xbf16>
    %c6_104 = arith.constant 6 : index
    %c0_105 = arith.constant 0 : index
    %c0_106 = arith.constant 0 : index
    %104 = vector.load %arg4[%c6_104, %c0_105, %c0_106] : memref<9x128x128xbf16, #tpu.memory_space<vmem>>, vector<1x128x128xbf16>
    %105 = vector.shape_cast %104 : vector<1x128x128xbf16> to vector<128x128xbf16>
    %cst_107 = arith.constant dense<0.000000e+00> : vector<328x128xf32>
    %106 = tpu.matmul %103, %105, %cst_107 {dimension_numbers = #tpu.dot_dimension_numbers<[1], [0], [0], [1], [0, 0, 1, 1], [], []>} : vector<328x128xbf16>, vector<128x128xbf16>, vector<328x128xf32> -> vector<328x128xf32>
    %107 = arith.addf %102, %106 : vector<328x128xf32>
    %c37_108 = arith.constant 37 : index
    %c0_109 = arith.constant 0 : index
    %108 = vector.load %arg9[%c37_108, %c0_109] : memref<368x128xbf16, #tpu.memory_space<vmem>>, vector<328x128xbf16>
    %c7_110 = arith.constant 7 : index
    %c0_111 = arith.constant 0 : index
    %c0_112 = arith.constant 0 : index
    %109 = vector.load %arg4[%c7_110, %c0_111, %c0_112] : memref<9x128x128xbf16, #tpu.memory_space<vmem>>, vector<1x128x128xbf16>
    %110 = vector.shape_cast %109 : vector<1x128x128xbf16> to vector<128x128xbf16>
    %cst_113 = arith.constant dense<0.000000e+00> : vector<328x128xf32>
    %111 = tpu.matmul %108, %110, %cst_113 {dimension_numbers = #tpu.dot_dimension_numbers<[1], [0], [0], [1], [0, 0, 1, 1], [], []>} : vector<328x128xbf16>, vector<128x128xbf16>, vector<328x128xf32> -> vector<328x128xf32>
    %112 = arith.addf %107, %111 : vector<328x128xf32>
    %c38_114 = arith.constant 38 : index
    %c0_115 = arith.constant 0 : index
    %113 = vector.load %arg9[%c38_114, %c0_115] : memref<368x128xbf16, #tpu.memory_space<vmem>>, vector<328x128xbf16>
    %c8_116 = arith.constant 8 : index
    %c0_117 = arith.constant 0 : index
    %c0_118 = arith.constant 0 : index
    %114 = vector.load %arg4[%c8_116, %c0_117, %c0_118] : memref<9x128x128xbf16, #tpu.memory_space<vmem>>, vector<1x128x128xbf16>
    %115 = vector.shape_cast %114 : vector<1x128x128xbf16> to vector<128x128xbf16>
    %cst_119 = arith.constant dense<0.000000e+00> : vector<328x128xf32>
    %116 = tpu.matmul %113, %115, %cst_119 {dimension_numbers = #tpu.dot_dimension_numbers<[1], [0], [0], [1], [0, 0, 1, 1], [], []>} : vector<328x128xbf16>, vector<128x128xbf16>, vector<328x128xf32> -> vector<328x128xf32>
    %117 = arith.addf %112, %116 : vector<328x128xf32>
    %c0_120 = arith.constant 0 : index
    %c0_121 = arith.constant 0 : index
    %118 = vector.load %arg6[%c0_120, %c0_121] : memref<1x128xf32, #tpu.memory_space<vmem>>, vector<1x128xf32>
    %119 = vector.broadcast %118 : vector<1x128xf32> to vector<328x128xf32>
    %120 = arith.addf %117, %119 : vector<328x128xf32>
    %cst_122 = arith.constant 0.000000e+00 : f32
    %121 = vector.broadcast %cst_122 : f32 to vector<328x128xf32>
    %122 = arith.maximumf %120, %121 : vector<328x128xf32>
    %c0_123 = arith.constant 0 : index
    %c0_124 = arith.constant 0 : index
    %c0_125 = arith.constant 0 : index
    %123 = vector.load %arg8[%c0_123, %c0_124, %c0_125] : memref<1x328x128xf32, #tpu.memory_space<vmem>>, vector<1x328x128xf32>
    %124 = vector.shape_cast %123 : vector<1x328x128xf32> to vector<328x128xf32>
    %125 = vector.shape_cast %122 : vector<328x128xf32> to vector<1x328x128xf32>
    tpu.vector_store %arg8[%c0_123, %c0_124, %c0_125], %125 {strides = array<i32>} : memref<1x328x128xf32, #tpu.memory_space<vmem>>, vector<1x328x128xf32>,
    return
  }
  func.func @transform_0(%arg0: i32) -> (i32, i32, i32) {
    %c0_i32 = arith.constant 0 : i32
    %c0_i32_0 = arith.constant 0 : i32
    %c0_i32_1 = arith.constant 0 : i32
    return %arg0, %c0_i32, %c0_i32_0 : i32, i32, i32
  }
  func.func @transform_1(%arg0: i32) -> (i32, i32, i32) {
    %c0_i32 = arith.constant 0 : i32
    %c0_i32_0 = arith.constant 0 : i32
    %c0_i32_1 = arith.constant 0 : i32
    %c0_i32_2 = arith.constant 0 : i32
    return %c0_i32, %c0_i32_0, %c0_i32_1 : i32, i32, i32
  }
  func.func @transform_2(%arg0: i32) -> (i32, i32) {
    %c0_i32 = arith.constant 0 : i32
    %c0_i32_0 = arith.constant 0 : i32
    %c0_i32_1 = arith.constant 0 : i32
    return %c0_i32, %c0_i32_0 : i32, i32
  }
  func.func @transform_3(%arg0: i32) -> (i32, i32, i32) {
    %c0_i32 = arith.constant 0 : i32
    %c0_i32_0 = arith.constant 0 : i32
    %c0_i32_1 = arith.constant 0 : i32
    %c0_i32_2 = arith.constant 0 : i32
    return %c0_i32, %c0_i32_0, %c0_i32_1 : i32, i32, i32
  }
  func.func @transform_4(%arg0: i32) -> (i32, i32) {
    %c0_i32 = arith.constant 0 : i32
    %c0_i32_0 = arith.constant 0 : i32
    %c0_i32_1 = arith.constant 0 : i32
    return %c0_i32, %c0_i32_0 : i32, i32
  }
  func.func @transform_5(%arg0: i32) -> (i32, i32) {
    %c0_i32 = arith.constant 0 : i32
    %c0_i32_0 = arith.constant 0 : i32
    %c0_i32_1 = arith.constant 0 : i32
    return %c0_i32, %c0_i32_0 : i32, i32
  }
  func.func @transform_6(%arg0: i32) -> (i32, i32) {
    %c0_i32 = arith.constant 0 : i32
    %c0_i32_0 = arith.constant 0 : i32
    %c0_i32_1 = arith.constant 0 : i32
    return %c0_i32, %c0_i32_0 : i32, i32
  }
  func.func @transform_7(%arg0: i32) -> (i32, i32, i32) {
    %c0_i32 = arith.constant 0 : i32
    %c0_i32_0 = arith.constant 0 : i32
    %c0_i32_1 = arith.constant 0 : i32
    return %arg0, %c0_i32, %c0_i32_0 : i32, i32, i32
  }
}

</mosaic_0001>

<llo_original>
// kernel: tpu_custom_call.1
$region0: #{tpu_custom_call.1}
  #allocation0 [shape = 'u32[]', space=smem, size = 0x4, offset = 0x4, fixed_abs, tag = 'smem constant byte address 0x4 - core index']
  #allocation1 [shape = 'u32[144,128]{1,0:T(1,128)}', space=vmem, size = 0x12000, scoped, tag = 'internal scratch']
  #allocation2 [shape = 'bf16[368,128]{1,0:T(16,128)(2,1)}', space=vmem, size = 0x17000, scoped, tag = 'scratch operand']
  %s0 = inlined_call_operand.hbm [shape: bf16[2,368,4], index: 0, kind: input, shape index: {}]
  %s1 = inlined_call_operand.hbm [shape: bf16[9,4,128], index: 1, kind: input, shape index: {}]
  %s2 = inlined_call_operand.hbm [shape: f32[1,128], index: 2, kind: input, shape index: {}]
  %s3 = inlined_call_operand.hbm [shape: bf16[9,128,128], index: 3, kind: input, shape index: {}]
  %s4 = inlined_call_operand.hbm [shape: bf16[4,128], index: 4, kind: input, shape index: {}]
  %s5 = inlined_call_operand.hbm [shape: f32[1,128], index: 5, kind: input, shape index: {}]
  %s6 = inlined_call_operand.hbm [shape: f32[328,1], index: 6, kind: input, shape index: {}]
  %s7 = inlined_call_operand.hbm [shape: f32[2,328,128], index: 7, kind: output, shape index: {}]
  %s8 = sld [smem:[#allocation0]]
  $region89: #{tpu_custom_call.1} parent=0
    _
  %s10 = ssub.s32 1, %s8
  %s11 = scalar_select 0, %s10, %s8
  $region1: #{tpu_custom_call.1} parent=0
    #allocation3 [shape = 'u8[188416]{0}', space=vmem, size = 0x2e000, scoped, tag = 'input window, operand 0']
    #allocation4 [shape = 's32[2]{0}', space=sflag, size = 0x8, scoped, tag = 'scoped memory for tpu_custom_call.1']
    #allocation5 [shape = 's32[2]{0}', space=sflag, size = 0x8, scoped, tag = 'scoped memory for tpu_custom_call.1']
    #allocation6 [shape = 'u8[9216]{0}', space=vmem, size = 0x2400, scoped, tag = 'input window, operand 1, single buffered']
    #allocation7 [shape = 's32[1]{0}', space=sflag, size = 0x4, scoped, tag = 'scoped memory for tpu_custom_call.1']
    #allocation8 [shape = 'u8[512]{0}', space=vmem, size = 0x400, scoped, tag = 'input window, operand 2, single buffered']
    #allocation9 [shape = 'u8[294912]{0}', space=vmem, size = 0x48000, scoped, tag = 'input window, operand 3, single buffered']
    #allocation10 [shape = 's32[1]{0}', space=sflag, size = 0x4, scoped, tag = 'scoped memory for tpu_custom_call.1']
    #allocation11 [shape = 'u8[1024]{0}', space=vmem, size = 0x400, scoped, tag = 'input window, operand 4, single buffered']
    #allocation12 [shape = 'u8[512]{0}', space=vmem, size = 0x400, scoped, tag = 'input window, operand 5, single buffered']
    #allocation13 [shape = 's32[1]{0}', space=sflag, size = 0x4, scoped, tag = 'scoped memory for tpu_custom_call.1']
    #allocation14 [shape = 'u8[167936]{0}', space=vmem, size = 0x29000, scoped, tag = 'input window, operand 6, single buffered']
    #allocation15 [shape = 'u8[335872]{0}', space=vmem, size = 0x52000, scoped, tag = 'output window, operand 0']
    %12 = vsyncpa [#allocation4], 0
    %s13 = scalar_lea.sflag [#allocation4], 1
    %14 = vsyncpa %s13, 0
    %15 = vsyncpa [#allocation7], 0
    %16 = vsyncpa [#allocation10], 0
    %17 = vsyncpa [#allocation13], 0
    %18 = vsyncpa [#allocation5], 0
    %s19 = scalar_lea.sflag [#allocation5], 1
    %20 = vsyncpa %s19, 0
    loop: start=0, step=1, limit=4
    $region2: #{tpu_custom_call.1} parent=1 // loop_pre_header
      _
    $region3: #{tpu_custom_call.1} parent=1 // loop_header
      %s22 = sphi 0, %s26
      %p23 = scmp.ge.s32.totalorder %s22, 4
      %s32 = sphi 0, %s34
      %s35 = sphi 0, %s32
      %s36 = sphi 0, %s35
      %s52 = sphi 0, %s36
      %s56 = sphi 0, %s56
      %s58 = sphi 0, %s56
      %s59 = sphi 0, %s58
      %s73 = sphi 0, %s59
      %s77 = sphi 0, %s77
      %s79 = sphi 0, %s77
      %s80 = sphi 0, %s79
      %s94 = sphi 0, %s80
      %s98 = sphi 0, %s98
      %s100 = sphi 0, %s98
      %s101 = sphi 0, %s100
      %s115 = sphi 0, %s101
      %s119 = sphi 0, %s119
      %s121 = sphi 0, %s119
      %s122 = sphi 0, %s121
      %s136 = sphi 0, %s122
      %s140 = sphi 0, %s140
      %s142 = sphi 0, %s140
      %s143 = sphi 0, %s142
      %s157 = sphi 0, %s143
      %s161 = sphi 0, %s161
      %s163 = sphi 0, %s161
      %s164 = sphi 0, %s163
      %s178 = sphi 0, %s164
      %s184 = sphi 0, %s186
      %s187 = sphi 0, %s184
      %s188 = sphi 0, %s187
      %s204 = sphi 0, %s188
    $region4: #{tpu_custom_call.1} parent=1 // loop_header_branch
      %25 = sbr.rel (%p23) target = $region8
    $region5: #{tpu_custom_call.1} parent=1 // loop_body
      %s27 = ssub.s32 %s22, 1
      %s28 = ssub.s32 %s22, 2
      %s29 = sadd.s32 %s22, 1
      %s30 = ssub.s32 %s22, %s29
      %p31 = scmp.eq.s32.totalorder %s30, 0
      %s33 = sadd.s32 %s32, 1
      %s34 = scalar_select %p31, %s32, %s33
      %p37 = pneg %p31
      %p38 = scmp.eq.s32.totalorder %s22, 1
      %p39 = por %p37, %p38
      %p40 = scmp.ne.s32.totalorder %s32, %s35
      %p41 = scmp.eq.s32.totalorder %s22, 0
      %p42 = por %p40, %p41
      %p43 = scmp.ne.s32.totalorder %s32, %s35
      %p44 = scmp.eq.s32.totalorder %s27, 1
      %p45 = por %p43, %p44
      %p46 = scmp.ne.s32.totalorder %s35, %s36
      %p47 = scmp.eq.s32.totalorder %s27, 0
      %p48 = por %p46, %p47
      %p49 = scmp.ne.s32.totalorder %s35, %s36
      %p50 = scmp.eq.s32.totalorder %s28, 1
      %p51 = por %p49, %p50
      %p53 = scmp.ne.s32.totalorder %s36, %s52
      %p54 = scmp.eq.s32.totalorder %s28, 0
      %p55 = por %p53, %p54
      %s57 = sadd.s32 %s56, 1
      %p60 = scmp.eq.s32.totalorder %s22, 1
      %p61 = scmp.ne.s32.totalorder %s56, %s58
      %p62 = scmp.eq.s32.totalorder %s22, 0
      %p63 = por %p61, %p62
      %p64 = scmp.ne.s32.totalorder %s56, %s58
      %p65 = scmp.eq.s32.totalorder %s27, 1
      %p66 = por %p64, %p65
      %p67 = scmp.ne.s32.totalorder %s58, %s59
      %p68 = scmp.eq.s32.totalorder %s27, 0
      %p69 = por %p67, %p68
      %p70 = scmp.ne.s32.totalorder %s58, %s59
      %p71 = scmp.eq.s32.totalorder %s28, 1
      %p72 = por %p70, %p71
      %p74 = scmp.ne.s32.totalorder %s59, %s73
      %p75 = scmp.eq.s32.totalorder %s28, 0
      %p76 = por %p74, %p75
      %s78 = sadd.s32 %s77, 1
      %p81 = scmp.eq.s32.totalorder %s22, 1
      %p82 = scmp.ne.s32.totalorder %s77, %s79
      %p83 = scmp.eq.s32.totalorder %s22, 0
      %p84 = por %p82, %p83
      %p85 = scmp.ne.s32.totalorder %s77, %s79
      %p86 = scmp.eq.s32.totalorder %s27, 1
      %p87 = por %p85, %p86
      %p88 = scmp.ne.s32.totalorder %s79, %s80
      %p89 = scmp.eq.s32.totalorder %s27, 0
      %p90 = por %p88, %p89
      %p91 = scmp.ne.s32.totalorder %s79, %s80
      %p92 = scmp.eq.s32.totalorder %s28, 1
      %p93 = por %p91, %p92
      %p95 = scmp.ne.s32.totalorder %s80, %s94
      %p96 = scmp.eq.s32.totalorder %s28, 0
      %p97 = por %p95, %p96
      %s99 = sadd.s32 %s98, 1
      %p102 = scmp.eq.s32.totalorder %s22, 1
      %p103 = scmp.ne.s32.totalorder %s98, %s100
      %p104 = scmp.eq.s32.totalorder %s22, 0
      %p105 = por %p103, %p104
      %p106 = scmp.ne.s32.totalorder %s98, %s100
      %p107 = scmp.eq.s32.totalorder %s27, 1
      %p108 = por %p106, %p107
      %p109 = scmp.ne.s32.totalorder %s100, %s101
      %p110 = scmp.eq.s32.totalorder %s27, 0
      %p111 = por %p109, %p110
      %p112 = scmp.ne.s32.totalorder %s100, %s101
      %p113 = scmp.eq.s32.totalorder %s28, 1
      %p114 = por %p112, %p113
      %p116 = scmp.ne.s32.totalorder %s101, %s115
      %p117 = scmp.eq.s32.totalorder %s28, 0
      %p118 = por %p116, %p117
      %s120 = sadd.s32 %s119, 1
      %p123 = scmp.eq.s32.totalorder %s22, 1
      %p124 = scmp.ne.s32.totalorder %s119, %s121
      %p125 = scmp.eq.s32.totalorder %s22, 0
      %p126 = por %p124, %p125
      %p127 = scmp.ne.s32.totalorder %s119, %s121
      %p128 = scmp.eq.s32.totalorder %s27, 1
      %p129 = por %p127, %p128
      %p130 = scmp.ne.s32.totalorder %s121, %s122
      %p131 = scmp.eq.s32.totalorder %s27, 0
      %p132 = por %p130, %p131
      %p133 = scmp.ne.s32.totalorder %s121, %s122
      %p134 = scmp.eq.s32.totalorder %s28, 1
      %p135 = por %p133, %p134
      %p137 = scmp.ne.s32.totalorder %s122, %s136
      %p138 = scmp.eq.s32.totalorder %s28, 0
      %p139 = por %p137, %p138
      %s141 = sadd.s32 %s140, 1
      %p144 = scmp.eq.s32.totalorder %s22, 1
      %p145 = scmp.ne.s32.totalorder %s140, %s142
      %p146 = scmp.eq.s32.totalorder %s22, 0
      %p147 = por %p145, %p146
      %p148 = scmp.ne.s32.totalorder %s140, %s142
      %p149 = scmp.eq.s32.totalorder %s27, 1
      %p150 = por %p148, %p149
      %p151 = scmp.ne.s32.totalorder %s142, %s143
      %p152 = scmp.eq.s32.totalorder %s27, 0
      %p153 = por %p151, %p152
      %p154 = scmp.ne.s32.totalorder %s142, %s143
      %p155 = scmp.eq.s32.totalorder %s28, 1
      %p156 = por %p154, %p155
      %p158 = scmp.ne.s32.totalorder %s143, %s157
      %p159 = scmp.eq.s32.totalorder %s28, 0
      %p160 = por %p158, %p159
      %s162 = sadd.s32 %s161, 1
      %p165 = scmp.eq.s32.totalorder %s22, 1
      %p166 = scmp.ne.s32.totalorder %s161, %s163
      %p167 = scmp.eq.s32.totalorder %s22, 0
      %p168 = por %p166, %p167
      %p169 = scmp.ne.s32.totalorder %s161, %s163
      %p170 = scmp.eq.s32.totalorder %s27, 1
      %p171 = por %p169, %p170
      %p172 = scmp.ne.s32.totalorder %s163, %s164
      %p173 = scmp.eq.s32.totalorder %s27, 0
      %p174 = por %p172, %p173
      %p175 = scmp.ne.s32.totalorder %s163, %s164
      %p176 = scmp.eq.s32.totalorder %s28, 1
      %p177 = por %p175, %p176
      %p179 = scmp.ne.s32.totalorder %s164, %s178
      %p180 = scmp.eq.s32.totalorder %s28, 0
      %p181 = por %p179, %p180
      %s182 = ssub.s32 %s22, %s29
      %p183 = scmp.eq.s32.totalorder %s182, 0
      %s185 = sadd.s32 %s184, 1
      %s186 = scalar_select %p183, %s184, %s185
      %p189 = pneg %p183
      %p190 = scmp.eq.s32.totalorder %s22, 1
      %p191 = por %p189, %p190
      %p192 = scmp.ne.s32.totalorder %s184, %s187
      %p193 = scmp.eq.s32.totalorder %s22, 0
      %p194 = por %p192, %p193
      %p195 = scmp.ne.s32.totalorder %s184, %s187
      %p196 = scmp.eq.s32.totalorder %s27, 1
      %p197 = por %p195, %p196
      %p198 = scmp.ne.s32.totalorder %s187, %s188
      %p199 = scmp.eq.s32.totalorder %s27, 0
      %p200 = por %p198, %p199
      %p201 = scmp.ne.s32.totalorder %s187, %s188
      %p202 = scmp.eq.s32.totalorder %s28, 1
      %p203 = por %p201, %p202
      %p205 = scmp.ne.s32.totalorder %s188, %s204
      %p206 = scmp.eq.s32.totalorder %s28, 0
      %p207 = por %p205, %p206
      %p208 = scmp.le.s32.totalorder 1, %s22
      %p209 = scmp.lt.s32.totalorder %s22, 3
      %p210 = pnand %p208, %p209
      %p211 = pneg %p210
      // Predicated region
      $region9: #{tpu_custom_call.1} parent=5 // pred_check
        _
      $region10: #{tpu_custom_call.1} parent=5 // pred_check_branch
        %213 = sbr.rel (%p210) target = $region12
      $region11: #{tpu_custom_call.1} parent=5 // pred_region
        %s214 = ssub.s32 %s22, 1
        // Predicated region
        $region13: #{tpu_custom_call.1} parent=11 // pred_check
          %p215 = pneg %p69
        $region14: #{tpu_custom_call.1} parent=11 // pred_check_branch
          %217 = sbr.rel (%p215) target = $region16
        $region15: #{tpu_custom_call.1} parent=11 // pred_region
          %s219 = ssub.s32 288, 288
          %220 = vsyncadd [#allocation7], %s219
          %s221 = sshll.u32 [#allocation6], 4
          %s222 = int_to_ptr.vmem [resolvable:$true] %s221
          %227 = dma.hbm_to_vmem [thread:$0]  %s1, 288, %s222, [#allocation7], 32, 32, 2
        $region16: #{tpu_custom_call.1} parent=11 // pred_fallthru
          _
        // Predicated region
        $region17: #{tpu_custom_call.1} parent=11 // pred_check
          %p228 = pneg %p90
        $region18: #{tpu_custom_call.1} parent=11 // pred_check_branch
          %230 = sbr.rel (%p228) target = $region20
        $region19: #{tpu_custom_call.1} parent=11 // pred_region
          %s232 = ssub.s32 16, 16
          %233 = vsyncadd [#allocation7], %s232
          %s235 = sshll.u32 [#allocation8], 4
          %s236 = int_to_ptr.vmem [resolvable:$true] %s235
          %238 = dma.hbm_to_vmem [thread:$0]  %s2, 16, %s236, [#allocation7]
        $region20: #{tpu_custom_call.1} parent=11 // pred_fallthru
          _
        // Predicated region
        $region21: #{tpu_custom_call.1} parent=11 // pred_check
          %p239 = pneg %p111
        $region22: #{tpu_custom_call.1} parent=11 // pred_check_branch
          %241 = sbr.rel (%p239) target = $region24
        $region23: #{tpu_custom_call.1} parent=11 // pred_region
          %s243 = ssub.s32 9216, 9216
          %244 = vsyncadd [#allocation10], %s243
          %s245 = sshll.u32 [#allocation9], 4
          %s246 = int_to_ptr.vmem [resolvable:$true] %s245
          %251 = dma.hbm_to_vmem [thread:$0]  %s3, 9216, %s246, [#allocation10], 64, 64, 4
        $region24: #{tpu_custom_call.1} parent=11 // pred_fallthru
          _
        // Predicated region
        $region25: #{tpu_custom_call.1} parent=11 // pred_check
          %p252 = pneg %p132
        $region26: #{tpu_custom_call.1} parent=11 // pred_check_branch
          %254 = sbr.rel (%p252) target = $region28
        $region27: #{tpu_custom_call.1} parent=11 // pred_region
          %s256 = ssub.s32 32, 32
          %257 = vsyncadd [#allocation10], %s256
          %s259 = sshll.u32 [#allocation11], 4
          %s260 = int_to_ptr.vmem [resolvable:$true] %s259
          %262 = dma.hbm_to_vmem [thread:$0]  %s4, 32, %s260, [#allocation10]
        $region28: #{tpu_custom_call.1} parent=11 // pred_fallthru
          _
        // Predicated region
        $region29: #{tpu_custom_call.1} parent=11 // pred_check
          %p263 = pneg %p153
        $region30: #{tpu_custom_call.1} parent=11 // pred_check_branch
          %265 = sbr.rel (%p263) target = $region32
        $region31: #{tpu_custom_call.1} parent=11 // pred_region
          %s267 = ssub.s32 16, 16
          %268 = vsyncadd [#allocation13], %s267
          %s270 = sshll.u32 [#allocation12], 4
          %s271 = int_to_ptr.vmem [resolvable:$true] %s270
          %273 = dma.hbm_to_vmem [thread:$0]  %s5, 16, %s271, [#allocation13]
        $region32: #{tpu_custom_call.1} parent=11 // pred_fallthru
          _
        // Predicated region
        $region33: #{tpu_custom_call.1} parent=11 // pred_check
          %p274 = pneg %p174
        $region34: #{tpu_custom_call.1} parent=11 // pred_check_branch
          %276 = sbr.rel (%p274) target = $region36
        $region35: #{tpu_custom_call.1} parent=11 // pred_region
          %s278 = ssub.s32 5248, 5248
          %279 = vsyncadd [#allocation13], %s278
          %s280 = sshll.u32 [#allocation14], 4
          %s281 = int_to_ptr.vmem [resolvable:$true] %s280
          %286 = dma.hbm_to_vmem [thread:$0]  %s6, 5248, %s281, [#allocation13], 128, 128, 8
        $region36: #{tpu_custom_call.1} parent=11 // pred_fallthru
          _
      $region12: #{tpu_custom_call.1} parent=5 // pred_fallthru
        _
      %p287 = scmp.lt.s32.totalorder %s22, 2
      // Predicated region
      $region37: #{tpu_custom_call.1} parent=5 // pred_check
        %p288 = pneg %p287
      $region38: #{tpu_custom_call.1} parent=5 // pred_check_branch
        %290 = sbr.rel (%p288) target = $region40
      $region39: #{tpu_custom_call.1} parent=5 // pred_region
        // Predicated region
        $region41: #{tpu_custom_call.1} parent=39 // pred_check
          %p291 = pneg %p42
        $region42: #{tpu_custom_call.1} parent=39 // pred_check_branch
          %293 = sbr.rel (%p291) target = $region44
        $region43: #{tpu_custom_call.1} parent=39 // pred_region
          %s294 = sand.u32 %s32, 1
          %s295 = scalar_lea.sflag [#allocation4], %s294
          %s296 = sand.u32 %s32, 1
          %s297 = smul.addr %s296, 184
          %s298 = scalar_lea.vmem [#allocation3], %s297
          %s300 = ssub.s32 2944, 2944
          %301 = vsyncadd %s295, %s300
          %s302 = smul.addr %s22, 46
          %s303 = smul.addr %s302, 64
          %s304 = scalar_lea.hbm %s0, %s303
          %s305 = sshll.u32 %s298, 4
          %s306 = int_to_ptr.vmem [resolvable:$true] %s305
          %311 = dma.hbm_to_vmem [thread:$0]  %s304, 2944, %s306, %s295, 64, 64, 4
        $region44: #{tpu_custom_call.1} parent=39 // pred_fallthru
          _
      $region40: #{tpu_custom_call.1} parent=5 // pred_fallthru
        _
      %p312 = scmp.le.s32.totalorder 1, %s22
      %p313 = scmp.lt.s32.totalorder %s22, 3
      %p314 = pnand %p312, %p313
      %p315 = pneg %p314
      // Predicated region
      $region45: #{tpu_custom_call.1} parent=5 // pred_check
        _
      $region46: #{tpu_custom_call.1} parent=5 // pred_check_branch
        %317 = sbr.rel (%p314) target = $region48
      $region47: #{tpu_custom_call.1} parent=5 // pred_region
        %s318 = ssub.s32 %s22, 1
        %s319 = sand.u32 %s35, 1
        %s320 = scalar_lea.sflag [#allocation4], %s319
        %s321 = sand.u32 %s35, 1
        %s322 = smul.addr %s321, 184
        %s323 = scalar_lea.vmem [#allocation3], %s322
        // Predicated region
        $region49: #{tpu_custom_call.1} parent=47 // pred_check
          %p324 = pneg %p48
        $region50: #{tpu_custom_call.1} parent=47 // pred_check_branch
          %326 = sbr.rel (%p324) target = $region52
        $region51: #{tpu_custom_call.1} parent=47 // pred_region
          %327 = dma.done %s320, 2944
        $region52: #{tpu_custom_call.1} parent=47 // pred_fallthru
          _
        // Predicated region
        $region53: #{tpu_custom_call.1} parent=47 // pred_check
          %p328 = pneg %p69
        $region54: #{tpu_custom_call.1} parent=47 // pred_check_branch
          %330 = sbr.rel (%p328) target = $region56
        $region55: #{tpu_custom_call.1} parent=47 // pred_region
          %331 = dma.done [#allocation7], 288
        $region56: #{tpu_custom_call.1} parent=47 // pred_fallthru
          _
        // Predicated region
        $region57: #{tpu_custom_call.1} parent=47 // pred_check
          %p332 = pneg %p90
        $region58: #{tpu_custom_call.1} parent=47 // pred_check_branch
          %334 = sbr.rel (%p332) target = $region60
        $region59: #{tpu_custom_call.1} parent=47 // pred_region
          %335 = dma.done [#allocation7], 16
        $region60: #{tpu_custom_call.1} parent=47 // pred_fallthru
          _
        // Predicated region
        $region61: #{tpu_custom_call.1} parent=47 // pred_check
          %p336 = pneg %p111
        $region62: #{tpu_custom_call.1} parent=47 // pred_check_branch
          %338 = sbr.rel (%p336) target = $region64
        $region63: #{tpu_custom_call.1} parent=47 // pred_region
          %339 = dma.done [#allocation10], 9216
        $region64: #{tpu_custom_call.1} parent=47 // pred_fallthru
          _
        // Predicated region
        $region65: #{tpu_custom_call.1} parent=47 // pred_check
          %p340 = pneg %p132
        $region66: #{tpu_custom_call.1} parent=47 // pred_check_branch
          %342 = sbr.rel (%p340) target = $region68
        $region67: #{tpu_custom_call.1} parent=47 // pred_region
          %343 = dma.done [#allocation10], 32
        $region68: #{tpu_custom_call.1} parent=47 // pred_fallthru
          _
        // Predicated region
        $region69: #{tpu_custom_call.1} parent=47 // pred_check
          %p344 = pneg %p153
        $region70: #{tpu_custom_call.1} parent=47 // pred_check_branch
          %346 = sbr.rel (%p344) target = $region72
        $region71: #{tpu_custom_call.1} parent=47 // pred_region
          %347 = dma.done [#allocation13], 16
        $region72: #{tpu_custom_call.1} parent=47 // pred_fallthru
          _
        // Predicated region
        $region73: #{tpu_custom_call.1} parent=47 // pred_check
          %p348 = pneg %p174
        $region74: #{tpu_custom_call.1} parent=47 // pred_check_branch
          %350 = sbr.rel (%p348) target = $region76
        $region75: #{tpu_custom_call.1} parent=47 // pred_region
          %351 = dma.done [#allocation13], 5248
        $region76: #{tpu_custom_call.1} parent=47 // pred_fallthru
          _
        %s352 = sand.u32 %s35, 1
        %s353 = scalar_lea.sflag [#allocation4], %s352
        %s354 = sand.u32 %s35, 1
        %s355 = smul.addr %s354, 184
        %s356 = scalar_lea.vmem [#allocation3], %s355
        %p357 = pneg %p48
        %p358 = pneg %p45
        %p359 = pneg %p69
        %p360 = pneg %p66
        %p361 = pneg %p90
        %p362 = pneg %p87
        %p363 = pneg %p111
        %p364 = pneg %p108
        %p365 = pneg %p132
        %p366 = pneg %p129
        %p367 = pneg %p153
        %p368 = pneg %p150
        %p369 = pneg %p174
        %p370 = pneg %p171
        %p371 = pneg %p200
        %p372 = pneg %p197
        %s373 = sand.u32 %s187, 1
        %s374 = scalar_lea.sflag [#allocation5], %s373
        %s375 = sand.u32 %s187, 1
        %s376 = smul.addr %s375, 328
        %s377 = scalar_lea.vmem [#allocation15], %s376
        %v379 = vld [vmem:[%s323] sm:$0xf]
        %v380 = vld [vmem:[%s323 + $0x4] sm:$0xf]
        %v381 = vld [vmem:[%s323 + $0x8] sm:$0xf]
        %v382 = vld [vmem:[%s323 + $0xc] sm:$0xf]
        %v383 = vld [vmem:[%s323 + $0x10] sm:$0xf]
        %v384 = vld [vmem:[%s323 + $0x14] sm:$0xf]
        %v385 = vld [vmem:[%s323 + $0x18] sm:$0xf]
        %v386 = vld [vmem:[%s323 + $0x1c] sm:$0xf]
        %v387 = vld [vmem:[%s323 + $0x20] sm:$0xf]
        %v388 = vld [vmem:[%s323 + $0x24] sm:$0xf]
        %v389 = vld [vmem:[%s323 + $0x28] sm:$0xf]
        %v390 = vld [vmem:[%s323 + $0x2c] sm:$0xf]
        %v391 = vld [vmem:[%s323 + $0x30] sm:$0xf]
        %v392 = vld [vmem:[%s323 + $0x34] sm:$0xf]
        %v393 = vld [vmem:[%s323 + $0x38] sm:$0xf]
        %v394 = vld [vmem:[%s323 + $0x3c] sm:$0xf]
        %v395 = vld [vmem:[%s323 + $0x40] sm:$0xf]
        %v396 = vld [vmem:[%s323 + $0x44] sm:$0xf]
        %v397 = vld [vmem:[%s323 + $0x48] sm:$0xf]
        %v398 = vld [vmem:[%s323 + $0x4c] sm:$0xf]
        %v399 = vld [vmem:[%s323 + $0x50] sm:$0xf]
        %v400 = vld [vmem:[%s323 + $0x54] sm:$0xf]
        %v401 = vld [vmem:[%s323 + $0x58] sm:$0xf]
        %v402 = vld [vmem:[%s323 + $0x5c] sm:$0xf]
        %v403 = vld [vmem:[%s323 + $0x60] sm:$0xf]
        %v404 = vld [vmem:[%s323 + $0x64] sm:$0xf]
        %v405 = vld [vmem:[%s323 + $0x68] sm:$0xf]
        %v406 = vld [vmem:[%s323 + $0x6c] sm:$0xf]
        %v407 = vld [vmem:[%s323 + $0x70] sm:$0xf]
        %v408 = vld [vmem:[%s323 + $0x74] sm:$0xf]
        %v409 = vld [vmem:[%s323 + $0x78] sm:$0xf]
        %v410 = vld [vmem:[%s323 + $0x7c] sm:$0xf]
        %v411 = vld [vmem:[%s323 + $0x80] sm:$0xf]
        %v412 = vld [vmem:[%s323 + $0x84] sm:$0xf]
        %v413 = vld [vmem:[%s323 + $0x88] sm:$0xf]
        %v414 = vld [vmem:[%s323 + $0x8c] sm:$0xf]
        %v415 = vld [vmem:[%s323 + $0x90] sm:$0xf]
        %v416 = vld [vmem:[%s323 + $0x94] sm:$0xf]
        %v417 = vld [vmem:[%s323 + $0x98] sm:$0xf]
        %v418 = vld [vmem:[%s323 + $0x9c] sm:$0xf]
        %v419 = vld [vmem:[%s323 + $0xa0] sm:$0xf]
        %v420 = vld [vmem:[#allocation6] sm:$0x3]
        %v421 = vld [vmem:[%s323 + $0xa4] sm:$0x1]
        %s422 = scalar_lea.vmem [#allocation6], 2
        %v423 = vld [vmem:[%s422] sm:$0x3]
        %v466 = vunpack.c.l.b16 %v379
        %v467 = vunpack.c.l.b16 %v380
        %v468 = vunpack.c.l.b16 %v381
        %v469 = vunpack.c.l.b16 %v382
        %v470 = vunpack.c.l.b16 %v383
        %v471 = vunpack.c.l.b16 %v384
        %v472 = vunpack.c.l.b16 %v385
        %v473 = vunpack.c.l.b16 %v386
        %v474 = vunpack.c.l.b16 %v387
        %v475 = vunpack.c.l.b16 %v388
        %v476 = vunpack.c.l.b16 %v389
        %v477 = vunpack.c.l.b16 %v390
        %v478 = vunpack.c.l.b16 %v391
        %v479 = vunpack.c.l.b16 %v392
        %v480 = vunpack.c.l.b16 %v393
        %v481 = vunpack.c.l.b16 %v394
        %v482 = vunpack.c.l.b16 %v395
        %v483 = vunpack.c.l.b16 %v396
        %v484 = vunpack.c.l.b16 %v397
        %v485 = vunpack.c.l.b16 %v398
        %v486 = vunpack.c.l.b16 %v399
        %v487 = vunpack.c.l.b16 %v400
        %v488 = vunpack.c.l.b16 %v401
        %v489 = vunpack.c.l.b16 %v402
        %v490 = vunpack.c.l.b16 %v403
        %v491 = vunpack.c.l.b16 %v404
        %v492 = vunpack.c.l.b16 %v405
        %v493 = vunpack.c.l.b16 %v406
        %v494 = vunpack.c.l.b16 %v407
        %v495 = vunpack.c.l.b16 %v408
        %v496 = vunpack.c.l.b16 %v409
        %v497 = vunpack.c.l.b16 %v410
        %v498 = vunpack.c.l.b16 %v411
        %v499 = vunpack.c.l.b16 %v412
        %v500 = vunpack.c.l.b16 %v413
        %v501 = vunpack.c.l.b16 %v414
        %v502 = vunpack.c.l.b16 %v415
        %v503 = vunpack.c.l.b16 %v416
        %v504 = vunpack.c.l.b16 %v417
        %v505 = vunpack.c.l.b16 %v418
        %v506 = vunpack.c.l.b16 %v419
        %v507 = vunpack.c.l.b16 %v421
        %v508 = vpack.c.b16 %v467, %v466
        %v509 = vpack.c.b16 %v469, %v468
        %v510 = vpack.c.b16 %v471, %v470
        %v511 = vpack.c.b16 %v473, %v472
        %v512 = vpack.c.b16 %v475, %v474
        %v513 = vpack.c.b16 %v477, %v476
        %v514 = vpack.c.b16 %v479, %v478
        %v515 = vpack.c.b16 %v481, %v480
        %v516 = vpack.c.b16 %v483, %v482
        %v517 = vpack.c.b16 %v485, %v484
        %v518 = vpack.c.b16 %v487, %v486
        %v519 = vpack.c.b16 %v489, %v488
        %v520 = vpack.c.b16 %v491, %v490
        %v521 = vpack.c.b16 %v493, %v492
        %v522 = vpack.c.b16 %v495, %v494
        %v523 = vpack.c.b16 %v497, %v496
        %v524 = vpack.c.b16 %v499, %v498
        %v525 = vpack.c.b16 %v501, %v500
        %v526 = vpack.c.b16 %v503, %v502
        %v527 = vpack.c.b16 %v505, %v504
        %v528 = vpack.c.b16 %v507, %v506
        %vm529 = vsmask.f32 7424
        %v531 = vshrl.u32 %v508, 16
        %v533 = vshll.u32 %v508, 16
        %v535 = vrot.slane %v533, 1
        %v536 = vor.u32 %v531, %v535
        %v538 = vshll.u32 %v509, 16
        %v540 = vrot.slane %v538, 1
        %v541 = vsel %vm529, %v536, %v540
        %v542 = vshrl.u32 %v509, 16
        %v544 = vor.u32 %v542, %v540
        %v546 = vshll.u32 %v510, 16
        %v548 = vrot.slane %v546, 1
        %v549 = vsel %vm529, %v544, %v548
        %v550 = vshrl.u32 %v510, 16
        %v552 = vor.u32 %v550, %v548
        %v554 = vshll.u32 %v511, 16
        %v556 = vrot.slane %v554, 1
        %v557 = vsel %vm529, %v552, %v556
        %v558 = vshrl.u32 %v511, 16
        %v560 = vor.u32 %v558, %v556
        %v562 = vshll.u32 %v512, 16
        %v564 = vrot.slane %v562, 1
        %v565 = vsel %vm529, %v560, %v564
        %v566 = vshrl.u32 %v512, 16
        %v568 = vor.u32 %v566, %v564
        %v570 = vshll.u32 %v513, 16
        %v572 = vrot.slane %v570, 1
        %v573 = vsel %vm529, %v568, %v572
        %v574 = vshrl.u32 %v513, 16
        %v576 = vor.u32 %v574, %v572
        %v578 = vshll.u32 %v514, 16
        %v580 = vrot.slane %v578, 1
        %v581 = vsel %vm529, %v576, %v580
        %v582 = vshrl.u32 %v514, 16
        %v584 = vor.u32 %v582, %v580
        %v586 = vshll.u32 %v515, 16
        %v588 = vrot.slane %v586, 1
        %v589 = vsel %vm529, %v584, %v588
        %v590 = vshrl.u32 %v515, 16
        %v592 = vor.u32 %v590, %v588
        %v594 = vshll.u32 %v516, 16
        %v596 = vrot.slane %v594, 1
        %v597 = vsel %vm529, %v592, %v596
        %v598 = vshrl.u32 %v516, 16
        %v600 = vor.u32 %v598, %v596
        %v602 = vshll.u32 %v517, 16
        %v604 = vrot.slane %v602, 1
        %v605 = vsel %vm529, %v600, %v604
        %v606 = vshrl.u32 %v517, 16
        %v608 = vor.u32 %v606, %v604
        %v610 = vshll.u32 %v518, 16
        %v612 = vrot.slane %v610, 1
        %v613 = vsel %vm529, %v608, %v612
        %v614 = vshrl.u32 %v518, 16
        %v616 = vor.u32 %v614, %v612
        %v618 = vshll.u32 %v519, 16
        %v620 = vrot.slane %v618, 1
        %v621 = vsel %vm529, %v616, %v620
        %v622 = vshrl.u32 %v519, 16
        %v624 = vor.u32 %v622, %v620
        %v626 = vshll.u32 %v520, 16
        %v628 = vrot.slane %v626, 1
        %v629 = vsel %vm529, %v624, %v628
        %v630 = vshrl.u32 %v520, 16
        %v632 = vor.u32 %v630, %v628
        %v634 = vshll.u32 %v521, 16
        %v636 = vrot.slane %v634, 1
        %v637 = vsel %vm529, %v632, %v636
        %v638 = vshrl.u32 %v521, 16
        %v640 = vor.u32 %v638, %v636
        %v642 = vshll.u32 %v522, 16
        %v644 = vrot.slane %v642, 1
        %v645 = vsel %vm529, %v640, %v644
        %v646 = vshrl.u32 %v522, 16
        %v648 = vor.u32 %v646, %v644
        %v650 = vshll.u32 %v523, 16
        %v652 = vrot.slane %v650, 1
        %v653 = vsel %vm529, %v648, %v652
        %v654 = vshrl.u32 %v523, 16
        %v656 = vor.u32 %v654, %v652
        %v658 = vshll.u32 %v524, 16
        %v660 = vrot.slane %v658, 1
        %v661 = vsel %vm529, %v656, %v660
        %v662 = vshrl.u32 %v524, 16
        %v664 = vor.u32 %v662, %v660
        %v666 = vshll.u32 %v525, 16
        %v668 = vrot.slane %v666, 1
        %v669 = vsel %vm529, %v664, %v668
        %v670 = vshrl.u32 %v525, 16
        %v672 = vor.u32 %v670, %v668
        %v674 = vshll.u32 %v526, 16
        %v676 = vrot.slane %v674, 1
        %v677 = vsel %vm529, %v672, %v676
        %v678 = vshrl.u32 %v526, 16
        %v680 = vor.u32 %v678, %v676
        %v682 = vshll.u32 %v527, 16
        %v684 = vrot.slane %v682, 1
        %v685 = vsel %vm529, %v680, %v684
        %v686 = vshrl.u32 %v527, 16
        %v688 = vor.u32 %v686, %v684
        %v690 = vshll.u32 %v528, 16
        %v692 = vrot.slane %v690, 1
        %v693 = vsel %vm529, %v688, %v692
        %v694 = vshrl.u32 %v528, 16
        %v696 = vor.u32 %v694, %v692
        %vm697 = vcmask 31744
        %v699 = vsel %vm697, %v541, 0
        %v702 = vsel %vm697, %v549, 0
        %v705 = vsel %vm697, %v557, 0
        %v708 = vsel %vm697, %v565, 0
        %v711 = vsel %vm697, %v573, 0
        %v714 = vsel %vm697, %v581, 0
        %v717 = vsel %vm697, %v589, 0
        %v720 = vsel %vm697, %v597, 0
        %v723 = vsel %vm697, %v605, 0
        %v726 = vsel %vm697, %v613, 0
        %v729 = vsel %vm697, %v621, 0
        %v732 = vsel %vm697, %v629, 0
        %v735 = vsel %vm697, %v637, 0
        %v738 = vsel %vm697, %v645, 0
        %v741 = vsel %vm697, %v653, 0
        %v744 = vsel %vm697, %v661, 0
        %v747 = vsel %vm697, %v669, 0
        %v750 = vsel %vm697, %v677, 0
        %v753 = vsel %vm697, %v685, 0
        %v756 = vsel %vm697, %v693, 0
        %v759 = vsel %vm697, %v696, 0
        %vm761 = vcmask 1041408
        %v763 = vsel %vm761, %v423, 0
        %765 = vmatprep.subr.bf16.mxu0 0
        %766 = vmatpush1.bf16.msra.mxu0 %v763
        %767 = vmatprep.subr.bf16.mxu0 0
        %768 = vmatpush1.bf16.msra.mxu0 0
        %769 = vmatprep.subr.bf16.mxu0 0
        %770 = vmatpush1.bf16.msra.mxu0 0
        %771 = vmatprep.subr.bf16.mxu0 0
        %772 = vmatpush1.bf16.msra.mxu0 0
        %773 = vmatprep.subr.bf16.mxu0 0
        %774 = vmatpush1.bf16.msra.mxu0 0
        %775 = vmatprep.subr.bf16.mxu0 0
        %776 = vmatpush1.bf16.msra.mxu0 0
        %777 = vmatprep.subr.bf16.mxu0 0
        %778 = vmatpush1.bf16.msra.mxu0 0
        %779 = vmatprep.subr.bf16.mxu0 0
        %780 = vmatpush1.bf16.msra.mxu0 0
        %781 = vmatprep.subr.bf16.mxu0 0
        %782 = vmatpush1.bf16.msra.mxu0 0
        %783 = vmatprep.subr.bf16.mxu0 0
        %784 = vmatpush1.bf16.msra.mxu0 0
        %785 = vmatprep.subr.bf16.mxu0 0
        %786 = vmatpush1.bf16.msra.mxu0 0
        %787 = vmatprep.subr.bf16.mxu0 0
        %788 = vmatpush1.bf16.msra.mxu0 0
        %789 = vmatprep.subr.bf16.mxu0 0
        %790 = vmatpush1.bf16.msra.mxu0 0
        %791 = vmatprep.subr.bf16.mxu0 0
        %792 = vmatpush1.bf16.msra.mxu0 0
        %793 = vmatprep.subr.bf16.mxu0 0
        %794 = vmatpush1.bf16.msra.mxu0 0
        %795 = vmatprep.subr.bf16.mxu0 0
        %796 = vmatpush1.bf16.msra.mxu0 0
        %797 = vmatprep.mubr.bf16.mxu0 0
        %798 = vmatmul.mubr.bf16.gmra.mrb[0].mxu0 %v699
        %v799 = vpop.f32.mrb[0].mxu0
        %v800 = vadd.f32 0.0, %v799
        %v801 = vpop.f32.mrb[0].mxu0
        %v802 = vpop.f32.mrb[0].mxu0
        %v803 = vadd.f32 0.0, %v802
        %v804 = vpop.f32.mrb[0].mxu0
        %805 = vmatprep.mubr.bf16.mxu0 0
        %806 = vmatmul.mubr.bf16.gmra.mrb[0].mxu0 %v702
        %v807 = vpop.f32.mrb[0].mxu0
        %v808 = vadd.f32 0.0, %v807
        %v809 = vpop.f32.mrb[0].mxu0
        %v810 = vpop.f32.mrb[0].mxu0
        %v811 = vadd.f32 0.0, %v810
        %v812 = vpop.f32.mrb[0].mxu0
        %813 = vmatprep.mubr.bf16.mxu0 0
        %814 = vmatmul.mubr.bf16.gmra.mrb[0].mxu0 %v705
        %v815 = vpop.f32.mrb[0].mxu0
        %v816 = vadd.f32 0.0, %v815
        %v817 = vpop.f32.mrb[0].mxu0
        %v818 = vpop.f32.mrb[0].mxu0
        %v819 = vadd.f32 0.0, %v818
        %v820 = vpop.f32.mrb[0].mxu0
        %821 = vmatprep.mubr.bf16.mxu0 0
        %822 = vmatmul.mubr.bf16.gmra.mrb[0].mxu0 %v708
        %v823 = vpop.f32.mrb[0].mxu0
        %v824 = vadd.f32 0.0, %v823
        %v825 = vpop.f32.mrb[0].mxu0
        %v826 = vpop.f32.mrb[0].mxu0
        %v827 = vadd.f32 0.0, %v826
        %v828 = vpop.f32.mrb[0].mxu0
        %829 = vmatprep.mubr.bf16.mxu0 0
        %830 = vmatmul.mubr.bf16.gmra.mrb[0].mxu0 %v711
        %v831 = vpop.f32.mrb[0].mxu0
        %v832 = vadd.f32 0.0, %v831
        %v833 = vpop.f32.mrb[0].mxu0
        %v834 = vpop.f32.mrb[0].mxu0
        %v835 = vadd.f32 0.0, %v834
        %v836 = vpop.f32.mrb[0].mxu0
        %837 = vmatprep.mubr.bf16.mxu0 0
        %838 = vmatmul.mubr.bf16.gmra.mrb[0].mxu0 %v714
        %v839 = vpop.f32.mrb[0].mxu0
        %v840 = vadd.f32 0.0, %v839
        %v841 = vpop.f32.mrb[0].mxu0
        %v842 = vpop.f32.mrb[0].mxu0
        %v843 = vadd.f32 0.0, %v842
        %v844 = vpop.f32.mrb[0].mxu0
        %845 = vmatprep.mubr.bf16.mxu0 0
        %846 = vmatmul.mubr.bf16.gmra.mrb[0].mxu0 %v717
        %v847 = vpop.f32.mrb[0].mxu0
        %v848 = vadd.f32 0.0, %v847
        %v849 = vpop.f32.mrb[0].mxu0
        %v850 = vpop.f32.mrb[0].mxu0
        %v851 = vadd.f32 0.0, %v850
        %v852 = vpop.f32.mrb[0].mxu0
        %853 = vmatprep.mubr.bf16.mxu0 0
        %854 = vmatmul.mubr.bf16.gmra.mrb[0].mxu0 %v720
        %v855 = vpop.f32.mrb[0].mxu0
        %v856 = vadd.f32 0.0, %v855
        %v857 = vpop.f32.mrb[0].mxu0
        %v858 = vpop.f32.mrb[0].mxu0
        %v859 = vadd.f32 0.0, %v858
        %v860 = vpop.f32.mrb[0].mxu0
        %861 = vmatprep.mubr.bf16.mxu0 0
        %862 = vmatmul.mubr.bf16.gmra.mrb[0].mxu0 %v723
        %v863 = vpop.f32.mrb[0].mxu0
        %v864 = vadd.f32 0.0, %v863
        %v865 = vpop.f32.mrb[0].mxu0
        %v866 = vpop.f32.mrb[0].mxu0
        %v867 = vadd.f32 0.0, %v866
        %v868 = vpop.f32.mrb[0].mxu0
        %869 = vmatprep.mubr.bf16.mxu0 0
        %870 = vmatmul.mubr.bf16.gmra.mrb[0].mxu0 %v726
        %v871 = vpop.f32.mrb[0].mxu0
        %v872 = vadd.f32 0.0, %v871
        %v873 = vpop.f32.mrb[0].mxu0
        %v874 = vpop.f32.mrb[0].mxu0
        %v875 = vadd.f32 0.0, %v874
        %v876 = vpop.f32.mrb[0].mxu0
        %877 = vmatprep.mubr.bf16.mxu0 0
        %878 = vmatmul.mubr.bf16.gmra.mrb[0].mxu0 %v729
        %v879 = vpop.f32.mrb[0].mxu0
        %v880 = vadd.f32 0.0, %v879
        %v881 = vpop.f32.mrb[0].mxu0
        %v882 = vpop.f32.mrb[0].mxu0
        %v883 = vadd.f32 0.0, %v882
        %v884 = vpop.f32.mrb[0].mxu0
        %885 = vmatprep.mubr.bf16.mxu0 0
        %886 = vmatmul.mubr.bf16.gmra.mrb[0].mxu0 %v732
        %v887 = vpop.f32.mrb[0].mxu0
        %v888 = vadd.f32 0.0, %v887
        %v889 = vpop.f32.mrb[0].mxu0
        %v890 = vpop.f32.mrb[0].mxu0
        %v891 = vadd.f32 0.0, %v890
        %v892 = vpop.f32.mrb[0].mxu0
        %893 = vmatprep.mubr.bf16.mxu0 0
        %894 = vmatmul.mubr.bf16.gmra.mrb[0].mxu0 %v735
        %v895 = vpop.f32.mrb[0].mxu0
        %v896 = vadd.f32 0.0, %v895
        %v897 = vpop.f32.mrb[0].mxu0
        %v898 = vpop.f32.mrb[0].mxu0
        %v899 = vadd.f32 0.0, %v898
        %v900 = vpop.f32.mrb[0].mxu0
        %901 = vmatprep.mubr.bf16.mxu0 0
        %902 = vmatmul.mubr.bf16.gmra.mrb[0].mxu0 %v738
        %v903 = vpop.f32.mrb[0].mxu0
        %v904 = vadd.f32 0.0, %v903
        %v905 = vpop.f32.mrb[0].mxu0
        %v906 = vpop.f32.mrb[0].mxu0
        %v907 = vadd.f32 0.0, %v906
        %v908 = vpop.f32.mrb[0].mxu0
        %909 = vmatprep.mubr.bf16.mxu0 0
        %910 = vmatmul.mubr.bf16.gmra.mrb[0].mxu0 %v741
        %v911 = vpop.f32.mrb[0].mxu0
        %v912 = vadd.f32 0.0, %v911
        %v913 = vpop.f32.mrb[0].mxu0
        %v914 = vpop.f32.mrb[0].mxu0
        %v915 = vadd.f32 0.0, %v914
        %v916 = vpop.f32.mrb[0].mxu0
        %917 = vmatprep.mubr.bf16.mxu0 0
        %918 = vmatmul.mubr.bf16.gmra.mrb[0].mxu0 %v744
        %v919 = vpop.f32.mrb[0].mxu0
        %v920 = vadd.f32 0.0, %v919
        %v921 = vpop.f32.mrb[0].mxu0
        %v922 = vpop.f32.mrb[0].mxu0
        %v923 = vadd.f32 0.0, %v922
        %v924 = vpop.f32.mrb[0].mxu0
        %925 = vmatprep.mubr.bf16.mxu0 0
        %926 = vmatmul.mubr.bf16.gmra.mrb[0].mxu0 %v747
        %v927 = vpop.f32.mrb[0].mxu0
        %v928 = vadd.f32 0.0, %v927
        %v929 = vpop.f32.mrb[0].mxu0
        %v930 = vpop.f32.mrb[0].mxu0
        %v931 = vadd.f32 0.0, %v930
        %v932 = vpop.f32.mrb[0].mxu0
        %933 = vmatprep.mubr.bf16.mxu0 0
        %934 = vmatmul.mubr.bf16.gmra.mrb[0].mxu0 %v750
        %v935 = vpop.f32.mrb[0].mxu0
        %v936 = vadd.f32 0.0, %v935
        %v937 = vpop.f32.mrb[0].mxu0
        %v938 = vpop.f32.mrb[0].mxu0
        %v939 = vadd.f32 0.0, %v938
        %v940 = vpop.f32.mrb[0].mxu0
        %941 = vmatprep.mubr.bf16.mxu0 0
        %942 = vmatmul.mubr.bf16.gmra.mrb[0].mxu0 %v753
        %v943 = vpop.f32.mrb[0].mxu0
        %v944 = vadd.f32 0.0, %v943
        %v945 = vpop.f32.mrb[0].mxu0
        %v946 = vpop.f32.mrb[0].mxu0
        %v947 = vadd.f32 0.0, %v946
        %v948 = vpop.f32.mrb[0].mxu0
        %949 = vmatprep.mubr.bf16.mxu0 0
        %950 = vmatmul.mubr.bf16.gmra.mrb[0].mxu0 %v756
        %v951 = vpop.f32.mrb[0].mxu0
        %v952 = vadd.f32 0.0, %v951
        %v953 = vpop.f32.mrb[0].mxu0
        %v954 = vpop.f32.mrb[0].mxu0
        %v955 = vadd.f32 0.0, %v954
        %v956 = vpop.f32.mrb[0].mxu0
        %957 = vmatprep.mubr.bf16.mxu0 0
        %958 = vmatmul.mubr.bf16.gmra.mrb[0].mxu0 %v759
        %v959 = vpop.f32.mrb[0].mxu0
        %v960 = vadd.f32 0.0, %v959
        %v961 = vpop.f32.mrb[0].mxu0
        %v962 = vpop.f32.mrb[0].mxu0
        %v963 = vpop.f32.mrb[0].mxu0
        %964 = vdwg.mxu0
        %v965 = vpack.c.b16 %v506, %v506
        %v966 = vsel %vm697, %v508, 0
        %v968 = vsel %vm697, %v509, 0
        %v970 = vsel %vm697, %v510, 0
        %v972 = vsel %vm697, %v511, 0
        %v974 = vsel %vm697, %v512, 0
        %v976 = vsel %vm697, %v513, 0
        %v978 = vsel %vm697, %v514, 0
        %v980 = vsel %vm697, %v515, 0
        %v982 = vsel %vm697, %v516, 0
        %v984 = vsel %vm697, %v517, 0
        %v986 = vsel %vm697, %v518, 0
        %v988 = vsel %vm697, %v519, 0
        %v990 = vsel %vm697, %v520, 0
        %v992 = vsel %vm697, %v521, 0
        %v994 = vsel %vm697, %v522, 0
        %v996 = vsel %vm697, %v523, 0
        %v998 = vsel %vm697, %v524, 0
        %v1000 = vsel %vm697, %v525, 0
        %v1002 = vsel %vm697, %v526, 0
        %v1004 = vsel %vm697, %v527, 0
        %v1007 = vsel %vm697, %v965, 0
        %v1010 = vsel %vm761, %v420, 0
        %1012 = vmatprep.subr.bf16.mxu0 0
        %1013 = vmatpush1.bf16.msra.mxu0 %v1010
        %1014 = vmatprep.subr.bf16.mxu0 0
        %1015 = vmatpush1.bf16.msra.mxu0 0
        %1016 = vmatprep.subr.bf16.mxu0 0
        %1017 = vmatpush1.bf16.msra.mxu0 0
        %1018 = vmatprep.subr.bf16.mxu0 0
        %1019 = vmatpush1.bf16.msra.mxu0 0
        %1020 = vmatprep.subr.bf16.mxu0 0
        %1021 = vmatpush1.bf16.msra.mxu0 0
        %1022 = vmatprep.subr.bf16.mxu0 0
        %1023 = vmatpush1.bf16.msra.mxu0 0
        %1024 = vmatprep.subr.bf16.mxu0 0
        %1025 = vmatpush1.bf16.msra.mxu0 0
        %1026 = vmatprep.subr.bf16.mxu0 0
        %1027 = vmatpush1.bf16.msra.mxu0 0
        %1028 = vmatprep.subr.bf16.mxu0 0
        %1029 = vmatpush1.bf16.msra.mxu0 0
        %1030 = vmatprep.subr.bf16.mxu0 0
        %1031 = vmatpush1.bf16.msra.mxu0 0
        %1032 = vmatprep.subr.bf16.mxu0 0
        %1033 = vmatpush1.bf16.msra.mxu0 0
        %1034 = vmatprep.subr.bf16.mxu0 0
        %1035 = vmatpush1.bf16.msra.mxu0 0
        %1036 = vmatprep.subr.bf16.mxu0 0
        %1037 = vmatpush1.bf16.msra.mxu0 0
        %1038 = vmatprep.subr.bf16.mxu0 0
        %1039 = vmatpush1.bf16.msra.mxu0 0
        %1040 = vmatprep.subr.bf16.mxu0 0
        %1041 = vmatpush1.bf16.msra.mxu0 0
        %1042 = vmatprep.subr.bf16.mxu0 0
        %1043 = vmatpush1.bf16.msra.mxu0 0
        %1044 = vmatprep.mubr.bf16.mxu0 0
        %1045 = vmatmul.mubr.bf16.gmra.mrb[0].mxu0 %v966
        %v1046 = vpop.f32.mrb[0].mxu0
        %v1047 = vadd.f32 %v800, %v1046
        %v1048 = vpop.f32.mrb[0].mxu0
        %v1049 = vpop.f32.mrb[0].mxu0
        %v1050 = vadd.f32 %v803, %v1049
        %v1051 = vpop.f32.mrb[0].mxu0
        %1052 = vmatprep.mubr.bf16.mxu0 0
        %1053 = vmatmul.mubr.bf16.gmra.mrb[0].mxu0 %v968
        %v1054 = vpop.f32.mrb[0].mxu0
        %v1055 = vadd.f32 %v808, %v1054
        %v1056 = vpop.f32.mrb[0].mxu0
        %v1057 = vpop.f32.mrb[0].mxu0
        %v1058 = vadd.f32 %v811, %v1057
        %v1059 = vpop.f32.mrb[0].mxu0
        %1060 = vmatprep.mubr.bf16.mxu0 0
        %1061 = vmatmul.mubr.bf16.gmra.mrb[0].mxu0 %v970
        %v1062 = vpop.f32.mrb[0].mxu0
        %v1063 = vadd.f32 %v816, %v1062
        %v1064 = vpop.f32.mrb[0].mxu0
        %v1065 = vpop.f32.mrb[0].mxu0
        %v1066 = vadd.f32 %v819, %v1065
        %v1067 = vpop.f32.mrb[0].mxu0
        %1068 = vmatprep.mubr.bf16.mxu0 0
        %1069 = vmatmul.mubr.bf16.gmra.mrb[0].mxu0 %v972
        %v1070 = vpop.f32.mrb[0].mxu0
        %v1071 = vadd.f32 %v824, %v1070
        %v1072 = vpop.f32.mrb[0].mxu0
        %v1073 = vpop.f32.mrb[0].mxu0
        %v1074 = vadd.f32 %v827, %v1073
        %v1075 = vpop.f32.mrb[0].mxu0
        %1076 = vmatprep.mubr.bf16.mxu0 0
        %1077 = vmatmul.mubr.bf16.gmra.mrb[0].mxu0 %v974
        %v1078 = vpop.f32.mrb[0].mxu0
        %v1079 = vadd.f32 %v832, %v1078
        %v1080 = vpop.f32.mrb[0].mxu0
        %v1081 = vpop.f32.mrb[0].mxu0
        %v1082 = vadd.f32 %v835, %v1081
        %v1083 = vpop.f32.mrb[0].mxu0
        %1084 = vmatprep.mubr.bf16.mxu0 0
        %1085 = vmatmul.mubr.bf16.gmra.mrb[0].mxu0 %v976
        %v1086 = vpop.f32.mrb[0].mxu0
        %v1087 = vadd.f32 %v840, %v1086
        %v1088 = vpop.f32.mrb[0].mxu0
        %v1089 = vpop.f32.mrb[0].mxu0
        %v1090 = vadd.f32 %v843, %v1089
        %v1091 = vpop.f32.mrb[0].mxu0
        %1092 = vmatprep.mubr.bf16.mxu0 0
        %1093 = vmatmul.mubr.bf16.gmra.mrb[0].mxu0 %v978
        %v1094 = vpop.f32.mrb[0].mxu0
        %v1095 = vadd.f32 %v848, %v1094
        %v1096 = vpop.f32.mrb[0].mxu0
        %v1097 = vpop.f32.mrb[0].mxu0
        %v1098 = vadd.f32 %v851, %v1097
        %v1099 = vpop.f32.mrb[0].mxu0
        %1100 = vmatprep.mubr.bf16.mxu0 0
        %1101 = vmatmul.mubr.bf16.gmra.mrb[0].mxu0 %v980
        %v1102 = vpop.f32.mrb[0].mxu0
        %v1103 = vadd.f32 %v856, %v1102
        %v1104 = vpop.f32.mrb[0].mxu0
        %v1105 = vpop.f32.mrb[0].mxu0
        %v1106 = vadd.f32 %v859, %v1105
        %v1107 = vpop.f32.mrb[0].mxu0
        %1108 = vmatprep.mubr.bf16.mxu0 0
        %1109 = vmatmul.mubr.bf16.gmra.mrb[0].mxu0 %v982
        %v1110 = vpop.f32.mrb[0].mxu0
        %v1111 = vadd.f32 %v864, %v1110
        %v1112 = vpop.f32.mrb[0].mxu0
        %v1113 = vpop.f32.mrb[0].mxu0
        %v1114 = vadd.f32 %v867, %v1113
        %v1115 = vpop.f32.mrb[0].mxu0
        %1116 = vmatprep.mubr.bf16.mxu0 0
        %1117 = vmatmul.mubr.bf16.gmra.mrb[0].mxu0 %v984
        %v1118 = vpop.f32.mrb[0].mxu0
        %v1119 = vadd.f32 %v872, %v1118
        %v1120 = vpop.f32.mrb[0].mxu0
        %v1121 = vpop.f32.mrb[0].mxu0
        %v1122 = vadd.f32 %v875, %v1121
        %v1123 = vpop.f32.mrb[0].mxu0
        %1124 = vmatprep.mubr.bf16.mxu0 0
        %1125 = vmatmul.mubr.bf16.gmra.mrb[0].mxu0 %v986
        %v1126 = vpop.f32.mrb[0].mxu0
        %v1127 = vadd.f32 %v880, %v1126
        %v1128 = vpop.f32.mrb[0].mxu0
        %v1129 = vpop.f32.mrb[0].mxu0
        %v1130 = vadd.f32 %v883, %v1129
        %v1131 = vpop.f32.mrb[0].mxu0
        %1132 = vmatprep.mubr.bf16.mxu0 0
        %1133 = vmatmul.mubr.bf16.gmra.mrb[0].mxu0 %v988
        %v1134 = vpop.f32.mrb[0].mxu0
        %v1135 = vadd.f32 %v888, %v1134
        %v1136 = vpop.f32.mrb[0].mxu0
        %v1137 = vpop.f32.mrb[0].mxu0
        %v1138 = vadd.f32 %v891, %v1137
        %v1139 = vpop.f32.mrb[0].mxu0
        %1140 = vmatprep.mubr.bf16.mxu0 0
        %1141 = vmatmul.mubr.bf16.gmra.mrb[0].mxu0 %v990
        %v1142 = vpop.f32.mrb[0].mxu0
        %v1143 = vadd.f32 %v896, %v1142
        %v1144 = vpop.f32.mrb[0].mxu0
        %v1145 = vpop.f32.mrb[0].mxu0
        %v1146 = vadd.f32 %v899, %v1145
        %v1147 = vpop.f32.mrb[0].mxu0
        %1148 = vmatprep.mubr.bf16.mxu0 0
        %1149 = vmatmul.mubr.bf16.gmra.mrb[0].mxu0 %v992
        %v1150 = vpop.f32.mrb[0].mxu0
        %v1151 = vadd.f32 %v904, %v1150
        %v1152 = vpop.f32.mrb[0].mxu0
        %v1153 = vpop.f32.mrb[0].mxu0
        %v1154 = vadd.f32 %v907, %v1153
        %v1155 = vpop.f32.mrb[0].mxu0
        %1156 = vmatprep.mubr.bf16.mxu0 0
        %1157 = vmatmul.mubr.bf16.gmra.mrb[0].mxu0 %v994
        %v1158 = vpop.f32.mrb[0].mxu0
        %v1159 = vadd.f32 %v912, %v1158
        %v1160 = vpop.f32.mrb[0].mxu0
        %v1161 = vpop.f32.mrb[0].mxu0
        %v1162 = vadd.f32 %v915, %v1161
        %v1163 = vpop.f32.mrb[0].mxu0
        %1164 = vmatprep.mubr.bf16.mxu0 0
        %1165 = vmatmul.mubr.bf16.gmra.mrb[0].mxu0 %v996
        %v1166 = vpop.f32.mrb[0].mxu0
        %v1167 = vadd.f32 %v920, %v1166
        %v1168 = vpop.f32.mrb[0].mxu0
        %v1169 = vpop.f32.mrb[0].mxu0
        %v1170 = vadd.f32 %v923, %v1169
        %v1171 = vpop.f32.mrb[0].mxu0
        %1172 = vmatprep.mubr.bf16.mxu0 0
        %1173 = vmatmul.mubr.bf16.gmra.mrb[0].mxu0 %v998
        %v1174 = vpop.f32.mrb[0].mxu0
        %v1175 = vadd.f32 %v928, %v1174
        %v1176 = vpop.f32.mrb[0].mxu0
        %v1177 = vpop.f32.mrb[0].mxu0
        %v1178 = vadd.f32 %v931, %v1177
        %v1179 = vpop.f32.mrb[0].mxu0
        %1180 = vmatprep.mubr.bf16.mxu0 0
        %1181 = vmatmul.mubr.bf16.gmra.mrb[0].mxu0 %v1000
        %v1182 = vpop.f32.mrb[0].mxu0
        %v1183 = vadd.f32 %v936, %v1182
        %v1184 = vpop.f32.mrb[0].mxu0
        %v1185 = vpop.f32.mrb[0].mxu0
        %v1186 = vadd.f32 %v939, %v1185
        %v1187 = vpop.f32.mrb[0].mxu0
        %1188 = vmatprep.mubr.bf16.mxu0 0
        %1189 = vmatmul.mubr.bf16.gmra.mrb[0].mxu0 %v1002
        %v1190 = vpop.f32.mrb[0].mxu0
        %v1191 = vadd.f32 %v944, %v1190
        %v1192 = vpop.f32.mrb[0].mxu0
        %v1193 = vpop.f32.mrb[0].mxu0
        %v1194 = vadd.f32 %v947, %v1193
        %v1195 = vpop.f32.mrb[0].mxu0
        %1196 = vmatprep.mubr.bf16.mxu0 0
        %1197 = vmatmul.mubr.bf16.gmra.mrb[0].mxu0 %v1004
        %v1198 = vpop.f32.mrb[0].mxu0
        %v1199 = vadd.f32 %v952, %v1198
        %v1200 = vpop.f32.mrb[0].mxu0
        %v1201 = vpop.f32.mrb[0].mxu0
        %v1202 = vadd.f32 %v955, %v1201
        %v1203 = vpop.f32.mrb[0].mxu0
        %1204 = vmatprep.mubr.bf16.mxu0 0
        %1205 = vmatmul.mubr.bf16.gmra.mrb[0].mxu0 %v1007
        %v1206 = vpop.f32.mrb[0].mxu0
        %v1207 = vadd.f32 %v960, %v1206
        %v1208 = vpop.f32.mrb[0].mxu0
        %v1209 = vpop.f32.mrb[0].mxu0
        %v1210 = vpop.f32.mrb[0].mxu0
        %1211 = vdwg.mxu0
        %v1212 = vld [vmem:[%s323] sm:$0xe]
        %s1213 = scalar_lea.vmem [#allocation6], 4
        %v1214 = vld [vmem:[%s1213] sm:$0x3]
        %v1216 = vunpack.c.l.b16 %v1212
        %v1217 = vpack.c.b16 %v467, %v1216
        %vm1218 = vcmask 1046528
        %v1219 = vrot.slane %v1217, 1
        %v1220 = vrot.slane %v509, 1
        %v1221 = vsel %vm1218, %v1219, %v1220
        %v1222 = vrot.slane %v510, 1
        %v1223 = vsel %vm1218, %v1220, %v1222
        %v1224 = vrot.slane %v511, 1
        %v1225 = vsel %vm1218, %v1222, %v1224
        %v1226 = vrot.slane %v512, 1
        %v1227 = vsel %vm1218, %v1224, %v1226
        %v1228 = vrot.slane %v513, 1
        %v1229 = vsel %vm1218, %v1226, %v1228
        %v1230 = vrot.slane %v514, 1
        %v1231 = vsel %vm1218, %v1228, %v1230
        %v1232 = vrot.slane %v515, 1
        %v1233 = vsel %vm1218, %v1230, %v1232
        %v1234 = vrot.slane %v516, 1
        %v1235 = vsel %vm1218, %v1232, %v1234
        %v1236 = vrot.slane %v517, 1
        %v1237 = vsel %vm1218, %v1234, %v1236
        %v1238 = vrot.slane %v518, 1
        %v1239 = vsel %vm1218, %v1236, %v1238
        %v1240 = vrot.slane %v519, 1
        %v1241 = vsel %vm1218, %v1238, %v1240
        %v1242 = vrot.slane %v520, 1
        %v1243 = vsel %vm1218, %v1240, %v1242
        %v1244 = vrot.slane %v521, 1
        %v1245 = vsel %vm1218, %v1242, %v1244
        %v1246 = vrot.slane %v522, 1
        %v1247 = vsel %vm1218, %v1244, %v1246
        %v1248 = vrot.slane %v523, 1
        %v1249 = vsel %vm1218, %v1246, %v1248
        %v1250 = vrot.slane %v524, 1
        %v1251 = vsel %vm1218, %v1248, %v1250
        %v1252 = vrot.slane %v525, 1
        %v1253 = vsel %vm1218, %v1250, %v1252
        %v1254 = vrot.slane %v526, 1
        %v1255 = vsel %vm1218, %v1252, %v1254
        %v1256 = vrot.slane %v527, 1
        %v1257 = vsel %vm1218, %v1254, %v1256
        %v1258 = vrot.slane %v528, 1
        %v1259 = vsel %vm1218, %v1256, %v1258
        %v1261 = vsel %vm697, %v1221, 0
        %v1264 = vsel %vm697, %v1223, 0
        %v1267 = vsel %vm697, %v1225, 0
        %v1270 = vsel %vm697, %v1227, 0
        %v1273 = vsel %vm697, %v1229, 0
        %v1276 = vsel %vm697, %v1231, 0
        %v1279 = vsel %vm697, %v1233, 0
        %v1282 = vsel %vm697, %v1235, 0
        %v1285 = vsel %vm697, %v1237, 0
        %v1288 = vsel %vm697, %v1239, 0
        %v1291 = vsel %vm697, %v1241, 0
        %v1294 = vsel %vm697, %v1243, 0
        %v1297 = vsel %vm697, %v1245, 0
        %v1300 = vsel %vm697, %v1247, 0
        %v1303 = vsel %vm697, %v1249, 0
        %v1306 = vsel %vm697, %v1251, 0
        %v1309 = vsel %vm697, %v1253, 0
        %v1312 = vsel %vm697, %v1255, 0
        %v1315 = vsel %vm697, %v1257, 0
        %v1318 = vsel %vm697, %v1259, 0
        %v1321 = vsel %vm697, %v1258, 0
        %v1324 = vsel %vm761, %v1214, 0
        %1326 = vmatprep.subr.bf16.mxu0 0
        %1327 = vmatpush1.bf16.msra.mxu0 %v1324
        %1328 = vmatprep.subr.bf16.mxu0 0
        %1329 = vmatpush1.bf16.msra.mxu0 0
        %1330 = vmatprep.subr.bf16.mxu0 0
        %1331 = vmatpush1.bf16.msra.mxu0 0
        %1332 = vmatprep.subr.bf16.mxu0 0
        %1333 = vmatpush1.bf16.msra.mxu0 0
        %1334 = vmatprep.subr.bf16.mxu0 0
        %1335 = vmatpush1.bf16.msra.mxu0 0
        %1336 = vmatprep.subr.bf16.mxu0 0
        %1337 = vmatpush1.bf16.msra.mxu0 0
        %1338 = vmatprep.subr.bf16.mxu0 0
        %1339 = vmatpush1.bf16.msra.mxu0 0
        %1340 = vmatprep.subr.bf16.mxu0 0
        %1341 = vmatpush1.bf16.msra.mxu0 0
        %1342 = vmatprep.subr.bf16.mxu0 0
        %1343 = vmatpush1.bf16.msra.mxu0 0
        %1344 = vmatprep.subr.bf16.mxu0 0
        %1345 = vmatpush1.bf16.msra.mxu0 0
        %1346 = vmatprep.subr.bf16.mxu0 0
        %1347 = vmatpush1.bf16.msra.mxu0 0
        %1348 = vmatprep.subr.bf16.mxu0 0
        %1349 = vmatpush1.bf16.msra.mxu0 0
        %1350 = vmatprep.subr.bf16.mxu0 0
        %1351 = vmatpush1.bf16.msra.mxu0 0
        %1352 = vmatprep.subr.bf16.mxu0 0
        %1353 = vmatpush1.bf16.msra.mxu0 0
        %1354 = vmatprep.subr.bf16.mxu0 0
        %1355 = vmatpush1.bf16.msra.mxu0 0
        %1356 = vmatprep.subr.bf16.mxu0 0
        %1357 = vmatpush1.bf16.msra.mxu0 0
        %1358 = vmatprep.mubr.bf16.mxu0 0
        %1359 = vmatmul.mubr.bf16.gmra.mrb[0].mxu0 %v1261
        %v1360 = vpop.f32.mrb[0].mxu0
        %v1361 = vadd.f32 0.0, %v1360
        %v1362 = vpop.f32.mrb[0].mxu0
        %v1363 = vpop.f32.mrb[0].mxu0
        %v1364 = vadd.f32 0.0, %v1363
        %v1365 = vpop.f32.mrb[0].mxu0
        %1366 = vmatprep.mubr.bf16.mxu0 0
        %1367 = vmatmul.mubr.bf16.gmra.mrb[0].mxu0 %v1264
        %v1368 = vpop.f32.mrb[0].mxu0
        %v1369 = vadd.f32 0.0, %v1368
        %v1370 = vpop.f32.mrb[0].mxu0
        %v1371 = vpop.f32.mrb[0].mxu0
        %v1372 = vadd.f32 0.0, %v1371
        %v1373 = vpop.f32.mrb[0].mxu0
        %1374 = vmatprep.mubr.bf16.mxu0 0
        %1375 = vmatmul.mubr.bf16.gmra.mrb[0].mxu0 %v1267
        %v1376 = vpop.f32.mrb[0].mxu0
        %v1377 = vadd.f32 0.0, %v1376
        %v1378 = vpop.f32.mrb[0].mxu0
        %v1379 = vpop.f32.mrb[0].mxu0
        %v1380 = vadd.f32 0.0, %v1379
        %v1381 = vpop.f32.mrb[0].mxu0
        %1382 = vmatprep.mubr.bf16.mxu0 0
        %1383 = vmatmul.mubr.bf16.gmra.mrb[0].mxu0 %v1270
        %v1384 = vpop.f32.mrb[0].mxu0
        %v1385 = vadd.f32 0.0, %v1384
        %v1386 = vpop.f32.mrb[0].mxu0
        %v1387 = vpop.f32.mrb[0].mxu0
        %v1388 = vadd.f32 0.0, %v1387
        %v1389 = vpop.f32.mrb[0].mxu0
        %1390 = vmatprep.mubr.bf16.mxu0 0
        %1391 = vmatmul.mubr.bf16.gmra.mrb[0].mxu0 %v1273
        %v1392 = vpop.f32.mrb[0].mxu0
        %v1393 = vadd.f32 0.0, %v1392
        %v1394 = vpop.f32.mrb[0].mxu0
        %v1395 = vpop.f32.mrb[0].mxu0
        %v1396 = vadd.f32 0.0, %v1395
        %v1397 = vpop.f32.mrb[0].mxu0
        %1398 = vmatprep.mubr.bf16.mxu0 0
        %1399 = vmatmul.mubr.bf16.gmra.mrb[0].mxu0 %v1276
        %v1400 = vpop.f32.mrb[0].mxu0
        %v1401 = vadd.f32 0.0, %v1400
        %v1402 = vpop.f32.mrb[0].mxu0
        %v1403 = vpop.f32.mrb[0].mxu0
        %v1404 = vadd.f32 0.0, %v1403
        %v1405 = vpop.f32.mrb[0].mxu0
        %1406 = vmatprep.mubr.bf16.mxu0 0
        %1407 = vmatmul.mubr.bf16.gmra.mrb[0].mxu0 %v1279
        %v1408 = vpop.f32.mrb[0].mxu0
        %v1409 = vadd.f32 0.0, %v1408
        %v1410 = vpop.f32.mrb[0].mxu0
        %v1411 = vpop.f32.mrb[0].mxu0
        %v1412 = vadd.f32 0.0, %v1411
        %v1413 = vpop.f32.mrb[0].mxu0
        %1414 = vmatprep.mubr.bf16.mxu0 0
        %1415 = vmatmul.mubr.bf16.gmra.mrb[0].mxu0 %v1282
        %v1416 = vpop.f32.mrb[0].mxu0
        %v1417 = vadd.f32 0.0, %v1416
        %v1418 = vpop.f32.mrb[0].mxu0
        %v1419 = vpop.f32.mrb[0].mxu0
        %v1420 = vadd.f32 0.0, %v1419
        %v1421 = vpop.f32.mrb[0].mxu0
        %1422 = vmatprep.mubr.bf16.mxu0 0
        %1423 = vmatmul.mubr.bf16.gmra.mrb[0].mxu0 %v1285
        %v1424 = vpop.f32.mrb[0].mxu0
        %v1425 = vadd.f32 0.0, %v1424
        %v1426 = vpop.f32.mrb[0].mxu0
        %v1427 = vpop.f32.mrb[0].mxu0
        %v1428 = vadd.f32 0.0, %v1427
        %v1429 = vpop.f32.mrb[0].mxu0
        %1430 = vmatprep.mubr.bf16.mxu0 0
        %1431 = vmatmul.mubr.bf16.gmra.mrb[0].mxu0 %v1288
        %v1432 = vpop.f32.mrb[0].mxu0
        %v1433 = vadd.f32 0.0, %v1432
        %v1434 = vpop.f32.mrb[0].mxu0
        %v1435 = vpop.f32.mrb[0].mxu0
        %v1436 = vadd.f32 0.0, %v1435
        %v1437 = vpop.f32.mrb[0].mxu0
        %1438 = vmatprep.mubr.bf16.mxu0 0
        %1439 = vmatmul.mubr.bf16.gmra.mrb[0].mxu0 %v1291
        %v1440 = vpop.f32.mrb[0].mxu0
        %v1441 = vadd.f32 0.0, %v1440
        %v1442 = vpop.f32.mrb[0].mxu0
        %v1443 = vpop.f32.mrb[0].mxu0
        %v1444 = vadd.f32 0.0, %v1443
        %v1445 = vpop.f32.mrb[0].mxu0
        %1446 = vmatprep.mubr.bf16.mxu0 0
        %1447 = vmatmul.mubr.bf16.gmra.mrb[0].mxu0 %v1294
        %v1448 = vpop.f32.mrb[0].mxu0
        %v1449 = vadd.f32 0.0, %v1448
        %v1450 = vpop.f32.mrb[0].mxu0
        %v1451 = vpop.f32.mrb[0].mxu0
        %v1452 = vadd.f32 0.0, %v1451
        %v1453 = vpop.f32.mrb[0].mxu0
        %1454 = vmatprep.mubr.bf16.mxu0 0
        %1455 = vmatmul.mubr.bf16.gmra.mrb[0].mxu0 %v1297
        %v1456 = vpop.f32.mrb[0].mxu0
        %v1457 = vadd.f32 0.0, %v1456
        %v1458 = vpop.f32.mrb[0].mxu0
        %v1459 = vpop.f32.mrb[0].mxu0
        %v1460 = vadd.f32 0.0, %v1459
        %v1461 = vpop.f32.mrb[0].mxu0
        %1462 = vmatprep.mubr.bf16.mxu0 0
        %1463 = vmatmul.mubr.bf16.gmra.mrb[0].mxu0 %v1300
        %v1464 = vpop.f32.mrb[0].mxu0
        %v1465 = vadd.f32 0.0, %v1464
        %v1466 = vpop.f32.mrb[0].mxu0
        %v1467 = vpop.f32.mrb[0].mxu0
        %v1468 = vadd.f32 0.0, %v1467
        %v1469 = vpop.f32.mrb[0].mxu0
        %1470 = vmatprep.mubr.bf16.mxu0 0
        %1471 = vmatmul.mubr.bf16.gmra.mrb[0].mxu0 %v1303
        %v1472 = vpop.f32.mrb[0].mxu0
        %v1473 = vadd.f32 0.0, %v1472
        %v1474 = vpop.f32.mrb[0].mxu0
        %v1475 = vpop.f32.mrb[0].mxu0
        %v1476 = vadd.f32 0.0, %v1475
        %v1477 = vpop.f32.mrb[0].mxu0
        %1478 = vmatprep.mubr.bf16.mxu0 0
        %1479 = vmatmul.mubr.bf16.gmra.mrb[0].mxu0 %v1306
        %v1480 = vpop.f32.mrb[0].mxu0
        %v1481 = vadd.f32 0.0, %v1480
        %v1482 = vpop.f32.mrb[0].mxu0
        %v1483 = vpop.f32.mrb[0].mxu0
        %v1484 = vadd.f32 0.0, %v1483
        %v1485 = vpop.f32.mrb[0].mxu0
        %1486 = vmatprep.mubr.bf16.mxu0 0
        %1487 = vmatmul.mubr.bf16.gmra.mrb[0].mxu0 %v1309
        %v1488 = vpop.f32.mrb[0].mxu0
        %v1489 = vadd.f32 0.0, %v1488
        %v1490 = vpop.f32.mrb[0].mxu0
        %v1491 = vpop.f32.mrb[0].mxu0
        %v1492 = vadd.f32 0.0, %v1491
        %v1493 = vpop.f32.mrb[0].mxu0
        %1494 = vmatprep.mubr.bf16.mxu0 0
        %1495 = vmatmul.mubr.bf16.gmra.mrb[0].mxu0 %v1312
        %v1496 = vpop.f32.mrb[0].mxu0
        %v1497 = vadd.f32 0.0, %v1496
        %v1498 = vpop.f32.mrb[0].mxu0
        %v1499 = vpop.f32.mrb[0].mxu0
        %v1500 = vadd.f32 0.0, %v1499
        %v1501 = vpop.f32.mrb[0].mxu0
        %1502 = vmatprep.mubr.bf16.mxu0 0
        %1503 = vmatmul.mubr.bf16.gmra.mrb[0].mxu0 %v1315
        %v1504 = vpop.f32.mrb[0].mxu0
        %v1505 = vadd.f32 0.0, %v1504
        %v1506 = vpop.f32.mrb[0].mxu0
        %v1507 = vpop.f32.mrb[0].mxu0
        %v1508 = vadd.f32 0.0, %v1507
        %v1509 = vpop.f32.mrb[0].mxu0
        %1510 = vmatprep.mubr.bf16.mxu0 0
        %1511 = vmatmul.mubr.bf16.gmra.mrb[0].mxu0 %v1318
        %v1512 = vpop.f32.mrb[0].mxu0
        %v1513 = vadd.f32 0.0, %v1512
        %v1514 = vpop.f32.mrb[0].mxu0
        %v1515 = vpop.f32.mrb[0].mxu0
        %v1516 = vadd.f32 0.0, %v1515
        %v1517 = vpop.f32.mrb[0].mxu0
        %1518 = vmatprep.mubr.bf16.mxu0 0
        %1519 = vmatmul.mubr.bf16.gmra.mrb[0].mxu0 %v1321
        %v1520 = vpop.f32.mrb[0].mxu0
        %v1521 = vadd.f32 0.0, %v1520
        %v1522 = vpop.f32.mrb[0].mxu0
        %v1523 = vpop.f32.mrb[0].mxu0
        %v1524 = vpop.f32.mrb[0].mxu0
        %1525 = vdwg.mxu0
        %v1526 = vadd.f32 %v1047, %v1361
        %v1527 = vadd.f32 %v1050, %v1364
        %v1528 = vadd.f32 %v1055, %v1369
        %v1529 = vadd.f32 %v1058, %v1372
        %v1530 = vadd.f32 %v1063, %v1377
        %v1531 = vadd.f32 %v1066, %v1380
        %v1532 = vadd.f32 %v1071, %v1385
        %v1533 = vadd.f32 %v1074, %v1388
        %v1534 = vadd.f32 %v1079, %v1393
        %v1535 = vadd.f32 %v1082, %v1396
        %v1536 = vadd.f32 %v1087, %v1401
        %v1537 = vadd.f32 %v1090, %v1404
        %v1538 = vadd.f32 %v1095, %v1409
        %v1539 = vadd.f32 %v1098, %v1412
        %v1540 = vadd.f32 %v1103, %v1417
        %v1541 = vadd.f32 %v1106, %v1420
        %v1542 = vadd.f32 %v1111, %v1425
        %v1543 = vadd.f32 %v1114, %v1428
        %v1544 = vadd.f32 %v1119, %v1433
        %v1545 = vadd.f32 %v1122, %v1436
        %v1546 = vadd.f32 %v1127, %v1441
        %v1547 = vadd.f32 %v1130, %v1444
        %v1548 = vadd.f32 %v1135, %v1449
        %v1549 = vadd.f32 %v1138, %v1452
        %v1550 = vadd.f32 %v1143, %v1457
        %v1551 = vadd.f32 %v1146, %v1460
        %v1552 = vadd.f32 %v1151, %v1465
        %v1553 = vadd.f32 %v1154, %v1468
        %v1554 = vadd.f32 %v1159, %v1473
        %v1555 = vadd.f32 %v1162, %v1476
        %v1556 = vadd.f32 %v1167, %v1481
        %v1557 = vadd.f32 %v1170, %v1484
        %v1558 = vadd.f32 %v1175, %v1489
        %v1559 = vadd.f32 %v1178, %v1492
        %v1560 = vadd.f32 %v1183, %v1497
        %v1561 = vadd.f32 %v1186, %v1500
        %v1562 = vadd.f32 %v1191, %v1505
        %v1563 = vadd.f32 %v1194, %v1508
        %v1564 = vadd.f32 %v1199, %v1513
        %v1565 = vadd.f32 %v1202, %v1516
        %v1566 = vadd.f32 %v1207, %v1521
        %v1567 = vld [vmem:[%s323 + $0x8] sm:$0xe]
        %v1568 = vld [vmem:[%s323 + $0xc] sm:$0xf]
        %v1569 = vld [vmem:[%s323 + $0x10] sm:$0xf]
        %v1570 = vld [vmem:[%s323 + $0x14] sm:$0xf]
        %v1571 = vld [vmem:[%s323 + $0x18] sm:$0xf]
        %v1572 = vld [vmem:[%s323 + $0x1c] sm:$0xf]
        %v1573 = vld [vmem:[%s323 + $0x20] sm:$0xf]
        %v1574 = vld [vmem:[%s323 + $0x24] sm:$0xf]
        %v1575 = vld [vmem:[%s323 + $0x28] sm:$0xf]
        %v1576 = vld [vmem:[%s323 + $0x2c] sm:$0xf]
        %v1577 = vld [vmem:[%s323 + $0x30] sm:$0xf]
        %v1578 = vld [vmem:[%s323 + $0x34] sm:$0xf]
        %v1579 = vld [vmem:[%s323 + $0x38] sm:$0xf]
        %v1580 = vld [vmem:[%s323 + $0x3c] sm:$0xf]
        %v1581 = vld [vmem:[%s323 + $0x40] sm:$0xf]
        %v1582 = vld [vmem:[%s323 + $0x44] sm:$0xf]
        %v1583 = vld [vmem:[%s323 + $0x48] sm:$0xf]
        %v1584 = vld [vmem:[%s323 + $0x4c] sm:$0xf]
        %v1585 = vld [vmem:[%s323 + $0x50] sm:$0xf]
        %v1586 = vld [vmem:[%s323 + $0x54] sm:$0xf]
        %v1587 = vld [vmem:[%s323 + $0x58] sm:$0xf]
        %v1588 = vld [vmem:[%s323 + $0x5c] sm:$0xf]
        %v1589 = vld [vmem:[%s323 + $0x60] sm:$0xf]
        %v1590 = vld [vmem:[%s323 + $0x64] sm:$0xf]
        %v1591 = vld [vmem:[%s323 + $0x68] sm:$0xf]
        %v1592 = vld [vmem:[%s323 + $0x6c] sm:$0xf]
        %v1593 = vld [vmem:[%s323 + $0x70] sm:$0xf]
        %v1594 = vld [vmem:[%s323 + $0x74] sm:$0xf]
        %v1595 = vld [vmem:[%s323 + $0x78] sm:$0xf]
        %v1596 = vld [vmem:[%s323 + $0x7c] sm:$0xf]
        %v1597 = vld [vmem:[%s323 + $0x80] sm:$0xf]
        %v1598 = vld [vmem:[%s323 + $0x84] sm:$0xf]
        %v1599 = vld [vmem:[%s323 + $0x88] sm:$0xf]
        %v1600 = vld [vmem:[%s323 + $0x8c] sm:$0xf]
        %v1601 = vld [vmem:[%s323 + $0x90] sm:$0xf]
        %v1602 = vld [vmem:[%s323 + $0x94] sm:$0xf]
        %v1603 = vld [vmem:[%s323 + $0x98] sm:$0xf]
        %v1604 = vld [vmem:[%s323 + $0x9c] sm:$0xf]
        %v1605 = vld [vmem:[%s323 + $0xa0] sm:$0xf]
        %v1606 = vld [vmem:[%s323 + $0xa4] sm:$0xf]
        %v1607 = vld [vmem:[%s323 + $0xa8] sm:$0xf]
        %v1608 = vld [vmem:[%s323 + $0xac] sm:$0x1]
        %s1609 = scalar_lea.vmem [#allocation6], 6
        %v1610 = vld [vmem:[%s1609] sm:$0x3]
        %v1653 = vunpack.c.l.b16 %v1567
        %v1654 = vunpack.c.l.b16 %v1568
        %v1655 = vunpack.c.l.b16 %v1569
        %v1656 = vunpack.c.l.b16 %v1570
        %v1657 = vunpack.c.l.b16 %v1571
        %v1658 = vunpack.c.l.b16 %v1572
        %v1659 = vunpack.c.l.b16 %v1573
        %v1660 = vunpack.c.l.b16 %v1574
        %v1661 = vunpack.c.l.b16 %v1575
        %v1662 = vunpack.c.l.b16 %v1576
        %v1663 = vunpack.c.l.b16 %v1577
        %v1664 = vunpack.c.l.b16 %v1578
        %v1665 = vunpack.c.l.b16 %v1579
        %v1666 = vunpack.c.l.b16 %v1580
        %v1667 = vunpack.c.l.b16 %v1581
        %v1668 = vunpack.c.l.b16 %v1582
        %v1669 = vunpack.c.l.b16 %v1583
        %v1670 = vunpack.c.l.b16 %v1584
        %v1671 = vunpack.c.l.b16 %v1585
        %v1672 = vunpack.c.l.b16 %v1586
        %v1673 = vunpack.c.l.b16 %v1587
        %v1674 = vunpack.c.l.b16 %v1588
        %v1675 = vunpack.c.l.b16 %v1589
        %v1676 = vunpack.c.l.b16 %v1590
        %v1677 = vunpack.c.l.b16 %v1591
        %v1678 = vunpack.c.l.b16 %v1592
        %v1679 = vunpack.c.l.b16 %v1593
        %v1680 = vunpack.c.l.b16 %v1594
        %v1681 = vunpack.c.l.b16 %v1595
        %v1682 = vunpack.c.l.b16 %v1596
        %v1683 = vunpack.c.l.b16 %v1597
        %v1684 = vunpack.c.l.b16 %v1598
        %v1685 = vunpack.c.l.b16 %v1599
        %v1686 = vunpack.c.l.b16 %v1600
        %v1687 = vunpack.c.l.b16 %v1601
        %v1688 = vunpack.c.l.b16 %v1602
        %v1689 = vunpack.c.l.b16 %v1603
        %v1690 = vunpack.c.l.b16 %v1604
        %v1691 = vunpack.c.l.b16 %v1605
        %v1692 = vunpack.c.l.b16 %v1606
        %v1693 = vunpack.c.l.b16 %v1607
        %v1694 = vunpack.c.l.b16 %v1608
        %v1695 = vpack.c.b16 %v1654, %v1653
        %v1696 = vpack.c.b16 %v1656, %v1655
        %v1697 = vpack.c.b16 %v1658, %v1657
        %v1698 = vpack.c.b16 %v1660, %v1659
        %v1699 = vpack.c.b16 %v1662, %v1661
        %v1700 = vpack.c.b16 %v1664, %v1663
        %v1701 = vpack.c.b16 %v1666, %v1665
        %v1702 = vpack.c.b16 %v1668, %v1667
        %v1703 = vpack.c.b16 %v1670, %v1669
        %v1704 = vpack.c.b16 %v1672, %v1671
        %v1705 = vpack.c.b16 %v1674, %v1673
        %v1706 = vpack.c.b16 %v1676, %v1675
        %v1707 = vpack.c.b16 %v1678, %v1677
        %v1708 = vpack.c.b16 %v1680, %v1679
        %v1709 = vpack.c.b16 %v1682, %v1681
        %v1710 = vpack.c.b16 %v1684, %v1683
        %v1711 = vpack.c.b16 %v1686, %v1685
        %v1712 = vpack.c.b16 %v1688, %v1687
        %v1713 = vpack.c.b16 %v1690, %v1689
        %v1714 = vpack.c.b16 %v1692, %v1691
        %v1715 = vpack.c.b16 %v1694, %v1693
        %v1716 = vrot.slane %v1695, 1
        %v1717 = vrot.slane %v1696, 1
        %v1718 = vsel %vm1218, %v1716, %v1717
        %v1719 = vrot.slane %v1697, 1
        %v1720 = vsel %vm1218, %v1717, %v1719
        %v1721 = vrot.slane %v1698, 1
        %v1722 = vsel %vm1218, %v1719, %v1721
        %v1723 = vrot.slane %v1699, 1
        %v1724 = vsel %vm1218, %v1721, %v1723
        %v1725 = vrot.slane %v1700, 1
        %v1726 = vsel %vm1218, %v1723, %v1725
        %v1727 = vrot.slane %v1701, 1
        %v1728 = vsel %vm1218, %v1725, %v1727
        %v1729 = vrot.slane %v1702, 1
        %v1730 = vsel %vm1218, %v1727, %v1729
        %v1731 = vrot.slane %v1703, 1
        %v1732 = vsel %vm1218, %v1729, %v1731
        %v1733 = vrot.slane %v1704, 1
        %v1734 = vsel %vm1218, %v1731, %v1733
        %v1735 = vrot.slane %v1705, 1
        %v1736 = vsel %vm1218, %v1733, %v1735
        %v1737 = vrot.slane %v1706, 1
        %v1738 = vsel %vm1218, %v1735, %v1737
        %v1739 = vrot.slane %v1707, 1
        %v1740 = vsel %vm1218, %v1737, %v1739
        %v1741 = vrot.slane %v1708, 1
        %v1742 = vsel %vm1218, %v1739, %v1741
        %v1743 = vrot.slane %v1709, 1
        %v1744 = vsel %vm1218, %v1741, %v1743
        %v1745 = vrot.slane %v1710, 1
        %v1746 = vsel %vm1218, %v1743, %v1745
        %v1747 = vrot.slane %v1711, 1
        %v1748 = vsel %vm1218, %v1745, %v1747
        %v1749 = vrot.slane %v1712, 1
        %v1750 = vsel %vm1218, %v1747, %v1749
        %v1751 = vrot.slane %v1713, 1
        %v1752 = vsel %vm1218, %v1749, %v1751
        %v1753 = vrot.slane %v1714, 1
        %v1754 = vsel %vm1218, %v1751, %v1753
        %v1755 = vrot.slane %v1715, 1
        %v1756 = vsel %vm1218, %v1753, %v1755
        %v1758 = vsel %vm697, %v1718, 0
        %v1761 = vsel %vm697, %v1720, 0
        %v1764 = vsel %vm697, %v1722, 0
        %v1767 = vsel %vm697, %v1724, 0
        %v1770 = vsel %vm697, %v1726, 0
        %v1773 = vsel %vm697, %v1728, 0
        %v1776 = vsel %vm697, %v1730, 0
        %v1779 = vsel %vm697, %v1732, 0
        %v1782 = vsel %vm697, %v1734, 0
        %v1785 = vsel %vm697, %v1736, 0
        %v1788 = vsel %vm697, %v1738, 0
        %v1791 = vsel %vm697, %v1740, 0
        %v1794 = vsel %vm697, %v1742, 0
        %v1797 = vsel %vm697, %v1744, 0
        %v1800 = vsel %vm697, %v1746, 0
        %v1803 = vsel %vm697, %v1748, 0
        %v1806 = vsel %vm697, %v1750, 0
        %v1809 = vsel %vm697, %v1752, 0
        %v1812 = vsel %vm697, %v1754, 0
        %v1815 = vsel %vm697, %v1756, 0
        %v1818 = vsel %vm697, %v1755, 0
        %v1821 = vsel %vm761, %v1610, 0
        %1823 = vmatprep.subr.bf16.mxu0 0
        %1824 = vmatpush1.bf16.msra.mxu0 %v1821
        %1825 = vmatprep.subr.bf16.mxu0 0
        %1826 = vmatpush1.bf16.msra.mxu0 0
        %1827 = vmatprep.subr.bf16.mxu0 0
        %1828 = vmatpush1.bf16.msra.mxu0 0
        %1829 = vmatprep.subr.bf16.mxu0 0
        %1830 = vmatpush1.bf16.msra.mxu0 0
        %1831 = vmatprep.subr.bf16.mxu0 0
        %1832 = vmatpush1.bf16.msra.mxu0 0
        %1833 = vmatprep.subr.bf16.mxu0 0
        %1834 = vmatpush1.bf16.msra.mxu0 0
        %1835 = vmatprep.subr.bf16.mxu0 0
        %1836 = vmatpush1.bf16.msra.mxu0 0
        %1837 = vmatprep.subr.bf16.mxu0 0
        %1838 = vmatpush1.bf16.msra.mxu0 0
        %1839 = vmatprep.subr.bf16.mxu0 0
        %1840 = vmatpush1.bf16.msra.mxu0 0
        %1841 = vmatprep.subr.bf16.mxu0 0
        %1842 = vmatpush1.bf16.msra.mxu0 0
        %1843 = vmatprep.subr.bf16.mxu0 0
        %1844 = vmatpush1.bf16.msra.mxu0 0
        %1845 = vmatprep.subr.bf16.mxu0 0
        %1846 = vmatpush1.bf16.msra.mxu0 0
        %1847 = vmatprep.subr.bf16.mxu0 0
        %1848 = vmatpush1.bf16.msra.mxu0 0
        %1849 = vmatprep.subr.bf16.mxu0 0
        %1850 = vmatpush1.bf16.msra.mxu0 0
        %1851 = vmatprep.subr.bf16.mxu0 0
        %1852 = vmatpush1.bf16.msra.mxu0 0
        %1853 = vmatprep.subr.bf16.mxu0 0
        %1854 = vmatpush1.bf16.msra.mxu0 0
        %1855 = vmatprep.mubr.bf16.mxu0 0
        %1856 = vmatmul.mubr.bf16.gmra.mrb[0].mxu0 %v1758
        %v1857 = vpop.f32.mrb[0].mxu0
        %v1858 = vadd.f32 0.0, %v1857
        %v1859 = vpop.f32.mrb[0].mxu0
        %v1860 = vpop.f32.mrb[0].mxu0
        %v1861 = vadd.f32 0.0, %v1860
        %v1862 = vpop.f32.mrb[0].mxu0
        %1863 = vmatprep.mubr.bf16.mxu0 0
        %1864 = vmatmul.mubr.bf16.gmra.mrb[0].mxu0 %v1761
        %v1865 = vpop.f32.mrb[0].mxu0
        %v1866 = vadd.f32 0.0, %v1865
        %v1867 = vpop.f32.mrb[0].mxu0
        %v1868 = vpop.f32.mrb[0].mxu0
        %v1869 = vadd.f32 0.0, %v1868
        %v1870 = vpop.f32.mrb[0].mxu0
        %1871 = vmatprep.mubr.bf16.mxu0 0
        %1872 = vmatmul.mubr.bf16.gmra.mrb[0].mxu0 %v1764
        %v1873 = vpop.f32.mrb[0].mxu0
        %v1874 = vadd.f32 0.0, %v1873
        %v1875 = vpop.f32.mrb[0].mxu0
        %v1876 = vpop.f32.mrb[0].mxu0
        %v1877 = vadd.f32 0.0, %v1876
        %v1878 = vpop.f32.mrb[0].mxu0
        %1879 = vmatprep.mubr.bf16.mxu0 0
        %1880 = vmatmul.mubr.bf16.gmra.mrb[0].mxu0 %v1767
        %v1881 = vpop.f32.mrb[0].mxu0
        %v1882 = vadd.f32 0.0, %v1881
        %v1883 = vpop.f32.mrb[0].mxu0
        %v1884 = vpop.f32.mrb[0].mxu0
        %v1885 = vadd.f32 0.0, %v1884
        %v1886 = vpop.f32.mrb[0].mxu0
        %1887 = vmatprep.mubr.bf16.mxu0 0
        %1888 = vmatmul.mubr.bf16.gmra.mrb[0].mxu0 %v1770
        %v1889 = vpop.f32.mrb[0].mxu0
        %v1890 = vadd.f32 0.0, %v1889
        %v1891 = vpop.f32.mrb[0].mxu0
        %v1892 = vpop.f32.mrb[0].mxu0
        %v1893 = vadd.f32 0.0, %v1892
        %v1894 = vpop.f32.mrb[0].mxu0
        %1895 = vmatprep.mubr.bf16.mxu0 0
        %1896 = vmatmul.mubr.bf16.gmra.mrb[0].mxu0 %v1773
        %v1897 = vpop.f32.mrb[0].mxu0
        %v1898 = vadd.f32 0.0, %v1897
        %v1899 = vpop.f32.mrb[0].mxu0
        %v1900 = vpop.f32.mrb[0].mxu0
        %v1901 = vadd.f32 0.0, %v1900
        %v1902 = vpop.f32.mrb[0].mxu0
        %1903 = vmatprep.mubr.bf16.mxu0 0
        %1904 = vmatmul.mubr.bf16.gmra.mrb[0].mxu0 %v1776
        %v1905 = vpop.f32.mrb[0].mxu0
        %v1906 = vadd.f32 0.0, %v1905
        %v1907 = vpop.f32.mrb[0].mxu0
        %v1908 = vpop.f32.mrb[0].mxu0
        %v1909 = vadd.f32 0.0, %v1908
        %v1910 = vpop.f32.mrb[0].mxu0
        %1911 = vmatprep.mubr.bf16.mxu0 0
        %1912 = vmatmul.mubr.bf16.gmra.mrb[0].mxu0 %v1779
        %v1913 = vpop.f32.mrb[0].mxu0
        %v1914 = vadd.f32 0.0, %v1913
        %v1915 = vpop.f32.mrb[0].mxu0
        %v1916 = vpop.f32.mrb[0].mxu0
        %v1917 = vadd.f32 0.0, %v1916
        %v1918 = vpop.f32.mrb[0].mxu0
        %1919 = vmatprep.mubr.bf16.mxu0 0
        %1920 = vmatmul.mubr.bf16.gmra.mrb[0].mxu0 %v1782
        %v1921 = vpop.f32.mrb[0].mxu0
        %v1922 = vadd.f32 0.0, %v1921
        %v1923 = vpop.f32.mrb[0].mxu0
        %v1924 = vpop.f32.mrb[0].mxu0
        %v1925 = vadd.f32 0.0, %v1924
        %v1926 = vpop.f32.mrb[0].mxu0
        %1927 = vmatprep.mubr.bf16.mxu0 0
        %1928 = vmatmul.mubr.bf16.gmra.mrb[0].mxu0 %v1785
        %v1929 = vpop.f32.mrb[0].mxu0
        %v1930 = vadd.f32 0.0, %v1929
        %v1931 = vpop.f32.mrb[0].mxu0
        %v1932 = vpop.f32.mrb[0].mxu0
        %v1933 = vadd.f32 0.0, %v1932
        %v1934 = vpop.f32.mrb[0].mxu0
        %1935 = vmatprep.mubr.bf16.mxu0 0
        %1936 = vmatmul.mubr.bf16.gmra.mrb[0].mxu0 %v1788
        %v1937 = vpop.f32.mrb[0].mxu0
        %v1938 = vadd.f32 0.0, %v1937
        %v1939 = vpop.f32.mrb[0].mxu0
        %v1940 = vpop.f32.mrb[0].mxu0
        %v1941 = vadd.f32 0.0, %v1940
        %v1942 = vpop.f32.mrb[0].mxu0
        %1943 = vmatprep.mubr.bf16.mxu0 0
        %1944 = vmatmul.mubr.bf16.gmra.mrb[0].mxu0 %v1791
        %v1945 = vpop.f32.mrb[0].mxu0
        %v1946 = vadd.f32 0.0, %v1945
        %v1947 = vpop.f32.mrb[0].mxu0
        %v1948 = vpop.f32.mrb[0].mxu0
        %v1949 = vadd.f32 0.0, %v1948
        %v1950 = vpop.f32.mrb[0].mxu0
        %1951 = vmatprep.mubr.bf16.mxu0 0
        %1952 = vmatmul.mubr.bf16.gmra.mrb[0].mxu0 %v1794
        %v1953 = vpop.f32.mrb[0].mxu0
        %v1954 = vadd.f32 0.0, %v1953
        %v1955 = vpop.f32.mrb[0].mxu0
        %v1956 = vpop.f32.mrb[0].mxu0
        %v1957 = vadd.f32 0.0, %v1956
        %v1958 = vpop.f32.mrb[0].mxu0
        %1959 = vmatprep.mubr.bf16.mxu0 0
        %1960 = vmatmul.mubr.bf16.gmra.mrb[0].mxu0 %v1797
        %v1961 = vpop.f32.mrb[0].mxu0
        %v1962 = vadd.f32 0.0, %v1961
        %v1963 = vpop.f32.mrb[0].mxu0
        %v1964 = vpop.f32.mrb[0].mxu0
        %v1965 = vadd.f32 0.0, %v1964
        %v1966 = vpop.f32.mrb[0].mxu0
        %1967 = vmatprep.mubr.bf16.mxu0 0
        %1968 = vmatmul.mubr.bf16.gmra.mrb[0].mxu0 %v1800
        %v1969 = vpop.f32.mrb[0].mxu0
        %v1970 = vadd.f32 0.0, %v1969
        %v1971 = vpop.f32.mrb[0].mxu0
        %v1972 = vpop.f32.mrb[0].mxu0
        %v1973 = vadd.f32 0.0, %v1972
        %v1974 = vpop.f32.mrb[0].mxu0
        %1975 = vmatprep.mubr.bf16.mxu0 0
        %1976 = vmatmul.mubr.bf16.gmra.mrb[0].mxu0 %v1803
        %v1977 = vpop.f32.mrb[0].mxu0
        %v1978 = vadd.f32 0.0, %v1977
        %v1979 = vpop.f32.mrb[0].mxu0
        %v1980 = vpop.f32.mrb[0].mxu0
        %v1981 = vadd.f32 0.0, %v1980
        %v1982 = vpop.f32.mrb[0].mxu0
        %1983 = vmatprep.mubr.bf16.mxu0 0
        %1984 = vmatmul.mubr.bf16.gmra.mrb[0].mxu0 %v1806
        %v1985 = vpop.f32.mrb[0].mxu0
        %v1986 = vadd.f32 0.0, %v1985
        %v1987 = vpop.f32.mrb[0].mxu0
        %v1988 = vpop.f32.mrb[0].mxu0
        %v1989 = vadd.f32 0.0, %v1988
        %v1990 = vpop.f32.mrb[0].mxu0
        %1991 = vmatprep.mubr.bf16.mxu0 0
        %1992 = vmatmul.mubr.bf16.gmra.mrb[0].mxu0 %v1809
        %v1993 = vpop.f32.mrb[0].mxu0
        %v1994 = vadd.f32 0.0, %v1993
        %v1995 = vpop.f32.mrb[0].mxu0
        %v1996 = vpop.f32.mrb[0].mxu0
        %v1997 = vadd.f32 0.0, %v1996
        %v1998 = vpop.f32.mrb[0].mxu0
        %1999 = vmatprep.mubr.bf16.mxu0 0
        %2000 = vmatmul.mubr.bf16.gmra.mrb[0].mxu0 %v1812
        %v2001 = vpop.f32.mrb[0].mxu0
        %v2002 = vadd.f32 0.0, %v2001
        %v2003 = vpop.f32.mrb[0].mxu0
        %v2004 = vpop.f32.mrb[0].mxu0
        %v2005 = vadd.f32 0.0, %v2004
        %v2006 = vpop.f32.mrb[0].mxu0
        %2007 = vmatprep.mubr.bf16.mxu0 0
        %2008 = vmatmul.mubr.bf16.gmra.mrb[0].mxu0 %v1815
        %v2009 = vpop.f32.mrb[0].mxu0
        %v2010 = vadd.f32 0.0, %v2009
        %v2011 = vpop.f32.mrb[0].mxu0
        %v2012 = vpop.f32.mrb[0].mxu0
        %v2013 = vadd.f32 0.0, %v2012
        %v2014 = vpop.f32.mrb[0].mxu0
        %2015 = vmatprep.mubr.bf16.mxu0 0
        %2016 = vmatmul.mubr.bf16.gmra.mrb[0].mxu0 %v1818
        %v2017 = vpop.f32.mrb[0].mxu0
        %v2018 = vadd.f32 0.0, %v2017
        %v2019 = vpop.f32.mrb[0].mxu0
        %v2020 = vpop.f32.mrb[0].mxu0
        %v2021 = vpop.f32.mrb[0].mxu0
        %2022 = vdwg.mxu0
        %v2023 = vadd.f32 %v1526, %v1858
        %v2024 = vadd.f32 %v1527, %v1861
        %v2025 = vadd.f32 %v1528, %v1866
        %v2026 = vadd.f32 %v1529, %v1869
        %v2027 = vadd.f32 %v1530, %v1874
        %v2028 = vadd.f32 %v1531, %v1877
        %v2029 = vadd.f32 %v1532, %v1882
        %v2030 = vadd.f32 %v1533, %v1885
        %v2031 = vadd.f32 %v1534, %v1890
        %v2032 = vadd.f32 %v1535, %v1893
        %v2033 = vadd.f32 %v1536, %v1898
        %v2034 = vadd.f32 %v1537, %v1901
        %v2035 = vadd.f32 %v1538, %v1906
        %v2036 = vadd.f32 %v1539, %v1909
        %v2037 = vadd.f32 %v1540, %v1914
        %v2038 = vadd.f32 %v1541, %v1917
        %v2039 = vadd.f32 %v1542, %v1922
        %v2040 = vadd.f32 %v1543, %v1925
        %v2041 = vadd.f32 %v1544, %v1930
        %v2042 = vadd.f32 %v1545, %v1933
        %v2043 = vadd.f32 %v1546, %v1938
        %v2044 = vadd.f32 %v1547, %v1941
        %v2045 = vadd.f32 %v1548, %v1946
        %v2046 = vadd.f32 %v1549, %v1949
        %v2047 = vadd.f32 %v1550, %v1954
        %v2048 = vadd.f32 %v1551, %v1957
        %v2049 = vadd.f32 %v1552, %v1962
        %v2050 = vadd.f32 %v1553, %v1965
        %v2051 = vadd.f32 %v1554, %v1970
        %v2052 = vadd.f32 %v1555, %v1973
        %v2053 = vadd.f32 %v1556, %v1978
        %v2054 = vadd.f32 %v1557, %v1981
        %v2055 = vadd.f32 %v1558, %v1986
        %v2056 = vadd.f32 %v1559, %v1989
        %v2057 = vadd.f32 %v1560, %v1994
        %v2058 = vadd.f32 %v1561, %v1997
        %v2059 = vadd.f32 %v1562, %v2002
        %v2060 = vadd.f32 %v1563, %v2005
        %v2061 = vadd.f32 %v1564, %v2010
        %v2062 = vadd.f32 %v1565, %v2013
        %v2063 = vadd.f32 %v1566, %v2018
        %v2064 = vld [vmem:[%s323 + $0xac] sm:$0x3]
        %s2065 = scalar_lea.vmem [#allocation6], 8
        %v2066 = vld [vmem:[%s2065] sm:$0x3]
        %v2068 = vunpack.c.l.b16 %v2064
        %v2069 = vpack.c.b16 %v2068, %v1693
        %vm2070 = vsmask.f32 6400
        %v2072 = vshrl.u32 %v1695, 16
        %v2074 = vrot.slane %v2072, 1
        %v2075 = vshll.u32 %v1695, 16
        %v2077 = vrot.slane %v2075, 2
        %v2078 = vor.u32 %v2074, %v2077
        %v2080 = vshrl.u32 %v1696, 16
        %v2082 = vrot.slane %v2080, 1
        %v2083 = vshll.u32 %v1696, 16
        %v2085 = vrot.slane %v2083, 2
        %v2086 = vor.u32 %v2082, %v2085
        %v2087 = vsel %vm2070, %v2078, %v2086
        %v2089 = vshrl.u32 %v1697, 16
        %v2091 = vrot.slane %v2089, 1
        %v2092 = vshll.u32 %v1697, 16
        %v2094 = vrot.slane %v2092, 2
        %v2095 = vor.u32 %v2091, %v2094
        %v2096 = vsel %vm2070, %v2086, %v2095
        %v2098 = vshrl.u32 %v1698, 16
        %v2100 = vrot.slane %v2098, 1
        %v2101 = vshll.u32 %v1698, 16
        %v2103 = vrot.slane %v2101, 2
        %v2104 = vor.u32 %v2100, %v2103
        %v2105 = vsel %vm2070, %v2095, %v2104
        %v2107 = vshrl.u32 %v1699, 16
        %v2109 = vrot.slane %v2107, 1
        %v2110 = vshll.u32 %v1699, 16
        %v2112 = vrot.slane %v2110, 2
        %v2113 = vor.u32 %v2109, %v2112
        %v2114 = vsel %vm2070, %v2104, %v2113
        %v2116 = vshrl.u32 %v1700, 16
        %v2118 = vrot.slane %v2116, 1
        %v2119 = vshll.u32 %v1700, 16
        %v2121 = vrot.slane %v2119, 2
        %v2122 = vor.u32 %v2118, %v2121
        %v2123 = vsel %vm2070, %v2113, %v2122
        %v2125 = vshrl.u32 %v1701, 16
        %v2127 = vrot.slane %v2125, 1
        %v2128 = vshll.u32 %v1701, 16
        %v2130 = vrot.slane %v2128, 2
        %v2131 = vor.u32 %v2127, %v2130
        %v2132 = vsel %vm2070, %v2122, %v2131
        %v2134 = vshrl.u32 %v1702, 16
        %v2136 = vrot.slane %v2134, 1
        %v2137 = vshll.u32 %v1702, 16
        %v2139 = vrot.slane %v2137, 2
        %v2140 = vor.u32 %v2136, %v2139
        %v2141 = vsel %vm2070, %v2131, %v2140
        %v2143 = vshrl.u32 %v1703, 16
        %v2145 = vrot.slane %v2143, 1
        %v2146 = vshll.u32 %v1703, 16
        %v2148 = vrot.slane %v2146, 2
        %v2149 = vor.u32 %v2145, %v2148
        %v2150 = vsel %vm2070, %v2140, %v2149
        %v2152 = vshrl.u32 %v1704, 16
        %v2154 = vrot.slane %v2152, 1
        %v2155 = vshll.u32 %v1704, 16
        %v2157 = vrot.slane %v2155, 2
        %v2158 = vor.u32 %v2154, %v2157
        %v2159 = vsel %vm2070, %v2149, %v2158
        %v2161 = vshrl.u32 %v1705, 16
        %v2163 = vrot.slane %v2161, 1
        %v2164 = vshll.u32 %v1705, 16
        %v2166 = vrot.slane %v2164, 2
        %v2167 = vor.u32 %v2163, %v2166
        %v2168 = vsel %vm2070, %v2158, %v2167
        %v2170 = vshrl.u32 %v1706, 16
        %v2172 = vrot.slane %v2170, 1
        %v2173 = vshll.u32 %v1706, 16
        %v2175 = vrot.slane %v2173, 2
        %v2176 = vor.u32 %v2172, %v2175
        %v2177 = vsel %vm2070, %v2167, %v2176
        %v2179 = vshrl.u32 %v1707, 16
        %v2181 = vrot.slane %v2179, 1
        %v2182 = vshll.u32 %v1707, 16
        %v2184 = vrot.slane %v2182, 2
        %v2185 = vor.u32 %v2181, %v2184
        %v2186 = vsel %vm2070, %v2176, %v2185
        %v2188 = vshrl.u32 %v1708, 16
        %v2190 = vrot.slane %v2188, 1
        %v2191 = vshll.u32 %v1708, 16
        %v2193 = vrot.slane %v2191, 2
        %v2194 = vor.u32 %v2190, %v2193
        %v2195 = vsel %vm2070, %v2185, %v2194
        %v2197 = vshrl.u32 %v1709, 16
        %v2199 = vrot.slane %v2197, 1
        %v2200 = vshll.u32 %v1709, 16
        %v2202 = vrot.slane %v2200, 2
        %v2203 = vor.u32 %v2199, %v2202
        %v2204 = vsel %vm2070, %v2194, %v2203
        %v2206 = vshrl.u32 %v1710, 16
        %v2208 = vrot.slane %v2206, 1
        %v2209 = vshll.u32 %v1710, 16
        %v2211 = vrot.slane %v2209, 2
        %v2212 = vor.u32 %v2208, %v2211
        %v2213 = vsel %vm2070, %v2203, %v2212
        %v2215 = vshrl.u32 %v1711, 16
        %v2217 = vrot.slane %v2215, 1
        %v2218 = vshll.u32 %v1711, 16
        %v2220 = vrot.slane %v2218, 2
        %v2221 = vor.u32 %v2217, %v2220
        %v2222 = vsel %vm2070, %v2212, %v2221
        %v2224 = vshrl.u32 %v1712, 16
        %v2226 = vrot.slane %v2224, 1
        %v2227 = vshll.u32 %v1712, 16
        %v2229 = vrot.slane %v2227, 2
        %v2230 = vor.u32 %v2226, %v2229
        %v2231 = vsel %vm2070, %v2221, %v2230
        %v2233 = vshrl.u32 %v1713, 16
        %v2235 = vrot.slane %v2233, 1
        %v2236 = vshll.u32 %v1713, 16
        %v2238 = vrot.slane %v2236, 2
        %v2239 = vor.u32 %v2235, %v2238
        %v2240 = vsel %vm2070, %v2230, %v2239
        %v2242 = vshrl.u32 %v1714, 16
        %v2244 = vrot.slane %v2242, 1
        %v2245 = vshll.u32 %v1714, 16
        %v2247 = vrot.slane %v2245, 2
        %v2248 = vor.u32 %v2244, %v2247
        %v2249 = vsel %vm2070, %v2239, %v2248
        %v2251 = vshrl.u32 %v2069, 16
        %v2253 = vrot.slane %v2251, 1
        %v2254 = vshll.u32 %v2069, 16
        %v2256 = vrot.slane %v2254, 2
        %v2257 = vor.u32 %v2253, %v2256
        %v2258 = vsel %vm2070, %v2248, %v2257
        %v2260 = vsel %vm697, %v2087, 0
        %v2263 = vsel %vm697, %v2096, 0
        %v2266 = vsel %vm697, %v2105, 0
        %v2269 = vsel %vm697, %v2114, 0
        %v2272 = vsel %vm697, %v2123, 0
        %v2275 = vsel %vm697, %v2132, 0
        %v2278 = vsel %vm697, %v2141, 0
        %v2281 = vsel %vm697, %v2150, 0
        %v2284 = vsel %vm697, %v2159, 0
        %v2287 = vsel %vm697, %v2168, 0
        %v2290 = vsel %vm697, %v2177, 0
        %v2293 = vsel %vm697, %v2186, 0
        %v2296 = vsel %vm697, %v2195, 0
        %v2299 = vsel %vm697, %v2204, 0
        %v2302 = vsel %vm697, %v2213, 0
        %v2305 = vsel %vm697, %v2222, 0
        %v2308 = vsel %vm697, %v2231, 0
        %v2311 = vsel %vm697, %v2240, 0
        %v2314 = vsel %vm697, %v2249, 0
        %v2317 = vsel %vm697, %v2258, 0
        %v2320 = vsel %vm697, %v2257, 0
        %v2323 = vsel %vm761, %v2066, 0
        %2325 = vmatprep.subr.bf16.mxu0 0
        %2326 = vmatpush1.bf16.msra.mxu0 %v2323
        %2327 = vmatprep.subr.bf16.mxu0 0
        %2328 = vmatpush1.bf16.msra.mxu0 0
        %2329 = vmatprep.subr.bf16.mxu0 0
        %2330 = vmatpush1.bf16.msra.mxu0 0
        %2331 = vmatprep.subr.bf16.mxu0 0
        %2332 = vmatpush1.bf16.msra.mxu0 0
        %2333 = vmatprep.subr.bf16.mxu0 0
        %2334 = vmatpush1.bf16.msra.mxu0 0
        %2335 = vmatprep.subr.bf16.mxu0 0
        %2336 = vmatpush1.bf16.msra.mxu0 0
        %2337 = vmatprep.subr.bf16.mxu0 0
        %2338 = vmatpush1.bf16.msra.mxu0 0
        %2339 = vmatprep.subr.bf16.mxu0 0
        %2340 = vmatpush1.bf16.msra.mxu0 0
        %2341 = vmatprep.subr.bf16.mxu0 0
        %2342 = vmatpush1.bf16.msra.mxu0 0
        %2343 = vmatprep.subr.bf16.mxu0 0
        %2344 = vmatpush1.bf16.msra.mxu0 0
        %2345 = vmatprep.subr.bf16.mxu0 0
        %2346 = vmatpush1.bf16.msra.mxu0 0
        %2347 = vmatprep.subr.bf16.mxu0 0
        %2348 = vmatpush1.bf16.msra.mxu0 0
        %2349 = vmatprep.subr.bf16.mxu0 0
        %2350 = vmatpush1.bf16.msra.mxu0 0
        %2351 = vmatprep.subr.bf16.mxu0 0
        %2352 = vmatpush1.bf16.msra.mxu0 0
        %2353 = vmatprep.subr.bf16.mxu0 0
        %2354 = vmatpush1.bf16.msra.mxu0 0
        %2355 = vmatprep.subr.bf16.mxu0 0
        %2356 = vmatpush1.bf16.msra.mxu0 0
        %2357 = vmatprep.mubr.bf16.mxu0 0
        %2358 = vmatmul.mubr.bf16.gmra.mrb[0].mxu0 %v2260
        %v2359 = vpop.f32.mrb[0].mxu0
        %v2360 = vadd.f32 0.0, %v2359
        %v2361 = vpop.f32.mrb[0].mxu0
        %v2362 = vpop.f32.mrb[0].mxu0
        %v2363 = vadd.f32 0.0, %v2362
        %v2364 = vpop.f32.mrb[0].mxu0
        %2365 = vmatprep.mubr.bf16.mxu0 0
        %2366 = vmatmul.mubr.bf16.gmra.mrb[0].mxu0 %v2263
        %v2367 = vpop.f32.mrb[0].mxu0
        %v2368 = vadd.f32 0.0, %v2367
        %v2369 = vpop.f32.mrb[0].mxu0
        %v2370 = vpop.f32.mrb[0].mxu0
        %v2371 = vadd.f32 0.0, %v2370
        %v2372 = vpop.f32.mrb[0].mxu0
        %2373 = vmatprep.mubr.bf16.mxu0 0
        %2374 = vmatmul.mubr.bf16.gmra.mrb[0].mxu0 %v2266
        %v2375 = vpop.f32.mrb[0].mxu0
        %v2376 = vadd.f32 0.0, %v2375
        %v2377 = vpop.f32.mrb[0].mxu0
        %v2378 = vpop.f32.mrb[0].mxu0
        %v2379 = vadd.f32 0.0, %v2378
        %v2380 = vpop.f32.mrb[0].mxu0
        %2381 = vmatprep.mubr.bf16.mxu0 0
        %2382 = vmatmul.mubr.bf16.gmra.mrb[0].mxu0 %v2269
        %v2383 = vpop.f32.mrb[0].mxu0
        %v2384 = vadd.f32 0.0, %v2383
        %v2385 = vpop.f32.mrb[0].mxu0
        %v2386 = vpop.f32.mrb[0].mxu0
        %v2387 = vadd.f32 0.0, %v2386
        %v2388 = vpop.f32.mrb[0].mxu0
        %2389 = vmatprep.mubr.bf16.mxu0 0
        %2390 = vmatmul.mubr.bf16.gmra.mrb[0].mxu0 %v2272
        %v2391 = vpop.f32.mrb[0].mxu0
        %v2392 = vadd.f32 0.0, %v2391
        %v2393 = vpop.f32.mrb[0].mxu0
        %v2394 = vpop.f32.mrb[0].mxu0
        %v2395 = vadd.f32 0.0, %v2394
        %v2396 = vpop.f32.mrb[0].mxu0
        %2397 = vmatprep.mubr.bf16.mxu0 0
        %2398 = vmatmul.mubr.bf16.gmra.mrb[0].mxu0 %v2275
        %v2399 = vpop.f32.mrb[0].mxu0
        %v2400 = vadd.f32 0.0, %v2399
        %v2401 = vpop.f32.mrb[0].mxu0
        %v2402 = vpop.f32.mrb[0].mxu0
        %v2403 = vadd.f32 0.0, %v2402
        %v2404 = vpop.f32.mrb[0].mxu0
        %2405 = vmatprep.mubr.bf16.mxu0 0
        %2406 = vmatmul.mubr.bf16.gmra.mrb[0].mxu0 %v2278
        %v2407 = vpop.f32.mrb[0].mxu0
        %v2408 = vadd.f32 0.0, %v2407
        %v2409 = vpop.f32.mrb[0].mxu0
        %v2410 = vpop.f32.mrb[0].mxu0
        %v2411 = vadd.f32 0.0, %v2410
        %v2412 = vpop.f32.mrb[0].mxu0
        %2413 = vmatprep.mubr.bf16.mxu0 0
        %2414 = vmatmul.mubr.bf16.gmra.mrb[0].mxu0 %v2281
        %v2415 = vpop.f32.mrb[0].mxu0
        %v2416 = vadd.f32 0.0, %v2415
        %v2417 = vpop.f32.mrb[0].mxu0
        %v2418 = vpop.f32.mrb[0].mxu0
        %v2419 = vadd.f32 0.0, %v2418
        %v2420 = vpop.f32.mrb[0].mxu0
        %2421 = vmatprep.mubr.bf16.mxu0 0
        %2422 = vmatmul.mubr.bf16.gmra.mrb[0].mxu0 %v2284
        %v2423 = vpop.f32.mrb[0].mxu0
        %v2424 = vadd.f32 0.0, %v2423
        %v2425 = vpop.f32.mrb[0].mxu0
        %v2426 = vpop.f32.mrb[0].mxu0
        %v2427 = vadd.f32 0.0, %v2426
        %v2428 = vpop.f32.mrb[0].mxu0
        %2429 = vmatprep.mubr.bf16.mxu0 0
        %2430 = vmatmul.mubr.bf16.gmra.mrb[0].mxu0 %v2287
        %v2431 = vpop.f32.mrb[0].mxu0
        %v2432 = vadd.f32 0.0, %v2431
        %v2433 = vpop.f32.mrb[0].mxu0
        %v2434 = vpop.f32.mrb[0].mxu0
        %v2435 = vadd.f32 0.0, %v2434
        %v2436 = vpop.f32.mrb[0].mxu0
        %2437 = vmatprep.mubr.bf16.mxu0 0
        %2438 = vmatmul.mubr.bf16.gmra.mrb[0].mxu0 %v2290
        %v2439 = vpop.f32.mrb[0].mxu0
        %v2440 = vadd.f32 0.0, %v2439
        %v2441 = vpop.f32.mrb[0].mxu0
        %v2442 = vpop.f32.mrb[0].mxu0
        %v2443 = vadd.f32 0.0, %v2442
        %v2444 = vpop.f32.mrb[0].mxu0
        %2445 = vmatprep.mubr.bf16.mxu0 0
        %2446 = vmatmul.mubr.bf16.gmra.mrb[0].mxu0 %v2293
        %v2447 = vpop.f32.mrb[0].mxu0
        %v2448 = vadd.f32 0.0, %v2447
        %v2449 = vpop.f32.mrb[0].mxu0
        %v2450 = vpop.f32.mrb[0].mxu0
        %v2451 = vadd.f32 0.0, %v2450
        %v2452 = vpop.f32.mrb[0].mxu0
        %2453 = vmatprep.mubr.bf16.mxu0 0
        %2454 = vmatmul.mubr.bf16.gmra.mrb[0].mxu0 %v2296
        %v2455 = vpop.f32.mrb[0].mxu0
        %v2456 = vadd.f32 0.0, %v2455
        %v2457 = vpop.f32.mrb[0].mxu0
        %v2458 = vpop.f32.mrb[0].mxu0
        %v2459 = vadd.f32 0.0, %v2458
        %v2460 = vpop.f32.mrb[0].mxu0
        %2461 = vmatprep.mubr.bf16.mxu0 0
        %2462 = vmatmul.mubr.bf16.gmra.mrb[0].mxu0 %v2299
        %v2463 = vpop.f32.mrb[0].mxu0
        %v2464 = vadd.f32 0.0, %v2463
        %v2465 = vpop.f32.mrb[0].mxu0
        %v2466 = vpop.f32.mrb[0].mxu0
        %v2467 = vadd.f32 0.0, %v2466
        %v2468 = vpop.f32.mrb[0].mxu0
        %2469 = vmatprep.mubr.bf16.mxu0 0
        %2470 = vmatmul.mubr.bf16.gmra.mrb[0].mxu0 %v2302
        %v2471 = vpop.f32.mrb[0].mxu0
        %v2472 = vadd.f32 0.0, %v2471
        %v2473 = vpop.f32.mrb[0].mxu0
        %v2474 = vpop.f32.mrb[0].mxu0
        %v2475 = vadd.f32 0.0, %v2474
        %v2476 = vpop.f32.mrb[0].mxu0
        %2477 = vmatprep.mubr.bf16.mxu0 0
        %2478 = vmatmul.mubr.bf16.gmra.mrb[0].mxu0 %v2305
        %v2479 = vpop.f32.mrb[0].mxu0
        %v2480 = vadd.f32 0.0, %v2479
        %v2481 = vpop.f32.mrb[0].mxu0
        %v2482 = vpop.f32.mrb[0].mxu0
        %v2483 = vadd.f32 0.0, %v2482
        %v2484 = vpop.f32.mrb[0].mxu0
        %2485 = vmatprep.mubr.bf16.mxu0 0
        %2486 = vmatmul.mubr.bf16.gmra.mrb[0].mxu0 %v2308
        %v2487 = vpop.f32.mrb[0].mxu0
        %v2488 = vadd.f32 0.0, %v2487
        %v2489 = vpop.f32.mrb[0].mxu0
        %v2490 = vpop.f32.mrb[0].mxu0
        %v2491 = vadd.f32 0.0, %v2490
        %v2492 = vpop.f32.mrb[0].mxu0
        %2493 = vmatprep.mubr.bf16.mxu0 0
        %2494 = vmatmul.mubr.bf16.gmra.mrb[0].mxu0 %v2311
        %v2495 = vpop.f32.mrb[0].mxu0
        %v2496 = vadd.f32 0.0, %v2495
        %v2497 = vpop.f32.mrb[0].mxu0
        %v2498 = vpop.f32.mrb[0].mxu0
        %v2499 = vadd.f32 0.0, %v2498
        %v2500 = vpop.f32.mrb[0].mxu0
        %2501 = vmatprep.mubr.bf16.mxu0 0
        %2502 = vmatmul.mubr.bf16.gmra.mrb[0].mxu0 %v2314
        %v2503 = vpop.f32.mrb[0].mxu0
        %v2504 = vadd.f32 0.0, %v2503
        %v2505 = vpop.f32.mrb[0].mxu0
        %v2506 = vpop.f32.mrb[0].mxu0
        %v2507 = vadd.f32 0.0, %v2506
        %v2508 = vpop.f32.mrb[0].mxu0
        %2509 = vmatprep.mubr.bf16.mxu0 0
        %2510 = vmatmul.mubr.bf16.gmra.mrb[0].mxu0 %v2317
        %v2511 = vpop.f32.mrb[0].mxu0
        %v2512 = vadd.f32 0.0, %v2511
        %v2513 = vpop.f32.mrb[0].mxu0
        %v2514 = vpop.f32.mrb[0].mxu0
        %v2515 = vadd.f32 0.0, %v2514
        %v2516 = vpop.f32.mrb[0].mxu0
        %2517 = vmatprep.mubr.bf16.mxu0 0
        %2518 = vmatmul.mubr.bf16.gmra.mrb[0].mxu0 %v2320
        %v2519 = vpop.f32.mrb[0].mxu0
        %v2520 = vadd.f32 0.0, %v2519
        %v2521 = vpop.f32.mrb[0].mxu0
        %v2522 = vpop.f32.mrb[0].mxu0
        %v2523 = vpop.f32.mrb[0].mxu0
        %2524 = vdwg.mxu0
        %v2525 = vadd.f32 %v2023, %v2360
        %v2526 = vadd.f32 %v2024, %v2363
        %v2527 = vadd.f32 %v2025, %v2368
        %v2528 = vadd.f32 %v2026, %v2371
        %v2529 = vadd.f32 %v2027, %v2376
        %v2530 = vadd.f32 %v2028, %v2379
        %v2531 = vadd.f32 %v2029, %v2384
        %v2532 = vadd.f32 %v2030, %v2387
        %v2533 = vadd.f32 %v2031, %v2392
        %v2534 = vadd.f32 %v2032, %v2395
        %v2535 = vadd.f32 %v2033, %v2400
        %v2536 = vadd.f32 %v2034, %v2403
        %v2537 = vadd.f32 %v2035, %v2408
        %v2538 = vadd.f32 %v2036, %v2411
        %v2539 = vadd.f32 %v2037, %v2416
        %v2540 = vadd.f32 %v2038, %v2419
        %v2541 = vadd.f32 %v2039, %v2424
        %v2542 = vadd.f32 %v2040, %v2427
        %v2543 = vadd.f32 %v2041, %v2432
        %v2544 = vadd.f32 %v2042, %v2435
        %v2545 = vadd.f32 %v2043, %v2440
        %v2546 = vadd.f32 %v2044, %v2443
        %v2547 = vadd.f32 %v2045, %v2448
        %v2548 = vadd.f32 %v2046, %v2451
        %v2549 = vadd.f32 %v2047, %v2456
        %v2550 = vadd.f32 %v2048, %v2459
        %v2551 = vadd.f32 %v2049, %v2464
        %v2552 = vadd.f32 %v2050, %v2467
        %v2553 = vadd.f32 %v2051, %v2472
        %v2554 = vadd.f32 %v2052, %v2475
        %v2555 = vadd.f32 %v2053, %v2480
        %v2556 = vadd.f32 %v2054, %v2483
        %v2557 = vadd.f32 %v2055, %v2488
        %v2558 = vadd.f32 %v2056, %v2491
        %v2559 = vadd.f32 %v2057, %v2496
        %v2560 = vadd.f32 %v2058, %v2499
        %v2561 = vadd.f32 %v2059, %v2504
        %v2562 = vadd.f32 %v2060, %v2507
        %v2563 = vadd.f32 %v2061, %v2512
        %v2564 = vadd.f32 %v2062, %v2515
        %v2565 = vadd.f32 %v2063, %v2520
        %v2566 = vld [vmem:[%s323 + $0x8] sm:$0xc]
        %s2567 = scalar_lea.vmem [#allocation6], 10
        %v2568 = vld [vmem:[%s2567] sm:$0x3]
        %v2570 = vunpack.c.l.b16 %v2566
        %v2571 = vpack.c.b16 %v1654, %v2570
        %vm2572 = vcmask 1045504
        %v2573 = vrot.slane %v2571, 2
        %v2574 = vrot.slane %v1696, 2
        %v2575 = vsel %vm2572, %v2573, %v2574
        %v2576 = vrot.slane %v1697, 2
        %v2577 = vsel %vm2572, %v2574, %v2576
        %v2578 = vrot.slane %v1698, 2
        %v2579 = vsel %vm2572, %v2576, %v2578
        %v2580 = vrot.slane %v1699, 2
        %v2581 = vsel %vm2572, %v2578, %v2580
        %v2582 = vrot.slane %v1700, 2
        %v2583 = vsel %vm2572, %v2580, %v2582
        %v2584 = vrot.slane %v1701, 2
        %v2585 = vsel %vm2572, %v2582, %v2584
        %v2586 = vrot.slane %v1702, 2
        %v2587 = vsel %vm2572, %v2584, %v2586
        %v2588 = vrot.slane %v1703, 2
        %v2589 = vsel %vm2572, %v2586, %v2588
        %v2590 = vrot.slane %v1704, 2
        %v2591 = vsel %vm2572, %v2588, %v2590
        %v2592 = vrot.slane %v1705, 2
        %v2593 = vsel %vm2572, %v2590, %v2592
        %v2594 = vrot.slane %v1706, 2
        %v2595 = vsel %vm2572, %v2592, %v2594
        %v2596 = vrot.slane %v1707, 2
        %v2597 = vsel %vm2572, %v2594, %v2596
        %v2598 = vrot.slane %v1708, 2
        %v2599 = vsel %vm2572, %v2596, %v2598
        %v2600 = vrot.slane %v1709, 2
        %v2601 = vsel %vm2572, %v2598, %v2600
        %v2602 = vrot.slane %v1710, 2
        %v2603 = vsel %vm2572, %v2600, %v2602
        %v2604 = vrot.slane %v1711, 2
        %v2605 = vsel %vm2572, %v2602, %v2604
        %v2606 = vrot.slane %v1712, 2
        %v2607 = vsel %vm2572, %v2604, %v2606
        %v2608 = vrot.slane %v1713, 2
        %v2609 = vsel %vm2572, %v2606, %v2608
        %v2610 = vrot.slane %v1714, 2
        %v2611 = vsel %vm2572, %v2608, %v2610
        %v2612 = vrot.slane %v2069, 2
        %v2613 = vsel %vm2572, %v2610, %v2612
        %v2615 = vsel %vm697, %v2575, 0
        %v2618 = vsel %vm697, %v2577, 0
        %v2621 = vsel %vm697, %v2579, 0
        %v2624 = vsel %vm697, %v2581, 0
        %v2627 = vsel %vm697, %v2583, 0
        %v2630 = vsel %vm697, %v2585, 0
        %v2633 = vsel %vm697, %v2587, 0
        %v2636 = vsel %vm697, %v2589, 0
        %v2639 = vsel %vm697, %v2591, 0
        %v2642 = vsel %vm697, %v2593, 0
        %v2645 = vsel %vm697, %v2595, 0
        %v2648 = vsel %vm697, %v2597, 0
        %v2651 = vsel %vm697, %v2599, 0
        %v2654 = vsel %vm697, %v2601, 0
        %v2657 = vsel %vm697, %v2603, 0
        %v2660 = vsel %vm697, %v2605, 0
        %v2663 = vsel %vm697, %v2607, 0
        %v2666 = vsel %vm697, %v2609, 0
        %v2669 = vsel %vm697, %v2611, 0
        %v2672 = vsel %vm697, %v2613, 0
        %v2675 = vsel %vm697, %v2612, 0
        %v2678 = vsel %vm761, %v2568, 0
        %2680 = vmatprep.subr.bf16.mxu0 0
        %2681 = vmatpush1.bf16.msra.mxu0 %v2678
        %2682 = vmatprep.subr.bf16.mxu0 0
        %2683 = vmatpush1.bf16.msra.mxu0 0
        %2684 = vmatprep.subr.bf16.mxu0 0
        %2685 = vmatpush1.bf16.msra.mxu0 0
        %2686 = vmatprep.subr.bf16.mxu0 0
        %2687 = vmatpush1.bf16.msra.mxu0 0
        %2688 = vmatprep.subr.bf16.mxu0 0
        %2689 = vmatpush1.bf16.msra.mxu0 0
        %2690 = vmatprep.subr.bf16.mxu0 0
        %2691 = vmatpush1.bf16.msra.mxu0 0
        %2692 = vmatprep.subr.bf16.mxu0 0
        %2693 = vmatpush1.bf16.msra.mxu0 0
        %2694 = vmatprep.subr.bf16.mxu0 0
        %2695 = vmatpush1.bf16.msra.mxu0 0
        %2696 = vmatprep.subr.bf16.mxu0 0
        %2697 = vmatpush1.bf16.msra.mxu0 0
        %2698 = vmatprep.subr.bf16.mxu0 0
        %2699 = vmatpush1.bf16.msra.mxu0 0
        %2700 = vmatprep.subr.bf16.mxu0 0
        %2701 = vmatpush1.bf16.msra.mxu0 0
        %2702 = vmatprep.subr.bf16.mxu0 0
        %2703 = vmatpush1.bf16.msra.mxu0 0
        %2704 = vmatprep.subr.bf16.mxu0 0
        %2705 = vmatpush1.bf16.msra.mxu0 0
        %2706 = vmatprep.subr.bf16.mxu0 0
        %2707 = vmatpush1.bf16.msra.mxu0 0
        %2708 = vmatprep.subr.bf16.mxu0 0
        %2709 = vmatpush1.bf16.msra.mxu0 0
        %2710 = vmatprep.subr.bf16.mxu0 0
        %2711 = vmatpush1.bf16.msra.mxu0 0
        %2712 = vmatprep.mubr.bf16.mxu0 0
        %2713 = vmatmul.mubr.bf16.gmra.mrb[0].mxu0 %v2615
        %v2714 = vpop.f32.mrb[0].mxu0
        %v2715 = vadd.f32 0.0, %v2714
        %v2716 = vpop.f32.mrb[0].mxu0
        %v2717 = vpop.f32.mrb[0].mxu0
        %v2718 = vadd.f32 0.0, %v2717
        %v2719 = vpop.f32.mrb[0].mxu0
        %2720 = vmatprep.mubr.bf16.mxu0 0
        %2721 = vmatmul.mubr.bf16.gmra.mrb[0].mxu0 %v2618
        %v2722 = vpop.f32.mrb[0].mxu0
        %v2723 = vadd.f32 0.0, %v2722
        %v2724 = vpop.f32.mrb[0].mxu0
        %v2725 = vpop.f32.mrb[0].mxu0
        %v2726 = vadd.f32 0.0, %v2725
        %v2727 = vpop.f32.mrb[0].mxu0
        %2728 = vmatprep.mubr.bf16.mxu0 0
        %2729 = vmatmul.mubr.bf16.gmra.mrb[0].mxu0 %v2621
        %v2730 = vpop.f32.mrb[0].mxu0
        %v2731 = vadd.f32 0.0, %v2730
        %v2732 = vpop.f32.mrb[0].mxu0
        %v2733 = vpop.f32.mrb[0].mxu0
        %v2734 = vadd.f32 0.0, %v2733
        %v2735 = vpop.f32.mrb[0].mxu0
        %2736 = vmatprep.mubr.bf16.mxu0 0
        %2737 = vmatmul.mubr.bf16.gmra.mrb[0].mxu0 %v2624
        %v2738 = vpop.f32.mrb[0].mxu0
        %v2739 = vadd.f32 0.0, %v2738
        %v2740 = vpop.f32.mrb[0].mxu0
        %v2741 = vpop.f32.mrb[0].mxu0
        %v2742 = vadd.f32 0.0, %v2741
        %v2743 = vpop.f32.mrb[0].mxu0
        %2744 = vmatprep.mubr.bf16.mxu0 0
        %2745 = vmatmul.mubr.bf16.gmra.mrb[0].mxu0 %v2627
        %v2746 = vpop.f32.mrb[0].mxu0
        %v2747 = vadd.f32 0.0, %v2746
        %v2748 = vpop.f32.mrb[0].mxu0
        %v2749 = vpop.f32.mrb[0].mxu0
        %v2750 = vadd.f32 0.0, %v2749
        %v2751 = vpop.f32.mrb[0].mxu0
        %2752 = vmatprep.mubr.bf16.mxu0 0
        %2753 = vmatmul.mubr.bf16.gmra.mrb[0].mxu0 %v2630
        %v2754 = vpop.f32.mrb[0].mxu0
        %v2755 = vadd.f32 0.0, %v2754
        %v2756 = vpop.f32.mrb[0].mxu0
        %v2757 = vpop.f32.mrb[0].mxu0
        %v2758 = vadd.f32 0.0, %v2757
        %v2759 = vpop.f32.mrb[0].mxu0
        %2760 = vmatprep.mubr.bf16.mxu0 0
        %2761 = vmatmul.mubr.bf16.gmra.mrb[0].mxu0 %v2633
        %v2762 = vpop.f32.mrb[0].mxu0
        %v2763 = vadd.f32 0.0, %v2762
        %v2764 = vpop.f32.mrb[0].mxu0
        %v2765 = vpop.f32.mrb[0].mxu0
        %v2766 = vadd.f32 0.0, %v2765
        %v2767 = vpop.f32.mrb[0].mxu0
        %2768 = vmatprep.mubr.bf16.mxu0 0
        %2769 = vmatmul.mubr.bf16.gmra.mrb[0].mxu0 %v2636
        %v2770 = vpop.f32.mrb[0].mxu0
        %v2771 = vadd.f32 0.0, %v2770
        %v2772 = vpop.f32.mrb[0].mxu0
        %v2773 = vpop.f32.mrb[0].mxu0
        %v2774 = vadd.f32 0.0, %v2773
        %v2775 = vpop.f32.mrb[0].mxu0
        %2776 = vmatprep.mubr.bf16.mxu0 0
        %2777 = vmatmul.mubr.bf16.gmra.mrb[0].mxu0 %v2639
        %v2778 = vpop.f32.mrb[0].mxu0
        %v2779 = vadd.f32 0.0, %v2778
        %v2780 = vpop.f32.mrb[0].mxu0
        %v2781 = vpop.f32.mrb[0].mxu0
        %v2782 = vadd.f32 0.0, %v2781
        %v2783 = vpop.f32.mrb[0].mxu0
        %2784 = vmatprep.mubr.bf16.mxu0 0
        %2785 = vmatmul.mubr.bf16.gmra.mrb[0].mxu0 %v2642
        %v2786 = vpop.f32.mrb[0].mxu0
        %v2787 = vadd.f32 0.0, %v2786
        %v2788 = vpop.f32.mrb[0].mxu0
        %v2789 = vpop.f32.mrb[0].mxu0
        %v2790 = vadd.f32 0.0, %v2789
        %v2791 = vpop.f32.mrb[0].mxu0
        %2792 = vmatprep.mubr.bf16.mxu0 0
        %2793 = vmatmul.mubr.bf16.gmra.mrb[0].mxu0 %v2645
        %v2794 = vpop.f32.mrb[0].mxu0
        %v2795 = vadd.f32 0.0, %v2794
        %v2796 = vpop.f32.mrb[0].mxu0
        %v2797 = vpop.f32.mrb[0].mxu0
        %v2798 = vadd.f32 0.0, %v2797
        %v2799 = vpop.f32.mrb[0].mxu0
        %2800 = vmatprep.mubr.bf16.mxu0 0
        %2801 = vmatmul.mubr.bf16.gmra.mrb[0].mxu0 %v2648
        %v2802 = vpop.f32.mrb[0].mxu0
        %v2803 = vadd.f32 0.0, %v2802
        %v2804 = vpop.f32.mrb[0].mxu0
        %v2805 = vpop.f32.mrb[0].mxu0
        %v2806 = vadd.f32 0.0, %v2805
        %v2807 = vpop.f32.mrb[0].mxu0
        %2808 = vmatprep.mubr.bf16.mxu0 0
        %2809 = vmatmul.mubr.bf16.gmra.mrb[0].mxu0 %v2651
        %v2810 = vpop.f32.mrb[0].mxu0
        %v2811 = vadd.f32 0.0, %v2810
        %v2812 = vpop.f32.mrb[0].mxu0
        %v2813 = vpop.f32.mrb[0].mxu0
        %v2814 = vadd.f32 0.0, %v2813
        %v2815 = vpop.f32.mrb[0].mxu0
        %2816 = vmatprep.mubr.bf16.mxu0 0
        %2817 = vmatmul.mubr.bf16.gmra.mrb[0].mxu0 %v2654
        %v2818 = vpop.f32.mrb[0].mxu0
        %v2819 = vadd.f32 0.0, %v2818
        %v2820 = vpop.f32.mrb[0].mxu0
        %v2821 = vpop.f32.mrb[0].mxu0
        %v2822 = vadd.f32 0.0, %v2821
        %v2823 = vpop.f32.mrb[0].mxu0
        %2824 = vmatprep.mubr.bf16.mxu0 0
        %2825 = vmatmul.mubr.bf16.gmra.mrb[0].mxu0 %v2657
        %v2826 = vpop.f32.mrb[0].mxu0
        %v2827 = vadd.f32 0.0, %v2826
        %v2828 = vpop.f32.mrb[0].mxu0
        %v2829 = vpop.f32.mrb[0].mxu0
        %v2830 = vadd.f32 0.0, %v2829
        %v2831 = vpop.f32.mrb[0].mxu0
        %2832 = vmatprep.mubr.bf16.mxu0 0
        %2833 = vmatmul.mubr.bf16.gmra.mrb[0].mxu0 %v2660
        %v2834 = vpop.f32.mrb[0].mxu0
        %v2835 = vadd.f32 0.0, %v2834
        %v2836 = vpop.f32.mrb[0].mxu0
        %v2837 = vpop.f32.mrb[0].mxu0
        %v2838 = vadd.f32 0.0, %v2837
        %v2839 = vpop.f32.mrb[0].mxu0
        %2840 = vmatprep.mubr.bf16.mxu0 0
        %2841 = vmatmul.mubr.bf16.gmra.mrb[0].mxu0 %v2663
        %v2842 = vpop.f32.mrb[0].mxu0
        %v2843 = vadd.f32 0.0, %v2842
        %v2844 = vpop.f32.mrb[0].mxu0
        %v2845 = vpop.f32.mrb[0].mxu0
        %v2846 = vadd.f32 0.0, %v2845
        %v2847 = vpop.f32.mrb[0].mxu0
        %2848 = vmatprep.mubr.bf16.mxu0 0
        %2849 = vmatmul.mubr.bf16.gmra.mrb[0].mxu0 %v2666
        %v2850 = vpop.f32.mrb[0].mxu0
        %v2851 = vadd.f32 0.0, %v2850
        %v2852 = vpop.f32.mrb[0].mxu0
        %v2853 = vpop.f32.mrb[0].mxu0
        %v2854 = vadd.f32 0.0, %v2853
        %v2855 = vpop.f32.mrb[0].mxu0
        %2856 = vmatprep.mubr.bf16.mxu0 0
        %2857 = vmatmul.mubr.bf16.gmra.mrb[0].mxu0 %v2669
        %v2858 = vpop.f32.mrb[0].mxu0
        %v2859 = vadd.f32 0.0, %v2858
        %v2860 = vpop.f32.mrb[0].mxu0
        %v2861 = vpop.f32.mrb[0].mxu0
        %v2862 = vadd.f32 0.0, %v2861
        %v2863 = vpop.f32.mrb[0].mxu0
        %2864 = vmatprep.mubr.bf16.mxu0 0
        %2865 = vmatmul.mubr.bf16.gmra.mrb[0].mxu0 %v2672
        %v2866 = vpop.f32.mrb[0].mxu0
        %v2867 = vadd.f32 0.0, %v2866
        %v2868 = vpop.f32.mrb[0].mxu0
        %v2869 = vpop.f32.mrb[0].mxu0
        %v2870 = vadd.f32 0.0, %v2869
        %v2871 = vpop.f32.mrb[0].mxu0
        %2872 = vmatprep.mubr.bf16.mxu0 0
        %2873 = vmatmul.mubr.bf16.gmra.mrb[0].mxu0 %v2675
        %v2874 = vpop.f32.mrb[0].mxu0
        %v2875 = vadd.f32 0.0, %v2874
        %v2876 = vpop.f32.mrb[0].mxu0
        %v2877 = vpop.f32.mrb[0].mxu0
        %v2878 = vpop.f32.mrb[0].mxu0
        %2879 = vdwg.mxu0
        %v2880 = vadd.f32 %v2525, %v2715
        %v2881 = vadd.f32 %v2526, %v2718
        %v2882 = vadd.f32 %v2527, %v2723
        %v2883 = vadd.f32 %v2528, %v2726
        %v2884 = vadd.f32 %v2529, %v2731
        %v2885 = vadd.f32 %v2530, %v2734
        %v2886 = vadd.f32 %v2531, %v2739
        %v2887 = vadd.f32 %v2532, %v2742
        %v2888 = vadd.f32 %v2533, %v2747
        %v2889 = vadd.f32 %v2534, %v2750
        %v2890 = vadd.f32 %v2535, %v2755
        %v2891 = vadd.f32 %v2536, %v2758
        %v2892 = vadd.f32 %v2537, %v2763
        %v2893 = vadd.f32 %v2538, %v2766
        %v2894 = vadd.f32 %v2539, %v2771
        %v2895 = vadd.f32 %v2540, %v2774
        %v2896 = vadd.f32 %v2541, %v2779
        %v2897 = vadd.f32 %v2542, %v2782
        %v2898 = vadd.f32 %v2543, %v2787
        %v2899 = vadd.f32 %v2544, %v2790
        %v2900 = vadd.f32 %v2545, %v2795
        %v2901 = vadd.f32 %v2546, %v2798
        %v2902 = vadd.f32 %v2547, %v2803
        %v2903 = vadd.f32 %v2548, %v2806
        %v2904 = vadd.f32 %v2549, %v2811
        %v2905 = vadd.f32 %v2550, %v2814
        %v2906 = vadd.f32 %v2551, %v2819
        %v2907 = vadd.f32 %v2552, %v2822
        %v2908 = vadd.f32 %v2553, %v2827
        %v2909 = vadd.f32 %v2554, %v2830
        %v2910 = vadd.f32 %v2555, %v2835
        %v2911 = vadd.f32 %v2556, %v2838
        %v2912 = vadd.f32 %v2557, %v2843
        %v2913 = vadd.f32 %v2558, %v2846
        %v2914 = vadd.f32 %v2559, %v2851
        %v2915 = vadd.f32 %v2560, %v2854
        %v2916 = vadd.f32 %v2561, %v2859
        %v2917 = vadd.f32 %v2562, %v2862
        %v2918 = vadd.f32 %v2563, %v2867
        %v2919 = vadd.f32 %v2564, %v2870
        %v2920 = vadd.f32 %v2565, %v2875
        %v2921 = vld [vmem:[%s323 + $0x10] sm:$0xc]
        %v2922 = vld [vmem:[%s323 + $0x14] sm:$0xf]
        %v2923 = vld [vmem:[%s323 + $0x18] sm:$0xf]
        %v2924 = vld [vmem:[%s323 + $0x1c] sm:$0xf]
        %v2925 = vld [vmem:[%s323 + $0x20] sm:$0xf]
        %v2926 = vld [vmem:[%s323 + $0x24] sm:$0xf]
        %v2927 = vld [vmem:[%s323 + $0x28] sm:$0xf]
        %v2928 = vld [vmem:[%s323 + $0x2c] sm:$0xf]
        %v2929 = vld [vmem:[%s323 + $0x30] sm:$0xf]
        %v2930 = vld [vmem:[%s323 + $0x34] sm:$0xf]
        %v2931 = vld [vmem:[%s323 + $0x38] sm:$0xf]
        %v2932 = vld [vmem:[%s323 + $0x3c] sm:$0xf]
        %v2933 = vld [vmem:[%s323 + $0x40] sm:$0xf]
        %v2934 = vld [vmem:[%s323 + $0x44] sm:$0xf]
        %v2935 = vld [vmem:[%s323 + $0x48] sm:$0xf]
        %v2936 = vld [vmem:[%s323 + $0x4c] sm:$0xf]
        %v2937 = vld [vmem:[%s323 + $0x50] sm:$0xf]
        %v2938 = vld [vmem:[%s323 + $0x54] sm:$0xf]
        %v2939 = vld [vmem:[%s323 + $0x58] sm:$0xf]
        %v2940 = vld [vmem:[%s323 + $0x5c] sm:$0xf]
        %v2941 = vld [vmem:[%s323 + $0x60] sm:$0xf]
        %v2942 = vld [vmem:[%s323 + $0x64] sm:$0xf]
        %v2943 = vld [vmem:[%s323 + $0x68] sm:$0xf]
        %v2944 = vld [vmem:[%s323 + $0x6c] sm:$0xf]
        %v2945 = vld [vmem:[%s323 + $0x70] sm:$0xf]
        %v2946 = vld [vmem:[%s323 + $0x74] sm:$0xf]
        %v2947 = vld [vmem:[%s323 + $0x78] sm:$0xf]
        %v2948 = vld [vmem:[%s323 + $0x7c] sm:$0xf]
        %v2949 = vld [vmem:[%s323 + $0x80] sm:$0xf]
        %v2950 = vld [vmem:[%s323 + $0x84] sm:$0xf]
        %v2951 = vld [vmem:[%s323 + $0x88] sm:$0xf]
        %v2952 = vld [vmem:[%s323 + $0x8c] sm:$0xf]
        %v2953 = vld [vmem:[%s323 + $0x90] sm:$0xf]
        %v2954 = vld [vmem:[%s323 + $0x94] sm:$0xf]
        %v2955 = vld [vmem:[%s323 + $0x98] sm:$0xf]
        %v2956 = vld [vmem:[%s323 + $0x9c] sm:$0xf]
        %v2957 = vld [vmem:[%s323 + $0xa0] sm:$0xf]
        %v2958 = vld [vmem:[%s323 + $0xa4] sm:$0xf]
        %v2959 = vld [vmem:[%s323 + $0xa8] sm:$0xf]
        %v2960 = vld [vmem:[%s323 + $0xac] sm:$0xf]
        %v2961 = vld [vmem:[%s323 + $0xb0] sm:$0xf]
        %v2962 = vld [vmem:[%s323 + $0xb4] sm:$0x3]
        %s2963 = scalar_lea.vmem [#allocation6], 12
        %v2964 = vld [vmem:[%s2963] sm:$0x3]
        %v3007 = vunpack.c.l.b16 %v2921
        %v3008 = vunpack.c.l.b16 %v2922
        %v3009 = vunpack.c.l.b16 %v2923
        %v3010 = vunpack.c.l.b16 %v2924
        %v3011 = vunpack.c.l.b16 %v2925
        %v3012 = vunpack.c.l.b16 %v2926
        %v3013 = vunpack.c.l.b16 %v2927
        %v3014 = vunpack.c.l.b16 %v2928
        %v3015 = vunpack.c.l.b16 %v2929
        %v3016 = vunpack.c.l.b16 %v2930
        %v3017 = vunpack.c.l.b16 %v2931
        %v3018 = vunpack.c.l.b16 %v2932
        %v3019 = vunpack.c.l.b16 %v2933
        %v3020 = vunpack.c.l.b16 %v2934
        %v3021 = vunpack.c.l.b16 %v2935
        %v3022 = vunpack.c.l.b16 %v2936
        %v3023 = vunpack.c.l.b16 %v2937
        %v3024 = vunpack.c.l.b16 %v2938
        %v3025 = vunpack.c.l.b16 %v2939
        %v3026 = vunpack.c.l.b16 %v2940
        %v3027 = vunpack.c.l.b16 %v2941
        %v3028 = vunpack.c.l.b16 %v2942
        %v3029 = vunpack.c.l.b16 %v2943
        %v3030 = vunpack.c.l.b16 %v2944
        %v3031 = vunpack.c.l.b16 %v2945
        %v3032 = vunpack.c.l.b16 %v2946
        %v3033 = vunpack.c.l.b16 %v2947
        %v3034 = vunpack.c.l.b16 %v2948
        %v3035 = vunpack.c.l.b16 %v2949
        %v3036 = vunpack.c.l.b16 %v2950
        %v3037 = vunpack.c.l.b16 %v2951
        %v3038 = vunpack.c.l.b16 %v2952
        %v3039 = vunpack.c.l.b16 %v2953
        %v3040 = vunpack.c.l.b16 %v2954
        %v3041 = vunpack.c.l.b16 %v2955
        %v3042 = vunpack.c.l.b16 %v2956
        %v3043 = vunpack.c.l.b16 %v2957
        %v3044 = vunpack.c.l.b16 %v2958
        %v3045 = vunpack.c.l.b16 %v2959
        %v3046 = vunpack.c.l.b16 %v2960
        %v3047 = vunpack.c.l.b16 %v2961
        %v3048 = vunpack.c.l.b16 %v2962
        %v3049 = vpack.c.b16 %v3008, %v3007
        %v3050 = vpack.c.b16 %v3010, %v3009
        %v3051 = vpack.c.b16 %v3012, %v3011
        %v3052 = vpack.c.b16 %v3014, %v3013
        %v3053 = vpack.c.b16 %v3016, %v3015
        %v3054 = vpack.c.b16 %v3018, %v3017
        %v3055 = vpack.c.b16 %v3020, %v3019
        %v3056 = vpack.c.b16 %v3022, %v3021
        %v3057 = vpack.c.b16 %v3024, %v3023
        %v3058 = vpack.c.b16 %v3026, %v3025
        %v3059 = vpack.c.b16 %v3028, %v3027
        %v3060 = vpack.c.b16 %v3030, %v3029
        %v3061 = vpack.c.b16 %v3032, %v3031
        %v3062 = vpack.c.b16 %v3034, %v3033
        %v3063 = vpack.c.b16 %v3036, %v3035
        %v3064 = vpack.c.b16 %v3038, %v3037
        %v3065 = vpack.c.b16 %v3040, %v3039
        %v3066 = vpack.c.b16 %v3042, %v3041
        %v3067 = vpack.c.b16 %v3044, %v3043
        %v3068 = vpack.c.b16 %v3046, %v3045
        %v3069 = vpack.c.b16 %v3048, %v3047
        %v3070 = vrot.slane %v3049, 2
        %v3071 = vrot.slane %v3050, 2
        %v3072 = vsel %vm2572, %v3070, %v3071
        %v3073 = vrot.slane %v3051, 2
        %v3074 = vsel %vm2572, %v3071, %v3073
        %v3075 = vrot.slane %v3052, 2
        %v3076 = vsel %vm2572, %v3073, %v3075
        %v3077 = vrot.slane %v3053, 2
        %v3078 = vsel %vm2572, %v3075, %v3077
        %v3079 = vrot.slane %v3054, 2
        %v3080 = vsel %vm2572, %v3077, %v3079
        %v3081 = vrot.slane %v3055, 2
        %v3082 = vsel %vm2572, %v3079, %v3081
        %v3083 = vrot.slane %v3056, 2
        %v3084 = vsel %vm2572, %v3081, %v3083
        %v3085 = vrot.slane %v3057, 2
        %v3086 = vsel %vm2572, %v3083, %v3085
        %v3087 = vrot.slane %v3058, 2
        %v3088 = vsel %vm2572, %v3085, %v3087
        %v3089 = vrot.slane %v3059, 2
        %v3090 = vsel %vm2572, %v3087, %v3089
        %v3091 = vrot.slane %v3060, 2
        %v3092 = vsel %vm2572, %v3089, %v3091
        %v3093 = vrot.slane %v3061, 2
        %v3094 = vsel %vm2572, %v3091, %v3093
        %v3095 = vrot.slane %v3062, 2
        %v3096 = vsel %vm2572, %v3093, %v3095
        %v3097 = vrot.slane %v3063, 2
        %v3098 = vsel %vm2572, %v3095, %v3097
        %v3099 = vrot.slane %v3064, 2
        %v3100 = vsel %vm2572, %v3097, %v3099
        %v3101 = vrot.slane %v3065, 2
        %v3102 = vsel %vm2572, %v3099, %v3101
        %v3103 = vrot.slane %v3066, 2
        %v3104 = vsel %vm2572, %v3101, %v3103
        %v3105 = vrot.slane %v3067, 2
        %v3106 = vsel %vm2572, %v3103, %v3105
        %v3107 = vrot.slane %v3068, 2
        %v3108 = vsel %vm2572, %v3105, %v3107
        %v3109 = vrot.slane %v3069, 2
        %v3110 = vsel %vm2572, %v3107, %v3109
        %v3112 = vsel %vm697, %v3072, 0
        %v3115 = vsel %vm697, %v3074, 0
        %v3118 = vsel %vm697, %v3076, 0
        %v3121 = vsel %vm697, %v3078, 0
        %v3124 = vsel %vm697, %v3080, 0
        %v3127 = vsel %vm697, %v3082, 0
        %v3130 = vsel %vm697, %v3084, 0
        %v3133 = vsel %vm697, %v3086, 0
        %v3136 = vsel %vm697, %v3088, 0
        %v3139 = vsel %vm697, %v3090, 0
        %v3142 = vsel %vm697, %v3092, 0
        %v3145 = vsel %vm697, %v3094, 0
        %v3148 = vsel %vm697, %v3096, 0
        %v3151 = vsel %vm697, %v3098, 0
        %v3154 = vsel %vm697, %v3100, 0
        %v3157 = vsel %vm697, %v3102, 0
        %v3160 = vsel %vm697, %v3104, 0
        %v3163 = vsel %vm697, %v3106, 0
        %v3166 = vsel %vm697, %v3108, 0
        %v3169 = vsel %vm697, %v3110, 0
        %v3172 = vsel %vm697, %v3109, 0
        %v3175 = vsel %vm761, %v2964, 0
        %3177 = vmatprep.subr.bf16.mxu0 0
        %3178 = vmatpush1.bf16.msra.mxu0 %v3175
        %3179 = vmatprep.subr.bf16.mxu0 0
        %3180 = vmatpush1.bf16.msra.mxu0 0
        %3181 = vmatprep.subr.bf16.mxu0 0
        %3182 = vmatpush1.bf16.msra.mxu0 0
        %3183 = vmatprep.subr.bf16.mxu0 0
        %3184 = vmatpush1.bf16.msra.mxu0 0
        %3185 = vmatprep.subr.bf16.mxu0 0
        %3186 = vmatpush1.bf16.msra.mxu0 0
        %3187 = vmatprep.subr.bf16.mxu0 0
        %3188 = vmatpush1.bf16.msra.mxu0 0
        %3189 = vmatprep.subr.bf16.mxu0 0
        %3190 = vmatpush1.bf16.msra.mxu0 0
        %3191 = vmatprep.subr.bf16.mxu0 0
        %3192 = vmatpush1.bf16.msra.mxu0 0
        %3193 = vmatprep.subr.bf16.mxu0 0
        %3194 = vmatpush1.bf16.msra.mxu0 0
        %3195 = vmatprep.subr.bf16.mxu0 0
        %3196 = vmatpush1.bf16.msra.mxu0 0
        %3197 = vmatprep.subr.bf16.mxu0 0
        %3198 = vmatpush1.bf16.msra.mxu0 0
        %3199 = vmatprep.subr.bf16.mxu0 0
        %3200 = vmatpush1.bf16.msra.mxu0 0
        %3201 = vmatprep.subr.bf16.mxu0 0
        %3202 = vmatpush1.bf16.msra.mxu0 0
        %3203 = vmatprep.subr.bf16.mxu0 0
        %3204 = vmatpush1.bf16.msra.mxu0 0
        %3205 = vmatprep.subr.bf16.mxu0 0
        %3206 = vmatpush1.bf16.msra.mxu0 0
        %3207 = vmatprep.subr.bf16.mxu0 0
        %3208 = vmatpush1.bf16.msra.mxu0 0
        %3209 = vmatprep.mubr.bf16.mxu0 0
        %3210 = vmatmul.mubr.bf16.gmra.mrb[0].mxu0 %v3112
        %v3211 = vpop.f32.mrb[0].mxu0
        %v3212 = vadd.f32 0.0, %v3211
        %v3213 = vpop.f32.mrb[0].mxu0
        %v3214 = vpop.f32.mrb[0].mxu0
        %v3215 = vadd.f32 0.0, %v3214
        %v3216 = vpop.f32.mrb[0].mxu0
        %3217 = vmatprep.mubr.bf16.mxu0 0
        %3218 = vmatmul.mubr.bf16.gmra.mrb[0].mxu0 %v3115
        %v3219 = vpop.f32.mrb[0].mxu0
        %v3220 = vadd.f32 0.0, %v3219
        %v3221 = vpop.f32.mrb[0].mxu0
        %v3222 = vpop.f32.mrb[0].mxu0
        %v3223 = vadd.f32 0.0, %v3222
        %v3224 = vpop.f32.mrb[0].mxu0
        %3225 = vmatprep.mubr.bf16.mxu0 0
        %3226 = vmatmul.mubr.bf16.gmra.mrb[0].mxu0 %v3118
        %v3227 = vpop.f32.mrb[0].mxu0
        %v3228 = vadd.f32 0.0, %v3227
        %v3229 = vpop.f32.mrb[0].mxu0
        %v3230 = vpop.f32.mrb[0].mxu0
        %v3231 = vadd.f32 0.0, %v3230
        %v3232 = vpop.f32.mrb[0].mxu0
        %3233 = vmatprep.mubr.bf16.mxu0 0
        %3234 = vmatmul.mubr.bf16.gmra.mrb[0].mxu0 %v3121
        %v3235 = vpop.f32.mrb[0].mxu0
        %v3236 = vadd.f32 0.0, %v3235
        %v3237 = vpop.f32.mrb[0].mxu0
        %v3238 = vpop.f32.mrb[0].mxu0
        %v3239 = vadd.f32 0.0, %v3238
        %v3240 = vpop.f32.mrb[0].mxu0
        %3241 = vmatprep.mubr.bf16.mxu0 0
        %3242 = vmatmul.mubr.bf16.gmra.mrb[0].mxu0 %v3124
        %v3243 = vpop.f32.mrb[0].mxu0
        %v3244 = vadd.f32 0.0, %v3243
        %v3245 = vpop.f32.mrb[0].mxu0
        %v3246 = vpop.f32.mrb[0].mxu0
        %v3247 = vadd.f32 0.0, %v3246
        %v3248 = vpop.f32.mrb[0].mxu0
        %3249 = vmatprep.mubr.bf16.mxu0 0
        %3250 = vmatmul.mubr.bf16.gmra.mrb[0].mxu0 %v3127
        %v3251 = vpop.f32.mrb[0].mxu0
        %v3252 = vadd.f32 0.0, %v3251
        %v3253 = vpop.f32.mrb[0].mxu0
        %v3254 = vpop.f32.mrb[0].mxu0
        %v3255 = vadd.f32 0.0, %v3254
        %v3256 = vpop.f32.mrb[0].mxu0
        %3257 = vmatprep.mubr.bf16.mxu0 0
        %3258 = vmatmul.mubr.bf16.gmra.mrb[0].mxu0 %v3130
        %v3259 = vpop.f32.mrb[0].mxu0
        %v3260 = vadd.f32 0.0, %v3259
        %v3261 = vpop.f32.mrb[0].mxu0
        %v3262 = vpop.f32.mrb[0].mxu0
        %v3263 = vadd.f32 0.0, %v3262
        %v3264 = vpop.f32.mrb[0].mxu0
        %3265 = vmatprep.mubr.bf16.mxu0 0
        %3266 = vmatmul.mubr.bf16.gmra.mrb[0].mxu0 %v3133
        %v3267 = vpop.f32.mrb[0].mxu0
        %v3268 = vadd.f32 0.0, %v3267
        %v3269 = vpop.f32.mrb[0].mxu0
        %v3270 = vpop.f32.mrb[0].mxu0
        %v3271 = vadd.f32 0.0, %v3270
        %v3272 = vpop.f32.mrb[0].mxu0
        %3273 = vmatprep.mubr.bf16.mxu0 0
        %3274 = vmatmul.mubr.bf16.gmra.mrb[0].mxu0 %v3136
        %v3275 = vpop.f32.mrb[0].mxu0
        %v3276 = vadd.f32 0.0, %v3275
        %v3277 = vpop.f32.mrb[0].mxu0
        %v3278 = vpop.f32.mrb[0].mxu0
        %v3279 = vadd.f32 0.0, %v3278
        %v3280 = vpop.f32.mrb[0].mxu0
        %3281 = vmatprep.mubr.bf16.mxu0 0
        %3282 = vmatmul.mubr.bf16.gmra.mrb[0].mxu0 %v3139
        %v3283 = vpop.f32.mrb[0].mxu0
        %v3284 = vadd.f32 0.0, %v3283
        %v3285 = vpop.f32.mrb[0].mxu0
        %v3286 = vpop.f32.mrb[0].mxu0
        %v3287 = vadd.f32 0.0, %v3286
        %v3288 = vpop.f32.mrb[0].mxu0
        %3289 = vmatprep.mubr.bf16.mxu0 0
        %3290 = vmatmul.mubr.bf16.gmra.mrb[0].mxu0 %v3142
        %v3291 = vpop.f32.mrb[0].mxu0
        %v3292 = vadd.f32 0.0, %v3291
        %v3293 = vpop.f32.mrb[0].mxu0
        %v3294 = vpop.f32.mrb[0].mxu0
        %v3295 = vadd.f32 0.0, %v3294
        %v3296 = vpop.f32.mrb[0].mxu0
        %3297 = vmatprep.mubr.bf16.mxu0 0
        %3298 = vmatmul.mubr.bf16.gmra.mrb[0].mxu0 %v3145
        %v3299 = vpop.f32.mrb[0].mxu0
        %v3300 = vadd.f32 0.0, %v3299
        %v3301 = vpop.f32.mrb[0].mxu0
        %v3302 = vpop.f32.mrb[0].mxu0
        %v3303 = vadd.f32 0.0, %v3302
        %v3304 = vpop.f32.mrb[0].mxu0
        %3305 = vmatprep.mubr.bf16.mxu0 0
        %3306 = vmatmul.mubr.bf16.gmra.mrb[0].mxu0 %v3148
        %v3307 = vpop.f32.mrb[0].mxu0
        %v3308 = vadd.f32 0.0, %v3307
        %v3309 = vpop.f32.mrb[0].mxu0
        %v3310 = vpop.f32.mrb[0].mxu0
        %v3311 = vadd.f32 0.0, %v3310
        %v3312 = vpop.f32.mrb[0].mxu0
        %3313 = vmatprep.mubr.bf16.mxu0 0
        %3314 = vmatmul.mubr.bf16.gmra.mrb[0].mxu0 %v3151
        %v3315 = vpop.f32.mrb[0].mxu0
        %v3316 = vadd.f32 0.0, %v3315
        %v3317 = vpop.f32.mrb[0].mxu0
        %v3318 = vpop.f32.mrb[0].mxu0
        %v3319 = vadd.f32 0.0, %v3318
        %v3320 = vpop.f32.mrb[0].mxu0
        %3321 = vmatprep.mubr.bf16.mxu0 0
        %3322 = vmatmul.mubr.bf16.gmra.mrb[0].mxu0 %v3154
        %v3323 = vpop.f32.mrb[0].mxu0
        %v3324 = vadd.f32 0.0, %v3323
        %v3325 = vpop.f32.mrb[0].mxu0
        %v3326 = vpop.f32.mrb[0].mxu0
        %v3327 = vadd.f32 0.0, %v3326
        %v3328 = vpop.f32.mrb[0].mxu0
        %3329 = vmatprep.mubr.bf16.mxu0 0
        %3330 = vmatmul.mubr.bf16.gmra.mrb[0].mxu0 %v3157
        %v3331 = vpop.f32.mrb[0].mxu0
        %v3332 = vadd.f32 0.0, %v3331
        %v3333 = vpop.f32.mrb[0].mxu0
        %v3334 = vpop.f32.mrb[0].mxu0
        %v3335 = vadd.f32 0.0, %v3334
        %v3336 = vpop.f32.mrb[0].mxu0
        %3337 = vmatprep.mubr.bf16.mxu0 0
        %3338 = vmatmul.mubr.bf16.gmra.mrb[0].mxu0 %v3160
        %v3339 = vpop.f32.mrb[0].mxu0
        %v3340 = vadd.f32 0.0, %v3339
        %v3341 = vpop.f32.mrb[0].mxu0
        %v3342 = vpop.f32.mrb[0].mxu0
        %v3343 = vadd.f32 0.0, %v3342
        %v3344 = vpop.f32.mrb[0].mxu0
        %3345 = vmatprep.mubr.bf16.mxu0 0
        %3346 = vmatmul.mubr.bf16.gmra.mrb[0].mxu0 %v3163
        %v3347 = vpop.f32.mrb[0].mxu0
        %v3348 = vadd.f32 0.0, %v3347
        %v3349 = vpop.f32.mrb[0].mxu0
        %v3350 = vpop.f32.mrb[0].mxu0
        %v3351 = vadd.f32 0.0, %v3350
        %v3352 = vpop.f32.mrb[0].mxu0
        %3353 = vmatprep.mubr.bf16.mxu0 0
        %3354 = vmatmul.mubr.bf16.gmra.mrb[0].mxu0 %v3166
        %v3355 = vpop.f32.mrb[0].mxu0
        %v3356 = vadd.f32 0.0, %v3355
        %v3357 = vpop.f32.mrb[0].mxu0
        %v3358 = vpop.f32.mrb[0].mxu0
        %v3359 = vadd.f32 0.0, %v3358
        %v3360 = vpop.f32.mrb[0].mxu0
        %3361 = vmatprep.mubr.bf16.mxu0 0
        %3362 = vmatmul.mubr.bf16.gmra.mrb[0].mxu0 %v3169
        %v3363 = vpop.f32.mrb[0].mxu0
        %v3364 = vadd.f32 0.0, %v3363
        %v3365 = vpop.f32.mrb[0].mxu0
        %v3366 = vpop.f32.mrb[0].mxu0
        %v3367 = vadd.f32 0.0, %v3366
        %v3368 = vpop.f32.mrb[0].mxu0
        %3369 = vmatprep.mubr.bf16.mxu0 0
        %3370 = vmatmul.mubr.bf16.gmra.mrb[0].mxu0 %v3172
        %v3371 = vpop.f32.mrb[0].mxu0
        %v3372 = vadd.f32 0.0, %v3371
        %v3373 = vpop.f32.mrb[0].mxu0
        %v3374 = vpop.f32.mrb[0].mxu0
        %v3375 = vpop.f32.mrb[0].mxu0
        %3376 = vdwg.mxu0
        %v3377 = vadd.f32 %v2880, %v3212
        %v3378 = vadd.f32 %v2881, %v3215
        %v3379 = vadd.f32 %v2882, %v3220
        %v3380 = vadd.f32 %v2883, %v3223
        %v3381 = vadd.f32 %v2884, %v3228
        %v3382 = vadd.f32 %v2885, %v3231
        %v3383 = vadd.f32 %v2886, %v3236
        %v3384 = vadd.f32 %v2887, %v3239
        %v3385 = vadd.f32 %v2888, %v3244
        %v3386 = vadd.f32 %v2889, %v3247
        %v3387 = vadd.f32 %v2890, %v3252
        %v3388 = vadd.f32 %v2891, %v3255
        %v3389 = vadd.f32 %v2892, %v3260
        %v3390 = vadd.f32 %v2893, %v3263
        %v3391 = vadd.f32 %v2894, %v3268
        %v3392 = vadd.f32 %v2895, %v3271
        %v3393 = vadd.f32 %v2896, %v3276
        %v3394 = vadd.f32 %v2897, %v3279
        %v3395 = vadd.f32 %v2898, %v3284
        %v3396 = vadd.f32 %v2899, %v3287
        %v3397 = vadd.f32 %v2900, %v3292
        %v3398 = vadd.f32 %v2901, %v3295
        %v3399 = vadd.f32 %v2902, %v3300
        %v3400 = vadd.f32 %v2903, %v3303
        %v3401 = vadd.f32 %v2904, %v3308
        %v3402 = vadd.f32 %v2905, %v3311
        %v3403 = vadd.f32 %v2906, %v3316
        %v3404 = vadd.f32 %v2907, %v3319
        %v3405 = vadd.f32 %v2908, %v3324
        %v3406 = vadd.f32 %v2909, %v3327
        %v3407 = vadd.f32 %v2910, %v3332
        %v3408 = vadd.f32 %v2911, %v3335
        %v3409 = vadd.f32 %v2912, %v3340
        %v3410 = vadd.f32 %v2913, %v3343
        %v3411 = vadd.f32 %v2914, %v3348
        %v3412 = vadd.f32 %v2915, %v3351
        %v3413 = vadd.f32 %v2916, %v3356
        %v3414 = vadd.f32 %v2917, %v3359
        %v3415 = vadd.f32 %v2918, %v3364
        %v3416 = vadd.f32 %v2919, %v3367
        %v3417 = vadd.f32 %v2920, %v3372
        %v3418 = vld [vmem:[%s323 + $0xb4] sm:$0x7]
        %s3419 = scalar_lea.vmem [#allocation6], 14
        %v3420 = vld [vmem:[%s3419] sm:$0x3]
        %v3422 = vunpack.c.l.b16 %v3418
        %v3423 = vpack.c.b16 %v3422, %v3047
        %vm3424 = vsmask.f32 5376
        %v3426 = vshrl.u32 %v3049, 16
        %v3428 = vrot.slane %v3426, 2
        %v3429 = vshll.u32 %v3049, 16
        %v3431 = vrot.slane %v3429, 3
        %v3432 = vor.u32 %v3428, %v3431
        %v3434 = vshrl.u32 %v3050, 16
        %v3436 = vrot.slane %v3434, 2
        %v3437 = vshll.u32 %v3050, 16
        %v3439 = vrot.slane %v3437, 3
        %v3440 = vor.u32 %v3436, %v3439
        %v3441 = vsel %vm3424, %v3432, %v3440
        %v3443 = vshrl.u32 %v3051, 16
        %v3445 = vrot.slane %v3443, 2
        %v3446 = vshll.u32 %v3051, 16
        %v3448 = vrot.slane %v3446, 3
        %v3449 = vor.u32 %v3445, %v3448
        %v3450 = vsel %vm3424, %v3440, %v3449
        %v3452 = vshrl.u32 %v3052, 16
        %v3454 = vrot.slane %v3452, 2
        %v3455 = vshll.u32 %v3052, 16
        %v3457 = vrot.slane %v3455, 3
        %v3458 = vor.u32 %v3454, %v3457
        %v3459 = vsel %vm3424, %v3449, %v3458
        %v3461 = vshrl.u32 %v3053, 16
        %v3463 = vrot.slane %v3461, 2
        %v3464 = vshll.u32 %v3053, 16
        %v3466 = vrot.slane %v3464, 3
        %v3467 = vor.u32 %v3463, %v3466
        %v3468 = vsel %vm3424, %v3458, %v3467
        %v3470 = vshrl.u32 %v3054, 16
        %v3472 = vrot.slane %v3470, 2
        %v3473 = vshll.u32 %v3054, 16
        %v3475 = vrot.slane %v3473, 3
        %v3476 = vor.u32 %v3472, %v3475
        %v3477 = vsel %vm3424, %v3467, %v3476
        %v3479 = vshrl.u32 %v3055, 16
        %v3481 = vrot.slane %v3479, 2
        %v3482 = vshll.u32 %v3055, 16
        %v3484 = vrot.slane %v3482, 3
        %v3485 = vor.u32 %v3481, %v3484
        %v3486 = vsel %vm3424, %v3476, %v3485
        %v3488 = vshrl.u32 %v3056, 16
        %v3490 = vrot.slane %v3488, 2
        %v3491 = vshll.u32 %v3056, 16
        %v3493 = vrot.slane %v3491, 3
        %v3494 = vor.u32 %v3490, %v3493
        %v3495 = vsel %vm3424, %v3485, %v3494
        %v3497 = vshrl.u32 %v3057, 16
        %v3499 = vrot.slane %v3497, 2
        %v3500 = vshll.u32 %v3057, 16
        %v3502 = vrot.slane %v3500, 3
        %v3503 = vor.u32 %v3499, %v3502
        %v3504 = vsel %vm3424, %v3494, %v3503
        %v3506 = vshrl.u32 %v3058, 16
        %v3508 = vrot.slane %v3506, 2
        %v3509 = vshll.u32 %v3058, 16
        %v3511 = vrot.slane %v3509, 3
        %v3512 = vor.u32 %v3508, %v3511
        %v3513 = vsel %vm3424, %v3503, %v3512
        %v3515 = vshrl.u32 %v3059, 16
        %v3517 = vrot.slane %v3515, 2
        %v3518 = vshll.u32 %v3059, 16
        %v3520 = vrot.slane %v3518, 3
        %v3521 = vor.u32 %v3517, %v3520
        %v3522 = vsel %vm3424, %v3512, %v3521
        %v3524 = vshrl.u32 %v3060, 16
        %v3526 = vrot.slane %v3524, 2
        %v3527 = vshll.u32 %v3060, 16
        %v3529 = vrot.slane %v3527, 3
        %v3530 = vor.u32 %v3526, %v3529
        %v3531 = vsel %vm3424, %v3521, %v3530
        %v3533 = vshrl.u32 %v3061, 16
        %v3535 = vrot.slane %v3533, 2
        %v3536 = vshll.u32 %v3061, 16
        %v3538 = vrot.slane %v3536, 3
        %v3539 = vor.u32 %v3535, %v3538
        %v3540 = vsel %vm3424, %v3530, %v3539
        %v3542 = vshrl.u32 %v3062, 16
        %v3544 = vrot.slane %v3542, 2
        %v3545 = vshll.u32 %v3062, 16
        %v3547 = vrot.slane %v3545, 3
        %v3548 = vor.u32 %v3544, %v3547
        %v3549 = vsel %vm3424, %v3539, %v3548
        %v3551 = vshrl.u32 %v3063, 16
        %v3553 = vrot.slane %v3551, 2
        %v3554 = vshll.u32 %v3063, 16
        %v3556 = vrot.slane %v3554, 3
        %v3557 = vor.u32 %v3553, %v3556
        %v3558 = vsel %vm3424, %v3548, %v3557
        %v3560 = vshrl.u32 %v3064, 16
        %v3562 = vrot.slane %v3560, 2
        %v3563 = vshll.u32 %v3064, 16
        %v3565 = vrot.slane %v3563, 3
        %v3566 = vor.u32 %v3562, %v3565
        %v3567 = vsel %vm3424, %v3557, %v3566
        %v3569 = vshrl.u32 %v3065, 16
        %v3571 = vrot.slane %v3569, 2
        %v3572 = vshll.u32 %v3065, 16
        %v3574 = vrot.slane %v3572, 3
        %v3575 = vor.u32 %v3571, %v3574
        %v3576 = vsel %vm3424, %v3566, %v3575
        %v3578 = vshrl.u32 %v3066, 16
        %v3580 = vrot.slane %v3578, 2
        %v3581 = vshll.u32 %v3066, 16
        %v3583 = vrot.slane %v3581, 3
        %v3584 = vor.u32 %v3580, %v3583
        %v3585 = vsel %vm3424, %v3575, %v3584
        %v3587 = vshrl.u32 %v3067, 16
        %v3589 = vrot.slane %v3587, 2
        %v3590 = vshll.u32 %v3067, 16
        %v3592 = vrot.slane %v3590, 3
        %v3593 = vor.u32 %v3589, %v3592
        %v3594 = vsel %vm3424, %v3584, %v3593
        %v3596 = vshrl.u32 %v3068, 16
        %v3598 = vrot.slane %v3596, 2
        %v3599 = vshll.u32 %v3068, 16
        %v3601 = vrot.slane %v3599, 3
        %v3602 = vor.u32 %v3598, %v3601
        %v3603 = vsel %vm3424, %v3593, %v3602
        %v3605 = vshrl.u32 %v3423, 16
        %v3607 = vrot.slane %v3605, 2
        %v3608 = vshll.u32 %v3423, 16
        %v3610 = vrot.slane %v3608, 3
        %v3611 = vor.u32 %v3607, %v3610
        %v3612 = vsel %vm3424, %v3602, %v3611
        %v3614 = vsel %vm697, %v3441, 0
        %v3617 = vsel %vm697, %v3450, 0
        %v3620 = vsel %vm697, %v3459, 0
        %v3623 = vsel %vm697, %v3468, 0
        %v3626 = vsel %vm697, %v3477, 0
        %v3629 = vsel %vm697, %v3486, 0
        %v3632 = vsel %vm697, %v3495, 0
        %v3635 = vsel %vm697, %v3504, 0
        %v3638 = vsel %vm697, %v3513, 0
        %v3641 = vsel %vm697, %v3522, 0
        %v3644 = vsel %vm697, %v3531, 0
        %v3647 = vsel %vm697, %v3540, 0
        %v3650 = vsel %vm697, %v3549, 0
        %v3653 = vsel %vm697, %v3558, 0
        %v3656 = vsel %vm697, %v3567, 0
        %v3659 = vsel %vm697, %v3576, 0
        %v3662 = vsel %vm697, %v3585, 0
        %v3665 = vsel %vm697, %v3594, 0
        %v3668 = vsel %vm697, %v3603, 0
        %v3671 = vsel %vm697, %v3612, 0
        %v3674 = vsel %vm697, %v3611, 0
        %v3677 = vsel %vm761, %v3420, 0
        %3679 = vmatprep.subr.bf16.mxu0 0
        %3680 = vmatpush1.bf16.msra.mxu0 %v3677
        %3681 = vmatprep.subr.bf16.mxu0 0
        %3682 = vmatpush1.bf16.msra.mxu0 0
        %3683 = vmatprep.subr.bf16.mxu0 0
        %3684 = vmatpush1.bf16.msra.mxu0 0
        %3685 = vmatprep.subr.bf16.mxu0 0
        %3686 = vmatpush1.bf16.msra.mxu0 0
        %3687 = vmatprep.subr.bf16.mxu0 0
        %3688 = vmatpush1.bf16.msra.mxu0 0
        %3689 = vmatprep.subr.bf16.mxu0 0
        %3690 = vmatpush1.bf16.msra.mxu0 0
        %3691 = vmatprep.subr.bf16.mxu0 0
        %3692 = vmatpush1.bf16.msra.mxu0 0
        %3693 = vmatprep.subr.bf16.mxu0 0
        %3694 = vmatpush1.bf16.msra.mxu0 0
        %3695 = vmatprep.subr.bf16.mxu0 0
        %3696 = vmatpush1.bf16.msra.mxu0 0
        %3697 = vmatprep.subr.bf16.mxu0 0
        %3698 = vmatpush1.bf16.msra.mxu0 0
        %3699 = vmatprep.subr.bf16.mxu0 0
        %3700 = vmatpush1.bf16.msra.mxu0 0
        %3701 = vmatprep.subr.bf16.mxu0 0
        %3702 = vmatpush1.bf16.msra.mxu0 0
        %3703 = vmatprep.subr.bf16.mxu0 0
        %3704 = vmatpush1.bf16.msra.mxu0 0
        %3705 = vmatprep.subr.bf16.mxu0 0
        %3706 = vmatpush1.bf16.msra.mxu0 0
        %3707 = vmatprep.subr.bf16.mxu0 0
        %3708 = vmatpush1.bf16.msra.mxu0 0
        %3709 = vmatprep.subr.bf16.mxu0 0
        %3710 = vmatpush1.bf16.msra.mxu0 0
        %3711 = vmatprep.mubr.bf16.mxu0 0
        %3712 = vmatmul.mubr.bf16.gmra.mrb[0].mxu0 %v3614
        %v3713 = vpop.f32.mrb[0].mxu0
        %v3714 = vadd.f32 0.0, %v3713
        %v3715 = vpop.f32.mrb[0].mxu0
        %v3716 = vpop.f32.mrb[0].mxu0
        %v3717 = vadd.f32 0.0, %v3716
        %v3718 = vpop.f32.mrb[0].mxu0
        %3719 = vmatprep.mubr.bf16.mxu0 0
        %3720 = vmatmul.mubr.bf16.gmra.mrb[0].mxu0 %v3617
        %v3721 = vpop.f32.mrb[0].mxu0
        %v3722 = vadd.f32 0.0, %v3721
        %v3723 = vpop.f32.mrb[0].mxu0
        %v3724 = vpop.f32.mrb[0].mxu0
        %v3725 = vadd.f32 0.0, %v3724
        %v3726 = vpop.f32.mrb[0].mxu0
        %3727 = vmatprep.mubr.bf16.mxu0 0
        %3728 = vmatmul.mubr.bf16.gmra.mrb[0].mxu0 %v3620
        %v3729 = vpop.f32.mrb[0].mxu0
        %v3730 = vadd.f32 0.0, %v3729
        %v3731 = vpop.f32.mrb[0].mxu0
        %v3732 = vpop.f32.mrb[0].mxu0
        %v3733 = vadd.f32 0.0, %v3732
        %v3734 = vpop.f32.mrb[0].mxu0
        %3735 = vmatprep.mubr.bf16.mxu0 0
        %3736 = vmatmul.mubr.bf16.gmra.mrb[0].mxu0 %v3623
        %v3737 = vpop.f32.mrb[0].mxu0
        %v3738 = vadd.f32 0.0, %v3737
        %v3739 = vpop.f32.mrb[0].mxu0
        %v3740 = vpop.f32.mrb[0].mxu0
        %v3741 = vadd.f32 0.0, %v3740
        %v3742 = vpop.f32.mrb[0].mxu0
        %3743 = vmatprep.mubr.bf16.mxu0 0
        %3744 = vmatmul.mubr.bf16.gmra.mrb[0].mxu0 %v3626
        %v3745 = vpop.f32.mrb[0].mxu0
        %v3746 = vadd.f32 0.0, %v3745
        %v3747 = vpop.f32.mrb[0].mxu0
        %v3748 = vpop.f32.mrb[0].mxu0
        %v3749 = vadd.f32 0.0, %v3748
        %v3750 = vpop.f32.mrb[0].mxu0
        %3751 = vmatprep.mubr.bf16.mxu0 0
        %3752 = vmatmul.mubr.bf16.gmra.mrb[0].mxu0 %v3629
        %v3753 = vpop.f32.mrb[0].mxu0
        %v3754 = vadd.f32 0.0, %v3753
        %v3755 = vpop.f32.mrb[0].mxu0
        %v3756 = vpop.f32.mrb[0].mxu0
        %v3757 = vadd.f32 0.0, %v3756
        %v3758 = vpop.f32.mrb[0].mxu0
        %3759 = vmatprep.mubr.bf16.mxu0 0
        %3760 = vmatmul.mubr.bf16.gmra.mrb[0].mxu0 %v3632
        %v3761 = vpop.f32.mrb[0].mxu0
        %v3762 = vadd.f32 0.0, %v3761
        %v3763 = vpop.f32.mrb[0].mxu0
        %v3764 = vpop.f32.mrb[0].mxu0
        %v3765 = vadd.f32 0.0, %v3764
        %v3766 = vpop.f32.mrb[0].mxu0
        %3767 = vmatprep.mubr.bf16.mxu0 0
        %3768 = vmatmul.mubr.bf16.gmra.mrb[0].mxu0 %v3635
        %v3769 = vpop.f32.mrb[0].mxu0
        %v3770 = vadd.f32 0.0, %v3769
        %v3771 = vpop.f32.mrb[0].mxu0
        %v3772 = vpop.f32.mrb[0].mxu0
        %v3773 = vadd.f32 0.0, %v3772
        %v3774 = vpop.f32.mrb[0].mxu0
        %3775 = vmatprep.mubr.bf16.mxu0 0
        %3776 = vmatmul.mubr.bf16.gmra.mrb[0].mxu0 %v3638
        %v3777 = vpop.f32.mrb[0].mxu0
        %v3778 = vadd.f32 0.0, %v3777
        %v3779 = vpop.f32.mrb[0].mxu0
        %v3780 = vpop.f32.mrb[0].mxu0
        %v3781 = vadd.f32 0.0, %v3780
        %v3782 = vpop.f32.mrb[0].mxu0
        %3783 = vmatprep.mubr.bf16.mxu0 0
        %3784 = vmatmul.mubr.bf16.gmra.mrb[0].mxu0 %v3641
        %v3785 = vpop.f32.mrb[0].mxu0
        %v3786 = vadd.f32 0.0, %v3785
        %v3787 = vpop.f32.mrb[0].mxu0
        %v3788 = vpop.f32.mrb[0].mxu0
        %v3789 = vadd.f32 0.0, %v3788
        %v3790 = vpop.f32.mrb[0].mxu0
        %3791 = vmatprep.mubr.bf16.mxu0 0
        %3792 = vmatmul.mubr.bf16.gmra.mrb[0].mxu0 %v3644
        %v3793 = vpop.f32.mrb[0].mxu0
        %v3794 = vadd.f32 0.0, %v3793
        %v3795 = vpop.f32.mrb[0].mxu0
        %v3796 = vpop.f32.mrb[0].mxu0
        %v3797 = vadd.f32 0.0, %v3796
        %v3798 = vpop.f32.mrb[0].mxu0
        %3799 = vmatprep.mubr.bf16.mxu0 0
        %3800 = vmatmul.mubr.bf16.gmra.mrb[0].mxu0 %v3647
        %v3801 = vpop.f32.mrb[0].mxu0
        %v3802 = vadd.f32 0.0, %v3801
        %v3803 = vpop.f32.mrb[0].mxu0
        %v3804 = vpop.f32.mrb[0].mxu0
        %v3805 = vadd.f32 0.0, %v3804
        %v3806 = vpop.f32.mrb[0].mxu0
        %3807 = vmatprep.mubr.bf16.mxu0 0
        %3808 = vmatmul.mubr.bf16.gmra.mrb[0].mxu0 %v3650
        %v3809 = vpop.f32.mrb[0].mxu0
        %v3810 = vadd.f32 0.0, %v3809
        %v3811 = vpop.f32.mrb[0].mxu0
        %v3812 = vpop.f32.mrb[0].mxu0
        %v3813 = vadd.f32 0.0, %v3812
        %v3814 = vpop.f32.mrb[0].mxu0
        %3815 = vmatprep.mubr.bf16.mxu0 0
        %3816 = vmatmul.mubr.bf16.gmra.mrb[0].mxu0 %v3653
        %v3817 = vpop.f32.mrb[0].mxu0
        %v3818 = vadd.f32 0.0, %v3817
        %v3819 = vpop.f32.mrb[0].mxu0
        %v3820 = vpop.f32.mrb[0].mxu0
        %v3821 = vadd.f32 0.0, %v3820
        %v3822 = vpop.f32.mrb[0].mxu0
        %3823 = vmatprep.mubr.bf16.mxu0 0
        %3824 = vmatmul.mubr.bf16.gmra.mrb[0].mxu0 %v3656
        %v3825 = vpop.f32.mrb[0].mxu0
        %v3826 = vadd.f32 0.0, %v3825
        %v3827 = vpop.f32.mrb[0].mxu0
        %v3828 = vpop.f32.mrb[0].mxu0
        %v3829 = vadd.f32 0.0, %v3828
        %v3830 = vpop.f32.mrb[0].mxu0
        %3831 = vmatprep.mubr.bf16.mxu0 0
        %3832 = vmatmul.mubr.bf16.gmra.mrb[0].mxu0 %v3659
        %v3833 = vpop.f32.mrb[0].mxu0
        %v3834 = vadd.f32 0.0, %v3833
        %v3835 = vpop.f32.mrb[0].mxu0
        %v3836 = vpop.f32.mrb[0].mxu0
        %v3837 = vadd.f32 0.0, %v3836
        %v3838 = vpop.f32.mrb[0].mxu0
        %3839 = vmatprep.mubr.bf16.mxu0 0
        %3840 = vmatmul.mubr.bf16.gmra.mrb[0].mxu0 %v3662
        %v3841 = vpop.f32.mrb[0].mxu0
        %v3842 = vadd.f32 0.0, %v3841
        %v3843 = vpop.f32.mrb[0].mxu0
        %v3844 = vpop.f32.mrb[0].mxu0
        %v3845 = vadd.f32 0.0, %v3844
        %v3846 = vpop.f32.mrb[0].mxu0
        %3847 = vmatprep.mubr.bf16.mxu0 0
        %3848 = vmatmul.mubr.bf16.gmra.mrb[0].mxu0 %v3665
        %v3849 = vpop.f32.mrb[0].mxu0
        %v3850 = vadd.f32 0.0, %v3849
        %v3851 = vpop.f32.mrb[0].mxu0
        %v3852 = vpop.f32.mrb[0].mxu0
        %v3853 = vadd.f32 0.0, %v3852
        %v3854 = vpop.f32.mrb[0].mxu0
        %3855 = vmatprep.mubr.bf16.mxu0 0
        %3856 = vmatmul.mubr.bf16.gmra.mrb[0].mxu0 %v3668
        %v3857 = vpop.f32.mrb[0].mxu0
        %v3858 = vadd.f32 0.0, %v3857
        %v3859 = vpop.f32.mrb[0].mxu0
        %v3860 = vpop.f32.mrb[0].mxu0
        %v3861 = vadd.f32 0.0, %v3860
        %v3862 = vpop.f32.mrb[0].mxu0
        %3863 = vmatprep.mubr.bf16.mxu0 0
        %3864 = vmatmul.mubr.bf16.gmra.mrb[0].mxu0 %v3671
        %v3865 = vpop.f32.mrb[0].mxu0
        %v3866 = vadd.f32 0.0, %v3865
        %v3867 = vpop.f32.mrb[0].mxu0
        %v3868 = vpop.f32.mrb[0].mxu0
        %v3869 = vadd.f32 0.0, %v3868
        %v3870 = vpop.f32.mrb[0].mxu0
        %3871 = vmatprep.mubr.bf16.mxu0 0
        %3872 = vmatmul.mubr.bf16.gmra.mrb[0].mxu0 %v3674
        %v3873 = vpop.f32.mrb[0].mxu0
        %v3874 = vadd.f32 0.0, %v3873
        %v3875 = vpop.f32.mrb[0].mxu0
        %v3876 = vpop.f32.mrb[0].mxu0
        %v3877 = vpop.f32.mrb[0].mxu0
        %3878 = vdwg.mxu0
        %v3879 = vadd.f32 %v3377, %v3714
        %v3880 = vadd.f32 %v3378, %v3717
        %v3881 = vadd.f32 %v3379, %v3722
        %v3882 = vadd.f32 %v3380, %v3725
        %v3883 = vadd.f32 %v3381, %v3730
        %v3884 = vadd.f32 %v3382, %v3733
        %v3885 = vadd.f32 %v3383, %v3738
        %v3886 = vadd.f32 %v3384, %v3741
        %v3887 = vadd.f32 %v3385, %v3746
        %v3888 = vadd.f32 %v3386, %v3749
        %v3889 = vadd.f32 %v3387, %v3754
        %v3890 = vadd.f32 %v3388, %v3757
        %v3891 = vadd.f32 %v3389, %v3762
        %v3892 = vadd.f32 %v3390, %v3765
        %v3893 = vadd.f32 %v3391, %v3770
        %v3894 = vadd.f32 %v3392, %v3773
        %v3895 = vadd.f32 %v3393, %v3778
        %v3896 = vadd.f32 %v3394, %v3781
        %v3897 = vadd.f32 %v3395, %v3786
        %v3898 = vadd.f32 %v3396, %v3789
        %v3899 = vadd.f32 %v3397, %v3794
        %v3900 = vadd.f32 %v3398, %v3797
        %v3901 = vadd.f32 %v3399, %v3802
        %v3902 = vadd.f32 %v3400, %v3805
        %v3903 = vadd.f32 %v3401, %v3810
        %v3904 = vadd.f32 %v3402, %v3813
        %v3905 = vadd.f32 %v3403, %v3818
        %v3906 = vadd.f32 %v3404, %v3821
        %v3907 = vadd.f32 %v3405, %v3826
        %v3908 = vadd.f32 %v3406, %v3829
        %v3909 = vadd.f32 %v3407, %v3834
        %v3910 = vadd.f32 %v3408, %v3837
        %v3911 = vadd.f32 %v3409, %v3842
        %v3912 = vadd.f32 %v3410, %v3845
        %v3913 = vadd.f32 %v3411, %v3850
        %v3914 = vadd.f32 %v3412, %v3853
        %v3915 = vadd.f32 %v3413, %v3858
        %v3916 = vadd.f32 %v3414, %v3861
        %v3917 = vadd.f32 %v3415, %v3866
        %v3918 = vadd.f32 %v3416, %v3869
        %v3919 = vadd.f32 %v3417, %v3874
        %v3920 = vld [vmem:[%s323 + $0x10] sm:$0x8]
        %s3921 = scalar_lea.vmem [#allocation6], 16
        %v3922 = vld [vmem:[%s3921] sm:$0x3]
        %v3924 = vunpack.c.l.b16 %v3920
        %v3925 = vpack.c.b16 %v3008, %v3924
        %vm3926 = vcmask 1044480
        %v3927 = vrot.slane %v3925, 3
        %v3928 = vrot.slane %v3050, 3
        %v3929 = vsel %vm3926, %v3927, %v3928
        %v3930 = vrot.slane %v3051, 3
        %v3931 = vsel %vm3926, %v3928, %v3930
        %v3932 = vrot.slane %v3052, 3
        %v3933 = vsel %vm3926, %v3930, %v3932
        %v3934 = vrot.slane %v3053, 3
        %v3935 = vsel %vm3926, %v3932, %v3934
        %v3936 = vrot.slane %v3054, 3
        %v3937 = vsel %vm3926, %v3934, %v3936
        %v3938 = vrot.slane %v3055, 3
        %v3939 = vsel %vm3926, %v3936, %v3938
        %v3940 = vrot.slane %v3056, 3
        %v3941 = vsel %vm3926, %v3938, %v3940
        %v3942 = vrot.slane %v3057, 3
        %v3943 = vsel %vm3926, %v3940, %v3942
        %v3944 = vrot.slane %v3058, 3
        %v3945 = vsel %vm3926, %v3942, %v3944
        %v3946 = vrot.slane %v3059, 3
        %v3947 = vsel %vm3926, %v3944, %v3946
        %v3948 = vrot.slane %v3060, 3
        %v3949 = vsel %vm3926, %v3946, %v3948
        %v3950 = vrot.slane %v3061, 3
        %v3951 = vsel %vm3926, %v3948, %v3950
        %v3952 = vrot.slane %v3062, 3
        %v3953 = vsel %vm3926, %v3950, %v3952
        %v3954 = vrot.slane %v3063, 3
        %v3955 = vsel %vm3926, %v3952, %v3954
        %v3956 = vrot.slane %v3064, 3
        %v3957 = vsel %vm3926, %v3954, %v3956
        %v3958 = vrot.slane %v3065, 3
        %v3959 = vsel %vm3926, %v3956, %v3958
        %v3960 = vrot.slane %v3066, 3
        %v3961 = vsel %vm3926, %v3958, %v3960
        %v3962 = vrot.slane %v3067, 3
        %v3963 = vsel %vm3926, %v3960, %v3962
        %v3964 = vrot.slane %v3068, 3
        %v3965 = vsel %vm3926, %v3962, %v3964
        %v3966 = vrot.slane %v3423, 3
        %v3967 = vsel %vm3926, %v3964, %v3966
        %v3969 = vsel %vm697, %v3929, 0
        %v3972 = vsel %vm697, %v3931, 0
        %v3975 = vsel %vm697, %v3933, 0
        %v3978 = vsel %vm697, %v3935, 0
        %v3981 = vsel %vm697, %v3937, 0
        %v3984 = vsel %vm697, %v3939, 0
        %v3987 = vsel %vm697, %v3941, 0
        %v3990 = vsel %vm697, %v3943, 0
        %v3993 = vsel %vm697, %v3945, 0
        %v3996 = vsel %vm697, %v3947, 0
        %v3999 = vsel %vm697, %v3949, 0
        %v4002 = vsel %vm697, %v3951, 0
        %v4005 = vsel %vm697, %v3953, 0
        %v4008 = vsel %vm697, %v3955, 0
        %v4011 = vsel %vm697, %v3957, 0
        %v4014 = vsel %vm697, %v3959, 0
        %v4017 = vsel %vm697, %v3961, 0
        %v4020 = vsel %vm697, %v3963, 0
        %v4023 = vsel %vm697, %v3965, 0
        %v4026 = vsel %vm697, %v3967, 0
        %v4029 = vsel %vm697, %v3966, 0
        %v4032 = vsel %vm761, %v3922, 0
        %4034 = vmatprep.subr.bf16.mxu0 0
        %4035 = vmatpush1.bf16.msra.mxu0 %v4032
        %4036 = vmatprep.subr.bf16.mxu0 0
        %4037 = vmatpush1.bf16.msra.mxu0 0
        %4038 = vmatprep.subr.bf16.mxu0 0
        %4039 = vmatpush1.bf16.msra.mxu0 0
        %4040 = vmatprep.subr.bf16.mxu0 0
        %4041 = vmatpush1.bf16.msra.mxu0 0
        %4042 = vmatprep.subr.bf16.mxu0 0
        %4043 = vmatpush1.bf16.msra.mxu0 0
        %4044 = vmatprep.subr.bf16.mxu0 0
        %4045 = vmatpush1.bf16.msra.mxu0 0
        %4046 = vmatprep.subr.bf16.mxu0 0
        %4047 = vmatpush1.bf16.msra.mxu0 0
        %4048 = vmatprep.subr.bf16.mxu0 0
        %4049 = vmatpush1.bf16.msra.mxu0 0
        %4050 = vmatprep.subr.bf16.mxu0 0
        %4051 = vmatpush1.bf16.msra.mxu0 0
        %4052 = vmatprep.subr.bf16.mxu0 0
        %4053 = vmatpush1.bf16.msra.mxu0 0
        %4054 = vmatprep.subr.bf16.mxu0 0
        %4055 = vmatpush1.bf16.msra.mxu0 0
        %4056 = vmatprep.subr.bf16.mxu0 0
        %4057 = vmatpush1.bf16.msra.mxu0 0
        %4058 = vmatprep.subr.bf16.mxu0 0
        %4059 = vmatpush1.bf16.msra.mxu0 0
        %4060 = vmatprep.subr.bf16.mxu0 0
        %4061 = vmatpush1.bf16.msra.mxu0 0
        %4062 = vmatprep.subr.bf16.mxu0 0
        %4063 = vmatpush1.bf16.msra.mxu0 0
        %4064 = vmatprep.subr.bf16.mxu0 0
        %4065 = vmatpush1.bf16.msra.mxu0 0
        %4066 = vmatprep.mubr.bf16.mxu0 0
        %4067 = vmatmul.mubr.bf16.gmra.mrb[0].mxu0 %v3969
        %v4068 = vpop.f32.mrb[0].mxu0
        %v4069 = vadd.f32 0.0, %v4068
        %v4070 = vpop.f32.mrb[0].mxu0
        %v4071 = vpop.f32.mrb[0].mxu0
        %v4072 = vadd.f32 0.0, %v4071
        %v4073 = vpop.f32.mrb[0].mxu0
        %4074 = vmatprep.mubr.bf16.mxu0 0
        %4075 = vmatmul.mubr.bf16.gmra.mrb[0].mxu0 %v3972
        %v4076 = vpop.f32.mrb[0].mxu0
        %v4077 = vadd.f32 0.0, %v4076
        %v4078 = vpop.f32.mrb[0].mxu0
        %v4079 = vpop.f32.mrb[0].mxu0
        %v4080 = vadd.f32 0.0, %v4079
        %v4081 = vpop.f32.mrb[0].mxu0
        %4082 = vmatprep.mubr.bf16.mxu0 0
        %4083 = vmatmul.mubr.bf16.gmra.mrb[0].mxu0 %v3975
        %v4084 = vpop.f32.mrb[0].mxu0
        %v4085 = vadd.f32 0.0, %v4084
        %v4086 = vpop.f32.mrb[0].mxu0
        %v4087 = vpop.f32.mrb[0].mxu0
        %v4088 = vadd.f32 0.0, %v4087
        %v4089 = vpop.f32.mrb[0].mxu0
        %4090 = vmatprep.mubr.bf16.mxu0 0
        %4091 = vmatmul.mubr.bf16.gmra.mrb[0].mxu0 %v3978
        %v4092 = vpop.f32.mrb[0].mxu0
        %v4093 = vadd.f32 0.0, %v4092
        %v4094 = vpop.f32.mrb[0].mxu0
        %v4095 = vpop.f32.mrb[0].mxu0
        %v4096 = vadd.f32 0.0, %v4095
        %v4097 = vpop.f32.mrb[0].mxu0
        %4098 = vmatprep.mubr.bf16.mxu0 0
        %4099 = vmatmul.mubr.bf16.gmra.mrb[0].mxu0 %v3981
        %v4100 = vpop.f32.mrb[0].mxu0
        %v4101 = vadd.f32 0.0, %v4100
        %v4102 = vpop.f32.mrb[0].mxu0
        %v4103 = vpop.f32.mrb[0].mxu0
        %v4104 = vadd.f32 0.0, %v4103
        %v4105 = vpop.f32.mrb[0].mxu0
        %4106 = vmatprep.mubr.bf16.mxu0 0
        %4107 = vmatmul.mubr.bf16.gmra.mrb[0].mxu0 %v3984
        %v4108 = vpop.f32.mrb[0].mxu0
        %v4109 = vadd.f32 0.0, %v4108
        %v4110 = vpop.f32.mrb[0].mxu0
        %v4111 = vpop.f32.mrb[0].mxu0
        %v4112 = vadd.f32 0.0, %v4111
        %v4113 = vpop.f32.mrb[0].mxu0
        %4114 = vmatprep.mubr.bf16.mxu0 0
        %4115 = vmatmul.mubr.bf16.gmra.mrb[0].mxu0 %v3987
        %v4116 = vpop.f32.mrb[0].mxu0
        %v4117 = vadd.f32 0.0, %v4116
        %v4118 = vpop.f32.mrb[0].mxu0
        %v4119 = vpop.f32.mrb[0].mxu0
        %v4120 = vadd.f32 0.0, %v4119
        %v4121 = vpop.f32.mrb[0].mxu0
        %4122 = vmatprep.mubr.bf16.mxu0 0
        %4123 = vmatmul.mubr.bf16.gmra.mrb[0].mxu0 %v3990
        %v4124 = vpop.f32.mrb[0].mxu0
        %v4125 = vadd.f32 0.0, %v4124
        %v4126 = vpop.f32.mrb[0].mxu0
        %v4127 = vpop.f32.mrb[0].mxu0
        %v4128 = vadd.f32 0.0, %v4127
        %v4129 = vpop.f32.mrb[0].mxu0
        %4130 = vmatprep.mubr.bf16.mxu0 0
        %4131 = vmatmul.mubr.bf16.gmra.mrb[0].mxu0 %v3993
        %v4132 = vpop.f32.mrb[0].mxu0
        %v4133 = vadd.f32 0.0, %v4132
        %v4134 = vpop.f32.mrb[0].mxu0
        %v4135 = vpop.f32.mrb[0].mxu0
        %v4136 = vadd.f32 0.0, %v4135
        %v4137 = vpop.f32.mrb[0].mxu0
        %4138 = vmatprep.mubr.bf16.mxu0 0
        %4139 = vmatmul.mubr.bf16.gmra.mrb[0].mxu0 %v3996
        %v4140 = vpop.f32.mrb[0].mxu0
        %v4141 = vadd.f32 0.0, %v4140
        %v4142 = vpop.f32.mrb[0].mxu0
        %v4143 = vpop.f32.mrb[0].mxu0
        %v4144 = vadd.f32 0.0, %v4143
        %v4145 = vpop.f32.mrb[0].mxu0
        %4146 = vmatprep.mubr.bf16.mxu0 0
        %4147 = vmatmul.mubr.bf16.gmra.mrb[0].mxu0 %v3999
        %v4148 = vpop.f32.mrb[0].mxu0
        %v4149 = vadd.f32 0.0, %v4148
        %v4150 = vpop.f32.mrb[0].mxu0
        %v4151 = vpop.f32.mrb[0].mxu0
        %v4152 = vadd.f32 0.0, %v4151
        %v4153 = vpop.f32.mrb[0].mxu0
        %4154 = vmatprep.mubr.bf16.mxu0 0
        %4155 = vmatmul.mubr.bf16.gmra.mrb[0].mxu0 %v4002
        %v4156 = vpop.f32.mrb[0].mxu0
        %v4157 = vadd.f32 0.0, %v4156
        %v4158 = vpop.f32.mrb[0].mxu0
        %v4159 = vpop.f32.mrb[0].mxu0
        %v4160 = vadd.f32 0.0, %v4159
        %v4161 = vpop.f32.mrb[0].mxu0
        %4162 = vmatprep.mubr.bf16.mxu0 0
        %4163 = vmatmul.mubr.bf16.gmra.mrb[0].mxu0 %v4005
        %v4164 = vpop.f32.mrb[0].mxu0
        %v4165 = vadd.f32 0.0, %v4164
        %v4166 = vpop.f32.mrb[0].mxu0
        %v4167 = vpop.f32.mrb[0].mxu0
        %v4168 = vadd.f32 0.0, %v4167
        %v4169 = vpop.f32.mrb[0].mxu0
        %4170 = vmatprep.mubr.bf16.mxu0 0
        %4171 = vmatmul.mubr.bf16.gmra.mrb[0].mxu0 %v4008
        %v4172 = vpop.f32.mrb[0].mxu0
        %v4173 = vadd.f32 0.0, %v4172
        %v4174 = vpop.f32.mrb[0].mxu0
        %v4175 = vpop.f32.mrb[0].mxu0
        %v4176 = vadd.f32 0.0, %v4175
        %v4177 = vpop.f32.mrb[0].mxu0
        %4178 = vmatprep.mubr.bf16.mxu0 0
        %4179 = vmatmul.mubr.bf16.gmra.mrb[0].mxu0 %v4011
        %v4180 = vpop.f32.mrb[0].mxu0
        %v4181 = vadd.f32 0.0, %v4180
        %v4182 = vpop.f32.mrb[0].mxu0
        %v4183 = vpop.f32.mrb[0].mxu0
        %v4184 = vadd.f32 0.0, %v4183
        %v4185 = vpop.f32.mrb[0].mxu0
        %4186 = vmatprep.mubr.bf16.mxu0 0
        %4187 = vmatmul.mubr.bf16.gmra.mrb[0].mxu0 %v4014
        %v4188 = vpop.f32.mrb[0].mxu0
        %v4189 = vadd.f32 0.0, %v4188
        %v4190 = vpop.f32.mrb[0].mxu0
        %v4191 = vpop.f32.mrb[0].mxu0
        %v4192 = vadd.f32 0.0, %v4191
        %v4193 = vpop.f32.mrb[0].mxu0
        %4194 = vmatprep.mubr.bf16.mxu0 0
        %4195 = vmatmul.mubr.bf16.gmra.mrb[0].mxu0 %v4017
        %v4196 = vpop.f32.mrb[0].mxu0
        %v4197 = vadd.f32 0.0, %v4196
        %v4198 = vpop.f32.mrb[0].mxu0
        %v4199 = vpop.f32.mrb[0].mxu0
        %v4200 = vadd.f32 0.0, %v4199
        %v4201 = vpop.f32.mrb[0].mxu0
        %4202 = vmatprep.mubr.bf16.mxu0 0
        %4203 = vmatmul.mubr.bf16.gmra.mrb[0].mxu0 %v4020
        %v4204 = vpop.f32.mrb[0].mxu0
        %v4205 = vadd.f32 0.0, %v4204
        %v4206 = vpop.f32.mrb[0].mxu0
        %v4207 = vpop.f32.mrb[0].mxu0
        %v4208 = vadd.f32 0.0, %v4207
        %v4209 = vpop.f32.mrb[0].mxu0
        %4210 = vmatprep.mubr.bf16.mxu0 0
        %4211 = vmatmul.mubr.bf16.gmra.mrb[0].mxu0 %v4023
        %v4212 = vpop.f32.mrb[0].mxu0
        %v4213 = vadd.f32 0.0, %v4212
        %v4214 = vpop.f32.mrb[0].mxu0
        %v4215 = vpop.f32.mrb[0].mxu0
        %v4216 = vadd.f32 0.0, %v4215
        %v4217 = vpop.f32.mrb[0].mxu0
        %4218 = vmatprep.mubr.bf16.mxu0 0
        %4219 = vmatmul.mubr.bf16.gmra.mrb[0].mxu0 %v4026
        %v4220 = vpop.f32.mrb[0].mxu0
        %v4221 = vadd.f32 0.0, %v4220
        %v4222 = vpop.f32.mrb[0].mxu0
        %v4223 = vpop.f32.mrb[0].mxu0
        %v4224 = vadd.f32 0.0, %v4223
        %v4225 = vpop.f32.mrb[0].mxu0
        %4226 = vmatprep.mubr.bf16.mxu0 0
        %4227 = vmatmul.mubr.bf16.gmra.mrb[0].mxu0 %v4029
        %v4228 = vpop.f32.mrb[0].mxu0
        %v4229 = vadd.f32 0.0, %v4228
        %v4230 = vpop.f32.mrb[0].mxu0
        %v4231 = vpop.f32.mrb[0].mxu0
        %v4232 = vpop.f32.mrb[0].mxu0
        %4233 = vdwg.mxu0
        %v4234 = vadd.f32 %v3879, %v4069
        %v4235 = vadd.f32 %v3880, %v4072
        %v4236 = vadd.f32 %v3881, %v4077
        %v4237 = vadd.f32 %v3882, %v4080
        %v4238 = vadd.f32 %v3883, %v4085
        %v4239 = vadd.f32 %v3884, %v4088
        %v4240 = vadd.f32 %v3885, %v4093
        %v4241 = vadd.f32 %v3886, %v4096
        %v4242 = vadd.f32 %v3887, %v4101
        %v4243 = vadd.f32 %v3888, %v4104
        %v4244 = vadd.f32 %v3889, %v4109
        %v4245 = vadd.f32 %v3890, %v4112
        %v4246 = vadd.f32 %v3891, %v4117
        %v4247 = vadd.f32 %v3892, %v4120
        %v4248 = vadd.f32 %v3893, %v4125
        %v4249 = vadd.f32 %v3894, %v4128
        %v4250 = vadd.f32 %v3895, %v4133
        %v4251 = vadd.f32 %v3896, %v4136
        %v4252 = vadd.f32 %v3897, %v4141
        %v4253 = vadd.f32 %v3898, %v4144
        %v4254 = vadd.f32 %v3899, %v4149
        %v4255 = vadd.f32 %v3900, %v4152
        %v4256 = vadd.f32 %v3901, %v4157
        %v4257 = vadd.f32 %v3902, %v4160
        %v4258 = vadd.f32 %v3903, %v4165
        %v4259 = vadd.f32 %v3904, %v4168
        %v4260 = vadd.f32 %v3905, %v4173
        %v4261 = vadd.f32 %v3906, %v4176
        %v4262 = vadd.f32 %v3907, %v4181
        %v4263 = vadd.f32 %v3908, %v4184
        %v4264 = vadd.f32 %v3909, %v4189
        %v4265 = vadd.f32 %v3910, %v4192
        %v4266 = vadd.f32 %v3911, %v4197
        %v4267 = vadd.f32 %v3912, %v4200
        %v4268 = vadd.f32 %v3913, %v4205
        %v4269 = vadd.f32 %v3914, %v4208
        %v4270 = vadd.f32 %v3915, %v4213
        %v4271 = vadd.f32 %v3916, %v4216
        %v4272 = vadd.f32 %v3917, %v4221
        %v4273 = vadd.f32 %v3918, %v4224
        %v4274 = vadd.f32 %v3919, %v4229
        %v4275 = vld [vmem:[#allocation8] sm:$0x1]
        %v4277 = vlaneseq
        %v4278 = vshrl.u32 %v4277, 7
        %v4279 = vsub.s32 0, %v4278
        %v4280 = vrot.slane %v4275, %v4279
        %v4282 = vadd.f32 %v4234, %v4280
        %v4283 = vadd.f32 %v4235, %v4280
        %v4284 = vadd.f32 %v4236, %v4280
        %v4285 = vadd.f32 %v4237, %v4280
        %v4286 = vadd.f32 %v4238, %v4280
        %v4287 = vadd.f32 %v4239, %v4280
        %v4288 = vadd.f32 %v4240, %v4280
        %v4289 = vadd.f32 %v4241, %v4280
        %v4290 = vadd.f32 %v4242, %v4280
        %v4291 = vadd.f32 %v4243, %v4280
        %v4292 = vadd.f32 %v4244, %v4280
        %v4293 = vadd.f32 %v4245, %v4280
        %v4294 = vadd.f32 %v4246, %v4280
        %v4295 = vadd.f32 %v4247, %v4280
        %v4296 = vadd.f32 %v4248, %v4280
        %v4297 = vadd.f32 %v4249, %v4280
        %v4298 = vadd.f32 %v4250, %v4280
        %v4299 = vadd.f32 %v4251, %v4280
        %v4300 = vadd.f32 %v4252, %v4280
        %v4301 = vadd.f32 %v4253, %v4280
        %v4302 = vadd.f32 %v4254, %v4280
        %v4303 = vadd.f32 %v4255, %v4280
        %v4304 = vadd.f32 %v4256, %v4280
        %v4305 = vadd.f32 %v4257, %v4280
        %v4306 = vadd.f32 %v4258, %v4280
        %v4307 = vadd.f32 %v4259, %v4280
        %v4308 = vadd.f32 %v4260, %v4280
        %v4309 = vadd.f32 %v4261, %v4280
        %v4310 = vadd.f32 %v4262, %v4280
        %v4311 = vadd.f32 %v4263, %v4280
        %v4312 = vadd.f32 %v4264, %v4280
        %v4313 = vadd.f32 %v4265, %v4280
        %v4314 = vadd.f32 %v4266, %v4280
        %v4315 = vadd.f32 %v4267, %v4280
        %v4316 = vadd.f32 %v4268, %v4280
        %v4317 = vadd.f32 %v4269, %v4280
        %v4318 = vadd.f32 %v4270, %v4280
        %v4319 = vadd.f32 %v4271, %v4280
        %v4320 = vadd.f32 %v4272, %v4280
        %v4321 = vadd.f32 %v4273, %v4280
        %v4322 = vadd.f32 %v4274, %v4280
        %v4323 = vmax.f32 %v4282, 0.0
        %v4324 = vmax.f32 %v4283, 0.0
        %v4325 = vmax.f32 %v4284, 0.0
        %v4326 = vmax.f32 %v4285, 0.0
        %v4327 = vmax.f32 %v4286, 0.0
        %v4328 = vmax.f32 %v4287, 0.0
        %v4329 = vmax.f32 %v4288, 0.0
        %v4330 = vmax.f32 %v4289, 0.0
        %v4331 = vmax.f32 %v4290, 0.0
        %v4332 = vmax.f32 %v4291, 0.0
        %v4333 = vmax.f32 %v4292, 0.0
        %v4334 = vmax.f32 %v4293, 0.0
        %v4335 = vmax.f32 %v4294, 0.0
        %v4336 = vmax.f32 %v4295, 0.0
        %v4337 = vmax.f32 %v4296, 0.0
        %v4338 = vmax.f32 %v4297, 0.0
        %v4339 = vmax.f32 %v4298, 0.0
        %v4340 = vmax.f32 %v4299, 0.0
        %v4341 = vmax.f32 %v4300, 0.0
        %v4342 = vmax.f32 %v4301, 0.0
        %v4343 = vmax.f32 %v4302, 0.0
        %v4344 = vmax.f32 %v4303, 0.0
        %v4345 = vmax.f32 %v4304, 0.0
        %v4346 = vmax.f32 %v4305, 0.0
        %v4347 = vmax.f32 %v4306, 0.0
        %v4348 = vmax.f32 %v4307, 0.0
        %v4349 = vmax.f32 %v4308, 0.0
        %v4350 = vmax.f32 %v4309, 0.0
        %v4351 = vmax.f32 %v4310, 0.0
        %v4352 = vmax.f32 %v4311, 0.0
        %v4353 = vmax.f32 %v4312, 0.0
        %v4354 = vmax.f32 %v4313, 0.0
        %v4355 = vmax.f32 %v4314, 0.0
        %v4356 = vmax.f32 %v4315, 0.0
        %v4357 = vmax.f32 %v4316, 0.0
        %v4358 = vmax.f32 %v4317, 0.0
        %v4359 = vmax.f32 %v4318, 0.0
        %v4360 = vmax.f32 %v4319, 0.0
        %v4361 = vmax.f32 %v4320, 0.0
        %v4362 = vmax.f32 %v4321, 0.0
        %v4363 = vmax.f32 %v4322, 0.0
        %v4364 = vld [vmem:[#allocation14] sm:$0xff]
        %v4365 = vld [vmem:[#allocation14 + $0x8] sm:$0xff]
        %v4366 = vld [vmem:[#allocation14 + $0x10] sm:$0xff]
        %v4367 = vld [vmem:[#allocation14 + $0x18] sm:$0xff]
        %v4368 = vld [vmem:[#allocation14 + $0x20] sm:$0xff]
        %v4369 = vld [vmem:[#allocation14 + $0x28] sm:$0xff]
        %v4370 = vld [vmem:[#allocation14 + $0x30] sm:$0xff]
        %v4371 = vld [vmem:[#allocation14 + $0x38] sm:$0xff]
        %v4372 = vld [vmem:[#allocation14 + $0x40] sm:$0xff]
        %v4373 = vld [vmem:[#allocation14 + $0x48] sm:$0xff]
        %v4374 = vld [vmem:[#allocation14 + $0x50] sm:$0xff]
        %v4375 = vld [vmem:[#allocation14 + $0x58] sm:$0xff]
        %v4376 = vld [vmem:[#allocation14 + $0x60] sm:$0xff]
        %v4377 = vld [vmem:[#allocation14 + $0x68] sm:$0xff]
        %v4378 = vld [vmem:[#allocation14 + $0x70] sm:$0xff]
        %v4379 = vld [vmem:[#allocation14 + $0x78] sm:$0xff]
        %v4380 = vld [vmem:[#allocation14 + $0x80] sm:$0xff]
        %v4381 = vld [vmem:[#allocation14 + $0x88] sm:$0xff]
        %v4382 = vld [vmem:[#allocation14 + $0x90] sm:$0xff]
        %v4383 = vld [vmem:[#allocation14 + $0x98] sm:$0xff]
        %v4384 = vld [vmem:[#allocation14 + $0xa0] sm:$0xff]
        %v4385 = vld [vmem:[#allocation14 + $0xa8] sm:$0xff]
        %v4386 = vld [vmem:[#allocation14 + $0xb0] sm:$0xff]
        %v4387 = vld [vmem:[#allocation14 + $0xb8] sm:$0xff]
        %v4388 = vld [vmem:[#allocation14 + $0xc0] sm:$0xff]
        %v4389 = vld [vmem:[#allocation14 + $0xc8] sm:$0xff]
        %v4390 = vld [vmem:[#allocation14 + $0xd0] sm:$0xff]
        %v4391 = vld [vmem:[#allocation14 + $0xd8] sm:$0xff]
        %v4392 = vld [vmem:[#allocation14 + $0xe0] sm:$0xff]
        %v4393 = vld [vmem:[#allocation14 + $0xe8] sm:$0xff]
        %v4394 = vld [vmem:[#allocation14 + $0xf0] sm:$0xff]
        %v4395 = vld [vmem:[#allocation14 + $0xf8] sm:$0xff]
        %v4396 = vld [vmem:[#allocation14 + $0x100] sm:$0xff]
        %v4397 = vld [vmem:[#allocation14 + $0x108] sm:$0xff]
        %v4398 = vld [vmem:[#allocation14 + $0x110] sm:$0xff]
        %v4399 = vld [vmem:[#allocation14 + $0x118] sm:$0xff]
        %v4400 = vld [vmem:[#allocation14 + $0x120] sm:$0xff]
        %v4401 = vld [vmem:[#allocation14 + $0x128] sm:$0xff]
        %v4402 = vld [vmem:[#allocation14 + $0x130] sm:$0xff]
        %v4403 = vld [vmem:[#allocation14 + $0x138] sm:$0xff]
        %v4404 = vld [vmem:[#allocation14 + $0x140] sm:$0xff]
        %4406 = vset.pattern.permute.xlu0 0
        %4407 = vperm.xlu0 %4406, %v4364
        %v4408 = vpop.permute.xlu0 %4407
        %4411 = vset.pattern.permute.xlu0 0
        %4412 = vperm.xlu0 %4411, %v4365
        %v4413 = vpop.permute.xlu0 %4412
        %4416 = vset.pattern.permute.xlu0 0
        %4417 = vperm.xlu0 %4416, %v4366
        %v4418 = vpop.permute.xlu0 %4417
        %4421 = vset.pattern.permute.xlu0 0
        %4422 = vperm.xlu0 %4421, %v4367
        %v4423 = vpop.permute.xlu0 %4422
        %4426 = vset.pattern.permute.xlu0 0
        %4427 = vperm.xlu0 %4426, %v4368
        %v4428 = vpop.permute.xlu0 %4427
        %4431 = vset.pattern.permute.xlu0 0
        %4432 = vperm.xlu0 %4431, %v4369
        %v4433 = vpop.permute.xlu0 %4432
        %4436 = vset.pattern.permute.xlu0 0
        %4437 = vperm.xlu0 %4436, %v4370
        %v4438 = vpop.permute.xlu0 %4437
        %4441 = vset.pattern.permute.xlu0 0
        %4442 = vperm.xlu0 %4441, %v4371
        %v4443 = vpop.permute.xlu0 %4442
        %4446 = vset.pattern.permute.xlu0 0
        %4447 = vperm.xlu0 %4446, %v4372
        %v4448 = vpop.permute.xlu0 %4447
        %4451 = vset.pattern.permute.xlu0 0
        %4452 = vperm.xlu0 %4451, %v4373
        %v4453 = vpop.permute.xlu0 %4452
        %4456 = vset.pattern.permute.xlu0 0
        %4457 = vperm.xlu0 %4456, %v4374
        %v4458 = vpop.permute.xlu0 %4457
        %4461 = vset.pattern.permute.xlu0 0
        %4462 = vperm.xlu0 %4461, %v4375
        %v4463 = vpop.permute.xlu0 %4462
        %4466 = vset.pattern.permute.xlu0 0
        %4467 = vperm.xlu0 %4466, %v4376
        %v4468 = vpop.permute.xlu0 %4467
        %4471 = vset.pattern.permute.xlu0 0
        %4472 = vperm.xlu0 %4471, %v4377
        %v4473 = vpop.permute.xlu0 %4472
        %4476 = vset.pattern.permute.xlu0 0
        %4477 = vperm.xlu0 %4476, %v4378
        %v4478 = vpop.permute.xlu0 %4477
        %4481 = vset.pattern.permute.xlu0 0
        %4482 = vperm.xlu0 %4481, %v4379
        %v4483 = vpop.permute.xlu0 %4482
        %4486 = vset.pattern.permute.xlu0 0
        %4487 = vperm.xlu0 %4486, %v4380
        %v4488 = vpop.permute.xlu0 %4487
        %4491 = vset.pattern.permute.xlu0 0
        %4492 = vperm.xlu0 %4491, %v4381
        %v4493 = vpop.permute.xlu0 %4492
        %4496 = vset.pattern.permute.xlu0 0
        %4497 = vperm.xlu0 %4496, %v4382
        %v4498 = vpop.permute.xlu0 %4497
        %4501 = vset.pattern.permute.xlu0 0
        %4502 = vperm.xlu0 %4501, %v4383
        %v4503 = vpop.permute.xlu0 %4502
        %4506 = vset.pattern.permute.xlu0 0
        %4507 = vperm.xlu0 %4506, %v4384
        %v4508 = vpop.permute.xlu0 %4507
        %4511 = vset.pattern.permute.xlu0 0
        %4512 = vperm.xlu0 %4511, %v4385
        %v4513 = vpop.permute.xlu0 %4512
        %4516 = vset.pattern.permute.xlu0 0
        %4517 = vperm.xlu0 %4516, %v4386
        %v4518 = vpop.permute.xlu0 %4517
        %4521 = vset.pattern.permute.xlu0 0
        %4522 = vperm.xlu0 %4521, %v4387
        %v4523 = vpop.permute.xlu0 %4522
        %4526 = vset.pattern.permute.xlu0 0
        %4527 = vperm.xlu0 %4526, %v4388
        %v4528 = vpop.permute.xlu0 %4527
        %4531 = vset.pattern.permute.xlu0 0
        %4532 = vperm.xlu0 %4531, %v4389
        %v4533 = vpop.permute.xlu0 %4532
        %4536 = vset.pattern.permute.xlu0 0
        %4537 = vperm.xlu0 %4536, %v4390
        %v4538 = vpop.permute.xlu0 %4537
        %4541 = vset.pattern.permute.xlu0 0
        %4542 = vperm.xlu0 %4541, %v4391
        %v4543 = vpop.permute.xlu0 %4542
        %4546 = vset.pattern.permute.xlu0 0
        %4547 = vperm.xlu0 %4546, %v4392
        %v4548 = vpop.permute.xlu0 %4547
        %4551 = vset.pattern.permute.xlu0 0
        %4552 = vperm.xlu0 %4551, %v4393
        %v4553 = vpop.permute.xlu0 %4552
        %4556 = vset.pattern.permute.xlu0 0
        %4557 = vperm.xlu0 %4556, %v4394
        %v4558 = vpop.permute.xlu0 %4557
        %4561 = vset.pattern.permute.xlu0 0
        %4562 = vperm.xlu0 %4561, %v4395
        %v4563 = vpop.permute.xlu0 %4562
        %4566 = vset.pattern.permute.xlu0 0
        %4567 = vperm.xlu0 %4566, %v4396
        %v4568 = vpop.permute.xlu0 %4567
        %4571 = vset.pattern.permute.xlu0 0
        %4572 = vperm.xlu0 %4571, %v4397
        %v4573 = vpop.permute.xlu0 %4572
        %4576 = vset.pattern.permute.xlu0 0
        %4577 = vperm.xlu0 %4576, %v4398
        %v4578 = vpop.permute.xlu0 %4577
        %4581 = vset.pattern.permute.xlu0 0
        %4582 = vperm.xlu0 %4581, %v4399
        %v4583 = vpop.permute.xlu0 %4582
        %4586 = vset.pattern.permute.xlu0 0
        %4587 = vperm.xlu0 %4586, %v4400
        %v4588 = vpop.permute.xlu0 %4587
        %4591 = vset.pattern.permute.xlu0 0
        %4592 = vperm.xlu0 %4591, %v4401
        %v4593 = vpop.permute.xlu0 %4592
        %4596 = vset.pattern.permute.xlu0 0
        %4597 = vperm.xlu0 %4596, %v4402
        %v4598 = vpop.permute.xlu0 %4597
        %4601 = vset.pattern.permute.xlu0 0
        %4602 = vperm.xlu0 %4601, %v4403
        %v4603 = vpop.permute.xlu0 %4602
        %4606 = vset.pattern.permute.xlu0 0
        %4607 = vperm.xlu0 %4606, %v4404
        %v4608 = vpop.permute.xlu0 %4607
        %v4610 = vmul.f32 %v4323, %v4408
        %v4611 = vmul.f32 %v4324, %v4413
        %v4612 = vmul.f32 %v4325, %v4418
        %v4613 = vmul.f32 %v4326, %v4423
        %v4614 = vmul.f32 %v4327, %v4428
        %v4615 = vmul.f32 %v4328, %v4433
        %v4616 = vmul.f32 %v4329, %v4438
        %v4617 = vmul.f32 %v4330, %v4443
        %v4618 = vmul.f32 %v4331, %v4448
        %v4619 = vmul.f32 %v4332, %v4453
        %v4620 = vmul.f32 %v4333, %v4458
        %v4621 = vmul.f32 %v4334, %v4463
        %v4622 = vmul.f32 %v4335, %v4468
        %v4623 = vmul.f32 %v4336, %v4473
        %v4624 = vmul.f32 %v4337, %v4478
        %v4625 = vmul.f32 %v4338, %v4483
        %v4626 = vmul.f32 %v4339, %v4488
        %v4627 = vmul.f32 %v4340, %v4493
        %v4628 = vmul.f32 %v4341, %v4498
        %v4629 = vmul.f32 %v4342, %v4503
        %v4630 = vmul.f32 %v4343, %v4508
        %v4631 = vmul.f32 %v4344, %v4513
        %v4632 = vmul.f32 %v4345, %v4518
        %v4633 = vmul.f32 %v4346, %v4523
        %v4634 = vmul.f32 %v4347, %v4528
        %v4635 = vmul.f32 %v4348, %v4533
        %v4636 = vmul.f32 %v4349, %v4538
        %v4637 = vmul.f32 %v4350, %v4543
        %v4638 = vmul.f32 %v4351, %v4548
        %v4639 = vmul.f32 %v4352, %v4553
        %v4640 = vmul.f32 %v4353, %v4558
        %v4641 = vmul.f32 %v4354, %v4563
        %v4642 = vmul.f32 %v4355, %v4568
        %v4643 = vmul.f32 %v4356, %v4573
        %v4644 = vmul.f32 %v4357, %v4578
        %v4645 = vmul.f32 %v4358, %v4583
        %v4646 = vmul.f32 %v4359, %v4588
        %v4647 = vmul.f32 %v4360, %v4593
        %v4648 = vmul.f32 %v4361, %v4598
        %v4649 = vmul.f32 %v4362, %v4603
        %v4650 = vmul.f32 %v4363, %v4608
        %4651 = vst [vmem:[#allocation2] sm:$0xff] 0
        %vm4652 = vcmask 1041408
        %vm4653 = vsmask.f32 1280
        %vm4654 = vmand %vm4652, %vm4653
        %v4655 = vld [vmem:[#allocation2 + $0x8] sm:$0x3]
        %v4656 = vsel %vm4654, 0, %v4655
        %4657 = vst [vmem:[#allocation2 + $0x8] sm:$0x3] %v4656
        %vm4658 = vcmask 1047557
        %vm4659 = vsmask.f32 7958
        %vm4660 = vmand %vm4658, %vm4659
        %v4661 = vld [vmem:[#allocation2 + $0xa8] sm:$0xe0]
        %v4662 = vsel %vm4660, 0, %v4661
        %4663 = vst [vmem:[#allocation2 + $0xa8] sm:$0xe0] %v4662
        %4664 = vst [vmem:[#allocation2 + $0xb0] sm:$0xff] 0
        %v4665 = vpack.c.bf16 %v4611, %v4610
        %v4666 = vpack.c.bf16 %v4613, %v4612
        %v4667 = vpack.c.bf16 %v4615, %v4614
        %v4668 = vpack.c.bf16 %v4617, %v4616
        %v4669 = vpack.c.bf16 %v4619, %v4618
        %v4670 = vpack.c.bf16 %v4621, %v4620
        %v4671 = vpack.c.bf16 %v4623, %v4622
        %v4672 = vpack.c.bf16 %v4625, %v4624
        %v4673 = vpack.c.bf16 %v4627, %v4626
        %v4674 = vpack.c.bf16 %v4629, %v4628
        %v4675 = vpack.c.bf16 %v4631, %v4630
        %v4676 = vpack.c.bf16 %v4633, %v4632
        %v4677 = vpack.c.bf16 %v4635, %v4634
        %v4678 = vpack.c.bf16 %v4637, %v4636
        %v4679 = vpack.c.bf16 %v4639, %v4638
        %v4680 = vpack.c.bf16 %v4641, %v4640
        %v4681 = vpack.c.bf16 %v4643, %v4642
        %v4682 = vpack.c.bf16 %v4645, %v4644
        %v4683 = vpack.c.bf16 %v4647, %v4646
        %v4684 = vpack.c.bf16 %v4649, %v4648
        %v4685 = vpack.c.bf16 %v4650, %v4650
        %v4687 = vshrl.u32 %v4665, 16
        %v4689 = vrot.slane %v4687, 6
        %v4690 = vshll.u32 %v4665, 16
        %v4692 = vrot.slane %v4690, 7
        %v4693 = vor.u32 %v4689, %v4692
        %v4695 = vshrl.u32 %v4666, 16
        %v4697 = vrot.slane %v4695, 6
        %v4698 = vshll.u32 %v4666, 16
        %v4700 = vrot.slane %v4698, 7
        %v4701 = vor.u32 %v4697, %v4700
        %v4702 = vsel %vm4653, %v4693, %v4701
        %v4704 = vshrl.u32 %v4667, 16
        %v4706 = vrot.slane %v4704, 6
        %v4707 = vshll.u32 %v4667, 16
        %v4709 = vrot.slane %v4707, 7
        %v4710 = vor.u32 %v4706, %v4709
        %v4711 = vsel %vm4653, %v4701, %v4710
        %v4713 = vshrl.u32 %v4668, 16
        %v4715 = vrot.slane %v4713, 6
        %v4716 = vshll.u32 %v4668, 16
        %v4718 = vrot.slane %v4716, 7
        %v4719 = vor.u32 %v4715, %v4718
        %v4720 = vsel %vm4653, %v4710, %v4719
        %v4722 = vshrl.u32 %v4669, 16
        %v4724 = vrot.slane %v4722, 6
        %v4725 = vshll.u32 %v4669, 16
        %v4727 = vrot.slane %v4725, 7
        %v4728 = vor.u32 %v4724, %v4727
        %v4729 = vsel %vm4653, %v4719, %v4728
        %v4731 = vshrl.u32 %v4670, 16
        %v4733 = vrot.slane %v4731, 6
        %v4734 = vshll.u32 %v4670, 16
        %v4736 = vrot.slane %v4734, 7
        %v4737 = vor.u32 %v4733, %v4736
        %v4738 = vsel %vm4653, %v4728, %v4737
        %v4740 = vshrl.u32 %v4671, 16
        %v4742 = vrot.slane %v4740, 6
        %v4743 = vshll.u32 %v4671, 16
        %v4745 = vrot.slane %v4743, 7
        %v4746 = vor.u32 %v4742, %v4745
        %v4747 = vsel %vm4653, %v4737, %v4746
        %v4749 = vshrl.u32 %v4672, 16
        %v4751 = vrot.slane %v4749, 6
        %v4752 = vshll.u32 %v4672, 16
        %v4754 = vrot.slane %v4752, 7
        %v4755 = vor.u32 %v4751, %v4754
        %v4756 = vsel %vm4653, %v4746, %v4755
        %v4758 = vshrl.u32 %v4673, 16
        %v4760 = vrot.slane %v4758, 6
        %v4761 = vshll.u32 %v4673, 16
        %v4763 = vrot.slane %v4761, 7
        %v4764 = vor.u32 %v4760, %v4763
        %v4765 = vsel %vm4653, %v4755, %v4764
        %v4767 = vshrl.u32 %v4674, 16
        %v4769 = vrot.slane %v4767, 6
        %v4770 = vshll.u32 %v4674, 16
        %v4772 = vrot.slane %v4770, 7
        %v4773 = vor.u32 %v4769, %v4772
        %v4774 = vsel %vm4653, %v4764, %v4773
        %v4776 = vshrl.u32 %v4675, 16
        %v4778 = vrot.slane %v4776, 6
        %v4779 = vshll.u32 %v4675, 16
        %v4781 = vrot.slane %v4779, 7
        %v4782 = vor.u32 %v4778, %v4781
        %v4783 = vsel %vm4653, %v4773, %v4782
        %v4785 = vshrl.u32 %v4676, 16
        %v4787 = vrot.slane %v4785, 6
        %v4788 = vshll.u32 %v4676, 16
        %v4790 = vrot.slane %v4788, 7
        %v4791 = vor.u32 %v4787, %v4790
        %v4792 = vsel %vm4653, %v4782, %v4791
        %v4794 = vshrl.u32 %v4677, 16
        %v4796 = vrot.slane %v4794, 6
        %v4797 = vshll.u32 %v4677, 16
        %v4799 = vrot.slane %v4797, 7
        %v4800 = vor.u32 %v4796, %v4799
        %v4801 = vsel %vm4653, %v4791, %v4800
        %v4803 = vshrl.u32 %v4678, 16
        %v4805 = vrot.slane %v4803, 6
        %v4806 = vshll.u32 %v4678, 16
        %v4808 = vrot.slane %v4806, 7
        %v4809 = vor.u32 %v4805, %v4808
        %v4810 = vsel %vm4653, %v4800, %v4809
        %v4812 = vshrl.u32 %v4679, 16
        %v4814 = vrot.slane %v4812, 6
        %v4815 = vshll.u32 %v4679, 16
        %v4817 = vrot.slane %v4815, 7
        %v4818 = vor.u32 %v4814, %v4817
        %v4819 = vsel %vm4653, %v4809, %v4818
        %v4821 = vshrl.u32 %v4680, 16
        %v4823 = vrot.slane %v4821, 6
        %v4824 = vshll.u32 %v4680, 16
        %v4826 = vrot.slane %v4824, 7
        %v4827 = vor.u32 %v4823, %v4826
        %v4828 = vsel %vm4653, %v4818, %v4827
        %v4830 = vshrl.u32 %v4681, 16
        %v4832 = vrot.slane %v4830, 6
        %v4833 = vshll.u32 %v4681, 16
        %v4835 = vrot.slane %v4833, 7
        %v4836 = vor.u32 %v4832, %v4835
        %v4837 = vsel %vm4653, %v4827, %v4836
        %v4839 = vshrl.u32 %v4682, 16
        %v4841 = vrot.slane %v4839, 6
        %v4842 = vshll.u32 %v4682, 16
        %v4844 = vrot.slane %v4842, 7
        %v4845 = vor.u32 %v4841, %v4844
        %v4846 = vsel %vm4653, %v4836, %v4845
        %v4848 = vshrl.u32 %v4683, 16
        %v4850 = vrot.slane %v4848, 6
        %v4851 = vshll.u32 %v4683, 16
        %v4853 = vrot.slane %v4851, 7
        %v4854 = vor.u32 %v4850, %v4853
        %v4855 = vsel %vm4653, %v4845, %v4854
        %v4857 = vshrl.u32 %v4684, 16
        %v4859 = vrot.slane %v4857, 6
        %v4860 = vshll.u32 %v4684, 16
        %v4862 = vrot.slane %v4860, 7
        %v4863 = vor.u32 %v4859, %v4862
        %v4864 = vsel %vm4653, %v4854, %v4863
        %v4866 = vshrl.u32 %v4685, 16
        %v4868 = vrot.slane %v4866, 6
        %v4869 = vshll.u32 %v4685, 16
        %v4871 = vrot.slane %v4869, 7
        %v4872 = vor.u32 %v4868, %v4871
        %v4873 = vsel %vm4653, %v4863, %v4872
        %vm4895 = vcmask 1047553
        %vm4896 = vsmask.f32 7942
        %vm4897 = vmand %vm4895, %vm4896
        %v4898 = vld [vmem:[#allocation2 + $0x8] sm:$0xfe]
        %v4899 = vsel %vm4897, %v4693, %v4898
        %4900 = vst [vmem:[#allocation2 + $0x8] sm:$0xfe] %v4899
        %4901 = vst [vmem:[#allocation2 + $0x10] sm:$0xff] %v4702
        %4902 = vst [vmem:[#allocation2 + $0x18] sm:$0xff] %v4711
        %4903 = vst [vmem:[#allocation2 + $0x20] sm:$0xff] %v4720
        %4904 = vst [vmem:[#allocation2 + $0x28] sm:$0xff] %v4729
        %4905 = vst [vmem:[#allocation2 + $0x30] sm:$0xff] %v4738
        %4906 = vst [vmem:[#allocation2 + $0x38] sm:$0xff] %v4747
        %4907 = vst [vmem:[#allocation2 + $0x40] sm:$0xff] %v4756
        %4908 = vst [vmem:[#allocation2 + $0x48] sm:$0xff] %v4765
        %4909 = vst [vmem:[#allocation2 + $0x50] sm:$0xff] %v4774
        %4910 = vst [vmem:[#allocation2 + $0x58] sm:$0xff] %v4783
        %4911 = vst [vmem:[#allocation2 + $0x60] sm:$0xff] %v4792
        %4912 = vst [vmem:[#allocation2 + $0x68] sm:$0xff] %v4801
        %4913 = vst [vmem:[#allocation2 + $0x70] sm:$0xff] %v4810
        %4914 = vst [vmem:[#allocation2 + $0x78] sm:$0xff] %v4819
        %4915 = vst [vmem:[#allocation2 + $0x80] sm:$0xff] %v4828
        %4916 = vst [vmem:[#allocation2 + $0x88] sm:$0xff] %v4837
        %4917 = vst [vmem:[#allocation2 + $0x90] sm:$0xff] %v4846
        %4918 = vst [vmem:[#allocation2 + $0x98] sm:$0xff] %v4855
        %4919 = vst [vmem:[#allocation2 + $0xa0] sm:$0xff] %v4864
        %vm4920 = vmand %vm2572, %vm3424
        %v4921 = vld [vmem:[#allocation2 + $0xa8] sm:$0x3f]
        %v4922 = vsel %vm4920, %v4873, %v4921
        %4923 = vst [vmem:[#allocation2 + $0xa8] sm:$0x3f] %v4922
        %v4924 = vld [vmem:[%s323 + $0x8] sm:$0xe]
        %v4925 = vld [vmem:[%s323 + $0xc] sm:$0xf]
        %v4926 = vld [vmem:[%s323 + $0x10] sm:$0xf]
        %v4927 = vld [vmem:[%s323 + $0x14] sm:$0xf]
        %v4928 = vld [vmem:[%s323 + $0x18] sm:$0xf]
        %v4929 = vld [vmem:[%s323 + $0x1c] sm:$0xf]
        %v4930 = vld [vmem:[%s323 + $0x20] sm:$0xf]
        %v4931 = vld [vmem:[%s323 + $0x24] sm:$0xf]
        %v4932 = vld [vmem:[%s323 + $0x28] sm:$0xf]
        %v4933 = vld [vmem:[%s323 + $0x2c] sm:$0xf]
        %v4934 = vld [vmem:[%s323 + $0x30] sm:$0xf]
        %v4935 = vld [vmem:[%s323 + $0x34] sm:$0xf]
        %v4936 = vld [vmem:[%s323 + $0x38] sm:$0xf]
        %v4937 = vld [vmem:[%s323 + $0x3c] sm:$0xf]
        %v4938 = vld [vmem:[%s323 + $0x40] sm:$0xf]
        %v4939 = vld [vmem:[%s323 + $0x44] sm:$0xf]
        %v4940 = vld [vmem:[%s323 + $0x48] sm:$0xf]
        %v4941 = vld [vmem:[%s323 + $0x4c] sm:$0xf]
        %v4942 = vld [vmem:[%s323 + $0x50] sm:$0xf]
        %v4943 = vld [vmem:[%s323 + $0x54] sm:$0xf]
        %v4944 = vld [vmem:[%s323 + $0x58] sm:$0xf]
        %v4945 = vld [vmem:[%s323 + $0x5c] sm:$0xf]
        %v4946 = vld [vmem:[%s323 + $0x60] sm:$0xf]
        %v4947 = vld [vmem:[%s323 + $0x64] sm:$0xf]
        %v4948 = vld [vmem:[%s323 + $0x68] sm:$0xf]
        %v4949 = vld [vmem:[%s323 + $0x6c] sm:$0xf]
        %v4950 = vld [vmem:[%s323 + $0x70] sm:$0xf]
        %v4951 = vld [vmem:[%s323 + $0x74] sm:$0xf]
        %v4952 = vld [vmem:[%s323 + $0x78] sm:$0xf]
        %v4953 = vld [vmem:[%s323 + $0x7c] sm:$0xf]
        %v4954 = vld [vmem:[%s323 + $0x80] sm:$0xf]
        %v4955 = vld [vmem:[%s323 + $0x84] sm:$0xf]
        %v4956 = vld [vmem:[%s323 + $0x88] sm:$0xf]
        %v4957 = vld [vmem:[%s323 + $0x8c] sm:$0xf]
        %v4958 = vld [vmem:[%s323 + $0x90] sm:$0xf]
        %v4959 = vld [vmem:[%s323 + $0x94] sm:$0xf]
        %v4960 = vld [vmem:[%s323 + $0x98] sm:$0xf]
        %v4961 = vld [vmem:[%s323 + $0x9c] sm:$0xf]
        %v4962 = vld [vmem:[%s323 + $0xa0] sm:$0xf]
        %v4963 = vld [vmem:[%s323 + $0xa4] sm:$0xf]
        %v4964 = vld [vmem:[%s323 + $0xa8] sm:$0xf]
        %v4965 = vld [vmem:[%s323 + $0xac] sm:$0x3]
        %v4966 = vld [vmem:[#allocation11] sm:$0x3]
        %v4967 = vld [vmem:[#allocation2] sm:$0xff]
        %v4968 = vld [vmem:[#allocation2 + $0x8] sm:$0xff]
        %v4969 = vld [vmem:[#allocation2 + $0x10] sm:$0xff]
        %v4970 = vld [vmem:[#allocation2 + $0x18] sm:$0xff]
        %v4971 = vld [vmem:[#allocation2 + $0x20] sm:$0xff]
        %v4972 = vld [vmem:[#allocation2 + $0x28] sm:$0xff]
        %v4973 = vld [vmem:[#allocation2 + $0x30] sm:$0xff]
        %v4974 = vld [vmem:[#allocation2 + $0x38] sm:$0xff]
        %v4975 = vld [vmem:[#allocation2 + $0x40] sm:$0xff]
        %v4976 = vld [vmem:[#allocation2 + $0x48] sm:$0xff]
        %v4977 = vld [vmem:[#allocation2 + $0x50] sm:$0xff]
        %v4978 = vld [vmem:[#allocation2 + $0x58] sm:$0xff]
        %v4979 = vld [vmem:[#allocation2 + $0x60] sm:$0xff]
        %v4980 = vld [vmem:[#allocation2 + $0x68] sm:$0xff]
        %v4981 = vld [vmem:[#allocation2 + $0x70] sm:$0xff]
        %v4982 = vld [vmem:[#allocation2 + $0x78] sm:$0xff]
        %v4983 = vld [vmem:[#allocation2 + $0x80] sm:$0xff]
        %v4984 = vld [vmem:[#allocation2 + $0x88] sm:$0xff]
        %v4985 = vld [vmem:[#allocation2 + $0x90] sm:$0xff]
        %v4986 = vld [vmem:[#allocation2 + $0x98] sm:$0xff]
        %v4987 = vld [vmem:[#allocation2 + $0xa0] sm:$0xf]
        %v4988 = vld [vmem:[#allocation9] sm:$0xf]
        %v4989 = vld [vmem:[#allocation9 + $0x4] sm:$0xf]
        %v4990 = vld [vmem:[#allocation9 + $0x8] sm:$0xf]
        %v4991 = vld [vmem:[#allocation9 + $0xc] sm:$0xf]
        %v4992 = vld [vmem:[#allocation9 + $0x10] sm:$0xf]
        %v4993 = vld [vmem:[#allocation9 + $0x14] sm:$0xf]
        %v4994 = vld [vmem:[#allocation9 + $0x18] sm:$0xf]
        %v4995 = vld [vmem:[#allocation9 + $0x1c] sm:$0xf]
        %v4996 = vld [vmem:[#allocation9 + $0x20] sm:$0xf]
        %v4997 = vld [vmem:[#allocation9 + $0x24] sm:$0xf]
        %v4998 = vld [vmem:[#allocation9 + $0x28] sm:$0xf]
        %v4999 = vld [vmem:[#allocation9 + $0x2c] sm:$0xf]
        %v5000 = vld [vmem:[#allocation9 + $0x30] sm:$0xf]
        %v5001 = vld [vmem:[#allocation9 + $0x34] sm:$0xf]
        %v5002 = vld [vmem:[#allocation9 + $0x38] sm:$0xf]
        %v5003 = vld [vmem:[#allocation9 + $0x3c] sm:$0xf]
        %v5020 = vunpack.c.l.b16 %v4988
        %v5021 = vunpack.c.l.b16 %v4989
        %v5022 = vunpack.c.l.b16 %v4990
        %v5023 = vunpack.c.l.b16 %v4991
        %v5024 = vunpack.c.l.b16 %v4992
        %v5025 = vunpack.c.l.b16 %v4993
        %v5026 = vunpack.c.l.b16 %v4994
        %v5027 = vunpack.c.l.b16 %v4995
        %v5028 = vunpack.c.l.b16 %v4996
        %v5029 = vunpack.c.l.b16 %v4997
        %v5030 = vunpack.c.l.b16 %v4998
        %v5031 = vunpack.c.l.b16 %v4999
        %v5032 = vunpack.c.l.b16 %v5000
        %v5033 = vunpack.c.l.b16 %v5001
        %v5034 = vunpack.c.l.b16 %v5002
        %v5035 = vunpack.c.l.b16 %v5003
        %v5036 = vpack.c.b16 %v5021, %v5020
        %v5037 = vpack.c.b16 %v5023, %v5022
        %v5038 = vpack.c.b16 %v5025, %v5024
        %v5039 = vpack.c.b16 %v5027, %v5026
        %v5040 = vpack.c.b16 %v5029, %v5028
        %v5041 = vpack.c.b16 %v5031, %v5030
        %v5042 = vpack.c.b16 %v5033, %v5032
        %v5043 = vpack.c.b16 %v5035, %v5034
        %5052 = vmatprep.subr.bf16.mxu0 0
        %5053 = vmatpush1.bf16.msra.mxu0 %v5036
        %5054 = vmatprep.subr.bf16.mxu0 0
        %5055 = vmatpush1.bf16.msra.mxu0 %v5037
        %5056 = vmatprep.subr.bf16.mxu0 0
        %5057 = vmatpush1.bf16.msra.mxu0 %v5038
        %5058 = vmatprep.subr.bf16.mxu0 0
        %5059 = vmatpush1.bf16.msra.mxu0 %v5039
        %5060 = vmatprep.subr.bf16.mxu0 0
        %5061 = vmatpush1.bf16.msra.mxu0 %v5040
        %5062 = vmatprep.subr.bf16.mxu0 0
        %5063 = vmatpush1.bf16.msra.mxu0 %v5041
        %5064 = vmatprep.subr.bf16.mxu0 0
        %5065 = vmatpush1.bf16.msra.mxu0 %v5042
        %5066 = vmatprep.subr.bf16.mxu0 0
        %5067 = vmatpush1.bf16.msra.mxu0 %v5043
        %5068 = vmatprep.subr.bf16.mxu0 0
        %5069 = vmatpush1.bf16.msra.mxu0 0
        %5070 = vmatprep.subr.bf16.mxu0 0
        %5071 = vmatpush1.bf16.msra.mxu0 0
        %5072 = vmatprep.subr.bf16.mxu0 0
        %5073 = vmatpush1.bf16.msra.mxu0 0
        %5074 = vmatprep.subr.bf16.mxu0 0
        %5075 = vmatpush1.bf16.msra.mxu0 0
        %5076 = vmatprep.subr.bf16.mxu0 0
        %5077 = vmatpush1.bf16.msra.mxu0 0
        %5078 = vmatprep.subr.bf16.mxu0 0
        %5079 = vmatpush1.bf16.msra.mxu0 0
        %5080 = vmatprep.subr.bf16.mxu0 0
        %5081 = vmatpush1.bf16.msra.mxu0 0
        %5082 = vmatprep.subr.bf16.mxu0 0
        %5083 = vmatpush1.bf16.msra.mxu0 0
        %5084 = vmatprep.mubr.bf16.mxu0 0
        %5085 = vmatmul.mubr.bf16.gmra.mrb[0].mxu0 %v4967
        %v5086 = vpop.f32.mrb[0].mxu0
        %v5087 = vadd.f32 0.0, %v5086
        %v5088 = vpop.f32.mrb[0].mxu0
        %v5089 = vpop.f32.mrb[0].mxu0
        %v5090 = vadd.f32 0.0, %v5089
        %v5091 = vpop.f32.mrb[0].mxu0
        %5092 = vmatprep.mubr.bf16.mxu0 0
        %5093 = vmatmul.mubr.bf16.gmra.mrb[0].mxu0 %v4968
        %v5094 = vpop.f32.mrb[0].mxu0
        %v5095 = vadd.f32 0.0, %v5094
        %v5096 = vpop.f32.mrb[0].mxu0
        %v5097 = vpop.f32.mrb[0].mxu0
        %v5098 = vadd.f32 0.0, %v5097
        %v5099 = vpop.f32.mrb[0].mxu0
        %5100 = vmatprep.mubr.bf16.mxu0 0
        %5101 = vmatmul.mubr.bf16.gmra.mrb[0].mxu0 %v4969
        %v5102 = vpop.f32.mrb[0].mxu0
        %v5103 = vadd.f32 0.0, %v5102
        %v5104 = vpop.f32.mrb[0].mxu0
        %v5105 = vpop.f32.mrb[0].mxu0
        %v5106 = vadd.f32 0.0, %v5105
        %v5107 = vpop.f32.mrb[0].mxu0
        %5108 = vmatprep.mubr.bf16.mxu0 0
        %5109 = vmatmul.mubr.bf16.gmra.mrb[0].mxu0 %v4970
        %v5110 = vpop.f32.mrb[0].mxu0
        %v5111 = vadd.f32 0.0, %v5110
        %v5112 = vpop.f32.mrb[0].mxu0
        %v5113 = vpop.f32.mrb[0].mxu0
        %v5114 = vadd.f32 0.0, %v5113
        %v5115 = vpop.f32.mrb[0].mxu0
        %5116 = vmatprep.mubr.bf16.mxu0 0
        %5117 = vmatmul.mubr.bf16.gmra.mrb[0].mxu0 %v4971
        %v5118 = vpop.f32.mrb[0].mxu0
        %v5119 = vadd.f32 0.0, %v5118
        %v5120 = vpop.f32.mrb[0].mxu0
        %v5121 = vpop.f32.mrb[0].mxu0
        %v5122 = vadd.f32 0.0, %v5121
        %v5123 = vpop.f32.mrb[0].mxu0
        %5124 = vmatprep.mubr.bf16.mxu0 0
        %5125 = vmatmul.mubr.bf16.gmra.mrb[0].mxu0 %v4972
        %v5126 = vpop.f32.mrb[0].mxu0
        %v5127 = vadd.f32 0.0, %v5126
        %v5128 = vpop.f32.mrb[0].mxu0
        %v5129 = vpop.f32.mrb[0].mxu0
        %v5130 = vadd.f32 0.0, %v5129
        %v5131 = vpop.f32.mrb[0].mxu0
        %5132 = vmatprep.mubr.bf16.mxu0 0
        %5133 = vmatmul.mubr.bf16.gmra.mrb[0].mxu0 %v4973
        %v5134 = vpop.f32.mrb[0].mxu0
        %v5135 = vadd.f32 0.0, %v5134
        %v5136 = vpop.f32.mrb[0].mxu0
        %v5137 = vpop.f32.mrb[0].mxu0
        %v5138 = vadd.f32 0.0, %v5137
        %v5139 = vpop.f32.mrb[0].mxu0
        %5140 = vmatprep.mubr.bf16.mxu0 0
        %5141 = vmatmul.mubr.bf16.gmra.mrb[0].mxu0 %v4974
        %v5142 = vpop.f32.mrb[0].mxu0
        %v5143 = vadd.f32 0.0, %v5142
        %v5144 = vpop.f32.mrb[0].mxu0
        %v5145 = vpop.f32.mrb[0].mxu0
        %v5146 = vadd.f32 0.0, %v5145
        %v5147 = vpop.f32.mrb[0].mxu0
        %5148 = vmatprep.mubr.bf16.mxu0 0
        %5149 = vmatmul.mubr.bf16.gmra.mrb[0].mxu0 %v4975
        %v5150 = vpop.f32.mrb[0].mxu0
        %v5151 = vadd.f32 0.0, %v5150
        %v5152 = vpop.f32.mrb[0].mxu0
        %v5153 = vpop.f32.mrb[0].mxu0
        %v5154 = vadd.f32 0.0, %v5153
        %v5155 = vpop.f32.mrb[0].mxu0
        %5156 = vmatprep.mubr.bf16.mxu0 0
        %5157 = vmatmul.mubr.bf16.gmra.mrb[0].mxu0 %v4976
        %v5158 = vpop.f32.mrb[0].mxu0
        %v5159 = vadd.f32 0.0, %v5158
        %v5160 = vpop.f32.mrb[0].mxu0
        %v5161 = vpop.f32.mrb[0].mxu0
        %v5162 = vadd.f32 0.0, %v5161
        %v5163 = vpop.f32.mrb[0].mxu0
        %5164 = vmatprep.mubr.bf16.mxu0 0
        %5165 = vmatmul.mubr.bf16.gmra.mrb[0].mxu0 %v4977
        %v5166 = vpop.f32.mrb[0].mxu0
        %v5167 = vadd.f32 0.0, %v5166
        %v5168 = vpop.f32.mrb[0].mxu0
        %v5169 = vpop.f32.mrb[0].mxu0
        %v5170 = vadd.f32 0.0, %v5169
        %v5171 = vpop.f32.mrb[0].mxu0
        %5172 = vmatprep.mubr.bf16.mxu0 0
        %5173 = vmatmul.mubr.bf16.gmra.mrb[0].mxu0 %v4978
        %v5174 = vpop.f32.mrb[0].mxu0
        %v5175 = vadd.f32 0.0, %v5174
        %v5176 = vpop.f32.mrb[0].mxu0
        %v5177 = vpop.f32.mrb[0].mxu0
        %v5178 = vadd.f32 0.0, %v5177
        %v5179 = vpop.f32.mrb[0].mxu0
        %5180 = vmatprep.mubr.bf16.mxu0 0
        %5181 = vmatmul.mubr.bf16.gmra.mrb[0].mxu0 %v4979
        %v5182 = vpop.f32.mrb[0].mxu0
        %v5183 = vadd.f32 0.0, %v5182
        %v5184 = vpop.f32.mrb[0].mxu0
        %v5185 = vpop.f32.mrb[0].mxu0
        %v5186 = vadd.f32 0.0, %v5185
        %v5187 = vpop.f32.mrb[0].mxu0
        %5188 = vmatprep.mubr.bf16.mxu0 0
        %5189 = vmatmul.mubr.bf16.gmra.mrb[0].mxu0 %v4980
        %v5190 = vpop.f32.mrb[0].mxu0
        %v5191 = vadd.f32 0.0, %v5190
        %v5192 = vpop.f32.mrb[0].mxu0
        %v5193 = vpop.f32.mrb[0].mxu0
        %v5194 = vadd.f32 0.0, %v5193
        %v5195 = vpop.f32.mrb[0].mxu0
        %5196 = vmatprep.mubr.bf16.mxu0 0
        %5197 = vmatmul.mubr.bf16.gmra.mrb[0].mxu0 %v4981
        %v5198 = vpop.f32.mrb[0].mxu0
        %v5199 = vadd.f32 0.0, %v5198
        %v5200 = vpop.f32.mrb[0].mxu0
        %v5201 = vpop.f32.mrb[0].mxu0
        %v5202 = vadd.f32 0.0, %v5201
        %v5203 = vpop.f32.mrb[0].mxu0
        %5204 = vmatprep.mubr.bf16.mxu0 0
        %5205 = vmatmul.mubr.bf16.gmra.mrb[0].mxu0 %v4982
        %v5206 = vpop.f32.mrb[0].mxu0
        %v5207 = vadd.f32 0.0, %v5206
        %v5208 = vpop.f32.mrb[0].mxu0
        %v5209 = vpop.f32.mrb[0].mxu0
        %v5210 = vadd.f32 0.0, %v5209
        %v5211 = vpop.f32.mrb[0].mxu0
        %5212 = vmatprep.mubr.bf16.mxu0 0
        %5213 = vmatmul.mubr.bf16.gmra.mrb[0].mxu0 %v4983
        %v5214 = vpop.f32.mrb[0].mxu0
        %v5215 = vadd.f32 0.0, %v5214
        %v5216 = vpop.f32.mrb[0].mxu0
        %v5217 = vpop.f32.mrb[0].mxu0
        %v5218 = vadd.f32 0.0, %v5217
        %v5219 = vpop.f32.mrb[0].mxu0
        %5220 = vmatprep.mubr.bf16.mxu0 0
        %5221 = vmatmul.mubr.bf16.gmra.mrb[0].mxu0 %v4984
        %v5222 = vpop.f32.mrb[0].mxu0
        %v5223 = vadd.f32 0.0, %v5222
        %v5224 = vpop.f32.mrb[0].mxu0
        %v5225 = vpop.f32.mrb[0].mxu0
        %v5226 = vadd.f32 0.0, %v5225
        %v5227 = vpop.f32.mrb[0].mxu0
        %5228 = vmatprep.mubr.bf16.mxu0 0
        %5229 = vmatmul.mubr.bf16.gmra.mrb[0].mxu0 %v4985
        %v5230 = vpop.f32.mrb[0].mxu0
        %v5231 = vadd.f32 0.0, %v5230
        %v5232 = vpop.f32.mrb[0].mxu0
        %v5233 = vpop.f32.mrb[0].mxu0
        %v5234 = vadd.f32 0.0, %v5233
        %v5235 = vpop.f32.mrb[0].mxu0
        %5236 = vmatprep.mubr.bf16.mxu0 0
        %5237 = vmatmul.mubr.bf16.gmra.mrb[0].mxu0 %v4986
        %v5238 = vpop.f32.mrb[0].mxu0
        %v5239 = vadd.f32 0.0, %v5238
        %v5240 = vpop.f32.mrb[0].mxu0
        %v5241 = vpop.f32.mrb[0].mxu0
        %v5242 = vadd.f32 0.0, %v5241
        %v5243 = vpop.f32.mrb[0].mxu0
        %5244 = vmatprep.mubr.bf16.mxu0 0
        %5245 = vmatmul.mubr.bf16.gmra.mrb[0].mxu0 %v4987
        %v5246 = vpop.f32.mrb[0].mxu0
        %v5247 = vadd.f32 0.0, %v5246
        %v5248 = vpop.f32.mrb[0].mxu0
        %v5249 = vpop.f32.mrb[0].mxu0
        %v5250 = vpop.f32.mrb[0].mxu0
        %5251 = vdwg.mxu0
        %v5294 = vunpack.c.l.b16 %v4924
        %v5295 = vunpack.c.l.b16 %v4925
        %v5296 = vunpack.c.l.b16 %v4926
        %v5297 = vunpack.c.l.b16 %v4927
        %v5298 = vunpack.c.l.b16 %v4928
        %v5299 = vunpack.c.l.b16 %v4929
        %v5300 = vunpack.c.l.b16 %v4930
        %v5301 = vunpack.c.l.b16 %v4931
        %v5302 = vunpack.c.l.b16 %v4932
        %v5303 = vunpack.c.l.b16 %v4933
        %v5304 = vunpack.c.l.b16 %v4934
        %v5305 = vunpack.c.l.b16 %v4935
        %v5306 = vunpack.c.l.b16 %v4936
        %v5307 = vunpack.c.l.b16 %v4937
        %v5308 = vunpack.c.l.b16 %v4938
        %v5309 = vunpack.c.l.b16 %v4939
        %v5310 = vunpack.c.l.b16 %v4940
        %v5311 = vunpack.c.l.b16 %v4941
        %v5312 = vunpack.c.l.b16 %v4942
        %v5313 = vunpack.c.l.b16 %v4943
        %v5314 = vunpack.c.l.b16 %v4944
        %v5315 = vunpack.c.l.b16 %v4945
        %v5316 = vunpack.c.l.b16 %v4946
        %v5317 = vunpack.c.l.b16 %v4947
        %v5318 = vunpack.c.l.b16 %v4948
        %v5319 = vunpack.c.l.b16 %v4949
        %v5320 = vunpack.c.l.b16 %v4950
        %v5321 = vunpack.c.l.b16 %v4951
        %v5322 = vunpack.c.l.b16 %v4952
        %v5323 = vunpack.c.l.b16 %v4953
        %v5324 = vunpack.c.l.b16 %v4954
        %v5325 = vunpack.c.l.b16 %v4955
        %v5326 = vunpack.c.l.b16 %v4956
        %v5327 = vunpack.c.l.b16 %v4957
        %v5328 = vunpack.c.l.b16 %v4958
        %v5329 = vunpack.c.l.b16 %v4959
        %v5330 = vunpack.c.l.b16 %v4960
        %v5331 = vunpack.c.l.b16 %v4961
        %v5332 = vunpack.c.l.b16 %v4962
        %v5333 = vunpack.c.l.b16 %v4963
        %v5334 = vunpack.c.l.b16 %v4964
        %v5335 = vunpack.c.l.b16 %v4965
        %v5336 = vpack.c.b16 %v5295, %v5294
        %v5337 = vpack.c.b16 %v5297, %v5296
        %v5338 = vpack.c.b16 %v5299, %v5298
        %v5339 = vpack.c.b16 %v5301, %v5300
        %v5340 = vpack.c.b16 %v5303, %v5302
        %v5341 = vpack.c.b16 %v5305, %v5304
        %v5342 = vpack.c.b16 %v5307, %v5306
        %v5343 = vpack.c.b16 %v5309, %v5308
        %v5344 = vpack.c.b16 %v5311, %v5310
        %v5345 = vpack.c.b16 %v5313, %v5312
        %v5346 = vpack.c.b16 %v5315, %v5314
        %v5347 = vpack.c.b16 %v5317, %v5316
        %v5348 = vpack.c.b16 %v5319, %v5318
        %v5349 = vpack.c.b16 %v5321, %v5320
        %v5350 = vpack.c.b16 %v5323, %v5322
        %v5351 = vpack.c.b16 %v5325, %v5324
        %v5352 = vpack.c.b16 %v5327, %v5326
        %v5353 = vpack.c.b16 %v5329, %v5328
        %v5354 = vpack.c.b16 %v5331, %v5330
        %v5355 = vpack.c.b16 %v5333, %v5332
        %v5356 = vpack.c.b16 %v5335, %v5334
        %v5358 = vshrl.u32 %v5336, 16
        %v5360 = vrot.slane %v5358, 1
        %v5361 = vshll.u32 %v5336, 16
        %v5363 = vrot.slane %v5361, 2
        %v5364 = vor.u32 %v5360, %v5363
        %v5366 = vshrl.u32 %v5337, 16
        %v5368 = vrot.slane %v5366, 1
        %v5369 = vshll.u32 %v5337, 16
        %v5371 = vrot.slane %v5369, 2
        %v5372 = vor.u32 %v5368, %v5371
        %v5373 = vsel %vm2070, %v5364, %v5372
        %v5375 = vshrl.u32 %v5338, 16
        %v5377 = vrot.slane %v5375, 1
        %v5378 = vshll.u32 %v5338, 16
        %v5380 = vrot.slane %v5378, 2
        %v5381 = vor.u32 %v5377, %v5380
        %v5382 = vsel %vm2070, %v5372, %v5381
        %v5384 = vshrl.u32 %v5339, 16
        %v5386 = vrot.slane %v5384, 1
        %v5387 = vshll.u32 %v5339, 16
        %v5389 = vrot.slane %v5387, 2
        %v5390 = vor.u32 %v5386, %v5389
        %v5391 = vsel %vm2070, %v5381, %v5390
        %v5393 = vshrl.u32 %v5340, 16
        %v5395 = vrot.slane %v5393, 1
        %v5396 = vshll.u32 %v5340, 16
        %v5398 = vrot.slane %v5396, 2
        %v5399 = vor.u32 %v5395, %v5398
        %v5400 = vsel %vm2070, %v5390, %v5399
        %v5402 = vshrl.u32 %v5341, 16
        %v5404 = vrot.slane %v5402, 1
        %v5405 = vshll.u32 %v5341, 16
        %v5407 = vrot.slane %v5405, 2
        %v5408 = vor.u32 %v5404, %v5407
        %v5409 = vsel %vm2070, %v5399, %v5408
        %v5411 = vshrl.u32 %v5342, 16
        %v5413 = vrot.slane %v5411, 1
        %v5414 = vshll.u32 %v5342, 16
        %v5416 = vrot.slane %v5414, 2
        %v5417 = vor.u32 %v5413, %v5416
        %v5418 = vsel %vm2070, %v5408, %v5417
        %v5420 = vshrl.u32 %v5343, 16
        %v5422 = vrot.slane %v5420, 1
        %v5423 = vshll.u32 %v5343, 16
        %v5425 = vrot.slane %v5423, 2
        %v5426 = vor.u32 %v5422, %v5425
        %v5427 = vsel %vm2070, %v5417, %v5426
        %v5429 = vshrl.u32 %v5344, 16
        %v5431 = vrot.slane %v5429, 1
        %v5432 = vshll.u32 %v5344, 16
        %v5434 = vrot.slane %v5432, 2
        %v5435 = vor.u32 %v5431, %v5434
        %v5436 = vsel %vm2070, %v5426, %v5435
        %v5438 = vshrl.u32 %v5345, 16
        %v5440 = vrot.slane %v5438, 1
        %v5441 = vshll.u32 %v5345, 16
        %v5443 = vrot.slane %v5441, 2
        %v5444 = vor.u32 %v5440, %v5443
        %v5445 = vsel %vm2070, %v5435, %v5444
        %v5447 = vshrl.u32 %v5346, 16
        %v5449 = vrot.slane %v5447, 1
        %v5450 = vshll.u32 %v5346, 16
        %v5452 = vrot.slane %v5450, 2
        %v5453 = vor.u32 %v5449, %v5452
        %v5454 = vsel %vm2070, %v5444, %v5453
        %v5456 = vshrl.u32 %v5347, 16
        %v5458 = vrot.slane %v5456, 1
        %v5459 = vshll.u32 %v5347, 16
        %v5461 = vrot.slane %v5459, 2
        %v5462 = vor.u32 %v5458, %v5461
        %v5463 = vsel %vm2070, %v5453, %v5462
        %v5465 = vshrl.u32 %v5348, 16
        %v5467 = vrot.slane %v5465, 1
        %v5468 = vshll.u32 %v5348, 16
        %v5470 = vrot.slane %v5468, 2
        %v5471 = vor.u32 %v5467, %v5470
        %v5472 = vsel %vm2070, %v5462, %v5471
        %v5474 = vshrl.u32 %v5349, 16
        %v5476 = vrot.slane %v5474, 1
        %v5477 = vshll.u32 %v5349, 16
        %v5479 = vrot.slane %v5477, 2
        %v5480 = vor.u32 %v5476, %v5479
        %v5481 = vsel %vm2070, %v5471, %v5480
        %v5483 = vshrl.u32 %v5350, 16
        %v5485 = vrot.slane %v5483, 1
        %v5486 = vshll.u32 %v5350, 16
        %v5488 = vrot.slane %v5486, 2
        %v5489 = vor.u32 %v5485, %v5488
        %v5490 = vsel %vm2070, %v5480, %v5489
        %v5492 = vshrl.u32 %v5351, 16
        %v5494 = vrot.slane %v5492, 1
        %v5495 = vshll.u32 %v5351, 16
        %v5497 = vrot.slane %v5495, 2
        %v5498 = vor.u32 %v5494, %v5497
        %v5499 = vsel %vm2070, %v5489, %v5498
        %v5501 = vshrl.u32 %v5352, 16
        %v5503 = vrot.slane %v5501, 1
        %v5504 = vshll.u32 %v5352, 16
        %v5506 = vrot.slane %v5504, 2
        %v5507 = vor.u32 %v5503, %v5506
        %v5508 = vsel %vm2070, %v5498, %v5507
        %v5510 = vshrl.u32 %v5353, 16
        %v5512 = vrot.slane %v5510, 1
        %v5513 = vshll.u32 %v5353, 16
        %v5515 = vrot.slane %v5513, 2
        %v5516 = vor.u32 %v5512, %v5515
        %v5517 = vsel %vm2070, %v5507, %v5516
        %v5519 = vshrl.u32 %v5354, 16
        %v5521 = vrot.slane %v5519, 1
        %v5522 = vshll.u32 %v5354, 16
        %v5524 = vrot.slane %v5522, 2
        %v5525 = vor.u32 %v5521, %v5524
        %v5526 = vsel %vm2070, %v5516, %v5525
        %v5528 = vshrl.u32 %v5355, 16
        %v5530 = vrot.slane %v5528, 1
        %v5531 = vshll.u32 %v5355, 16
        %v5533 = vrot.slane %v5531, 2
        %v5534 = vor.u32 %v5530, %v5533
        %v5535 = vsel %vm2070, %v5525, %v5534
        %v5537 = vshrl.u32 %v5356, 16
        %v5539 = vrot.slane %v5537, 1
        %v5540 = vshll.u32 %v5356, 16
        %v5542 = vrot.slane %v5540, 2
        %v5543 = vor.u32 %v5539, %v5542
        %v5544 = vsel %vm2070, %v5534, %v5543
        %v5546 = vsel %vm697, %v5373, 0
        %v5549 = vsel %vm697, %v5382, 0
        %v5552 = vsel %vm697, %v5391, 0
        %v5555 = vsel %vm697, %v5400, 0
        %v5558 = vsel %vm697, %v5409, 0
        %v5561 = vsel %vm697, %v5418, 0
        %v5564 = vsel %vm697, %v5427, 0
        %v5567 = vsel %vm697, %v5436, 0
        %v5570 = vsel %vm697, %v5445, 0
        %v5573 = vsel %vm697, %v5454, 0
        %v5576 = vsel %vm697, %v5463, 0
        %v5579 = vsel %vm697, %v5472, 0
        %v5582 = vsel %vm697, %v5481, 0
        %v5585 = vsel %vm697, %v5490, 0
        %v5588 = vsel %vm697, %v5499, 0
        %v5591 = vsel %vm697, %v5508, 0
        %v5594 = vsel %vm697, %v5517, 0
        %v5597 = vsel %vm697, %v5526, 0
        %v5600 = vsel %vm697, %v5535, 0
        %v5603 = vsel %vm697, %v5544, 0
        %v5606 = vsel %vm697, %v5543, 0
        %v5609 = vsel %vm761, %v4966, 0
        %5611 = vmatprep.subr.bf16.mxu0 0
        %5612 = vmatpush1.bf16.msra.mxu0 %v5609
        %5613 = vmatprep.subr.bf16.mxu0 0
        %5614 = vmatpush1.bf16.msra.mxu0 0
        %5615 = vmatprep.subr.bf16.mxu0 0
        %5616 = vmatpush1.bf16.msra.mxu0 0
        %5617 = vmatprep.subr.bf16.mxu0 0
        %5618 = vmatpush1.bf16.msra.mxu0 0
        %5619 = vmatprep.subr.bf16.mxu0 0
        %5620 = vmatpush1.bf16.msra.mxu0 0
        %5621 = vmatprep.subr.bf16.mxu0 0
        %5622 = vmatpush1.bf16.msra.mxu0 0
        %5623 = vmatprep.subr.bf16.mxu0 0
        %5624 = vmatpush1.bf16.msra.mxu0 0
        %5625 = vmatprep.subr.bf16.mxu0 0
        %5626 = vmatpush1.bf16.msra.mxu0 0
        %5627 = vmatprep.subr.bf16.mxu0 0
        %5628 = vmatpush1.bf16.msra.mxu0 0
        %5629 = vmatprep.subr.bf16.mxu0 0
        %5630 = vmatpush1.bf16.msra.mxu0 0
        %5631 = vmatprep.subr.bf16.mxu0 0
        %5632 = vmatpush1.bf16.msra.mxu0 0
        %5633 = vmatprep.subr.bf16.mxu0 0
        %5634 = vmatpush1.bf16.msra.mxu0 0
        %5635 = vmatprep.subr.bf16.mxu0 0
        %5636 = vmatpush1.bf16.msra.mxu0 0
        %5637 = vmatprep.subr.bf16.mxu0 0
        %5638 = vmatpush1.bf16.msra.mxu0 0
        %5639 = vmatprep.subr.bf16.mxu0 0
        %5640 = vmatpush1.bf16.msra.mxu0 0
        %5641 = vmatprep.subr.bf16.mxu0 0
        %5642 = vmatpush1.bf16.msra.mxu0 0
        %5643 = vmatprep.mubr.bf16.mxu0 0
        %5644 = vmatmul.mubr.bf16.gmra.mrb[0].mxu0 %v5546
        %v5645 = vpop.f32.mrb[0].mxu0
        %v5646 = vadd.f32 %v5087, %v5645
        %v5647 = vpop.f32.mrb[0].mxu0
        %v5648 = vpop.f32.mrb[0].mxu0
        %v5649 = vadd.f32 %v5090, %v5648
        %v5650 = vpop.f32.mrb[0].mxu0
        %5651 = vmatprep.mubr.bf16.mxu0 0
        %5652 = vmatmul.mubr.bf16.gmra.mrb[0].mxu0 %v5549
        %v5653 = vpop.f32.mrb[0].mxu0
        %v5654 = vadd.f32 %v5095, %v5653
        %v5655 = vpop.f32.mrb[0].mxu0
        %v5656 = vpop.f32.mrb[0].mxu0
        %v5657 = vadd.f32 %v5098, %v5656
        %v5658 = vpop.f32.mrb[0].mxu0
        %5659 = vmatprep.mubr.bf16.mxu0 0
        %5660 = vmatmul.mubr.bf16.gmra.mrb[0].mxu0 %v5552
        %v5661 = vpop.f32.mrb[0].mxu0
        %v5662 = vadd.f32 %v5103, %v5661
        %v5663 = vpop.f32.mrb[0].mxu0
        %v5664 = vpop.f32.mrb[0].mxu0
        %v5665 = vadd.f32 %v5106, %v5664
        %v5666 = vpop.f32.mrb[0].mxu0
        %5667 = vmatprep.mubr.bf16.mxu0 0
        %5668 = vmatmul.mubr.bf16.gmra.mrb[0].mxu0 %v5555
        %v5669 = vpop.f32.mrb[0].mxu0
        %v5670 = vadd.f32 %v5111, %v5669
        %v5671 = vpop.f32.mrb[0].mxu0
        %v5672 = vpop.f32.mrb[0].mxu0
        %v5673 = vadd.f32 %v5114, %v5672
        %v5674 = vpop.f32.mrb[0].mxu0
        %5675 = vmatprep.mubr.bf16.mxu0 0
        %5676 = vmatmul.mubr.bf16.gmra.mrb[0].mxu0 %v5558
        %v5677 = vpop.f32.mrb[0].mxu0
        %v5678 = vadd.f32 %v5119, %v5677
        %v5679 = vpop.f32.mrb[0].mxu0
        %v5680 = vpop.f32.mrb[0].mxu0
        %v5681 = vadd.f32 %v5122, %v5680
        %v5682 = vpop.f32.mrb[0].mxu0
        %5683 = vmatprep.mubr.bf16.mxu0 0
        %5684 = vmatmul.mubr.bf16.gmra.mrb[0].mxu0 %v5561
        %v5685 = vpop.f32.mrb[0].mxu0
        %v5686 = vadd.f32 %v5127, %v5685
        %v5687 = vpop.f32.mrb[0].mxu0
        %v5688 = vpop.f32.mrb[0].mxu0
        %v5689 = vadd.f32 %v5130, %v5688
        %v5690 = vpop.f32.mrb[0].mxu0
        %5691 = vmatprep.mubr.bf16.mxu0 0
        %5692 = vmatmul.mubr.bf16.gmra.mrb[0].mxu0 %v5564
        %v5693 = vpop.f32.mrb[0].mxu0
        %v5694 = vadd.f32 %v5135, %v5693
        %v5695 = vpop.f32.mrb[0].mxu0
        %v5696 = vpop.f32.mrb[0].mxu0
        %v5697 = vadd.f32 %v5138, %v5696
        %v5698 = vpop.f32.mrb[0].mxu0
        %5699 = vmatprep.mubr.bf16.mxu0 0
        %5700 = vmatmul.mubr.bf16.gmra.mrb[0].mxu0 %v5567
        %v5701 = vpop.f32.mrb[0].mxu0
        %v5702 = vadd.f32 %v5143, %v5701
        %v5703 = vpop.f32.mrb[0].mxu0
        %v5704 = vpop.f32.mrb[0].mxu0
        %v5705 = vadd.f32 %v5146, %v5704
        %v5706 = vpop.f32.mrb[0].mxu0
        %5707 = vmatprep.mubr.bf16.mxu0 0
        %5708 = vmatmul.mubr.bf16.gmra.mrb[0].mxu0 %v5570
        %v5709 = vpop.f32.mrb[0].mxu0
        %v5710 = vadd.f32 %v5151, %v5709
        %v5711 = vpop.f32.mrb[0].mxu0
        %v5712 = vpop.f32.mrb[0].mxu0
        %v5713 = vadd.f32 %v5154, %v5712
        %v5714 = vpop.f32.mrb[0].mxu0
        %5715 = vmatprep.mubr.bf16.mxu0 0
        %5716 = vmatmul.mubr.bf16.gmra.mrb[0].mxu0 %v5573
        %v5717 = vpop.f32.mrb[0].mxu0
        %v5718 = vadd.f32 %v5159, %v5717
        %v5719 = vpop.f32.mrb[0].mxu0
        %v5720 = vpop.f32.mrb[0].mxu0
        %v5721 = vadd.f32 %v5162, %v5720
        %v5722 = vpop.f32.mrb[0].mxu0
        %5723 = vmatprep.mubr.bf16.mxu0 0
        %5724 = vmatmul.mubr.bf16.gmra.mrb[0].mxu0 %v5576
        %v5725 = vpop.f32.mrb[0].mxu0
        %v5726 = vadd.f32 %v5167, %v5725
        %v5727 = vpop.f32.mrb[0].mxu0
        %v5728 = vpop.f32.mrb[0].mxu0
        %v5729 = vadd.f32 %v5170, %v5728
        %v5730 = vpop.f32.mrb[0].mxu0
        %5731 = vmatprep.mubr.bf16.mxu0 0
        %5732 = vmatmul.mubr.bf16.gmra.mrb[0].mxu0 %v5579
        %v5733 = vpop.f32.mrb[0].mxu0
        %v5734 = vadd.f32 %v5175, %v5733
        %v5735 = vpop.f32.mrb[0].mxu0
        %v5736 = vpop.f32.mrb[0].mxu0
        %v5737 = vadd.f32 %v5178, %v5736
        %v5738 = vpop.f32.mrb[0].mxu0
        %5739 = vmatprep.mubr.bf16.mxu0 0
        %5740 = vmatmul.mubr.bf16.gmra.mrb[0].mxu0 %v5582
        %v5741 = vpop.f32.mrb[0].mxu0
        %v5742 = vadd.f32 %v5183, %v5741
        %v5743 = vpop.f32.mrb[0].mxu0
        %v5744 = vpop.f32.mrb[0].mxu0
        %v5745 = vadd.f32 %v5186, %v5744
        %v5746 = vpop.f32.mrb[0].mxu0
        %5747 = vmatprep.mubr.bf16.mxu0 0
        %5748 = vmatmul.mubr.bf16.gmra.mrb[0].mxu0 %v5585
        %v5749 = vpop.f32.mrb[0].mxu0
        %v5750 = vadd.f32 %v5191, %v5749
        %v5751 = vpop.f32.mrb[0].mxu0
        %v5752 = vpop.f32.mrb[0].mxu0
        %v5753 = vadd.f32 %v5194, %v5752
        %v5754 = vpop.f32.mrb[0].mxu0
        %5755 = vmatprep.mubr.bf16.mxu0 0
        %5756 = vmatmul.mubr.bf16.gmra.mrb[0].mxu0 %v5588
        %v5757 = vpop.f32.mrb[0].mxu0
        %v5758 = vadd.f32 %v5199, %v5757
        %v5759 = vpop.f32.mrb[0].mxu0
        %v5760 = vpop.f32.mrb[0].mxu0
        %v5761 = vadd.f32 %v5202, %v5760
        %v5762 = vpop.f32.mrb[0].mxu0
        %5763 = vmatprep.mubr.bf16.mxu0 0
        %5764 = vmatmul.mubr.bf16.gmra.mrb[0].mxu0 %v5591
        %v5765 = vpop.f32.mrb[0].mxu0
        %v5766 = vadd.f32 %v5207, %v5765
        %v5767 = vpop.f32.mrb[0].mxu0
        %v5768 = vpop.f32.mrb[0].mxu0
        %v5769 = vadd.f32 %v5210, %v5768
        %v5770 = vpop.f32.mrb[0].mxu0
        %5771 = vmatprep.mubr.bf16.mxu0 0
        %5772 = vmatmul.mubr.bf16.gmra.mrb[0].mxu0 %v5594
        %v5773 = vpop.f32.mrb[0].mxu0
        %v5774 = vadd.f32 %v5215, %v5773
        %v5775 = vpop.f32.mrb[0].mxu0
        %v5776 = vpop.f32.mrb[0].mxu0
        %v5777 = vadd.f32 %v5218, %v5776
        %v5778 = vpop.f32.mrb[0].mxu0
        %5779 = vmatprep.mubr.bf16.mxu0 0
        %5780 = vmatmul.mubr.bf16.gmra.mrb[0].mxu0 %v5597
        %v5781 = vpop.f32.mrb[0].mxu0
        %v5782 = vadd.f32 %v5223, %v5781
        %v5783 = vpop.f32.mrb[0].mxu0
        %v5784 = vpop.f32.mrb[0].mxu0
        %v5785 = vadd.f32 %v5226, %v5784
        %v5786 = vpop.f32.mrb[0].mxu0
        %5787 = vmatprep.mubr.bf16.mxu0 0
        %5788 = vmatmul.mubr.bf16.gmra.mrb[0].mxu0 %v5600
        %v5789 = vpop.f32.mrb[0].mxu0
        %v5790 = vadd.f32 %v5231, %v5789
        %v5791 = vpop.f32.mrb[0].mxu0
        %v5792 = vpop.f32.mrb[0].mxu0
        %v5793 = vadd.f32 %v5234, %v5792
        %v5794 = vpop.f32.mrb[0].mxu0
        %5795 = vmatprep.mubr.bf16.mxu0 0
        %5796 = vmatmul.mubr.bf16.gmra.mrb[0].mxu0 %v5603
        %v5797 = vpop.f32.mrb[0].mxu0
        %v5798 = vadd.f32 %v5239, %v5797
        %v5799 = vpop.f32.mrb[0].mxu0
        %v5800 = vpop.f32.mrb[0].mxu0
        %v5801 = vadd.f32 %v5242, %v5800
        %v5802 = vpop.f32.mrb[0].mxu0
        %5803 = vmatprep.mubr.bf16.mxu0 0
        %5804 = vmatmul.mubr.bf16.gmra.mrb[0].mxu0 %v5606
        %v5805 = vpop.f32.mrb[0].mxu0
        %v5806 = vadd.f32 %v5247, %v5805
        %v5807 = vpop.f32.mrb[0].mxu0
        %v5808 = vpop.f32.mrb[0].mxu0
        %v5809 = vpop.f32.mrb[0].mxu0
        %5810 = vdwg.mxu0
        %v5811 = vld [vmem:[#allocation2 + $0xa0] sm:$0x1f]
        %s5812 = scalar_lea.vmem [#allocation9], 64
        %v5813 = vld [vmem:[%s5812] sm:$0xf]
        %v5814 = vld [vmem:[%s5812 + $0x4] sm:$0xf]
        %v5815 = vld [vmem:[%s5812 + $0x8] sm:$0xf]
        %v5816 = vld [vmem:[%s5812 + $0xc] sm:$0xf]
        %v5817 = vld [vmem:[%s5812 + $0x10] sm:$0xf]
        %v5818 = vld [vmem:[%s5812 + $0x14] sm:$0xf]
        %v5819 = vld [vmem:[%s5812 + $0x18] sm:$0xf]
        %v5820 = vld [vmem:[%s5812 + $0x1c] sm:$0xf]
        %v5821 = vld [vmem:[%s5812 + $0x20] sm:$0xf]
        %v5822 = vld [vmem:[%s5812 + $0x24] sm:$0xf]
        %v5823 = vld [vmem:[%s5812 + $0x28] sm:$0xf]
        %v5824 = vld [vmem:[%s5812 + $0x2c] sm:$0xf]
        %v5825 = vld [vmem:[%s5812 + $0x30] sm:$0xf]
        %v5826 = vld [vmem:[%s5812 + $0x34] sm:$0xf]
        %v5827 = vld [vmem:[%s5812 + $0x38] sm:$0xf]
        %v5828 = vld [vmem:[%s5812 + $0x3c] sm:$0xf]
        %v5830 = vshrl.u32 %v4967, 16
        %v5832 = vshll.u32 %v4967, 16
        %v5834 = vrot.slane %v5832, 1
        %v5835 = vor.u32 %v5830, %v5834
        %v5837 = vshll.u32 %v4968, 16
        %v5839 = vrot.slane %v5837, 1
        %v5840 = vsel %vm529, %v5835, %v5839
        %v5841 = vshrl.u32 %v4968, 16
        %v5843 = vor.u32 %v5841, %v5839
        %v5845 = vshll.u32 %v4969, 16
        %v5847 = vrot.slane %v5845, 1
        %v5848 = vsel %vm529, %v5843, %v5847
        %v5849 = vshrl.u32 %v4969, 16
        %v5851 = vor.u32 %v5849, %v5847
        %v5853 = vshll.u32 %v4970, 16
        %v5855 = vrot.slane %v5853, 1
        %v5856 = vsel %vm529, %v5851, %v5855
        %v5857 = vshrl.u32 %v4970, 16
        %v5859 = vor.u32 %v5857, %v5855
        %v5861 = vshll.u32 %v4971, 16
        %v5863 = vrot.slane %v5861, 1
        %v5864 = vsel %vm529, %v5859, %v5863
        %v5865 = vshrl.u32 %v4971, 16
        %v5867 = vor.u32 %v5865, %v5863
        %v5869 = vshll.u32 %v4972, 16
        %v5871 = vrot.slane %v5869, 1
        %v5872 = vsel %vm529, %v5867, %v5871
        %v5873 = vshrl.u32 %v4972, 16
        %v5875 = vor.u32 %v5873, %v5871
        %v5877 = vshll.u32 %v4973, 16
        %v5879 = vrot.slane %v5877, 1
        %v5880 = vsel %vm529, %v5875, %v5879
        %v5881 = vshrl.u32 %v4973, 16
        %v5883 = vor.u32 %v5881, %v5879
        %v5885 = vshll.u32 %v4974, 16
        %v5887 = vrot.slane %v5885, 1
        %v5888 = vsel %vm529, %v5883, %v5887
        %v5889 = vshrl.u32 %v4974, 16
        %v5891 = vor.u32 %v5889, %v5887
        %v5893 = vshll.u32 %v4975, 16
        %v5895 = vrot.slane %v5893, 1
        %v5896 = vsel %vm529, %v5891, %v5895
        %v5897 = vshrl.u32 %v4975, 16
        %v5899 = vor.u32 %v5897, %v5895
        %v5901 = vshll.u32 %v4976, 16
        %v5903 = vrot.slane %v5901, 1
        %v5904 = vsel %vm529, %v5899, %v5903
        %v5905 = vshrl.u32 %v4976, 16
        %v5907 = vor.u32 %v5905, %v5903
        %v5909 = vshll.u32 %v4977, 16
        %v5911 = vrot.slane %v5909, 1
        %v5912 = vsel %vm529, %v5907, %v5911
        %v5913 = vshrl.u32 %v4977, 16
        %v5915 = vor.u32 %v5913, %v5911
        %v5917 = vshll.u32 %v4978, 16
        %v5919 = vrot.slane %v5917, 1
        %v5920 = vsel %vm529, %v5915, %v5919
        %v5921 = vshrl.u32 %v4978, 16
        %v5923 = vor.u32 %v5921, %v5919
        %v5925 = vshll.u32 %v4979, 16
        %v5927 = vrot.slane %v5925, 1
        %v5928 = vsel %vm529, %v5923, %v5927
        %v5929 = vshrl.u32 %v4979, 16
        %v5931 = vor.u32 %v5929, %v5927
        %v5933 = vshll.u32 %v4980, 16
        %v5935 = vrot.slane %v5933, 1
        %v5936 = vsel %vm529, %v5931, %v5935
        %v5937 = vshrl.u32 %v4980, 16
        %v5939 = vor.u32 %v5937, %v5935
        %v5941 = vshll.u32 %v4981, 16
        %v5943 = vrot.slane %v5941, 1
        %v5944 = vsel %vm529, %v5939, %v5943
        %v5945 = vshrl.u32 %v4981, 16
        %v5947 = vor.u32 %v5945, %v5943
        %v5949 = vshll.u32 %v4982, 16
        %v5951 = vrot.slane %v5949, 1
        %v5952 = vsel %vm529, %v5947, %v5951
        %v5953 = vshrl.u32 %v4982, 16
        %v5955 = vor.u32 %v5953, %v5951
        %v5957 = vshll.u32 %v4983, 16
        %v5959 = vrot.slane %v5957, 1
        %v5960 = vsel %vm529, %v5955, %v5959
        %v5961 = vshrl.u32 %v4983, 16
        %v5963 = vor.u32 %v5961, %v5959
        %v5965 = vshll.u32 %v4984, 16
        %v5967 = vrot.slane %v5965, 1
        %v5968 = vsel %vm529, %v5963, %v5967
        %v5969 = vshrl.u32 %v4984, 16
        %v5971 = vor.u32 %v5969, %v5967
        %v5973 = vshll.u32 %v4985, 16
        %v5975 = vrot.slane %v5973, 1
        %v5976 = vsel %vm529, %v5971, %v5975
        %v5977 = vshrl.u32 %v4985, 16
        %v5979 = vor.u32 %v5977, %v5975
        %v5981 = vshll.u32 %v4986, 16
        %v5983 = vrot.slane %v5981, 1
        %v5984 = vsel %vm529, %v5979, %v5983
        %v5985 = vshrl.u32 %v4986, 16
        %v5987 = vor.u32 %v5985, %v5983
        %v5989 = vshll.u32 %v5811, 16
        %v5991 = vrot.slane %v5989, 1
        %v5992 = vsel %vm529, %v5987, %v5991
        %v5993 = vshrl.u32 %v5811, 16
        %v5995 = vor.u32 %v5993, %v5991
        %v6033 = vunpack.c.l.b16 %v5813
        %v6034 = vunpack.c.l.b16 %v5814
        %v6035 = vunpack.c.l.b16 %v5815
        %v6036 = vunpack.c.l.b16 %v5816
        %v6037 = vunpack.c.l.b16 %v5817
        %v6038 = vunpack.c.l.b16 %v5818
        %v6039 = vunpack.c.l.b16 %v5819
        %v6040 = vunpack.c.l.b16 %v5820
        %v6041 = vunpack.c.l.b16 %v5821
        %v6042 = vunpack.c.l.b16 %v5822
        %v6043 = vunpack.c.l.b16 %v5823
        %v6044 = vunpack.c.l.b16 %v5824
        %v6045 = vunpack.c.l.b16 %v5825
        %v6046 = vunpack.c.l.b16 %v5826
        %v6047 = vunpack.c.l.b16 %v5827
        %v6048 = vunpack.c.l.b16 %v5828
        %v6049 = vpack.c.b16 %v6034, %v6033
        %v6050 = vpack.c.b16 %v6036, %v6035
        %v6051 = vpack.c.b16 %v6038, %v6037
        %v6052 = vpack.c.b16 %v6040, %v6039
        %v6053 = vpack.c.b16 %v6042, %v6041
        %v6054 = vpack.c.b16 %v6044, %v6043
        %v6055 = vpack.c.b16 %v6046, %v6045
        %v6056 = vpack.c.b16 %v6048, %v6047
        %6065 = vmatprep.subr.bf16.mxu0 0
        %6066 = vmatpush1.bf16.msra.mxu0 %v6049
        %6067 = vmatprep.subr.bf16.mxu0 0
        %6068 = vmatpush1.bf16.msra.mxu0 %v6050
        %6069 = vmatprep.subr.bf16.mxu0 0
        %6070 = vmatpush1.bf16.msra.mxu0 %v6051
        %6071 = vmatprep.subr.bf16.mxu0 0
        %6072 = vmatpush1.bf16.msra.mxu0 %v6052
        %6073 = vmatprep.subr.bf16.mxu0 0
        %6074 = vmatpush1.bf16.msra.mxu0 %v6053
        %6075 = vmatprep.subr.bf16.mxu0 0
        %6076 = vmatpush1.bf16.msra.mxu0 %v6054
        %6077 = vmatprep.subr.bf16.mxu0 0
        %6078 = vmatpush1.bf16.msra.mxu0 %v6055
        %6079 = vmatprep.subr.bf16.mxu0 0
        %6080 = vmatpush1.bf16.msra.mxu0 %v6056
        %6081 = vmatprep.subr.bf16.mxu0 0
        %6082 = vmatpush1.bf16.msra.mxu0 0
        %6083 = vmatprep.subr.bf16.mxu0 0
        %6084 = vmatpush1.bf16.msra.mxu0 0
        %6085 = vmatprep.subr.bf16.mxu0 0
        %6086 = vmatpush1.bf16.msra.mxu0 0
        %6087 = vmatprep.subr.bf16.mxu0 0
        %6088 = vmatpush1.bf16.msra.mxu0 0
        %6089 = vmatprep.subr.bf16.mxu0 0
        %6090 = vmatpush1.bf16.msra.mxu0 0
        %6091 = vmatprep.subr.bf16.mxu0 0
        %6092 = vmatpush1.bf16.msra.mxu0 0
        %6093 = vmatprep.subr.bf16.mxu0 0
        %6094 = vmatpush1.bf16.msra.mxu0 0
        %6095 = vmatprep.subr.bf16.mxu0 0
        %6096 = vmatpush1.bf16.msra.mxu0 0
        %6097 = vmatprep.mubr.bf16.mxu0 0
        %6098 = vmatmul.mubr.bf16.gmra.mrb[0].mxu0 %v5840
        %v6099 = vpop.f32.mrb[0].mxu0
        %v6100 = vadd.f32 0.0, %v6099
        %v6101 = vpop.f32.mrb[0].mxu0
        %v6102 = vpop.f32.mrb[0].mxu0
        %v6103 = vadd.f32 0.0, %v6102
        %v6104 = vpop.f32.mrb[0].mxu0
        %6105 = vmatprep.mubr.bf16.mxu0 0
        %6106 = vmatmul.mubr.bf16.gmra.mrb[0].mxu0 %v5848
        %v6107 = vpop.f32.mrb[0].mxu0
        %v6108 = vadd.f32 0.0, %v6107
        %v6109 = vpop.f32.mrb[0].mxu0
        %v6110 = vpop.f32.mrb[0].mxu0
        %v6111 = vadd.f32 0.0, %v6110
        %v6112 = vpop.f32.mrb[0].mxu0
        %6113 = vmatprep.mubr.bf16.mxu0 0
        %6114 = vmatmul.mubr.bf16.gmra.mrb[0].mxu0 %v5856
        %v6115 = vpop.f32.mrb[0].mxu0
        %v6116 = vadd.f32 0.0, %v6115
        %v6117 = vpop.f32.mrb[0].mxu0
        %v6118 = vpop.f32.mrb[0].mxu0
        %v6119 = vadd.f32 0.0, %v6118
        %v6120 = vpop.f32.mrb[0].mxu0
        %6121 = vmatprep.mubr.bf16.mxu0 0
        %6122 = vmatmul.mubr.bf16.gmra.mrb[0].mxu0 %v5864
        %v6123 = vpop.f32.mrb[0].mxu0
        %v6124 = vadd.f32 0.0, %v6123
        %v6125 = vpop.f32.mrb[0].mxu0
        %v6126 = vpop.f32.mrb[0].mxu0
        %v6127 = vadd.f32 0.0, %v6126
        %v6128 = vpop.f32.mrb[0].mxu0
        %6129 = vmatprep.mubr.bf16.mxu0 0
        %6130 = vmatmul.mubr.bf16.gmra.mrb[0].mxu0 %v5872
        %v6131 = vpop.f32.mrb[0].mxu0
        %v6132 = vadd.f32 0.0, %v6131
        %v6133 = vpop.f32.mrb[0].mxu0
        %v6134 = vpop.f32.mrb[0].mxu0
        %v6135 = vadd.f32 0.0, %v6134
        %v6136 = vpop.f32.mrb[0].mxu0
        %6137 = vmatprep.mubr.bf16.mxu0 0
        %6138 = vmatmul.mubr.bf16.gmra.mrb[0].mxu0 %v5880
        %v6139 = vpop.f32.mrb[0].mxu0
        %v6140 = vadd.f32 0.0, %v6139
        %v6141 = vpop.f32.mrb[0].mxu0
        %v6142 = vpop.f32.mrb[0].mxu0
        %v6143 = vadd.f32 0.0, %v6142
        %v6144 = vpop.f32.mrb[0].mxu0
        %6145 = vmatprep.mubr.bf16.mxu0 0
        %6146 = vmatmul.mubr.bf16.gmra.mrb[0].mxu0 %v5888
        %v6147 = vpop.f32.mrb[0].mxu0
        %v6148 = vadd.f32 0.0, %v6147
        %v6149 = vpop.f32.mrb[0].mxu0
        %v6150 = vpop.f32.mrb[0].mxu0
        %v6151 = vadd.f32 0.0, %v6150
        %v6152 = vpop.f32.mrb[0].mxu0
        %6153 = vmatprep.mubr.bf16.mxu0 0
        %6154 = vmatmul.mubr.bf16.gmra.mrb[0].mxu0 %v5896
        %v6155 = vpop.f32.mrb[0].mxu0
        %v6156 = vadd.f32 0.0, %v6155
        %v6157 = vpop.f32.mrb[0].mxu0
        %v6158 = vpop.f32.mrb[0].mxu0
        %v6159 = vadd.f32 0.0, %v6158
        %v6160 = vpop.f32.mrb[0].mxu0
        %6161 = vmatprep.mubr.bf16.mxu0 0
        %6162 = vmatmul.mubr.bf16.gmra.mrb[0].mxu0 %v5904
        %v6163 = vpop.f32.mrb[0].mxu0
        %v6164 = vadd.f32 0.0, %v6163
        %v6165 = vpop.f32.mrb[0].mxu0
        %v6166 = vpop.f32.mrb[0].mxu0
        %v6167 = vadd.f32 0.0, %v6166
        %v6168 = vpop.f32.mrb[0].mxu0
        %6169 = vmatprep.mubr.bf16.mxu0 0
        %6170 = vmatmul.mubr.bf16.gmra.mrb[0].mxu0 %v5912
        %v6171 = vpop.f32.mrb[0].mxu0
        %v6172 = vadd.f32 0.0, %v6171
        %v6173 = vpop.f32.mrb[0].mxu0
        %v6174 = vpop.f32.mrb[0].mxu0
        %v6175 = vadd.f32 0.0, %v6174
        %v6176 = vpop.f32.mrb[0].mxu0
        %6177 = vmatprep.mubr.bf16.mxu0 0
        %6178 = vmatmul.mubr.bf16.gmra.mrb[0].mxu0 %v5920
        %v6179 = vpop.f32.mrb[0].mxu0
        %v6180 = vadd.f32 0.0, %v6179
        %v6181 = vpop.f32.mrb[0].mxu0
        %v6182 = vpop.f32.mrb[0].mxu0
        %v6183 = vadd.f32 0.0, %v6182
        %v6184 = vpop.f32.mrb[0].mxu0
        %6185 = vmatprep.mubr.bf16.mxu0 0
        %6186 = vmatmul.mubr.bf16.gmra.mrb[0].mxu0 %v5928
        %v6187 = vpop.f32.mrb[0].mxu0
        %v6188 = vadd.f32 0.0, %v6187
        %v6189 = vpop.f32.mrb[0].mxu0
        %v6190 = vpop.f32.mrb[0].mxu0
        %v6191 = vadd.f32 0.0, %v6190
        %v6192 = vpop.f32.mrb[0].mxu0
        %6193 = vmatprep.mubr.bf16.mxu0 0
        %6194 = vmatmul.mubr.bf16.gmra.mrb[0].mxu0 %v5936
        %v6195 = vpop.f32.mrb[0].mxu0
        %v6196 = vadd.f32 0.0, %v6195
        %v6197 = vpop.f32.mrb[0].mxu0
        %v6198 = vpop.f32.mrb[0].mxu0
        %v6199 = vadd.f32 0.0, %v6198
        %v6200 = vpop.f32.mrb[0].mxu0
        %6201 = vmatprep.mubr.bf16.mxu0 0
        %6202 = vmatmul.mubr.bf16.gmra.mrb[0].mxu0 %v5944
        %v6203 = vpop.f32.mrb[0].mxu0
        %v6204 = vadd.f32 0.0, %v6203
        %v6205 = vpop.f32.mrb[0].mxu0
        %v6206 = vpop.f32.mrb[0].mxu0
        %v6207 = vadd.f32 0.0, %v6206
        %v6208 = vpop.f32.mrb[0].mxu0
        %6209 = vmatprep.mubr.bf16.mxu0 0
        %6210 = vmatmul.mubr.bf16.gmra.mrb[0].mxu0 %v5952
        %v6211 = vpop.f32.mrb[0].mxu0
        %v6212 = vadd.f32 0.0, %v6211
        %v6213 = vpop.f32.mrb[0].mxu0
        %v6214 = vpop.f32.mrb[0].mxu0
        %v6215 = vadd.f32 0.0, %v6214
        %v6216 = vpop.f32.mrb[0].mxu0
        %6217 = vmatprep.mubr.bf16.mxu0 0
        %6218 = vmatmul.mubr.bf16.gmra.mrb[0].mxu0 %v5960
        %v6219 = vpop.f32.mrb[0].mxu0
        %v6220 = vadd.f32 0.0, %v6219
        %v6221 = vpop.f32.mrb[0].mxu0
        %v6222 = vpop.f32.mrb[0].mxu0
        %v6223 = vadd.f32 0.0, %v6222
        %v6224 = vpop.f32.mrb[0].mxu0
        %6225 = vmatprep.mubr.bf16.mxu0 0
        %6226 = vmatmul.mubr.bf16.gmra.mrb[0].mxu0 %v5968
        %v6227 = vpop.f32.mrb[0].mxu0
        %v6228 = vadd.f32 0.0, %v6227
        %v6229 = vpop.f32.mrb[0].mxu0
        %v6230 = vpop.f32.mrb[0].mxu0
        %v6231 = vadd.f32 0.0, %v6230
        %v6232 = vpop.f32.mrb[0].mxu0
        %6233 = vmatprep.mubr.bf16.mxu0 0
        %6234 = vmatmul.mubr.bf16.gmra.mrb[0].mxu0 %v5976
        %v6235 = vpop.f32.mrb[0].mxu0
        %v6236 = vadd.f32 0.0, %v6235
        %v6237 = vpop.f32.mrb[0].mxu0
        %v6238 = vpop.f32.mrb[0].mxu0
        %v6239 = vadd.f32 0.0, %v6238
        %v6240 = vpop.f32.mrb[0].mxu0
        %6241 = vmatprep.mubr.bf16.mxu0 0
        %6242 = vmatmul.mubr.bf16.gmra.mrb[0].mxu0 %v5984
        %v6243 = vpop.f32.mrb[0].mxu0
        %v6244 = vadd.f32 0.0, %v6243
        %v6245 = vpop.f32.mrb[0].mxu0
        %v6246 = vpop.f32.mrb[0].mxu0
        %v6247 = vadd.f32 0.0, %v6246
        %v6248 = vpop.f32.mrb[0].mxu0
        %6249 = vmatprep.mubr.bf16.mxu0 0
        %6250 = vmatmul.mubr.bf16.gmra.mrb[0].mxu0 %v5992
        %v6251 = vpop.f32.mrb[0].mxu0
        %v6252 = vadd.f32 0.0, %v6251
        %v6253 = vpop.f32.mrb[0].mxu0
        %v6254 = vpop.f32.mrb[0].mxu0
        %v6255 = vadd.f32 0.0, %v6254
        %v6256 = vpop.f32.mrb[0].mxu0
        %6257 = vmatprep.mubr.bf16.mxu0 0
        %6258 = vmatmul.mubr.bf16.gmra.mrb[0].mxu0 %v5995
        %v6259 = vpop.f32.mrb[0].mxu0
        %v6260 = vadd.f32 0.0, %v6259
        %v6261 = vpop.f32.mrb[0].mxu0
        %v6262 = vpop.f32.mrb[0].mxu0
        %v6263 = vpop.f32.mrb[0].mxu0
        %6264 = vdwg.mxu0
        %v6265 = vadd.f32 %v5646, %v6100
        %v6266 = vadd.f32 %v5649, %v6103
        %v6267 = vadd.f32 %v5654, %v6108
        %v6268 = vadd.f32 %v5657, %v6111
        %v6269 = vadd.f32 %v5662, %v6116
        %v6270 = vadd.f32 %v5665, %v6119
        %v6271 = vadd.f32 %v5670, %v6124
        %v6272 = vadd.f32 %v5673, %v6127
        %v6273 = vadd.f32 %v5678, %v6132
        %v6274 = vadd.f32 %v5681, %v6135
        %v6275 = vadd.f32 %v5686, %v6140
        %v6276 = vadd.f32 %v5689, %v6143
        %v6277 = vadd.f32 %v5694, %v6148
        %v6278 = vadd.f32 %v5697, %v6151
        %v6279 = vadd.f32 %v5702, %v6156
        %v6280 = vadd.f32 %v5705, %v6159
        %v6281 = vadd.f32 %v5710, %v6164
        %v6282 = vadd.f32 %v5713, %v6167
        %v6283 = vadd.f32 %v5718, %v6172
        %v6284 = vadd.f32 %v5721, %v6175
        %v6285 = vadd.f32 %v5726, %v6180
        %v6286 = vadd.f32 %v5729, %v6183
        %v6287 = vadd.f32 %v5734, %v6188
        %v6288 = vadd.f32 %v5737, %v6191
        %v6289 = vadd.f32 %v5742, %v6196
        %v6290 = vadd.f32 %v5745, %v6199
        %v6291 = vadd.f32 %v5750, %v6204
        %v6292 = vadd.f32 %v5753, %v6207
        %v6293 = vadd.f32 %v5758, %v6212
        %v6294 = vadd.f32 %v5761, %v6215
        %v6295 = vadd.f32 %v5766, %v6220
        %v6296 = vadd.f32 %v5769, %v6223
        %v6297 = vadd.f32 %v5774, %v6228
        %v6298 = vadd.f32 %v5777, %v6231
        %v6299 = vadd.f32 %v5782, %v6236
        %v6300 = vadd.f32 %v5785, %v6239
        %v6301 = vadd.f32 %v5790, %v6244
        %v6302 = vadd.f32 %v5793, %v6247
        %v6303 = vadd.f32 %v5798, %v6252
        %v6304 = vadd.f32 %v5801, %v6255
        %v6305 = vadd.f32 %v5806, %v6260
        %v6306 = vld [vmem:[#allocation2] sm:$0xfe]
        %s6307 = scalar_lea.vmem [#allocation9], 128
        %v6308 = vld [vmem:[%s6307] sm:$0xf]
        %v6309 = vld [vmem:[%s6307 + $0x4] sm:$0xf]
        %v6310 = vld [vmem:[%s6307 + $0x8] sm:$0xf]
        %v6311 = vld [vmem:[%s6307 + $0xc] sm:$0xf]
        %v6312 = vld [vmem:[%s6307 + $0x10] sm:$0xf]
        %v6313 = vld [vmem:[%s6307 + $0x14] sm:$0xf]
        %v6314 = vld [vmem:[%s6307 + $0x18] sm:$0xf]
        %v6315 = vld [vmem:[%s6307 + $0x1c] sm:$0xf]
        %v6316 = vld [vmem:[%s6307 + $0x20] sm:$0xf]
        %v6317 = vld [vmem:[%s6307 + $0x24] sm:$0xf]
        %v6318 = vld [vmem:[%s6307 + $0x28] sm:$0xf]
        %v6319 = vld [vmem:[%s6307 + $0x2c] sm:$0xf]
        %v6320 = vld [vmem:[%s6307 + $0x30] sm:$0xf]
        %v6321 = vld [vmem:[%s6307 + $0x34] sm:$0xf]
        %v6322 = vld [vmem:[%s6307 + $0x38] sm:$0xf]
        %v6323 = vld [vmem:[%s6307 + $0x3c] sm:$0xf]
        %v6345 = vrot.slane %v6306, 1
        %v6346 = vrot.slane %v4968, 1
        %v6347 = vsel %vm1218, %v6345, %v6346
        %v6348 = vrot.slane %v4969, 1
        %v6349 = vsel %vm1218, %v6346, %v6348
        %v6350 = vrot.slane %v4970, 1
        %v6351 = vsel %vm1218, %v6348, %v6350
        %v6352 = vrot.slane %v4971, 1
        %v6353 = vsel %vm1218, %v6350, %v6352
        %v6354 = vrot.slane %v4972, 1
        %v6355 = vsel %vm1218, %v6352, %v6354
        %v6356 = vrot.slane %v4973, 1
        %v6357 = vsel %vm1218, %v6354, %v6356
        %v6358 = vrot.slane %v4974, 1
        %v6359 = vsel %vm1218, %v6356, %v6358
        %v6360 = vrot.slane %v4975, 1
        %v6361 = vsel %vm1218, %v6358, %v6360
        %v6362 = vrot.slane %v4976, 1
        %v6363 = vsel %vm1218, %v6360, %v6362
        %v6364 = vrot.slane %v4977, 1
        %v6365 = vsel %vm1218, %v6362, %v6364
        %v6366 = vrot.slane %v4978, 1
        %v6367 = vsel %vm1218, %v6364, %v6366
        %v6368 = vrot.slane %v4979, 1
        %v6369 = vsel %vm1218, %v6366, %v6368
        %v6370 = vrot.slane %v4980, 1
        %v6371 = vsel %vm1218, %v6368, %v6370
        %v6372 = vrot.slane %v4981, 1
        %v6373 = vsel %vm1218, %v6370, %v6372
        %v6374 = vrot.slane %v4982, 1
        %v6375 = vsel %vm1218, %v6372, %v6374
        %v6376 = vrot.slane %v4983, 1
        %v6377 = vsel %vm1218, %v6374, %v6376
        %v6378 = vrot.slane %v4984, 1
        %v6379 = vsel %vm1218, %v6376, %v6378
        %v6380 = vrot.slane %v4985, 1
        %v6381 = vsel %vm1218, %v6378, %v6380
        %v6382 = vrot.slane %v4986, 1
        %v6383 = vsel %vm1218, %v6380, %v6382
        %v6384 = vrot.slane %v5811, 1
        %v6385 = vsel %vm1218, %v6382, %v6384
        %v6423 = vunpack.c.l.b16 %v6308
        %v6424 = vunpack.c.l.b16 %v6309
        %v6425 = vunpack.c.l.b16 %v6310
        %v6426 = vunpack.c.l.b16 %v6311
        %v6427 = vunpack.c.l.b16 %v6312
        %v6428 = vunpack.c.l.b16 %v6313
        %v6429 = vunpack.c.l.b16 %v6314
        %v6430 = vunpack.c.l.b16 %v6315
        %v6431 = vunpack.c.l.b16 %v6316
        %v6432 = vunpack.c.l.b16 %v6317
        %v6433 = vunpack.c.l.b16 %v6318
        %v6434 = vunpack.c.l.b16 %v6319
        %v6435 = vunpack.c.l.b16 %v6320
        %v6436 = vunpack.c.l.b16 %v6321
        %v6437 = vunpack.c.l.b16 %v6322
        %v6438 = vunpack.c.l.b16 %v6323
        %v6439 = vpack.c.b16 %v6424, %v6423
        %v6440 = vpack.c.b16 %v6426, %v6425
        %v6441 = vpack.c.b16 %v6428, %v6427
        %v6442 = vpack.c.b16 %v6430, %v6429
        %v6443 = vpack.c.b16 %v6432, %v6431
        %v6444 = vpack.c.b16 %v6434, %v6433
        %v6445 = vpack.c.b16 %v6436, %v6435
        %v6446 = vpack.c.b16 %v6438, %v6437
        %6455 = vmatprep.subr.bf16.mxu0 0
        %6456 = vmatpush1.bf16.msra.mxu0 %v6439
        %6457 = vmatprep.subr.bf16.mxu0 0
        %6458 = vmatpush1.bf16.msra.mxu0 %v6440
        %6459 = vmatprep.subr.bf16.mxu0 0
        %6460 = vmatpush1.bf16.msra.mxu0 %v6441
        %6461 = vmatprep.subr.bf16.mxu0 0
        %6462 = vmatpush1.bf16.msra.mxu0 %v6442
        %6463 = vmatprep.subr.bf16.mxu0 0
        %6464 = vmatpush1.bf16.msra.mxu0 %v6443
        %6465 = vmatprep.subr.bf16.mxu0 0
        %6466 = vmatpush1.bf16.msra.mxu0 %v6444
        %6467 = vmatprep.subr.bf16.mxu0 0
        %6468 = vmatpush1.bf16.msra.mxu0 %v6445
        %6469 = vmatprep.subr.bf16.mxu0 0
        %6470 = vmatpush1.bf16.msra.mxu0 %v6446
        %6471 = vmatprep.subr.bf16.mxu0 0
        %6472 = vmatpush1.bf16.msra.mxu0 0
        %6473 = vmatprep.subr.bf16.mxu0 0
        %6474 = vmatpush1.bf16.msra.mxu0 0
        %6475 = vmatprep.subr.bf16.mxu0 0
        %6476 = vmatpush1.bf16.msra.mxu0 0
        %6477 = vmatprep.subr.bf16.mxu0 0
        %6478 = vmatpush1.bf16.msra.mxu0 0
        %6479 = vmatprep.subr.bf16.mxu0 0
        %6480 = vmatpush1.bf16.msra.mxu0 0
        %6481 = vmatprep.subr.bf16.mxu0 0
        %6482 = vmatpush1.bf16.msra.mxu0 0
        %6483 = vmatprep.subr.bf16.mxu0 0
        %6484 = vmatpush1.bf16.msra.mxu0 0
        %6485 = vmatprep.subr.bf16.mxu0 0
        %6486 = vmatpush1.bf16.msra.mxu0 0
        %6487 = vmatprep.mubr.bf16.mxu0 0
        %6488 = vmatmul.mubr.bf16.gmra.mrb[0].mxu0 %v6347
        %v6489 = vpop.f32.mrb[0].mxu0
        %v6490 = vadd.f32 0.0, %v6489
        %v6491 = vpop.f32.mrb[0].mxu0
        %v6492 = vpop.f32.mrb[0].mxu0
        %v6493 = vadd.f32 0.0, %v6492
        %v6494 = vpop.f32.mrb[0].mxu0
        %6495 = vmatprep.mubr.bf16.mxu0 0
        %6496 = vmatmul.mubr.bf16.gmra.mrb[0].mxu0 %v6349
        %v6497 = vpop.f32.mrb[0].mxu0
        %v6498 = vadd.f32 0.0, %v6497
        %v6499 = vpop.f32.mrb[0].mxu0
        %v6500 = vpop.f32.mrb[0].mxu0
        %v6501 = vadd.f32 0.0, %v6500
        %v6502 = vpop.f32.mrb[0].mxu0
        %6503 = vmatprep.mubr.bf16.mxu0 0
        %6504 = vmatmul.mubr.bf16.gmra.mrb[0].mxu0 %v6351
        %v6505 = vpop.f32.mrb[0].mxu0
        %v6506 = vadd.f32 0.0, %v6505
        %v6507 = vpop.f32.mrb[0].mxu0
        %v6508 = vpop.f32.mrb[0].mxu0
        %v6509 = vadd.f32 0.0, %v6508
        %v6510 = vpop.f32.mrb[0].mxu0
        %6511 = vmatprep.mubr.bf16.mxu0 0
        %6512 = vmatmul.mubr.bf16.gmra.mrb[0].mxu0 %v6353
        %v6513 = vpop.f32.mrb[0].mxu0
        %v6514 = vadd.f32 0.0, %v6513
        %v6515 = vpop.f32.mrb[0].mxu0
        %v6516 = vpop.f32.mrb[0].mxu0
        %v6517 = vadd.f32 0.0, %v6516
        %v6518 = vpop.f32.mrb[0].mxu0
        %6519 = vmatprep.mubr.bf16.mxu0 0
        %6520 = vmatmul.mubr.bf16.gmra.mrb[0].mxu0 %v6355
        %v6521 = vpop.f32.mrb[0].mxu0
        %v6522 = vadd.f32 0.0, %v6521
        %v6523 = vpop.f32.mrb[0].mxu0
        %v6524 = vpop.f32.mrb[0].mxu0
        %v6525 = vadd.f32 0.0, %v6524
        %v6526 = vpop.f32.mrb[0].mxu0
        %6527 = vmatprep.mubr.bf16.mxu0 0
        %6528 = vmatmul.mubr.bf16.gmra.mrb[0].mxu0 %v6357
        %v6529 = vpop.f32.mrb[0].mxu0
        %v6530 = vadd.f32 0.0, %v6529
        %v6531 = vpop.f32.mrb[0].mxu0
        %v6532 = vpop.f32.mrb[0].mxu0
        %v6533 = vadd.f32 0.0, %v6532
        %v6534 = vpop.f32.mrb[0].mxu0
        %6535 = vmatprep.mubr.bf16.mxu0 0
        %6536 = vmatmul.mubr.bf16.gmra.mrb[0].mxu0 %v6359
        %v6537 = vpop.f32.mrb[0].mxu0
        %v6538 = vadd.f32 0.0, %v6537
        %v6539 = vpop.f32.mrb[0].mxu0
        %v6540 = vpop.f32.mrb[0].mxu0
        %v6541 = vadd.f32 0.0, %v6540
        %v6542 = vpop.f32.mrb[0].mxu0
        %6543 = vmatprep.mubr.bf16.mxu0 0
        %6544 = vmatmul.mubr.bf16.gmra.mrb[0].mxu0 %v6361
        %v6545 = vpop.f32.mrb[0].mxu0
        %v6546 = vadd.f32 0.0, %v6545
        %v6547 = vpop.f32.mrb[0].mxu0
        %v6548 = vpop.f32.mrb[0].mxu0
        %v6549 = vadd.f32 0.0, %v6548
        %v6550 = vpop.f32.mrb[0].mxu0
        %6551 = vmatprep.mubr.bf16.mxu0 0
        %6552 = vmatmul.mubr.bf16.gmra.mrb[0].mxu0 %v6363
        %v6553 = vpop.f32.mrb[0].mxu0
        %v6554 = vadd.f32 0.0, %v6553
        %v6555 = vpop.f32.mrb[0].mxu0
        %v6556 = vpop.f32.mrb[0].mxu0
        %v6557 = vadd.f32 0.0, %v6556
        %v6558 = vpop.f32.mrb[0].mxu0
        %6559 = vmatprep.mubr.bf16.mxu0 0
        %6560 = vmatmul.mubr.bf16.gmra.mrb[0].mxu0 %v6365
        %v6561 = vpop.f32.mrb[0].mxu0
        %v6562 = vadd.f32 0.0, %v6561
        %v6563 = vpop.f32.mrb[0].mxu0
        %v6564 = vpop.f32.mrb[0].mxu0
        %v6565 = vadd.f32 0.0, %v6564
        %v6566 = vpop.f32.mrb[0].mxu0
        %6567 = vmatprep.mubr.bf16.mxu0 0
        %6568 = vmatmul.mubr.bf16.gmra.mrb[0].mxu0 %v6367
        %v6569 = vpop.f32.mrb[0].mxu0
        %v6570 = vadd.f32 0.0, %v6569
        %v6571 = vpop.f32.mrb[0].mxu0
        %v6572 = vpop.f32.mrb[0].mxu0
        %v6573 = vadd.f32 0.0, %v6572
        %v6574 = vpop.f32.mrb[0].mxu0
        %6575 = vmatprep.mubr.bf16.mxu0 0
        %6576 = vmatmul.mubr.bf16.gmra.mrb[0].mxu0 %v6369
        %v6577 = vpop.f32.mrb[0].mxu0
        %v6578 = vadd.f32 0.0, %v6577
        %v6579 = vpop.f32.mrb[0].mxu0
        %v6580 = vpop.f32.mrb[0].mxu0
        %v6581 = vadd.f32 0.0, %v6580
        %v6582 = vpop.f32.mrb[0].mxu0
        %6583 = vmatprep.mubr.bf16.mxu0 0
        %6584 = vmatmul.mubr.bf16.gmra.mrb[0].mxu0 %v6371
        %v6585 = vpop.f32.mrb[0].mxu0
        %v6586 = vadd.f32 0.0, %v6585
        %v6587 = vpop.f32.mrb[0].mxu0
        %v6588 = vpop.f32.mrb[0].mxu0
        %v6589 = vadd.f32 0.0, %v6588
        %v6590 = vpop.f32.mrb[0].mxu0
        %6591 = vmatprep.mubr.bf16.mxu0 0
        %6592 = vmatmul.mubr.bf16.gmra.mrb[0].mxu0 %v6373
        %v6593 = vpop.f32.mrb[0].mxu0
        %v6594 = vadd.f32 0.0, %v6593
        %v6595 = vpop.f32.mrb[0].mxu0
        %v6596 = vpop.f32.mrb[0].mxu0
        %v6597 = vadd.f32 0.0, %v6596
        %v6598 = vpop.f32.mrb[0].mxu0
        %6599 = vmatprep.mubr.bf16.mxu0 0
        %6600 = vmatmul.mubr.bf16.gmra.mrb[0].mxu0 %v6375
        %v6601 = vpop.f32.mrb[0].mxu0
        %v6602 = vadd.f32 0.0, %v6601
        %v6603 = vpop.f32.mrb[0].mxu0
        %v6604 = vpop.f32.mrb[0].mxu0
        %v6605 = vadd.f32 0.0, %v6604
        %v6606 = vpop.f32.mrb[0].mxu0
        %6607 = vmatprep.mubr.bf16.mxu0 0
        %6608 = vmatmul.mubr.bf16.gmra.mrb[0].mxu0 %v6377
        %v6609 = vpop.f32.mrb[0].mxu0
        %v6610 = vadd.f32 0.0, %v6609
        %v6611 = vpop.f32.mrb[0].mxu0
        %v6612 = vpop.f32.mrb[0].mxu0
        %v6613 = vadd.f32 0.0, %v6612
        %v6614 = vpop.f32.mrb[0].mxu0
        %6615 = vmatprep.mubr.bf16.mxu0 0
        %6616 = vmatmul.mubr.bf16.gmra.mrb[0].mxu0 %v6379
        %v6617 = vpop.f32.mrb[0].mxu0
        %v6618 = vadd.f32 0.0, %v6617
        %v6619 = vpop.f32.mrb[0].mxu0
        %v6620 = vpop.f32.mrb[0].mxu0
        %v6621 = vadd.f32 0.0, %v6620
        %v6622 = vpop.f32.mrb[0].mxu0
        %6623 = vmatprep.mubr.bf16.mxu0 0
        %6624 = vmatmul.mubr.bf16.gmra.mrb[0].mxu0 %v6381
        %v6625 = vpop.f32.mrb[0].mxu0
        %v6626 = vadd.f32 0.0, %v6625
        %v6627 = vpop.f32.mrb[0].mxu0
        %v6628 = vpop.f32.mrb[0].mxu0
        %v6629 = vadd.f32 0.0, %v6628
        %v6630 = vpop.f32.mrb[0].mxu0
        %6631 = vmatprep.mubr.bf16.mxu0 0
        %6632 = vmatmul.mubr.bf16.gmra.mrb[0].mxu0 %v6383
        %v6633 = vpop.f32.mrb[0].mxu0
        %v6634 = vadd.f32 0.0, %v6633
        %v6635 = vpop.f32.mrb[0].mxu0
        %v6636 = vpop.f32.mrb[0].mxu0
        %v6637 = vadd.f32 0.0, %v6636
        %v6638 = vpop.f32.mrb[0].mxu0
        %6639 = vmatprep.mubr.bf16.mxu0 0
        %6640 = vmatmul.mubr.bf16.gmra.mrb[0].mxu0 %v6385
        %v6641 = vpop.f32.mrb[0].mxu0
        %v6642 = vadd.f32 0.0, %v6641
        %v6643 = vpop.f32.mrb[0].mxu0
        %v6644 = vpop.f32.mrb[0].mxu0
        %v6645 = vadd.f32 0.0, %v6644
        %v6646 = vpop.f32.mrb[0].mxu0
        %6647 = vmatprep.mubr.bf16.mxu0 0
        %6648 = vmatmul.mubr.bf16.gmra.mrb[0].mxu0 %v6384
        %v6649 = vpop.f32.mrb[0].mxu0
        %v6650 = vadd.f32 0.0, %v6649
        %v6651 = vpop.f32.mrb[0].mxu0
        %v6652 = vpop.f32.mrb[0].mxu0
        %v6653 = vpop.f32.mrb[0].mxu0
        %6654 = vdwg.mxu0
        %v6655 = vadd.f32 %v6265, %v6490
        %v6656 = vadd.f32 %v6266, %v6493
        %v6657 = vadd.f32 %v6267, %v6498
        %v6658 = vadd.f32 %v6268, %v6501
        %v6659 = vadd.f32 %v6269, %v6506
        %v6660 = vadd.f32 %v6270, %v6509
        %v6661 = vadd.f32 %v6271, %v6514
        %v6662 = vadd.f32 %v6272, %v6517
        %v6663 = vadd.f32 %v6273, %v6522
        %v6664 = vadd.f32 %v6274, %v6525
        %v6665 = vadd.f32 %v6275, %v6530
        %v6666 = vadd.f32 %v6276, %v6533
        %v6667 = vadd.f32 %v6277, %v6538
        %v6668 = vadd.f32 %v6278, %v6541
        %v6669 = vadd.f32 %v6279, %v6546
        %v6670 = vadd.f32 %v6280, %v6549
        %v6671 = vadd.f32 %v6281, %v6554
        %v6672 = vadd.f32 %v6282, %v6557
        %v6673 = vadd.f32 %v6283, %v6562
        %v6674 = vadd.f32 %v6284, %v6565
        %v6675 = vadd.f32 %v6285, %v6570
        %v6676 = vadd.f32 %v6286, %v6573
        %v6677 = vadd.f32 %v6287, %v6578
        %v6678 = vadd.f32 %v6288, %v6581
        %v6679 = vadd.f32 %v6289, %v6586
        %v6680 = vadd.f32 %v6290, %v6589
        %v6681 = vadd.f32 %v6291, %v6594
        %v6682 = vadd.f32 %v6292, %v6597
        %v6683 = vadd.f32 %v6293, %v6602
        %v6684 = vadd.f32 %v6294, %v6605
        %v6685 = vadd.f32 %v6295, %v6610
        %v6686 = vadd.f32 %v6296, %v6613
        %v6687 = vadd.f32 %v6297, %v6618
        %v6688 = vadd.f32 %v6298, %v6621
        %v6689 = vadd.f32 %v6299, %v6626
        %v6690 = vadd.f32 %v6300, %v6629
        %v6691 = vadd.f32 %v6301, %v6634
        %v6692 = vadd.f32 %v6302, %v6637
        %v6693 = vadd.f32 %v6303, %v6642
        %v6694 = vadd.f32 %v6304, %v6645
        %v6695 = vadd.f32 %v6305, %v6650
        %v6696 = vld [vmem:[#allocation2 + $0x8] sm:$0xfe]
        %v6697 = vld [vmem:[#allocation2 + $0x10] sm:$0xff]
        %v6698 = vld [vmem:[#allocation2 + $0x18] sm:$0xff]
        %v6699 = vld [vmem:[#allocation2 + $0x20] sm:$0xff]
        %v6700 = vld [vmem:[#allocation2 + $0x28] sm:$0xff]
        %v6701 = vld [vmem:[#allocation2 + $0x30] sm:$0xff]
        %v6702 = vld [vmem:[#allocation2 + $0x38] sm:$0xff]
        %v6703 = vld [vmem:[#allocation2 + $0x40] sm:$0xff]
        %v6704 = vld [vmem:[#allocation2 + $0x48] sm:$0xff]
        %v6705 = vld [vmem:[#allocation2 + $0x50] sm:$0xff]
        %v6706 = vld [vmem:[#allocation2 + $0x58] sm:$0xff]
        %v6707 = vld [vmem:[#allocation2 + $0x60] sm:$0xff]
        %v6708 = vld [vmem:[#allocation2 + $0x68] sm:$0xff]
        %v6709 = vld [vmem:[#allocation2 + $0x70] sm:$0xff]
        %v6710 = vld [vmem:[#allocation2 + $0x78] sm:$0xff]
        %v6711 = vld [vmem:[#allocation2 + $0x80] sm:$0xff]
        %v6712 = vld [vmem:[#allocation2 + $0x88] sm:$0xff]
        %v6713 = vld [vmem:[#allocation2 + $0x90] sm:$0xff]
        %v6714 = vld [vmem:[#allocation2 + $0x98] sm:$0xff]
        %v6715 = vld [vmem:[#allocation2 + $0xa0] sm:$0xff]
        %v6716 = vld [vmem:[#allocation2 + $0xa8] sm:$0x1f]
        %s6717 = scalar_lea.vmem [#allocation9], 192
        %v6718 = vld [vmem:[%s6717] sm:$0xf]
        %v6719 = vld [vmem:[%s6717 + $0x4] sm:$0xf]
        %v6720 = vld [vmem:[%s6717 + $0x8] sm:$0xf]
        %v6721 = vld [vmem:[%s6717 + $0xc] sm:$0xf]
        %v6722 = vld [vmem:[%s6717 + $0x10] sm:$0xf]
        %v6723 = vld [vmem:[%s6717 + $0x14] sm:$0xf]
        %v6724 = vld [vmem:[%s6717 + $0x18] sm:$0xf]
        %v6725 = vld [vmem:[%s6717 + $0x1c] sm:$0xf]
        %v6726 = vld [vmem:[%s6717 + $0x20] sm:$0xf]
        %v6727 = vld [vmem:[%s6717 + $0x24] sm:$0xf]
        %v6728 = vld [vmem:[%s6717 + $0x28] sm:$0xf]
        %v6729 = vld [vmem:[%s6717 + $0x2c] sm:$0xf]
        %v6730 = vld [vmem:[%s6717 + $0x30] sm:$0xf]
        %v6731 = vld [vmem:[%s6717 + $0x34] sm:$0xf]
        %v6732 = vld [vmem:[%s6717 + $0x38] sm:$0xf]
        %v6733 = vld [vmem:[%s6717 + $0x3c] sm:$0xf]
        %v6755 = vrot.slane %v6696, 1
        %v6756 = vrot.slane %v6697, 1
        %v6757 = vsel %vm1218, %v6755, %v6756
        %v6758 = vrot.slane %v6698, 1
        %v6759 = vsel %vm1218, %v6756, %v6758
        %v6760 = vrot.slane %v6699, 1
        %v6761 = vsel %vm1218, %v6758, %v6760
        %v6762 = vrot.slane %v6700, 1
        %v6763 = vsel %vm1218, %v6760, %v6762
        %v6764 = vrot.slane %v6701, 1
        %v6765 = vsel %vm1218, %v6762, %v6764
        %v6766 = vrot.slane %v6702, 1
        %v6767 = vsel %vm1218, %v6764, %v6766
        %v6768 = vrot.slane %v6703, 1
        %v6769 = vsel %vm1218, %v6766, %v6768
        %v6770 = vrot.slane %v6704, 1
        %v6771 = vsel %vm1218, %v6768, %v6770
        %v6772 = vrot.slane %v6705, 1
        %v6773 = vsel %vm1218, %v6770, %v6772
        %v6774 = vrot.slane %v6706, 1
        %v6775 = vsel %vm1218, %v6772, %v6774
        %v6776 = vrot.slane %v6707, 1
        %v6777 = vsel %vm1218, %v6774, %v6776
        %v6778 = vrot.slane %v6708, 1
        %v6779 = vsel %vm1218, %v6776, %v6778
        %v6780 = vrot.slane %v6709, 1
        %v6781 = vsel %vm1218, %v6778, %v6780
        %v6782 = vrot.slane %v6710, 1
        %v6783 = vsel %vm1218, %v6780, %v6782
        %v6784 = vrot.slane %v6711, 1
        %v6785 = vsel %vm1218, %v6782, %v6784
        %v6786 = vrot.slane %v6712, 1
        %v6787 = vsel %vm1218, %v6784, %v6786
        %v6788 = vrot.slane %v6713, 1
        %v6789 = vsel %vm1218, %v6786, %v6788
        %v6790 = vrot.slane %v6714, 1
        %v6791 = vsel %vm1218, %v6788, %v6790
        %v6792 = vrot.slane %v6715, 1
        %v6793 = vsel %vm1218, %v6790, %v6792
        %v6794 = vrot.slane %v6716, 1
        %v6795 = vsel %vm1218, %v6792, %v6794
        %v6833 = vunpack.c.l.b16 %v6718
        %v6834 = vunpack.c.l.b16 %v6719
        %v6835 = vunpack.c.l.b16 %v6720
        %v6836 = vunpack.c.l.b16 %v6721
        %v6837 = vunpack.c.l.b16 %v6722
        %v6838 = vunpack.c.l.b16 %v6723
        %v6839 = vunpack.c.l.b16 %v6724
        %v6840 = vunpack.c.l.b16 %v6725
        %v6841 = vunpack.c.l.b16 %v6726
        %v6842 = vunpack.c.l.b16 %v6727
        %v6843 = vunpack.c.l.b16 %v6728
        %v6844 = vunpack.c.l.b16 %v6729
        %v6845 = vunpack.c.l.b16 %v6730
        %v6846 = vunpack.c.l.b16 %v6731
        %v6847 = vunpack.c.l.b16 %v6732
        %v6848 = vunpack.c.l.b16 %v6733
        %v6849 = vpack.c.b16 %v6834, %v6833
        %v6850 = vpack.c.b16 %v6836, %v6835
        %v6851 = vpack.c.b16 %v6838, %v6837
        %v6852 = vpack.c.b16 %v6840, %v6839
        %v6853 = vpack.c.b16 %v6842, %v6841
        %v6854 = vpack.c.b16 %v6844, %v6843
        %v6855 = vpack.c.b16 %v6846, %v6845
        %v6856 = vpack.c.b16 %v6848, %v6847
        %6865 = vmatprep.subr.bf16.mxu0 0
        %6866 = vmatpush1.bf16.msra.mxu0 %v6849
        %6867 = vmatprep.subr.bf16.mxu0 0
        %6868 = vmatpush1.bf16.msra.mxu0 %v6850
        %6869 = vmatprep.subr.bf16.mxu0 0
        %6870 = vmatpush1.bf16.msra.mxu0 %v6851
        %6871 = vmatprep.subr.bf16.mxu0 0
        %6872 = vmatpush1.bf16.msra.mxu0 %v6852
        %6873 = vmatprep.subr.bf16.mxu0 0
        %6874 = vmatpush1.bf16.msra.mxu0 %v6853
        %6875 = vmatprep.subr.bf16.mxu0 0
        %6876 = vmatpush1.bf16.msra.mxu0 %v6854
        %6877 = vmatprep.subr.bf16.mxu0 0
        %6878 = vmatpush1.bf16.msra.mxu0 %v6855
        %6879 = vmatprep.subr.bf16.mxu0 0
        %6880 = vmatpush1.bf16.msra.mxu0 %v6856
        %6881 = vmatprep.subr.bf16.mxu0 0
        %6882 = vmatpush1.bf16.msra.mxu0 0
        %6883 = vmatprep.subr.bf16.mxu0 0
        %6884 = vmatpush1.bf16.msra.mxu0 0
        %6885 = vmatprep.subr.bf16.mxu0 0
        %6886 = vmatpush1.bf16.msra.mxu0 0
        %6887 = vmatprep.subr.bf16.mxu0 0
        %6888 = vmatpush1.bf16.msra.mxu0 0
        %6889 = vmatprep.subr.bf16.mxu0 0
        %6890 = vmatpush1.bf16.msra.mxu0 0
        %6891 = vmatprep.subr.bf16.mxu0 0
        %6892 = vmatpush1.bf16.msra.mxu0 0
        %6893 = vmatprep.subr.bf16.mxu0 0
        %6894 = vmatpush1.bf16.msra.mxu0 0
        %6895 = vmatprep.subr.bf16.mxu0 0
        %6896 = vmatpush1.bf16.msra.mxu0 0
        %6897 = vmatprep.mubr.bf16.mxu0 0
        %6898 = vmatmul.mubr.bf16.gmra.mrb[0].mxu0 %v6757
        %v6899 = vpop.f32.mrb[0].mxu0
        %v6900 = vadd.f32 0.0, %v6899
        %v6901 = vpop.f32.mrb[0].mxu0
        %v6902 = vpop.f32.mrb[0].mxu0
        %v6903 = vadd.f32 0.0, %v6902
        %v6904 = vpop.f32.mrb[0].mxu0
        %6905 = vmatprep.mubr.bf16.mxu0 0
        %6906 = vmatmul.mubr.bf16.gmra.mrb[0].mxu0 %v6759
        %v6907 = vpop.f32.mrb[0].mxu0
        %v6908 = vadd.f32 0.0, %v6907
        %v6909 = vpop.f32.mrb[0].mxu0
        %v6910 = vpop.f32.mrb[0].mxu0
        %v6911 = vadd.f32 0.0, %v6910
        %v6912 = vpop.f32.mrb[0].mxu0
        %6913 = vmatprep.mubr.bf16.mxu0 0
        %6914 = vmatmul.mubr.bf16.gmra.mrb[0].mxu0 %v6761
        %v6915 = vpop.f32.mrb[0].mxu0
        %v6916 = vadd.f32 0.0, %v6915
        %v6917 = vpop.f32.mrb[0].mxu0
        %v6918 = vpop.f32.mrb[0].mxu0
        %v6919 = vadd.f32 0.0, %v6918
        %v6920 = vpop.f32.mrb[0].mxu0
        %6921 = vmatprep.mubr.bf16.mxu0 0
        %6922 = vmatmul.mubr.bf16.gmra.mrb[0].mxu0 %v6763
        %v6923 = vpop.f32.mrb[0].mxu0
        %v6924 = vadd.f32 0.0, %v6923
        %v6925 = vpop.f32.mrb[0].mxu0
        %v6926 = vpop.f32.mrb[0].mxu0
        %v6927 = vadd.f32 0.0, %v6926
        %v6928 = vpop.f32.mrb[0].mxu0
        %6929 = vmatprep.mubr.bf16.mxu0 0
        %6930 = vmatmul.mubr.bf16.gmra.mrb[0].mxu0 %v6765
        %v6931 = vpop.f32.mrb[0].mxu0
        %v6932 = vadd.f32 0.0, %v6931
        %v6933 = vpop.f32.mrb[0].mxu0
        %v6934 = vpop.f32.mrb[0].mxu0
        %v6935 = vadd.f32 0.0, %v6934
        %v6936 = vpop.f32.mrb[0].mxu0
        %6937 = vmatprep.mubr.bf16.mxu0 0
        %6938 = vmatmul.mubr.bf16.gmra.mrb[0].mxu0 %v6767
        %v6939 = vpop.f32.mrb[0].mxu0
        %v6940 = vadd.f32 0.0, %v6939
        %v6941 = vpop.f32.mrb[0].mxu0
        %v6942 = vpop.f32.mrb[0].mxu0
        %v6943 = vadd.f32 0.0, %v6942
        %v6944 = vpop.f32.mrb[0].mxu0
        %6945 = vmatprep.mubr.bf16.mxu0 0
        %6946 = vmatmul.mubr.bf16.gmra.mrb[0].mxu0 %v6769
        %v6947 = vpop.f32.mrb[0].mxu0
        %v6948 = vadd.f32 0.0, %v6947
        %v6949 = vpop.f32.mrb[0].mxu0
        %v6950 = vpop.f32.mrb[0].mxu0
        %v6951 = vadd.f32 0.0, %v6950
        %v6952 = vpop.f32.mrb[0].mxu0
        %6953 = vmatprep.mubr.bf16.mxu0 0
        %6954 = vmatmul.mubr.bf16.gmra.mrb[0].mxu0 %v6771
        %v6955 = vpop.f32.mrb[0].mxu0
        %v6956 = vadd.f32 0.0, %v6955
        %v6957 = vpop.f32.mrb[0].mxu0
        %v6958 = vpop.f32.mrb[0].mxu0
        %v6959 = vadd.f32 0.0, %v6958
        %v6960 = vpop.f32.mrb[0].mxu0
        %6961 = vmatprep.mubr.bf16.mxu0 0
        %6962 = vmatmul.mubr.bf16.gmra.mrb[0].mxu0 %v6773
        %v6963 = vpop.f32.mrb[0].mxu0
        %v6964 = vadd.f32 0.0, %v6963
        %v6965 = vpop.f32.mrb[0].mxu0
        %v6966 = vpop.f32.mrb[0].mxu0
        %v6967 = vadd.f32 0.0, %v6966
        %v6968 = vpop.f32.mrb[0].mxu0
        %6969 = vmatprep.mubr.bf16.mxu0 0
        %6970 = vmatmul.mubr.bf16.gmra.mrb[0].mxu0 %v6775
        %v6971 = vpop.f32.mrb[0].mxu0
        %v6972 = vadd.f32 0.0, %v6971
        %v6973 = vpop.f32.mrb[0].mxu0
        %v6974 = vpop.f32.mrb[0].mxu0
        %v6975 = vadd.f32 0.0, %v6974
        %v6976 = vpop.f32.mrb[0].mxu0
        %6977 = vmatprep.mubr.bf16.mxu0 0
        %6978 = vmatmul.mubr.bf16.gmra.mrb[0].mxu0 %v6777
        %v6979 = vpop.f32.mrb[0].mxu0
        %v6980 = vadd.f32 0.0, %v6979
        %v6981 = vpop.f32.mrb[0].mxu0
        %v6982 = vpop.f32.mrb[0].mxu0
        %v6983 = vadd.f32 0.0, %v6982
        %v6984 = vpop.f32.mrb[0].mxu0
        %6985 = vmatprep.mubr.bf16.mxu0 0
        %6986 = vmatmul.mubr.bf16.gmra.mrb[0].mxu0 %v6779
        %v6987 = vpop.f32.mrb[0].mxu0
        %v6988 = vadd.f32 0.0, %v6987
        %v6989 = vpop.f32.mrb[0].mxu0
        %v6990 = vpop.f32.mrb[0].mxu0
        %v6991 = vadd.f32 0.0, %v6990
        %v6992 = vpop.f32.mrb[0].mxu0
        %6993 = vmatprep.mubr.bf16.mxu0 0
        %6994 = vmatmul.mubr.bf16.gmra.mrb[0].mxu0 %v6781
        %v6995 = vpop.f32.mrb[0].mxu0
        %v6996 = vadd.f32 0.0, %v6995
        %v6997 = vpop.f32.mrb[0].mxu0
        %v6998 = vpop.f32.mrb[0].mxu0
        %v6999 = vadd.f32 0.0, %v6998
        %v7000 = vpop.f32.mrb[0].mxu0
        %7001 = vmatprep.mubr.bf16.mxu0 0
        %7002 = vmatmul.mubr.bf16.gmra.mrb[0].mxu0 %v6783
        %v7003 = vpop.f32.mrb[0].mxu0
        %v7004 = vadd.f32 0.0, %v7003
        %v7005 = vpop.f32.mrb[0].mxu0
        %v7006 = vpop.f32.mrb[0].mxu0
        %v7007 = vadd.f32 0.0, %v7006
        %v7008 = vpop.f32.mrb[0].mxu0
        %7009 = vmatprep.mubr.bf16.mxu0 0
        %7010 = vmatmul.mubr.bf16.gmra.mrb[0].mxu0 %v6785
        %v7011 = vpop.f32.mrb[0].mxu0
        %v7012 = vadd.f32 0.0, %v7011
        %v7013 = vpop.f32.mrb[0].mxu0
        %v7014 = vpop.f32.mrb[0].mxu0
        %v7015 = vadd.f32 0.0, %v7014
        %v7016 = vpop.f32.mrb[0].mxu0
        %7017 = vmatprep.mubr.bf16.mxu0 0
        %7018 = vmatmul.mubr.bf16.gmra.mrb[0].mxu0 %v6787
        %v7019 = vpop.f32.mrb[0].mxu0
        %v7020 = vadd.f32 0.0, %v7019
        %v7021 = vpop.f32.mrb[0].mxu0
        %v7022 = vpop.f32.mrb[0].mxu0
        %v7023 = vadd.f32 0.0, %v7022
        %v7024 = vpop.f32.mrb[0].mxu0
        %7025 = vmatprep.mubr.bf16.mxu0 0
        %7026 = vmatmul.mubr.bf16.gmra.mrb[0].mxu0 %v6789
        %v7027 = vpop.f32.mrb[0].mxu0
        %v7028 = vadd.f32 0.0, %v7027
        %v7029 = vpop.f32.mrb[0].mxu0
        %v7030 = vpop.f32.mrb[0].mxu0
        %v7031 = vadd.f32 0.0, %v7030
        %v7032 = vpop.f32.mrb[0].mxu0
        %7033 = vmatprep.mubr.bf16.mxu0 0
        %7034 = vmatmul.mubr.bf16.gmra.mrb[0].mxu0 %v6791
        %v7035 = vpop.f32.mrb[0].mxu0
        %v7036 = vadd.f32 0.0, %v7035
        %v7037 = vpop.f32.mrb[0].mxu0
        %v7038 = vpop.f32.mrb[0].mxu0
        %v7039 = vadd.f32 0.0, %v7038
        %v7040 = vpop.f32.mrb[0].mxu0
        %7041 = vmatprep.mubr.bf16.mxu0 0
        %7042 = vmatmul.mubr.bf16.gmra.mrb[0].mxu0 %v6793
        %v7043 = vpop.f32.mrb[0].mxu0
        %v7044 = vadd.f32 0.0, %v7043
        %v7045 = vpop.f32.mrb[0].mxu0
        %v7046 = vpop.f32.mrb[0].mxu0
        %v7047 = vadd.f32 0.0, %v7046
        %v7048 = vpop.f32.mrb[0].mxu0
        %7049 = vmatprep.mubr.bf16.mxu0 0
        %7050 = vmatmul.mubr.bf16.gmra.mrb[0].mxu0 %v6795
        %v7051 = vpop.f32.mrb[0].mxu0
        %v7052 = vadd.f32 0.0, %v7051
        %v7053 = vpop.f32.mrb[0].mxu0
        %v7054 = vpop.f32.mrb[0].mxu0
        %v7055 = vadd.f32 0.0, %v7054
        %v7056 = vpop.f32.mrb[0].mxu0
        %7057 = vmatprep.mubr.bf16.mxu0 0
        %7058 = vmatmul.mubr.bf16.gmra.mrb[0].mxu0 %v6794
        %v7059 = vpop.f32.mrb[0].mxu0
        %v7060 = vadd.f32 0.0, %v7059
        %v7061 = vpop.f32.mrb[0].mxu0
        %v7062 = vpop.f32.mrb[0].mxu0
        %v7063 = vpop.f32.mrb[0].mxu0
        %7064 = vdwg.mxu0
        %v7065 = vadd.f32 %v6655, %v6900
        %v7066 = vadd.f32 %v6656, %v6903
        %v7067 = vadd.f32 %v6657, %v6908
        %v7068 = vadd.f32 %v6658, %v6911
        %v7069 = vadd.f32 %v6659, %v6916
        %v7070 = vadd.f32 %v6660, %v6919
        %v7071 = vadd.f32 %v6661, %v6924
        %v7072 = vadd.f32 %v6662, %v6927
        %v7073 = vadd.f32 %v6663, %v6932
        %v7074 = vadd.f32 %v6664, %v6935
        %v7075 = vadd.f32 %v6665, %v6940
        %v7076 = vadd.f32 %v6666, %v6943
        %v7077 = vadd.f32 %v6667, %v6948
        %v7078 = vadd.f32 %v6668, %v6951
        %v7079 = vadd.f32 %v6669, %v6956
        %v7080 = vadd.f32 %v6670, %v6959
        %v7081 = vadd.f32 %v6671, %v6964
        %v7082 = vadd.f32 %v6672, %v6967
        %v7083 = vadd.f32 %v6673, %v6972
        %v7084 = vadd.f32 %v6674, %v6975
        %v7085 = vadd.f32 %v6675, %v6980
        %v7086 = vadd.f32 %v6676, %v6983
        %v7087 = vadd.f32 %v6677, %v6988
        %v7088 = vadd.f32 %v6678, %v6991
        %v7089 = vadd.f32 %v6679, %v6996
        %v7090 = vadd.f32 %v6680, %v6999
        %v7091 = vadd.f32 %v6681, %v7004
        %v7092 = vadd.f32 %v6682, %v7007
        %v7093 = vadd.f32 %v6683, %v7012
        %v7094 = vadd.f32 %v6684, %v7015
        %v7095 = vadd.f32 %v6685, %v7020
        %v7096 = vadd.f32 %v6686, %v7023
        %v7097 = vadd.f32 %v6687, %v7028
        %v7098 = vadd.f32 %v6688, %v7031
        %v7099 = vadd.f32 %v6689, %v7036
        %v7100 = vadd.f32 %v6690, %v7039
        %v7101 = vadd.f32 %v6691, %v7044
        %v7102 = vadd.f32 %v6692, %v7047
        %v7103 = vadd.f32 %v6693, %v7052
        %v7104 = vadd.f32 %v6694, %v7055
        %v7105 = vadd.f32 %v6695, %v7060
        %v7106 = vld [vmem:[#allocation2 + $0xa8] sm:$0x3f]
        %s7107 = scalar_lea.vmem [#allocation9], 256
        %v7108 = vld [vmem:[%s7107] sm:$0xf]
        %v7109 = vld [vmem:[%s7107 + $0x4] sm:$0xf]
        %v7110 = vld [vmem:[%s7107 + $0x8] sm:$0xf]
        %v7111 = vld [vmem:[%s7107 + $0xc] sm:$0xf]
        %v7112 = vld [vmem:[%s7107 + $0x10] sm:$0xf]
        %v7113 = vld [vmem:[%s7107 + $0x14] sm:$0xf]
        %v7114 = vld [vmem:[%s7107 + $0x18] sm:$0xf]
        %v7115 = vld [vmem:[%s7107 + $0x1c] sm:$0xf]
        %v7116 = vld [vmem:[%s7107 + $0x20] sm:$0xf]
        %v7117 = vld [vmem:[%s7107 + $0x24] sm:$0xf]
        %v7118 = vld [vmem:[%s7107 + $0x28] sm:$0xf]
        %v7119 = vld [vmem:[%s7107 + $0x2c] sm:$0xf]
        %v7120 = vld [vmem:[%s7107 + $0x30] sm:$0xf]
        %v7121 = vld [vmem:[%s7107 + $0x34] sm:$0xf]
        %v7122 = vld [vmem:[%s7107 + $0x38] sm:$0xf]
        %v7123 = vld [vmem:[%s7107 + $0x3c] sm:$0xf]
        %v7125 = vshrl.u32 %v6696, 16
        %v7127 = vrot.slane %v7125, 1
        %v7128 = vshll.u32 %v6696, 16
        %v7130 = vrot.slane %v7128, 2
        %v7131 = vor.u32 %v7127, %v7130
        %v7133 = vshrl.u32 %v6697, 16
        %v7135 = vrot.slane %v7133, 1
        %v7136 = vshll.u32 %v6697, 16
        %v7138 = vrot.slane %v7136, 2
        %v7139 = vor.u32 %v7135, %v7138
        %v7140 = vsel %vm2070, %v7131, %v7139
        %v7142 = vshrl.u32 %v6698, 16
        %v7144 = vrot.slane %v7142, 1
        %v7145 = vshll.u32 %v6698, 16
        %v7147 = vrot.slane %v7145, 2
        %v7148 = vor.u32 %v7144, %v7147
        %v7149 = vsel %vm2070, %v7139, %v7148
        %v7151 = vshrl.u32 %v6699, 16
        %v7153 = vrot.slane %v7151, 1
        %v7154 = vshll.u32 %v6699, 16
        %v7156 = vrot.slane %v7154, 2
        %v7157 = vor.u32 %v7153, %v7156
        %v7158 = vsel %vm2070, %v7148, %v7157
        %v7160 = vshrl.u32 %v6700, 16
        %v7162 = vrot.slane %v7160, 1
        %v7163 = vshll.u32 %v6700, 16
        %v7165 = vrot.slane %v7163, 2
        %v7166 = vor.u32 %v7162, %v7165
        %v7167 = vsel %vm2070, %v7157, %v7166
        %v7169 = vshrl.u32 %v6701, 16
        %v7171 = vrot.slane %v7169, 1
        %v7172 = vshll.u32 %v6701, 16
        %v7174 = vrot.slane %v7172, 2
        %v7175 = vor.u32 %v7171, %v7174
        %v7176 = vsel %vm2070, %v7166, %v7175
        %v7178 = vshrl.u32 %v6702, 16
        %v7180 = vrot.slane %v7178, 1
        %v7181 = vshll.u32 %v6702, 16
        %v7183 = vrot.slane %v7181, 2
        %v7184 = vor.u32 %v7180, %v7183
        %v7185 = vsel %vm2070, %v7175, %v7184
        %v7187 = vshrl.u32 %v6703, 16
        %v7189 = vrot.slane %v7187, 1
        %v7190 = vshll.u32 %v6703, 16
        %v7192 = vrot.slane %v7190, 2
        %v7193 = vor.u32 %v7189, %v7192
        %v7194 = vsel %vm2070, %v7184, %v7193
        %v7196 = vshrl.u32 %v6704, 16
        %v7198 = vrot.slane %v7196, 1
        %v7199 = vshll.u32 %v6704, 16
        %v7201 = vrot.slane %v7199, 2
        %v7202 = vor.u32 %v7198, %v7201
        %v7203 = vsel %vm2070, %v7193, %v7202
        %v7205 = vshrl.u32 %v6705, 16
        %v7207 = vrot.slane %v7205, 1
        %v7208 = vshll.u32 %v6705, 16
        %v7210 = vrot.slane %v7208, 2
        %v7211 = vor.u32 %v7207, %v7210
        %v7212 = vsel %vm2070, %v7202, %v7211
        %v7214 = vshrl.u32 %v6706, 16
        %v7216 = vrot.slane %v7214, 1
        %v7217 = vshll.u32 %v6706, 16
        %v7219 = vrot.slane %v7217, 2
        %v7220 = vor.u32 %v7216, %v7219
        %v7221 = vsel %vm2070, %v7211, %v7220
        %v7223 = vshrl.u32 %v6707, 16
        %v7225 = vrot.slane %v7223, 1
        %v7226 = vshll.u32 %v6707, 16
        %v7228 = vrot.slane %v7226, 2
        %v7229 = vor.u32 %v7225, %v7228
        %v7230 = vsel %vm2070, %v7220, %v7229
        %v7232 = vshrl.u32 %v6708, 16
        %v7234 = vrot.slane %v7232, 1
        %v7235 = vshll.u32 %v6708, 16
        %v7237 = vrot.slane %v7235, 2
        %v7238 = vor.u32 %v7234, %v7237
        %v7239 = vsel %vm2070, %v7229, %v7238
        %v7241 = vshrl.u32 %v6709, 16
        %v7243 = vrot.slane %v7241, 1
        %v7244 = vshll.u32 %v6709, 16
        %v7246 = vrot.slane %v7244, 2
        %v7247 = vor.u32 %v7243, %v7246
        %v7248 = vsel %vm2070, %v7238, %v7247
        %v7250 = vshrl.u32 %v6710, 16
        %v7252 = vrot.slane %v7250, 1
        %v7253 = vshll.u32 %v6710, 16
        %v7255 = vrot.slane %v7253, 2
        %v7256 = vor.u32 %v7252, %v7255
        %v7257 = vsel %vm2070, %v7247, %v7256
        %v7259 = vshrl.u32 %v6711, 16
        %v7261 = vrot.slane %v7259, 1
        %v7262 = vshll.u32 %v6711, 16
        %v7264 = vrot.slane %v7262, 2
        %v7265 = vor.u32 %v7261, %v7264
        %v7266 = vsel %vm2070, %v7256, %v7265
        %v7268 = vshrl.u32 %v6712, 16
        %v7270 = vrot.slane %v7268, 1
        %v7271 = vshll.u32 %v6712, 16
        %v7273 = vrot.slane %v7271, 2
        %v7274 = vor.u32 %v7270, %v7273
        %v7275 = vsel %vm2070, %v7265, %v7274
        %v7277 = vshrl.u32 %v6713, 16
        %v7279 = vrot.slane %v7277, 1
        %v7280 = vshll.u32 %v6713, 16
        %v7282 = vrot.slane %v7280, 2
        %v7283 = vor.u32 %v7279, %v7282
        %v7284 = vsel %vm2070, %v7274, %v7283
        %v7286 = vshrl.u32 %v6714, 16
        %v7288 = vrot.slane %v7286, 1
        %v7289 = vshll.u32 %v6714, 16
        %v7291 = vrot.slane %v7289, 2
        %v7292 = vor.u32 %v7288, %v7291
        %v7293 = vsel %vm2070, %v7283, %v7292
        %v7295 = vshrl.u32 %v6715, 16
        %v7297 = vrot.slane %v7295, 1
        %v7298 = vshll.u32 %v6715, 16
        %v7300 = vrot.slane %v7298, 2
        %v7301 = vor.u32 %v7297, %v7300
        %v7302 = vsel %vm2070, %v7292, %v7301
        %v7304 = vshrl.u32 %v7106, 16
        %v7306 = vrot.slane %v7304, 1
        %v7307 = vshll.u32 %v7106, 16
        %v7309 = vrot.slane %v7307, 2
        %v7310 = vor.u32 %v7306, %v7309
        %v7311 = vsel %vm2070, %v7301, %v7310
        %v7349 = vunpack.c.l.b16 %v7108
        %v7350 = vunpack.c.l.b16 %v7109
        %v7351 = vunpack.c.l.b16 %v7110
        %v7352 = vunpack.c.l.b16 %v7111
        %v7353 = vunpack.c.l.b16 %v7112
        %v7354 = vunpack.c.l.b16 %v7113
        %v7355 = vunpack.c.l.b16 %v7114
        %v7356 = vunpack.c.l.b16 %v7115
        %v7357 = vunpack.c.l.b16 %v7116
        %v7358 = vunpack.c.l.b16 %v7117
        %v7359 = vunpack.c.l.b16 %v7118
        %v7360 = vunpack.c.l.b16 %v7119
        %v7361 = vunpack.c.l.b16 %v7120
        %v7362 = vunpack.c.l.b16 %v7121
        %v7363 = vunpack.c.l.b16 %v7122
        %v7364 = vunpack.c.l.b16 %v7123
        %v7365 = vpack.c.b16 %v7350, %v7349
        %v7366 = vpack.c.b16 %v7352, %v7351
        %v7367 = vpack.c.b16 %v7354, %v7353
        %v7368 = vpack.c.b16 %v7356, %v7355
        %v7369 = vpack.c.b16 %v7358, %v7357
        %v7370 = vpack.c.b16 %v7360, %v7359
        %v7371 = vpack.c.b16 %v7362, %v7361
        %v7372 = vpack.c.b16 %v7364, %v7363
        %7381 = vmatprep.subr.bf16.mxu0 0
        %7382 = vmatpush1.bf16.msra.mxu0 %v7365
        %7383 = vmatprep.subr.bf16.mxu0 0
        %7384 = vmatpush1.bf16.msra.mxu0 %v7366
        %7385 = vmatprep.subr.bf16.mxu0 0
        %7386 = vmatpush1.bf16.msra.mxu0 %v7367
        %7387 = vmatprep.subr.bf16.mxu0 0
        %7388 = vmatpush1.bf16.msra.mxu0 %v7368
        %7389 = vmatprep.subr.bf16.mxu0 0
        %7390 = vmatpush1.bf16.msra.mxu0 %v7369
        %7391 = vmatprep.subr.bf16.mxu0 0
        %7392 = vmatpush1.bf16.msra.mxu0 %v7370
        %7393 = vmatprep.subr.bf16.mxu0 0
        %7394 = vmatpush1.bf16.msra.mxu0 %v7371
        %7395 = vmatprep.subr.bf16.mxu0 0
        %7396 = vmatpush1.bf16.msra.mxu0 %v7372
        %7397 = vmatprep.subr.bf16.mxu0 0
        %7398 = vmatpush1.bf16.msra.mxu0 0
        %7399 = vmatprep.subr.bf16.mxu0 0
        %7400 = vmatpush1.bf16.msra.mxu0 0
        %7401 = vmatprep.subr.bf16.mxu0 0
        %7402 = vmatpush1.bf16.msra.mxu0 0
        %7403 = vmatprep.subr.bf16.mxu0 0
        %7404 = vmatpush1.bf16.msra.mxu0 0
        %7405 = vmatprep.subr.bf16.mxu0 0
        %7406 = vmatpush1.bf16.msra.mxu0 0
        %7407 = vmatprep.subr.bf16.mxu0 0
        %7408 = vmatpush1.bf16.msra.mxu0 0
        %7409 = vmatprep.subr.bf16.mxu0 0
        %7410 = vmatpush1.bf16.msra.mxu0 0
        %7411 = vmatprep.subr.bf16.mxu0 0
        %7412 = vmatpush1.bf16.msra.mxu0 0
        %7413 = vmatprep.mubr.bf16.mxu0 0
        %7414 = vmatmul.mubr.bf16.gmra.mrb[0].mxu0 %v7140
        %v7415 = vpop.f32.mrb[0].mxu0
        %v7416 = vadd.f32 0.0, %v7415
        %v7417 = vpop.f32.mrb[0].mxu0
        %v7418 = vpop.f32.mrb[0].mxu0
        %v7419 = vadd.f32 0.0, %v7418
        %v7420 = vpop.f32.mrb[0].mxu0
        %7421 = vmatprep.mubr.bf16.mxu0 0
        %7422 = vmatmul.mubr.bf16.gmra.mrb[0].mxu0 %v7149
        %v7423 = vpop.f32.mrb[0].mxu0
        %v7424 = vadd.f32 0.0, %v7423
        %v7425 = vpop.f32.mrb[0].mxu0
        %v7426 = vpop.f32.mrb[0].mxu0
        %v7427 = vadd.f32 0.0, %v7426
        %v7428 = vpop.f32.mrb[0].mxu0
        %7429 = vmatprep.mubr.bf16.mxu0 0
        %7430 = vmatmul.mubr.bf16.gmra.mrb[0].mxu0 %v7158
        %v7431 = vpop.f32.mrb[0].mxu0
        %v7432 = vadd.f32 0.0, %v7431
        %v7433 = vpop.f32.mrb[0].mxu0
        %v7434 = vpop.f32.mrb[0].mxu0
        %v7435 = vadd.f32 0.0, %v7434
        %v7436 = vpop.f32.mrb[0].mxu0
        %7437 = vmatprep.mubr.bf16.mxu0 0
        %7438 = vmatmul.mubr.bf16.gmra.mrb[0].mxu0 %v7167
        %v7439 = vpop.f32.mrb[0].mxu0
        %v7440 = vadd.f32 0.0, %v7439
        %v7441 = vpop.f32.mrb[0].mxu0
        %v7442 = vpop.f32.mrb[0].mxu0
        %v7443 = vadd.f32 0.0, %v7442
        %v7444 = vpop.f32.mrb[0].mxu0
        %7445 = vmatprep.mubr.bf16.mxu0 0
        %7446 = vmatmul.mubr.bf16.gmra.mrb[0].mxu0 %v7176
        %v7447 = vpop.f32.mrb[0].mxu0
        %v7448 = vadd.f32 0.0, %v7447
        %v7449 = vpop.f32.mrb[0].mxu0
        %v7450 = vpop.f32.mrb[0].mxu0
        %v7451 = vadd.f32 0.0, %v7450
        %v7452 = vpop.f32.mrb[0].mxu0
        %7453 = vmatprep.mubr.bf16.mxu0 0
        %7454 = vmatmul.mubr.bf16.gmra.mrb[0].mxu0 %v7185
        %v7455 = vpop.f32.mrb[0].mxu0
        %v7456 = vadd.f32 0.0, %v7455
        %v7457 = vpop.f32.mrb[0].mxu0
        %v7458 = vpop.f32.mrb[0].mxu0
        %v7459 = vadd.f32 0.0, %v7458
        %v7460 = vpop.f32.mrb[0].mxu0
        %7461 = vmatprep.mubr.bf16.mxu0 0
        %7462 = vmatmul.mubr.bf16.gmra.mrb[0].mxu0 %v7194
        %v7463 = vpop.f32.mrb[0].mxu0
        %v7464 = vadd.f32 0.0, %v7463
        %v7465 = vpop.f32.mrb[0].mxu0
        %v7466 = vpop.f32.mrb[0].mxu0
        %v7467 = vadd.f32 0.0, %v7466
        %v7468 = vpop.f32.mrb[0].mxu0
        %7469 = vmatprep.mubr.bf16.mxu0 0
        %7470 = vmatmul.mubr.bf16.gmra.mrb[0].mxu0 %v7203
        %v7471 = vpop.f32.mrb[0].mxu0
        %v7472 = vadd.f32 0.0, %v7471
        %v7473 = vpop.f32.mrb[0].mxu0
        %v7474 = vpop.f32.mrb[0].mxu0
        %v7475 = vadd.f32 0.0, %v7474
        %v7476 = vpop.f32.mrb[0].mxu0
        %7477 = vmatprep.mubr.bf16.mxu0 0
        %7478 = vmatmul.mubr.bf16.gmra.mrb[0].mxu0 %v7212
        %v7479 = vpop.f32.mrb[0].mxu0
        %v7480 = vadd.f32 0.0, %v7479
        %v7481 = vpop.f32.mrb[0].mxu0
        %v7482 = vpop.f32.mrb[0].mxu0
        %v7483 = vadd.f32 0.0, %v7482
        %v7484 = vpop.f32.mrb[0].mxu0
        %7485 = vmatprep.mubr.bf16.mxu0 0
        %7486 = vmatmul.mubr.bf16.gmra.mrb[0].mxu0 %v7221
        %v7487 = vpop.f32.mrb[0].mxu0
        %v7488 = vadd.f32 0.0, %v7487
        %v7489 = vpop.f32.mrb[0].mxu0
        %v7490 = vpop.f32.mrb[0].mxu0
        %v7491 = vadd.f32 0.0, %v7490
        %v7492 = vpop.f32.mrb[0].mxu0
        %7493 = vmatprep.mubr.bf16.mxu0 0
        %7494 = vmatmul.mubr.bf16.gmra.mrb[0].mxu0 %v7230
        %v7495 = vpop.f32.mrb[0].mxu0
        %v7496 = vadd.f32 0.0, %v7495
        %v7497 = vpop.f32.mrb[0].mxu0
        %v7498 = vpop.f32.mrb[0].mxu0
        %v7499 = vadd.f32 0.0, %v7498
        %v7500 = vpop.f32.mrb[0].mxu0
        %7501 = vmatprep.mubr.bf16.mxu0 0
        %7502 = vmatmul.mubr.bf16.gmra.mrb[0].mxu0 %v7239
        %v7503 = vpop.f32.mrb[0].mxu0
        %v7504 = vadd.f32 0.0, %v7503
        %v7505 = vpop.f32.mrb[0].mxu0
        %v7506 = vpop.f32.mrb[0].mxu0
        %v7507 = vadd.f32 0.0, %v7506
        %v7508 = vpop.f32.mrb[0].mxu0
        %7509 = vmatprep.mubr.bf16.mxu0 0
        %7510 = vmatmul.mubr.bf16.gmra.mrb[0].mxu0 %v7248
        %v7511 = vpop.f32.mrb[0].mxu0
        %v7512 = vadd.f32 0.0, %v7511
        %v7513 = vpop.f32.mrb[0].mxu0
        %v7514 = vpop.f32.mrb[0].mxu0
        %v7515 = vadd.f32 0.0, %v7514
        %v7516 = vpop.f32.mrb[0].mxu0
        %7517 = vmatprep.mubr.bf16.mxu0 0
        %7518 = vmatmul.mubr.bf16.gmra.mrb[0].mxu0 %v7257
        %v7519 = vpop.f32.mrb[0].mxu0
        %v7520 = vadd.f32 0.0, %v7519
        %v7521 = vpop.f32.mrb[0].mxu0
        %v7522 = vpop.f32.mrb[0].mxu0
        %v7523 = vadd.f32 0.0, %v7522
        %v7524 = vpop.f32.mrb[0].mxu0
        %7525 = vmatprep.mubr.bf16.mxu0 0
        %7526 = vmatmul.mubr.bf16.gmra.mrb[0].mxu0 %v7266
        %v7527 = vpop.f32.mrb[0].mxu0
        %v7528 = vadd.f32 0.0, %v7527
        %v7529 = vpop.f32.mrb[0].mxu0
        %v7530 = vpop.f32.mrb[0].mxu0
        %v7531 = vadd.f32 0.0, %v7530
        %v7532 = vpop.f32.mrb[0].mxu0
        %7533 = vmatprep.mubr.bf16.mxu0 0
        %7534 = vmatmul.mubr.bf16.gmra.mrb[0].mxu0 %v7275
        %v7535 = vpop.f32.mrb[0].mxu0
        %v7536 = vadd.f32 0.0, %v7535
        %v7537 = vpop.f32.mrb[0].mxu0
        %v7538 = vpop.f32.mrb[0].mxu0
        %v7539 = vadd.f32 0.0, %v7538
        %v7540 = vpop.f32.mrb[0].mxu0
        %7541 = vmatprep.mubr.bf16.mxu0 0
        %7542 = vmatmul.mubr.bf16.gmra.mrb[0].mxu0 %v7284
        %v7543 = vpop.f32.mrb[0].mxu0
        %v7544 = vadd.f32 0.0, %v7543
        %v7545 = vpop.f32.mrb[0].mxu0
        %v7546 = vpop.f32.mrb[0].mxu0
        %v7547 = vadd.f32 0.0, %v7546
        %v7548 = vpop.f32.mrb[0].mxu0
        %7549 = vmatprep.mubr.bf16.mxu0 0
        %7550 = vmatmul.mubr.bf16.gmra.mrb[0].mxu0 %v7293
        %v7551 = vpop.f32.mrb[0].mxu0
        %v7552 = vadd.f32 0.0, %v7551
        %v7553 = vpop.f32.mrb[0].mxu0
        %v7554 = vpop.f32.mrb[0].mxu0
        %v7555 = vadd.f32 0.0, %v7554
        %v7556 = vpop.f32.mrb[0].mxu0
        %7557 = vmatprep.mubr.bf16.mxu0 0
        %7558 = vmatmul.mubr.bf16.gmra.mrb[0].mxu0 %v7302
        %v7559 = vpop.f32.mrb[0].mxu0
        %v7560 = vadd.f32 0.0, %v7559
        %v7561 = vpop.f32.mrb[0].mxu0
        %v7562 = vpop.f32.mrb[0].mxu0
        %v7563 = vadd.f32 0.0, %v7562
        %v7564 = vpop.f32.mrb[0].mxu0
        %7565 = vmatprep.mubr.bf16.mxu0 0
        %7566 = vmatmul.mubr.bf16.gmra.mrb[0].mxu0 %v7311
        %v7567 = vpop.f32.mrb[0].mxu0
        %v7568 = vadd.f32 0.0, %v7567
        %v7569 = vpop.f32.mrb[0].mxu0
        %v7570 = vpop.f32.mrb[0].mxu0
        %v7571 = vadd.f32 0.0, %v7570
        %v7572 = vpop.f32.mrb[0].mxu0
        %7573 = vmatprep.mubr.bf16.mxu0 0
        %7574 = vmatmul.mubr.bf16.gmra.mrb[0].mxu0 %v7310
        %v7575 = vpop.f32.mrb[0].mxu0
        %v7576 = vadd.f32 0.0, %v7575
        %v7577 = vpop.f32.mrb[0].mxu0
        %v7578 = vpop.f32.mrb[0].mxu0
        %v7579 = vpop.f32.mrb[0].mxu0
        %7580 = vdwg.mxu0
        %v7581 = vadd.f32 %v7065, %v7416
        %v7582 = vadd.f32 %v7066, %v7419
        %v7583 = vadd.f32 %v7067, %v7424
        %v7584 = vadd.f32 %v7068, %v7427
        %v7585 = vadd.f32 %v7069, %v7432
        %v7586 = vadd.f32 %v7070, %v7435
        %v7587 = vadd.f32 %v7071, %v7440
        %v7588 = vadd.f32 %v7072, %v7443
        %v7589 = vadd.f32 %v7073, %v7448
        %v7590 = vadd.f32 %v7074, %v7451
        %v7591 = vadd.f32 %v7075, %v7456
        %v7592 = vadd.f32 %v7076, %v7459
        %v7593 = vadd.f32 %v7077, %v7464
        %v7594 = vadd.f32 %v7078, %v7467
        %v7595 = vadd.f32 %v7079, %v7472
        %v7596 = vadd.f32 %v7080, %v7475
        %v7597 = vadd.f32 %v7081, %v7480
        %v7598 = vadd.f32 %v7082, %v7483
        %v7599 = vadd.f32 %v7083, %v7488
        %v7600 = vadd.f32 %v7084, %v7491
        %v7601 = vadd.f32 %v7085, %v7496
        %v7602 = vadd.f32 %v7086, %v7499
        %v7603 = vadd.f32 %v7087, %v7504
        %v7604 = vadd.f32 %v7088, %v7507
        %v7605 = vadd.f32 %v7089, %v7512
        %v7606 = vadd.f32 %v7090, %v7515
        %v7607 = vadd.f32 %v7091, %v7520
        %v7608 = vadd.f32 %v7092, %v7523
        %v7609 = vadd.f32 %v7093, %v7528
        %v7610 = vadd.f32 %v7094, %v7531
        %v7611 = vadd.f32 %v7095, %v7536
        %v7612 = vadd.f32 %v7096, %v7539
        %v7613 = vadd.f32 %v7097, %v7544
        %v7614 = vadd.f32 %v7098, %v7547
        %v7615 = vadd.f32 %v7099, %v7552
        %v7616 = vadd.f32 %v7100, %v7555
        %v7617 = vadd.f32 %v7101, %v7560
        %v7618 = vadd.f32 %v7102, %v7563
        %v7619 = vadd.f32 %v7103, %v7568
        %v7620 = vadd.f32 %v7104, %v7571
        %v7621 = vadd.f32 %v7105, %v7576
        %v7622 = vld [vmem:[#allocation2 + $0x8] sm:$0xfc]
        %s7623 = scalar_lea.vmem [#allocation9], 320
        %v7624 = vld [vmem:[%s7623] sm:$0xf]
        %v7625 = vld [vmem:[%s7623 + $0x4] sm:$0xf]
        %v7626 = vld [vmem:[%s7623 + $0x8] sm:$0xf]
        %v7627 = vld [vmem:[%s7623 + $0xc] sm:$0xf]
        %v7628 = vld [vmem:[%s7623 + $0x10] sm:$0xf]
        %v7629 = vld [vmem:[%s7623 + $0x14] sm:$0xf]
        %v7630 = vld [vmem:[%s7623 + $0x18] sm:$0xf]
        %v7631 = vld [vmem:[%s7623 + $0x1c] sm:$0xf]
        %v7632 = vld [vmem:[%s7623 + $0x20] sm:$0xf]
        %v7633 = vld [vmem:[%s7623 + $0x24] sm:$0xf]
        %v7634 = vld [vmem:[%s7623 + $0x28] sm:$0xf]
        %v7635 = vld [vmem:[%s7623 + $0x2c] sm:$0xf]
        %v7636 = vld [vmem:[%s7623 + $0x30] sm:$0xf]
        %v7637 = vld [vmem:[%s7623 + $0x34] sm:$0xf]
        %v7638 = vld [vmem:[%s7623 + $0x38] sm:$0xf]
        %v7639 = vld [vmem:[%s7623 + $0x3c] sm:$0xf]
        %v7642 = vrot.slane %v7622, 2
        %v7643 = vrot.slane %v6697, 2
        %v7644 = vsel %vm2572, %v7642, %v7643
        %v7645 = vrot.slane %v6698, 2
        %v7646 = vsel %vm2572, %v7643, %v7645
        %v7647 = vrot.slane %v6699, 2
        %v7648 = vsel %vm2572, %v7645, %v7647
        %v7649 = vrot.slane %v6700, 2
        %v7650 = vsel %vm2572, %v7647, %v7649
        %v7651 = vrot.slane %v6701, 2
        %v7652 = vsel %vm2572, %v7649, %v7651
        %v7653 = vrot.slane %v6702, 2
        %v7654 = vsel %vm2572, %v7651, %v7653
        %v7655 = vrot.slane %v6703, 2
        %v7656 = vsel %vm2572, %v7653, %v7655
        %v7657 = vrot.slane %v6704, 2
        %v7658 = vsel %vm2572, %v7655, %v7657
        %v7659 = vrot.slane %v6705, 2
        %v7660 = vsel %vm2572, %v7657, %v7659
        %v7661 = vrot.slane %v6706, 2
        %v7662 = vsel %vm2572, %v7659, %v7661
        %v7663 = vrot.slane %v6707, 2
        %v7664 = vsel %vm2572, %v7661, %v7663
        %v7665 = vrot.slane %v6708, 2
        %v7666 = vsel %vm2572, %v7663, %v7665
        %v7667 = vrot.slane %v6709, 2
        %v7668 = vsel %vm2572, %v7665, %v7667
        %v7669 = vrot.slane %v6710, 2
        %v7670 = vsel %vm2572, %v7667, %v7669
        %v7671 = vrot.slane %v6711, 2
        %v7672 = vsel %vm2572, %v7669, %v7671
        %v7673 = vrot.slane %v6712, 2
        %v7674 = vsel %vm2572, %v7671, %v7673
        %v7675 = vrot.slane %v6713, 2
        %v7676 = vsel %vm2572, %v7673, %v7675
        %v7677 = vrot.slane %v6714, 2
        %v7678 = vsel %vm2572, %v7675, %v7677
        %v7679 = vrot.slane %v6715, 2
        %v7680 = vsel %vm2572, %v7677, %v7679
        %v7681 = vrot.slane %v7106, 2
        %v7682 = vsel %vm2572, %v7679, %v7681
        %v7720 = vunpack.c.l.b16 %v7624
        %v7721 = vunpack.c.l.b16 %v7625
        %v7722 = vunpack.c.l.b16 %v7626
        %v7723 = vunpack.c.l.b16 %v7627
        %v7724 = vunpack.c.l.b16 %v7628
        %v7725 = vunpack.c.l.b16 %v7629
        %v7726 = vunpack.c.l.b16 %v7630
        %v7727 = vunpack.c.l.b16 %v7631
        %v7728 = vunpack.c.l.b16 %v7632
        %v7729 = vunpack.c.l.b16 %v7633
        %v7730 = vunpack.c.l.b16 %v7634
        %v7731 = vunpack.c.l.b16 %v7635
        %v7732 = vunpack.c.l.b16 %v7636
        %v7733 = vunpack.c.l.b16 %v7637
        %v7734 = vunpack.c.l.b16 %v7638
        %v7735 = vunpack.c.l.b16 %v7639
        %v7736 = vpack.c.b16 %v7721, %v7720
        %v7737 = vpack.c.b16 %v7723, %v7722
        %v7738 = vpack.c.b16 %v7725, %v7724
        %v7739 = vpack.c.b16 %v7727, %v7726
        %v7740 = vpack.c.b16 %v7729, %v7728
        %v7741 = vpack.c.b16 %v7731, %v7730
        %v7742 = vpack.c.b16 %v7733, %v7732
        %v7743 = vpack.c.b16 %v7735, %v7734
        %7752 = vmatprep.subr.bf16.mxu0 0
        %7753 = vmatpush1.bf16.msra.mxu0 %v7736
        %7754 = vmatprep.subr.bf16.mxu0 0
        %7755 = vmatpush1.bf16.msra.mxu0 %v7737
        %7756 = vmatprep.subr.bf16.mxu0 0
        %7757 = vmatpush1.bf16.msra.mxu0 %v7738
        %7758 = vmatprep.subr.bf16.mxu0 0
        %7759 = vmatpush1.bf16.msra.mxu0 %v7739
        %7760 = vmatprep.subr.bf16.mxu0 0
        %7761 = vmatpush1.bf16.msra.mxu0 %v7740
        %7762 = vmatprep.subr.bf16.mxu0 0
        %7763 = vmatpush1.bf16.msra.mxu0 %v7741
        %7764 = vmatprep.subr.bf16.mxu0 0
        %7765 = vmatpush1.bf16.msra.mxu0 %v7742
        %7766 = vmatprep.subr.bf16.mxu0 0
        %7767 = vmatpush1.bf16.msra.mxu0 %v7743
        %7768 = vmatprep.subr.bf16.mxu0 0
        %7769 = vmatpush1.bf16.msra.mxu0 0
        %7770 = vmatprep.subr.bf16.mxu0 0
        %7771 = vmatpush1.bf16.msra.mxu0 0
        %7772 = vmatprep.subr.bf16.mxu0 0
        %7773 = vmatpush1.bf16.msra.mxu0 0
        %7774 = vmatprep.subr.bf16.mxu0 0
        %7775 = vmatpush1.bf16.msra.mxu0 0
        %7776 = vmatprep.subr.bf16.mxu0 0
        %7777 = vmatpush1.bf16.msra.mxu0 0
        %7778 = vmatprep.subr.bf16.mxu0 0
        %7779 = vmatpush1.bf16.msra.mxu0 0
        %7780 = vmatprep.subr.bf16.mxu0 0
        %7781 = vmatpush1.bf16.msra.mxu0 0
        %7782 = vmatprep.subr.bf16.mxu0 0
        %7783 = vmatpush1.bf16.msra.mxu0 0
        %7784 = vmatprep.mubr.bf16.mxu0 0
        %7785 = vmatmul.mubr.bf16.gmra.mrb[0].mxu0 %v7644
        %v7786 = vpop.f32.mrb[0].mxu0
        %v7787 = vadd.f32 0.0, %v7786
        %v7788 = vpop.f32.mrb[0].mxu0
        %v7789 = vpop.f32.mrb[0].mxu0
        %v7790 = vadd.f32 0.0, %v7789
        %v7791 = vpop.f32.mrb[0].mxu0
        %7792 = vmatprep.mubr.bf16.mxu0 0
        %7793 = vmatmul.mubr.bf16.gmra.mrb[0].mxu0 %v7646
        %v7794 = vpop.f32.mrb[0].mxu0
        %v7795 = vadd.f32 0.0, %v7794
        %v7796 = vpop.f32.mrb[0].mxu0
        %v7797 = vpop.f32.mrb[0].mxu0
        %v7798 = vadd.f32 0.0, %v7797
        %v7799 = vpop.f32.mrb[0].mxu0
        %7800 = vmatprep.mubr.bf16.mxu0 0
        %7801 = vmatmul.mubr.bf16.gmra.mrb[0].mxu0 %v7648
        %v7802 = vpop.f32.mrb[0].mxu0
        %v7803 = vadd.f32 0.0, %v7802
        %v7804 = vpop.f32.mrb[0].mxu0
        %v7805 = vpop.f32.mrb[0].mxu0
        %v7806 = vadd.f32 0.0, %v7805
        %v7807 = vpop.f32.mrb[0].mxu0
        %7808 = vmatprep.mubr.bf16.mxu0 0
        %7809 = vmatmul.mubr.bf16.gmra.mrb[0].mxu0 %v7650
        %v7810 = vpop.f32.mrb[0].mxu0
        %v7811 = vadd.f32 0.0, %v7810
        %v7812 = vpop.f32.mrb[0].mxu0
        %v7813 = vpop.f32.mrb[0].mxu0
        %v7814 = vadd.f32 0.0, %v7813
        %v7815 = vpop.f32.mrb[0].mxu0
        %7816 = vmatprep.mubr.bf16.mxu0 0
        %7817 = vmatmul.mubr.bf16.gmra.mrb[0].mxu0 %v7652
        %v7818 = vpop.f32.mrb[0].mxu0
        %v7819 = vadd.f32 0.0, %v7818
        %v7820 = vpop.f32.mrb[0].mxu0
        %v7821 = vpop.f32.mrb[0].mxu0
        %v7822 = vadd.f32 0.0, %v7821
        %v7823 = vpop.f32.mrb[0].mxu0
        %7824 = vmatprep.mubr.bf16.mxu0 0
        %7825 = vmatmul.mubr.bf16.gmra.mrb[0].mxu0 %v7654
        %v7826 = vpop.f32.mrb[0].mxu0
        %v7827 = vadd.f32 0.0, %v7826
        %v7828 = vpop.f32.mrb[0].mxu0
        %v7829 = vpop.f32.mrb[0].mxu0
        %v7830 = vadd.f32 0.0, %v7829
        %v7831 = vpop.f32.mrb[0].mxu0
        %7832 = vmatprep.mubr.bf16.mxu0 0
        %7833 = vmatmul.mubr.bf16.gmra.mrb[0].mxu0 %v7656
        %v7834 = vpop.f32.mrb[0].mxu0
        %v7835 = vadd.f32 0.0, %v7834
        %v7836 = vpop.f32.mrb[0].mxu0
        %v7837 = vpop.f32.mrb[0].mxu0
        %v7838 = vadd.f32 0.0, %v7837
        %v7839 = vpop.f32.mrb[0].mxu0
        %7840 = vmatprep.mubr.bf16.mxu0 0
        %7841 = vmatmul.mubr.bf16.gmra.mrb[0].mxu0 %v7658
        %v7842 = vpop.f32.mrb[0].mxu0
        %v7843 = vadd.f32 0.0, %v7842
        %v7844 = vpop.f32.mrb[0].mxu0
        %v7845 = vpop.f32.mrb[0].mxu0
        %v7846 = vadd.f32 0.0, %v7845
        %v7847 = vpop.f32.mrb[0].mxu0
        %7848 = vmatprep.mubr.bf16.mxu0 0
        %7849 = vmatmul.mubr.bf16.gmra.mrb[0].mxu0 %v7660
        %v7850 = vpop.f32.mrb[0].mxu0
        %v7851 = vadd.f32 0.0, %v7850
        %v7852 = vpop.f32.mrb[0].mxu0
        %v7853 = vpop.f32.mrb[0].mxu0
        %v7854 = vadd.f32 0.0, %v7853
        %v7855 = vpop.f32.mrb[0].mxu0
        %7856 = vmatprep.mubr.bf16.mxu0 0
        %7857 = vmatmul.mubr.bf16.gmra.mrb[0].mxu0 %v7662
        %v7858 = vpop.f32.mrb[0].mxu0
        %v7859 = vadd.f32 0.0, %v7858
        %v7860 = vpop.f32.mrb[0].mxu0
        %v7861 = vpop.f32.mrb[0].mxu0
        %v7862 = vadd.f32 0.0, %v7861
        %v7863 = vpop.f32.mrb[0].mxu0
        %7864 = vmatprep.mubr.bf16.mxu0 0
        %7865 = vmatmul.mubr.bf16.gmra.mrb[0].mxu0 %v7664
        %v7866 = vpop.f32.mrb[0].mxu0
        %v7867 = vadd.f32 0.0, %v7866
        %v7868 = vpop.f32.mrb[0].mxu0
        %v7869 = vpop.f32.mrb[0].mxu0
        %v7870 = vadd.f32 0.0, %v7869
        %v7871 = vpop.f32.mrb[0].mxu0
        %7872 = vmatprep.mubr.bf16.mxu0 0
        %7873 = vmatmul.mubr.bf16.gmra.mrb[0].mxu0 %v7666
        %v7874 = vpop.f32.mrb[0].mxu0
        %v7875 = vadd.f32 0.0, %v7874
        %v7876 = vpop.f32.mrb[0].mxu0
        %v7877 = vpop.f32.mrb[0].mxu0
        %v7878 = vadd.f32 0.0, %v7877
        %v7879 = vpop.f32.mrb[0].mxu0
        %7880 = vmatprep.mubr.bf16.mxu0 0
        %7881 = vmatmul.mubr.bf16.gmra.mrb[0].mxu0 %v7668
        %v7882 = vpop.f32.mrb[0].mxu0
        %v7883 = vadd.f32 0.0, %v7882
        %v7884 = vpop.f32.mrb[0].mxu0
        %v7885 = vpop.f32.mrb[0].mxu0
        %v7886 = vadd.f32 0.0, %v7885
        %v7887 = vpop.f32.mrb[0].mxu0
        %7888 = vmatprep.mubr.bf16.mxu0 0
        %7889 = vmatmul.mubr.bf16.gmra.mrb[0].mxu0 %v7670
        %v7890 = vpop.f32.mrb[0].mxu0
        %v7891 = vadd.f32 0.0, %v7890
        %v7892 = vpop.f32.mrb[0].mxu0
        %v7893 = vpop.f32.mrb[0].mxu0
        %v7894 = vadd.f32 0.0, %v7893
        %v7895 = vpop.f32.mrb[0].mxu0
        %7896 = vmatprep.mubr.bf16.mxu0 0
        %7897 = vmatmul.mubr.bf16.gmra.mrb[0].mxu0 %v7672
        %v7898 = vpop.f32.mrb[0].mxu0
        %v7899 = vadd.f32 0.0, %v7898
        %v7900 = vpop.f32.mrb[0].mxu0
        %v7901 = vpop.f32.mrb[0].mxu0
        %v7902 = vadd.f32 0.0, %v7901
        %v7903 = vpop.f32.mrb[0].mxu0
        %7904 = vmatprep.mubr.bf16.mxu0 0
        %7905 = vmatmul.mubr.bf16.gmra.mrb[0].mxu0 %v7674
        %v7906 = vpop.f32.mrb[0].mxu0
        %v7907 = vadd.f32 0.0, %v7906
        %v7908 = vpop.f32.mrb[0].mxu0
        %v7909 = vpop.f32.mrb[0].mxu0
        %v7910 = vadd.f32 0.0, %v7909
        %v7911 = vpop.f32.mrb[0].mxu0
        %7912 = vmatprep.mubr.bf16.mxu0 0
        %7913 = vmatmul.mubr.bf16.gmra.mrb[0].mxu0 %v7676
        %v7914 = vpop.f32.mrb[0].mxu0
        %v7915 = vadd.f32 0.0, %v7914
        %v7916 = vpop.f32.mrb[0].mxu0
        %v7917 = vpop.f32.mrb[0].mxu0
        %v7918 = vadd.f32 0.0, %v7917
        %v7919 = vpop.f32.mrb[0].mxu0
        %7920 = vmatprep.mubr.bf16.mxu0 0
        %7921 = vmatmul.mubr.bf16.gmra.mrb[0].mxu0 %v7678
        %v7922 = vpop.f32.mrb[0].mxu0
        %v7923 = vadd.f32 0.0, %v7922
        %v7924 = vpop.f32.mrb[0].mxu0
        %v7925 = vpop.f32.mrb[0].mxu0
        %v7926 = vadd.f32 0.0, %v7925
        %v7927 = vpop.f32.mrb[0].mxu0
        %7928 = vmatprep.mubr.bf16.mxu0 0
        %7929 = vmatmul.mubr.bf16.gmra.mrb[0].mxu0 %v7680
        %v7930 = vpop.f32.mrb[0].mxu0
        %v7931 = vadd.f32 0.0, %v7930
        %v7932 = vpop.f32.mrb[0].mxu0
        %v7933 = vpop.f32.mrb[0].mxu0
        %v7934 = vadd.f32 0.0, %v7933
        %v7935 = vpop.f32.mrb[0].mxu0
        %7936 = vmatprep.mubr.bf16.mxu0 0
        %7937 = vmatmul.mubr.bf16.gmra.mrb[0].mxu0 %v7682
        %v7938 = vpop.f32.mrb[0].mxu0
        %v7939 = vadd.f32 0.0, %v7938
        %v7940 = vpop.f32.mrb[0].mxu0
        %v7941 = vpop.f32.mrb[0].mxu0
        %v7942 = vadd.f32 0.0, %v7941
        %v7943 = vpop.f32.mrb[0].mxu0
        %7944 = vmatprep.mubr.bf16.mxu0 0
        %7945 = vmatmul.mubr.bf16.gmra.mrb[0].mxu0 %v7681
        %v7946 = vpop.f32.mrb[0].mxu0
        %v7947 = vadd.f32 0.0, %v7946
        %v7948 = vpop.f32.mrb[0].mxu0
        %v7949 = vpop.f32.mrb[0].mxu0
        %v7950 = vpop.f32.mrb[0].mxu0
        %7951 = vdwg.mxu0
        %v7952 = vadd.f32 %v7581, %v7787
        %v7953 = vadd.f32 %v7582, %v7790
        %v7954 = vadd.f32 %v7583, %v7795
        %v7955 = vadd.f32 %v7584, %v7798
        %v7956 = vadd.f32 %v7585, %v7803
        %v7957 = vadd.f32 %v7586, %v7806
        %v7958 = vadd.f32 %v7587, %v7811
        %v7959 = vadd.f32 %v7588, %v7814
        %v7960 = vadd.f32 %v7589, %v7819
        %v7961 = vadd.f32 %v7590, %v7822
        %v7962 = vadd.f32 %v7591, %v7827
        %v7963 = vadd.f32 %v7592, %v7830
        %v7964 = vadd.f32 %v7593, %v7835
        %v7965 = vadd.f32 %v7594, %v7838
        %v7966 = vadd.f32 %v7595, %v7843
        %v7967 = vadd.f32 %v7596, %v7846
        %v7968 = vadd.f32 %v7597, %v7851
        %v7969 = vadd.f32 %v7598, %v7854
        %v7970 = vadd.f32 %v7599, %v7859
        %v7971 = vadd.f32 %v7600, %v7862
        %v7972 = vadd.f32 %v7601, %v7867
        %v7973 = vadd.f32 %v7602, %v7870
        %v7974 = vadd.f32 %v7603, %v7875
        %v7975 = vadd.f32 %v7604, %v7878
        %v7976 = vadd.f32 %v7605, %v7883
        %v7977 = vadd.f32 %v7606, %v7886
        %v7978 = vadd.f32 %v7607, %v7891
        %v7979 = vadd.f32 %v7608, %v7894
        %v7980 = vadd.f32 %v7609, %v7899
        %v7981 = vadd.f32 %v7610, %v7902
        %v7982 = vadd.f32 %v7611, %v7907
        %v7983 = vadd.f32 %v7612, %v7910
        %v7984 = vadd.f32 %v7613, %v7915
        %v7985 = vadd.f32 %v7614, %v7918
        %v7986 = vadd.f32 %v7615, %v7923
        %v7987 = vadd.f32 %v7616, %v7926
        %v7988 = vadd.f32 %v7617, %v7931
        %v7989 = vadd.f32 %v7618, %v7934
        %v7990 = vadd.f32 %v7619, %v7939
        %v7991 = vadd.f32 %v7620, %v7942
        %v7992 = vadd.f32 %v7621, %v7947
        %v7993 = vld [vmem:[#allocation2 + $0x10] sm:$0xfc]
        %v7994 = vld [vmem:[#allocation2 + $0x18] sm:$0xff]
        %v7995 = vld [vmem:[#allocation2 + $0x20] sm:$0xff]
        %v7996 = vld [vmem:[#allocation2 + $0x28] sm:$0xff]
        %v7997 = vld [vmem:[#allocation2 + $0x30] sm:$0xff]
        %v7998 = vld [vmem:[#allocation2 + $0x38] sm:$0xff]
        %v7999 = vld [vmem:[#allocation2 + $0x40] sm:$0xff]
        %v8000 = vld [vmem:[#allocation2 + $0x48] sm:$0xff]
        %v8001 = vld [vmem:[#allocation2 + $0x50] sm:$0xff]
        %v8002 = vld [vmem:[#allocation2 + $0x58] sm:$0xff]
        %v8003 = vld [vmem:[#allocation2 + $0x60] sm:$0xff]
        %v8004 = vld [vmem:[#allocation2 + $0x68] sm:$0xff]
        %v8005 = vld [vmem:[#allocation2 + $0x70] sm:$0xff]
        %v8006 = vld [vmem:[#allocation2 + $0x78] sm:$0xff]
        %v8007 = vld [vmem:[#allocation2 + $0x80] sm:$0xff]
        %v8008 = vld [vmem:[#allocation2 + $0x88] sm:$0xff]
        %v8009 = vld [vmem:[#allocation2 + $0x90] sm:$0xff]
        %v8010 = vld [vmem:[#allocation2 + $0x98] sm:$0xff]
        %v8011 = vld [vmem:[#allocation2 + $0xa0] sm:$0xff]
        %v8012 = vld [vmem:[#allocation2 + $0xa8] sm:$0xff]
        %v8013 = vld [vmem:[#allocation2 + $0xb0] sm:$0x3f]
        %s8014 = scalar_lea.vmem [#allocation9], 384
        %v8015 = vld [vmem:[%s8014] sm:$0xf]
        %v8016 = vld [vmem:[%s8014 + $0x4] sm:$0xf]
        %v8017 = vld [vmem:[%s8014 + $0x8] sm:$0xf]
        %v8018 = vld [vmem:[%s8014 + $0xc] sm:$0xf]
        %v8019 = vld [vmem:[%s8014 + $0x10] sm:$0xf]
        %v8020 = vld [vmem:[%s8014 + $0x14] sm:$0xf]
        %v8021 = vld [vmem:[%s8014 + $0x18] sm:$0xf]
        %v8022 = vld [vmem:[%s8014 + $0x1c] sm:$0xf]
        %v8023 = vld [vmem:[%s8014 + $0x20] sm:$0xf]
        %v8024 = vld [vmem:[%s8014 + $0x24] sm:$0xf]
        %v8025 = vld [vmem:[%s8014 + $0x28] sm:$0xf]
        %v8026 = vld [vmem:[%s8014 + $0x2c] sm:$0xf]
        %v8027 = vld [vmem:[%s8014 + $0x30] sm:$0xf]
        %v8028 = vld [vmem:[%s8014 + $0x34] sm:$0xf]
        %v8029 = vld [vmem:[%s8014 + $0x38] sm:$0xf]
        %v8030 = vld [vmem:[%s8014 + $0x3c] sm:$0xf]
        %v8052 = vrot.slane %v7993, 2
        %v8053 = vrot.slane %v7994, 2
        %v8054 = vsel %vm2572, %v8052, %v8053
        %v8055 = vrot.slane %v7995, 2
        %v8056 = vsel %vm2572, %v8053, %v8055
        %v8057 = vrot.slane %v7996, 2
        %v8058 = vsel %vm2572, %v8055, %v8057
        %v8059 = vrot.slane %v7997, 2
        %v8060 = vsel %vm2572, %v8057, %v8059
        %v8061 = vrot.slane %v7998, 2
        %v8062 = vsel %vm2572, %v8059, %v8061
        %v8063 = vrot.slane %v7999, 2
        %v8064 = vsel %vm2572, %v8061, %v8063
        %v8065 = vrot.slane %v8000, 2
        %v8066 = vsel %vm2572, %v8063, %v8065
        %v8067 = vrot.slane %v8001, 2
        %v8068 = vsel %vm2572, %v8065, %v8067
        %v8069 = vrot.slane %v8002, 2
        %v8070 = vsel %vm2572, %v8067, %v8069
        %v8071 = vrot.slane %v8003, 2
        %v8072 = vsel %vm2572, %v8069, %v8071
        %v8073 = vrot.slane %v8004, 2
        %v8074 = vsel %vm2572, %v8071, %v8073
        %v8075 = vrot.slane %v8005, 2
        %v8076 = vsel %vm2572, %v8073, %v8075
        %v8077 = vrot.slane %v8006, 2
        %v8078 = vsel %vm2572, %v8075, %v8077
        %v8079 = vrot.slane %v8007, 2
        %v8080 = vsel %vm2572, %v8077, %v8079
        %v8081 = vrot.slane %v8008, 2
        %v8082 = vsel %vm2572, %v8079, %v8081
        %v8083 = vrot.slane %v8009, 2
        %v8084 = vsel %vm2572, %v8081, %v8083
        %v8085 = vrot.slane %v8010, 2
        %v8086 = vsel %vm2572, %v8083, %v8085
        %v8087 = vrot.slane %v8011, 2
        %v8088 = vsel %vm2572, %v8085, %v8087
        %v8089 = vrot.slane %v8012, 2
        %v8090 = vsel %vm2572, %v8087, %v8089
        %v8091 = vrot.slane %v8013, 2
        %v8092 = vsel %vm2572, %v8089, %v8091
        %v8130 = vunpack.c.l.b16 %v8015
        %v8131 = vunpack.c.l.b16 %v8016
        %v8132 = vunpack.c.l.b16 %v8017
        %v8133 = vunpack.c.l.b16 %v8018
        %v8134 = vunpack.c.l.b16 %v8019
        %v8135 = vunpack.c.l.b16 %v8020
        %v8136 = vunpack.c.l.b16 %v8021
        %v8137 = vunpack.c.l.b16 %v8022
        %v8138 = vunpack.c.l.b16 %v8023
        %v8139 = vunpack.c.l.b16 %v8024
        %v8140 = vunpack.c.l.b16 %v8025
        %v8141 = vunpack.c.l.b16 %v8026
        %v8142 = vunpack.c.l.b16 %v8027
        %v8143 = vunpack.c.l.b16 %v8028
        %v8144 = vunpack.c.l.b16 %v8029
        %v8145 = vunpack.c.l.b16 %v8030
        %v8146 = vpack.c.b16 %v8131, %v8130
        %v8147 = vpack.c.b16 %v8133, %v8132
        %v8148 = vpack.c.b16 %v8135, %v8134
        %v8149 = vpack.c.b16 %v8137, %v8136
        %v8150 = vpack.c.b16 %v8139, %v8138
        %v8151 = vpack.c.b16 %v8141, %v8140
        %v8152 = vpack.c.b16 %v8143, %v8142
        %v8153 = vpack.c.b16 %v8145, %v8144
        %8162 = vmatprep.subr.bf16.mxu0 0
        %8163 = vmatpush1.bf16.msra.mxu0 %v8146
        %8164 = vmatprep.subr.bf16.mxu0 0
        %8165 = vmatpush1.bf16.msra.mxu0 %v8147
        %8166 = vmatprep.subr.bf16.mxu0 0
        %8167 = vmatpush1.bf16.msra.mxu0 %v8148
        %8168 = vmatprep.subr.bf16.mxu0 0
        %8169 = vmatpush1.bf16.msra.mxu0 %v8149
        %8170 = vmatprep.subr.bf16.mxu0 0
        %8171 = vmatpush1.bf16.msra.mxu0 %v8150
        %8172 = vmatprep.subr.bf16.mxu0 0
        %8173 = vmatpush1.bf16.msra.mxu0 %v8151
        %8174 = vmatprep.subr.bf16.mxu0 0
        %8175 = vmatpush1.bf16.msra.mxu0 %v8152
        %8176 = vmatprep.subr.bf16.mxu0 0
        %8177 = vmatpush1.bf16.msra.mxu0 %v8153
        %8178 = vmatprep.subr.bf16.mxu0 0
        %8179 = vmatpush1.bf16.msra.mxu0 0
        %8180 = vmatprep.subr.bf16.mxu0 0
        %8181 = vmatpush1.bf16.msra.mxu0 0
        %8182 = vmatprep.subr.bf16.mxu0 0
        %8183 = vmatpush1.bf16.msra.mxu0 0
        %8184 = vmatprep.subr.bf16.mxu0 0
        %8185 = vmatpush1.bf16.msra.mxu0 0
        %8186 = vmatprep.subr.bf16.mxu0 0
        %8187 = vmatpush1.bf16.msra.mxu0 0
        %8188 = vmatprep.subr.bf16.mxu0 0
        %8189 = vmatpush1.bf16.msra.mxu0 0
        %8190 = vmatprep.subr.bf16.mxu0 0
        %8191 = vmatpush1.bf16.msra.mxu0 0
        %8192 = vmatprep.subr.bf16.mxu0 0
        %8193 = vmatpush1.bf16.msra.mxu0 0
        %8194 = vmatprep.mubr.bf16.mxu0 0
        %8195 = vmatmul.mubr.bf16.gmra.mrb[0].mxu0 %v8054
        %v8196 = vpop.f32.mrb[0].mxu0
        %v8197 = vadd.f32 0.0, %v8196
        %v8198 = vpop.f32.mrb[0].mxu0
        %v8199 = vpop.f32.mrb[0].mxu0
        %v8200 = vadd.f32 0.0, %v8199
        %v8201 = vpop.f32.mrb[0].mxu0
        %8202 = vmatprep.mubr.bf16.mxu0 0
        %8203 = vmatmul.mubr.bf16.gmra.mrb[0].mxu0 %v8056
        %v8204 = vpop.f32.mrb[0].mxu0
        %v8205 = vadd.f32 0.0, %v8204
        %v8206 = vpop.f32.mrb[0].mxu0
        %v8207 = vpop.f32.mrb[0].mxu0
        %v8208 = vadd.f32 0.0, %v8207
        %v8209 = vpop.f32.mrb[0].mxu0
        %8210 = vmatprep.mubr.bf16.mxu0 0
        %8211 = vmatmul.mubr.bf16.gmra.mrb[0].mxu0 %v8058
        %v8212 = vpop.f32.mrb[0].mxu0
        %v8213 = vadd.f32 0.0, %v8212
        %v8214 = vpop.f32.mrb[0].mxu0
        %v8215 = vpop.f32.mrb[0].mxu0
        %v8216 = vadd.f32 0.0, %v8215
        %v8217 = vpop.f32.mrb[0].mxu0
        %8218 = vmatprep.mubr.bf16.mxu0 0
        %8219 = vmatmul.mubr.bf16.gmra.mrb[0].mxu0 %v8060
        %v8220 = vpop.f32.mrb[0].mxu0
        %v8221 = vadd.f32 0.0, %v8220
        %v8222 = vpop.f32.mrb[0].mxu0
        %v8223 = vpop.f32.mrb[0].mxu0
        %v8224 = vadd.f32 0.0, %v8223
        %v8225 = vpop.f32.mrb[0].mxu0
        %8226 = vmatprep.mubr.bf16.mxu0 0
        %8227 = vmatmul.mubr.bf16.gmra.mrb[0].mxu0 %v8062
        %v8228 = vpop.f32.mrb[0].mxu0
        %v8229 = vadd.f32 0.0, %v8228
        %v8230 = vpop.f32.mrb[0].mxu0
        %v8231 = vpop.f32.mrb[0].mxu0
        %v8232 = vadd.f32 0.0, %v8231
        %v8233 = vpop.f32.mrb[0].mxu0
        %8234 = vmatprep.mubr.bf16.mxu0 0
        %8235 = vmatmul.mubr.bf16.gmra.mrb[0].mxu0 %v8064
        %v8236 = vpop.f32.mrb[0].mxu0
        %v8237 = vadd.f32 0.0, %v8236
        %v8238 = vpop.f32.mrb[0].mxu0
        %v8239 = vpop.f32.mrb[0].mxu0
        %v8240 = vadd.f32 0.0, %v8239
        %v8241 = vpop.f32.mrb[0].mxu0
        %8242 = vmatprep.mubr.bf16.mxu0 0
        %8243 = vmatmul.mubr.bf16.gmra.mrb[0].mxu0 %v8066
        %v8244 = vpop.f32.mrb[0].mxu0
        %v8245 = vadd.f32 0.0, %v8244
        %v8246 = vpop.f32.mrb[0].mxu0
        %v8247 = vpop.f32.mrb[0].mxu0
        %v8248 = vadd.f32 0.0, %v8247
        %v8249 = vpop.f32.mrb[0].mxu0
        %8250 = vmatprep.mubr.bf16.mxu0 0
        %8251 = vmatmul.mubr.bf16.gmra.mrb[0].mxu0 %v8068
        %v8252 = vpop.f32.mrb[0].mxu0
        %v8253 = vadd.f32 0.0, %v8252
        %v8254 = vpop.f32.mrb[0].mxu0
        %v8255 = vpop.f32.mrb[0].mxu0
        %v8256 = vadd.f32 0.0, %v8255
        %v8257 = vpop.f32.mrb[0].mxu0
        %8258 = vmatprep.mubr.bf16.mxu0 0
        %8259 = vmatmul.mubr.bf16.gmra.mrb[0].mxu0 %v8070
        %v8260 = vpop.f32.mrb[0].mxu0
        %v8261 = vadd.f32 0.0, %v8260
        %v8262 = vpop.f32.mrb[0].mxu0
        %v8263 = vpop.f32.mrb[0].mxu0
        %v8264 = vadd.f32 0.0, %v8263
        %v8265 = vpop.f32.mrb[0].mxu0
        %8266 = vmatprep.mubr.bf16.mxu0 0
        %8267 = vmatmul.mubr.bf16.gmra.mrb[0].mxu0 %v8072
        %v8268 = vpop.f32.mrb[0].mxu0
        %v8269 = vadd.f32 0.0, %v8268
        %v8270 = vpop.f32.mrb[0].mxu0
        %v8271 = vpop.f32.mrb[0].mxu0
        %v8272 = vadd.f32 0.0, %v8271
        %v8273 = vpop.f32.mrb[0].mxu0
        %8274 = vmatprep.mubr.bf16.mxu0 0
        %8275 = vmatmul.mubr.bf16.gmra.mrb[0].mxu0 %v8074
        %v8276 = vpop.f32.mrb[0].mxu0
        %v8277 = vadd.f32 0.0, %v8276
        %v8278 = vpop.f32.mrb[0].mxu0
        %v8279 = vpop.f32.mrb[0].mxu0
        %v8280 = vadd.f32 0.0, %v8279
        %v8281 = vpop.f32.mrb[0].mxu0
        %8282 = vmatprep.mubr.bf16.mxu0 0
        %8283 = vmatmul.mubr.bf16.gmra.mrb[0].mxu0 %v8076
        %v8284 = vpop.f32.mrb[0].mxu0
        %v8285 = vadd.f32 0.0, %v8284
        %v8286 = vpop.f32.mrb[0].mxu0
        %v8287 = vpop.f32.mrb[0].mxu0
        %v8288 = vadd.f32 0.0, %v8287
        %v8289 = vpop.f32.mrb[0].mxu0
        %8290 = vmatprep.mubr.bf16.mxu0 0
        %8291 = vmatmul.mubr.bf16.gmra.mrb[0].mxu0 %v8078
        %v8292 = vpop.f32.mrb[0].mxu0
        %v8293 = vadd.f32 0.0, %v8292
        %v8294 = vpop.f32.mrb[0].mxu0
        %v8295 = vpop.f32.mrb[0].mxu0
        %v8296 = vadd.f32 0.0, %v8295
        %v8297 = vpop.f32.mrb[0].mxu0
        %8298 = vmatprep.mubr.bf16.mxu0 0
        %8299 = vmatmul.mubr.bf16.gmra.mrb[0].mxu0 %v8080
        %v8300 = vpop.f32.mrb[0].mxu0
        %v8301 = vadd.f32 0.0, %v8300
        %v8302 = vpop.f32.mrb[0].mxu0
        %v8303 = vpop.f32.mrb[0].mxu0
        %v8304 = vadd.f32 0.0, %v8303
        %v8305 = vpop.f32.mrb[0].mxu0
        %8306 = vmatprep.mubr.bf16.mxu0 0
        %8307 = vmatmul.mubr.bf16.gmra.mrb[0].mxu0 %v8082
        %v8308 = vpop.f32.mrb[0].mxu0
        %v8309 = vadd.f32 0.0, %v8308
        %v8310 = vpop.f32.mrb[0].mxu0
        %v8311 = vpop.f32.mrb[0].mxu0
        %v8312 = vadd.f32 0.0, %v8311
        %v8313 = vpop.f32.mrb[0].mxu0
        %8314 = vmatprep.mubr.bf16.mxu0 0
        %8315 = vmatmul.mubr.bf16.gmra.mrb[0].mxu0 %v8084
        %v8316 = vpop.f32.mrb[0].mxu0
        %v8317 = vadd.f32 0.0, %v8316
        %v8318 = vpop.f32.mrb[0].mxu0
        %v8319 = vpop.f32.mrb[0].mxu0
        %v8320 = vadd.f32 0.0, %v8319
        %v8321 = vpop.f32.mrb[0].mxu0
        %8322 = vmatprep.mubr.bf16.mxu0 0
        %8323 = vmatmul.mubr.bf16.gmra.mrb[0].mxu0 %v8086
        %v8324 = vpop.f32.mrb[0].mxu0
        %v8325 = vadd.f32 0.0, %v8324
        %v8326 = vpop.f32.mrb[0].mxu0
        %v8327 = vpop.f32.mrb[0].mxu0
        %v8328 = vadd.f32 0.0, %v8327
        %v8329 = vpop.f32.mrb[0].mxu0
        %8330 = vmatprep.mubr.bf16.mxu0 0
        %8331 = vmatmul.mubr.bf16.gmra.mrb[0].mxu0 %v8088
        %v8332 = vpop.f32.mrb[0].mxu0
        %v8333 = vadd.f32 0.0, %v8332
        %v8334 = vpop.f32.mrb[0].mxu0
        %v8335 = vpop.f32.mrb[0].mxu0
        %v8336 = vadd.f32 0.0, %v8335
        %v8337 = vpop.f32.mrb[0].mxu0
        %8338 = vmatprep.mubr.bf16.mxu0 0
        %8339 = vmatmul.mubr.bf16.gmra.mrb[0].mxu0 %v8090
        %v8340 = vpop.f32.mrb[0].mxu0
        %v8341 = vadd.f32 0.0, %v8340
        %v8342 = vpop.f32.mrb[0].mxu0
        %v8343 = vpop.f32.mrb[0].mxu0
        %v8344 = vadd.f32 0.0, %v8343
        %v8345 = vpop.f32.mrb[0].mxu0
        %8346 = vmatprep.mubr.bf16.mxu0 0
        %8347 = vmatmul.mubr.bf16.gmra.mrb[0].mxu0 %v8092
        %v8348 = vpop.f32.mrb[0].mxu0
        %v8349 = vadd.f32 0.0, %v8348
        %v8350 = vpop.f32.mrb[0].mxu0
        %v8351 = vpop.f32.mrb[0].mxu0
        %v8352 = vadd.f32 0.0, %v8351
        %v8353 = vpop.f32.mrb[0].mxu0
        %8354 = vmatprep.mubr.bf16.mxu0 0
        %8355 = vmatmul.mubr.bf16.gmra.mrb[0].mxu0 %v8091
        %v8356 = vpop.f32.mrb[0].mxu0
        %v8357 = vadd.f32 0.0, %v8356
        %v8358 = vpop.f32.mrb[0].mxu0
        %v8359 = vpop.f32.mrb[0].mxu0
        %v8360 = vpop.f32.mrb[0].mxu0
        %8361 = vdwg.mxu0
        %v8362 = vadd.f32 %v7952, %v8197
        %v8363 = vadd.f32 %v7953, %v8200
        %v8364 = vadd.f32 %v7954, %v8205
        %v8365 = vadd.f32 %v7955, %v8208
        %v8366 = vadd.f32 %v7956, %v8213
        %v8367 = vadd.f32 %v7957, %v8216
        %v8368 = vadd.f32 %v7958, %v8221
        %v8369 = vadd.f32 %v7959, %v8224
        %v8370 = vadd.f32 %v7960, %v8229
        %v8371 = vadd.f32 %v7961, %v8232
        %v8372 = vadd.f32 %v7962, %v8237
        %v8373 = vadd.f32 %v7963, %v8240
        %v8374 = vadd.f32 %v7964, %v8245
        %v8375 = vadd.f32 %v7965, %v8248
        %v8376 = vadd.f32 %v7966, %v8253
        %v8377 = vadd.f32 %v7967, %v8256
        %v8378 = vadd.f32 %v7968, %v8261
        %v8379 = vadd.f32 %v7969, %v8264
        %v8380 = vadd.f32 %v7970, %v8269
        %v8381 = vadd.f32 %v7971, %v8272
        %v8382 = vadd.f32 %v7972, %v8277
        %v8383 = vadd.f32 %v7973, %v8280
        %v8384 = vadd.f32 %v7974, %v8285
        %v8385 = vadd.f32 %v7975, %v8288
        %v8386 = vadd.f32 %v7976, %v8293
        %v8387 = vadd.f32 %v7977, %v8296
        %v8388 = vadd.f32 %v7978, %v8301
        %v8389 = vadd.f32 %v7979, %v8304
        %v8390 = vadd.f32 %v7980, %v8309
        %v8391 = vadd.f32 %v7981, %v8312
        %v8392 = vadd.f32 %v7982, %v8317
        %v8393 = vadd.f32 %v7983, %v8320
        %v8394 = vadd.f32 %v7984, %v8325
        %v8395 = vadd.f32 %v7985, %v8328
        %v8396 = vadd.f32 %v7986, %v8333
        %v8397 = vadd.f32 %v7987, %v8336
        %v8398 = vadd.f32 %v7988, %v8341
        %v8399 = vadd.f32 %v7989, %v8344
        %v8400 = vadd.f32 %v7990, %v8349
        %v8401 = vadd.f32 %v7991, %v8352
        %v8402 = vadd.f32 %v7992, %v8357
        %v8403 = vld [vmem:[#allocation2 + $0xb0] sm:$0x7f]
        %s8404 = scalar_lea.vmem [#allocation9], 448
        %v8405 = vld [vmem:[%s8404] sm:$0xf]
        %v8406 = vld [vmem:[%s8404 + $0x4] sm:$0xf]
        %v8407 = vld [vmem:[%s8404 + $0x8] sm:$0xf]
        %v8408 = vld [vmem:[%s8404 + $0xc] sm:$0xf]
        %v8409 = vld [vmem:[%s8404 + $0x10] sm:$0xf]
        %v8410 = vld [vmem:[%s8404 + $0x14] sm:$0xf]
        %v8411 = vld [vmem:[%s8404 + $0x18] sm:$0xf]
        %v8412 = vld [vmem:[%s8404 + $0x1c] sm:$0xf]
        %v8413 = vld [vmem:[%s8404 + $0x20] sm:$0xf]
        %v8414 = vld [vmem:[%s8404 + $0x24] sm:$0xf]
        %v8415 = vld [vmem:[%s8404 + $0x28] sm:$0xf]
        %v8416 = vld [vmem:[%s8404 + $0x2c] sm:$0xf]
        %v8417 = vld [vmem:[%s8404 + $0x30] sm:$0xf]
        %v8418 = vld [vmem:[%s8404 + $0x34] sm:$0xf]
        %v8419 = vld [vmem:[%s8404 + $0x38] sm:$0xf]
        %v8420 = vld [vmem:[%s8404 + $0x3c] sm:$0xf]
        %v8422 = vshrl.u32 %v7993, 16
        %v8424 = vrot.slane %v8422, 2
        %v8425 = vshll.u32 %v7993, 16
        %v8427 = vrot.slane %v8425, 3
        %v8428 = vor.u32 %v8424, %v8427
        %v8430 = vshrl.u32 %v7994, 16
        %v8432 = vrot.slane %v8430, 2
        %v8433 = vshll.u32 %v7994, 16
        %v8435 = vrot.slane %v8433, 3
        %v8436 = vor.u32 %v8432, %v8435
        %v8437 = vsel %vm3424, %v8428, %v8436
        %v8439 = vshrl.u32 %v7995, 16
        %v8441 = vrot.slane %v8439, 2
        %v8442 = vshll.u32 %v7995, 16
        %v8444 = vrot.slane %v8442, 3
        %v8445 = vor.u32 %v8441, %v8444
        %v8446 = vsel %vm3424, %v8436, %v8445
        %v8448 = vshrl.u32 %v7996, 16
        %v8450 = vrot.slane %v8448, 2
        %v8451 = vshll.u32 %v7996, 16
        %v8453 = vrot.slane %v8451, 3
        %v8454 = vor.u32 %v8450, %v8453
        %v8455 = vsel %vm3424, %v8445, %v8454
        %v8457 = vshrl.u32 %v7997, 16
        %v8459 = vrot.slane %v8457, 2
        %v8460 = vshll.u32 %v7997, 16
        %v8462 = vrot.slane %v8460, 3
        %v8463 = vor.u32 %v8459, %v8462
        %v8464 = vsel %vm3424, %v8454, %v8463
        %v8466 = vshrl.u32 %v7998, 16
        %v8468 = vrot.slane %v8466, 2
        %v8469 = vshll.u32 %v7998, 16
        %v8471 = vrot.slane %v8469, 3
        %v8472 = vor.u32 %v8468, %v8471
        %v8473 = vsel %vm3424, %v8463, %v8472
        %v8475 = vshrl.u32 %v7999, 16
        %v8477 = vrot.slane %v8475, 2
        %v8478 = vshll.u32 %v7999, 16
        %v8480 = vrot.slane %v8478, 3
        %v8481 = vor.u32 %v8477, %v8480
        %v8482 = vsel %vm3424, %v8472, %v8481
        %v8484 = vshrl.u32 %v8000, 16
        %v8486 = vrot.slane %v8484, 2
        %v8487 = vshll.u32 %v8000, 16
        %v8489 = vrot.slane %v8487, 3
        %v8490 = vor.u32 %v8486, %v8489
        %v8491 = vsel %vm3424, %v8481, %v8490
        %v8493 = vshrl.u32 %v8001, 16
        %v8495 = vrot.slane %v8493, 2
        %v8496 = vshll.u32 %v8001, 16
        %v8498 = vrot.slane %v8496, 3
        %v8499 = vor.u32 %v8495, %v8498
        %v8500 = vsel %vm3424, %v8490, %v8499
        %v8502 = vshrl.u32 %v8002, 16
        %v8504 = vrot.slane %v8502, 2
        %v8505 = vshll.u32 %v8002, 16
        %v8507 = vrot.slane %v8505, 3
        %v8508 = vor.u32 %v8504, %v8507
        %v8509 = vsel %vm3424, %v8499, %v8508
        %v8511 = vshrl.u32 %v8003, 16
        %v8513 = vrot.slane %v8511, 2
        %v8514 = vshll.u32 %v8003, 16
        %v8516 = vrot.slane %v8514, 3
        %v8517 = vor.u32 %v8513, %v8516
        %v8518 = vsel %vm3424, %v8508, %v8517
        %v8520 = vshrl.u32 %v8004, 16
        %v8522 = vrot.slane %v8520, 2
        %v8523 = vshll.u32 %v8004, 16
        %v8525 = vrot.slane %v8523, 3
        %v8526 = vor.u32 %v8522, %v8525
        %v8527 = vsel %vm3424, %v8517, %v8526
        %v8529 = vshrl.u32 %v8005, 16
        %v8531 = vrot.slane %v8529, 2
        %v8532 = vshll.u32 %v8005, 16
        %v8534 = vrot.slane %v8532, 3
        %v8535 = vor.u32 %v8531, %v8534
        %v8536 = vsel %vm3424, %v8526, %v8535
        %v8538 = vshrl.u32 %v8006, 16
        %v8540 = vrot.slane %v8538, 2
        %v8541 = vshll.u32 %v8006, 16
        %v8543 = vrot.slane %v8541, 3
        %v8544 = vor.u32 %v8540, %v8543
        %v8545 = vsel %vm3424, %v8535, %v8544
        %v8547 = vshrl.u32 %v8007, 16
        %v8549 = vrot.slane %v8547, 2
        %v8550 = vshll.u32 %v8007, 16
        %v8552 = vrot.slane %v8550, 3
        %v8553 = vor.u32 %v8549, %v8552
        %v8554 = vsel %vm3424, %v8544, %v8553
        %v8556 = vshrl.u32 %v8008, 16
        %v8558 = vrot.slane %v8556, 2
        %v8559 = vshll.u32 %v8008, 16
        %v8561 = vrot.slane %v8559, 3
        %v8562 = vor.u32 %v8558, %v8561
        %v8563 = vsel %vm3424, %v8553, %v8562
        %v8565 = vshrl.u32 %v8009, 16
        %v8567 = vrot.slane %v8565, 2
        %v8568 = vshll.u32 %v8009, 16
        %v8570 = vrot.slane %v8568, 3
        %v8571 = vor.u32 %v8567, %v8570
        %v8572 = vsel %vm3424, %v8562, %v8571
        %v8574 = vshrl.u32 %v8010, 16
        %v8576 = vrot.slane %v8574, 2
        %v8577 = vshll.u32 %v8010, 16
        %v8579 = vrot.slane %v8577, 3
        %v8580 = vor.u32 %v8576, %v8579
        %v8581 = vsel %vm3424, %v8571, %v8580
        %v8583 = vshrl.u32 %v8011, 16
        %v8585 = vrot.slane %v8583, 2
        %v8586 = vshll.u32 %v8011, 16
        %v8588 = vrot.slane %v8586, 3
        %v8589 = vor.u32 %v8585, %v8588
        %v8590 = vsel %vm3424, %v8580, %v8589
        %v8592 = vshrl.u32 %v8012, 16
        %v8594 = vrot.slane %v8592, 2
        %v8595 = vshll.u32 %v8012, 16
        %v8597 = vrot.slane %v8595, 3
        %v8598 = vor.u32 %v8594, %v8597
        %v8599 = vsel %vm3424, %v8589, %v8598
        %v8601 = vshrl.u32 %v8403, 16
        %v8603 = vrot.slane %v8601, 2
        %v8604 = vshll.u32 %v8403, 16
        %v8606 = vrot.slane %v8604, 3
        %v8607 = vor.u32 %v8603, %v8606
        %v8608 = vsel %vm3424, %v8598, %v8607
        %v8646 = vunpack.c.l.b16 %v8405
        %v8647 = vunpack.c.l.b16 %v8406
        %v8648 = vunpack.c.l.b16 %v8407
        %v8649 = vunpack.c.l.b16 %v8408
        %v8650 = vunpack.c.l.b16 %v8409
        %v8651 = vunpack.c.l.b16 %v8410
        %v8652 = vunpack.c.l.b16 %v8411
        %v8653 = vunpack.c.l.b16 %v8412
        %v8654 = vunpack.c.l.b16 %v8413
        %v8655 = vunpack.c.l.b16 %v8414
        %v8656 = vunpack.c.l.b16 %v8415
        %v8657 = vunpack.c.l.b16 %v8416
        %v8658 = vunpack.c.l.b16 %v8417
        %v8659 = vunpack.c.l.b16 %v8418
        %v8660 = vunpack.c.l.b16 %v8419
        %v8661 = vunpack.c.l.b16 %v8420
        %v8662 = vpack.c.b16 %v8647, %v8646
        %v8663 = vpack.c.b16 %v8649, %v8648
        %v8664 = vpack.c.b16 %v8651, %v8650
        %v8665 = vpack.c.b16 %v8653, %v8652
        %v8666 = vpack.c.b16 %v8655, %v8654
        %v8667 = vpack.c.b16 %v8657, %v8656
        %v8668 = vpack.c.b16 %v8659, %v8658
        %v8669 = vpack.c.b16 %v8661, %v8660
        %8678 = vmatprep.subr.bf16.mxu0 0
        %8679 = vmatpush1.bf16.msra.mxu0 %v8662
        %8680 = vmatprep.subr.bf16.mxu0 0
        %8681 = vmatpush1.bf16.msra.mxu0 %v8663
        %8682 = vmatprep.subr.bf16.mxu0 0
        %8683 = vmatpush1.bf16.msra.mxu0 %v8664
        %8684 = vmatprep.subr.bf16.mxu0 0
        %8685 = vmatpush1.bf16.msra.mxu0 %v8665
        %8686 = vmatprep.subr.bf16.mxu0 0
        %8687 = vmatpush1.bf16.msra.mxu0 %v8666
        %8688 = vmatprep.subr.bf16.mxu0 0
        %8689 = vmatpush1.bf16.msra.mxu0 %v8667
        %8690 = vmatprep.subr.bf16.mxu0 0
        %8691 = vmatpush1.bf16.msra.mxu0 %v8668
        %8692 = vmatprep.subr.bf16.mxu0 0
        %8693 = vmatpush1.bf16.msra.mxu0 %v8669
        %8694 = vmatprep.subr.bf16.mxu0 0
        %8695 = vmatpush1.bf16.msra.mxu0 0
        %8696 = vmatprep.subr.bf16.mxu0 0
        %8697 = vmatpush1.bf16.msra.mxu0 0
        %8698 = vmatprep.subr.bf16.mxu0 0
        %8699 = vmatpush1.bf16.msra.mxu0 0
        %8700 = vmatprep.subr.bf16.mxu0 0
        %8701 = vmatpush1.bf16.msra.mxu0 0
        %8702 = vmatprep.subr.bf16.mxu0 0
        %8703 = vmatpush1.bf16.msra.mxu0 0
        %8704 = vmatprep.subr.bf16.mxu0 0
        %8705 = vmatpush1.bf16.msra.mxu0 0
        %8706 = vmatprep.subr.bf16.mxu0 0
        %8707 = vmatpush1.bf16.msra.mxu0 0
        %8708 = vmatprep.subr.bf16.mxu0 0
        %8709 = vmatpush1.bf16.msra.mxu0 0
        %8710 = vmatprep.mubr.bf16.mxu0 0
        %8711 = vmatmul.mubr.bf16.gmra.mrb[0].mxu0 %v8437
        %v8712 = vpop.f32.mrb[0].mxu0
        %v8713 = vadd.f32 0.0, %v8712
        %v8714 = vpop.f32.mrb[0].mxu0
        %v8715 = vpop.f32.mrb[0].mxu0
        %v8716 = vadd.f32 0.0, %v8715
        %v8717 = vpop.f32.mrb[0].mxu0
        %8718 = vmatprep.mubr.bf16.mxu0 0
        %8719 = vmatmul.mubr.bf16.gmra.mrb[0].mxu0 %v8446
        %v8720 = vpop.f32.mrb[0].mxu0
        %v8721 = vadd.f32 0.0, %v8720
        %v8722 = vpop.f32.mrb[0].mxu0
        %v8723 = vpop.f32.mrb[0].mxu0
        %v8724 = vadd.f32 0.0, %v8723
        %v8725 = vpop.f32.mrb[0].mxu0
        %8726 = vmatprep.mubr.bf16.mxu0 0
        %8727 = vmatmul.mubr.bf16.gmra.mrb[0].mxu0 %v8455
        %v8728 = vpop.f32.mrb[0].mxu0
        %v8729 = vadd.f32 0.0, %v8728
        %v8730 = vpop.f32.mrb[0].mxu0
        %v8731 = vpop.f32.mrb[0].mxu0
        %v8732 = vadd.f32 0.0, %v8731
        %v8733 = vpop.f32.mrb[0].mxu0
        %8734 = vmatprep.mubr.bf16.mxu0 0
        %8735 = vmatmul.mubr.bf16.gmra.mrb[0].mxu0 %v8464
        %v8736 = vpop.f32.mrb[0].mxu0
        %v8737 = vadd.f32 0.0, %v8736
        %v8738 = vpop.f32.mrb[0].mxu0
        %v8739 = vpop.f32.mrb[0].mxu0
        %v8740 = vadd.f32 0.0, %v8739
        %v8741 = vpop.f32.mrb[0].mxu0
        %8742 = vmatprep.mubr.bf16.mxu0 0
        %8743 = vmatmul.mubr.bf16.gmra.mrb[0].mxu0 %v8473
        %v8744 = vpop.f32.mrb[0].mxu0
        %v8745 = vadd.f32 0.0, %v8744
        %v8746 = vpop.f32.mrb[0].mxu0
        %v8747 = vpop.f32.mrb[0].mxu0
        %v8748 = vadd.f32 0.0, %v8747
        %v8749 = vpop.f32.mrb[0].mxu0
        %8750 = vmatprep.mubr.bf16.mxu0 0
        %8751 = vmatmul.mubr.bf16.gmra.mrb[0].mxu0 %v8482
        %v8752 = vpop.f32.mrb[0].mxu0
        %v8753 = vadd.f32 0.0, %v8752
        %v8754 = vpop.f32.mrb[0].mxu0
        %v8755 = vpop.f32.mrb[0].mxu0
        %v8756 = vadd.f32 0.0, %v8755
        %v8757 = vpop.f32.mrb[0].mxu0
        %8758 = vmatprep.mubr.bf16.mxu0 0
        %8759 = vmatmul.mubr.bf16.gmra.mrb[0].mxu0 %v8491
        %v8760 = vpop.f32.mrb[0].mxu0
        %v8761 = vadd.f32 0.0, %v8760
        %v8762 = vpop.f32.mrb[0].mxu0
        %v8763 = vpop.f32.mrb[0].mxu0
        %v8764 = vadd.f32 0.0, %v8763
        %v8765 = vpop.f32.mrb[0].mxu0
        %8766 = vmatprep.mubr.bf16.mxu0 0
        %8767 = vmatmul.mubr.bf16.gmra.mrb[0].mxu0 %v8500
        %v8768 = vpop.f32.mrb[0].mxu0
        %v8769 = vadd.f32 0.0, %v8768
        %v8770 = vpop.f32.mrb[0].mxu0
        %v8771 = vpop.f32.mrb[0].mxu0
        %v8772 = vadd.f32 0.0, %v8771
        %v8773 = vpop.f32.mrb[0].mxu0
        %8774 = vmatprep.mubr.bf16.mxu0 0
        %8775 = vmatmul.mubr.bf16.gmra.mrb[0].mxu0 %v8509
        %v8776 = vpop.f32.mrb[0].mxu0
        %v8777 = vadd.f32 0.0, %v8776
        %v8778 = vpop.f32.mrb[0].mxu0
        %v8779 = vpop.f32.mrb[0].mxu0
        %v8780 = vadd.f32 0.0, %v8779
        %v8781 = vpop.f32.mrb[0].mxu0
        %8782 = vmatprep.mubr.bf16.mxu0 0
        %8783 = vmatmul.mubr.bf16.gmra.mrb[0].mxu0 %v8518
        %v8784 = vpop.f32.mrb[0].mxu0
        %v8785 = vadd.f32 0.0, %v8784
        %v8786 = vpop.f32.mrb[0].mxu0
        %v8787 = vpop.f32.mrb[0].mxu0
        %v8788 = vadd.f32 0.0, %v8787
        %v8789 = vpop.f32.mrb[0].mxu0
        %8790 = vmatprep.mubr.bf16.mxu0 0
        %8791 = vmatmul.mubr.bf16.gmra.mrb[0].mxu0 %v8527
        %v8792 = vpop.f32.mrb[0].mxu0
        %v8793 = vadd.f32 0.0, %v8792
        %v8794 = vpop.f32.mrb[0].mxu0
        %v8795 = vpop.f32.mrb[0].mxu0
        %v8796 = vadd.f32 0.0, %v8795
        %v8797 = vpop.f32.mrb[0].mxu0
        %8798 = vmatprep.mubr.bf16.mxu0 0
        %8799 = vmatmul.mubr.bf16.gmra.mrb[0].mxu0 %v8536
        %v8800 = vpop.f32.mrb[0].mxu0
        %v8801 = vadd.f32 0.0, %v8800
        %v8802 = vpop.f32.mrb[0].mxu0
        %v8803 = vpop.f32.mrb[0].mxu0
        %v8804 = vadd.f32 0.0, %v8803
        %v8805 = vpop.f32.mrb[0].mxu0
        %8806 = vmatprep.mubr.bf16.mxu0 0
        %8807 = vmatmul.mubr.bf16.gmra.mrb[0].mxu0 %v8545
        %v8808 = vpop.f32.mrb[0].mxu0
        %v8809 = vadd.f32 0.0, %v8808
        %v8810 = vpop.f32.mrb[0].mxu0
        %v8811 = vpop.f32.mrb[0].mxu0
        %v8812 = vadd.f32 0.0, %v8811
        %v8813 = vpop.f32.mrb[0].mxu0
        %8814 = vmatprep.mubr.bf16.mxu0 0
        %8815 = vmatmul.mubr.bf16.gmra.mrb[0].mxu0 %v8554
        %v8816 = vpop.f32.mrb[0].mxu0
        %v8817 = vadd.f32 0.0, %v8816
        %v8818 = vpop.f32.mrb[0].mxu0
        %v8819 = vpop.f32.mrb[0].mxu0
        %v8820 = vadd.f32 0.0, %v8819
        %v8821 = vpop.f32.mrb[0].mxu0
        %8822 = vmatprep.mubr.bf16.mxu0 0
        %8823 = vmatmul.mubr.bf16.gmra.mrb[0].mxu0 %v8563
        %v8824 = vpop.f32.mrb[0].mxu0
        %v8825 = vadd.f32 0.0, %v8824
        %v8826 = vpop.f32.mrb[0].mxu0
        %v8827 = vpop.f32.mrb[0].mxu0
        %v8828 = vadd.f32 0.0, %v8827
        %v8829 = vpop.f32.mrb[0].mxu0
        %8830 = vmatprep.mubr.bf16.mxu0 0
        %8831 = vmatmul.mubr.bf16.gmra.mrb[0].mxu0 %v8572
        %v8832 = vpop.f32.mrb[0].mxu0
        %v8833 = vadd.f32 0.0, %v8832
        %v8834 = vpop.f32.mrb[0].mxu0
        %v8835 = vpop.f32.mrb[0].mxu0
        %v8836 = vadd.f32 0.0, %v8835
        %v8837 = vpop.f32.mrb[0].mxu0
        %8838 = vmatprep.mubr.bf16.mxu0 0
        %8839 = vmatmul.mubr.bf16.gmra.mrb[0].mxu0 %v8581
        %v8840 = vpop.f32.mrb[0].mxu0
        %v8841 = vadd.f32 0.0, %v8840
        %v8842 = vpop.f32.mrb[0].mxu0
        %v8843 = vpop.f32.mrb[0].mxu0
        %v8844 = vadd.f32 0.0, %v8843
        %v8845 = vpop.f32.mrb[0].mxu0
        %8846 = vmatprep.mubr.bf16.mxu0 0
        %8847 = vmatmul.mubr.bf16.gmra.mrb[0].mxu0 %v8590
        %v8848 = vpop.f32.mrb[0].mxu0
        %v8849 = vadd.f32 0.0, %v8848
        %v8850 = vpop.f32.mrb[0].mxu0
        %v8851 = vpop.f32.mrb[0].mxu0
        %v8852 = vadd.f32 0.0, %v8851
        %v8853 = vpop.f32.mrb[0].mxu0
        %8854 = vmatprep.mubr.bf16.mxu0 0
        %8855 = vmatmul.mubr.bf16.gmra.mrb[0].mxu0 %v8599
        %v8856 = vpop.f32.mrb[0].mxu0
        %v8857 = vadd.f32 0.0, %v8856
        %v8858 = vpop.f32.mrb[0].mxu0
        %v8859 = vpop.f32.mrb[0].mxu0
        %v8860 = vadd.f32 0.0, %v8859
        %v8861 = vpop.f32.mrb[0].mxu0
        %8862 = vmatprep.mubr.bf16.mxu0 0
        %8863 = vmatmul.mubr.bf16.gmra.mrb[0].mxu0 %v8608
        %v8864 = vpop.f32.mrb[0].mxu0
        %v8865 = vadd.f32 0.0, %v8864
        %v8866 = vpop.f32.mrb[0].mxu0
        %v8867 = vpop.f32.mrb[0].mxu0
        %v8868 = vadd.f32 0.0, %v8867
        %v8869 = vpop.f32.mrb[0].mxu0
        %8870 = vmatprep.mubr.bf16.mxu0 0
        %8871 = vmatmul.mubr.bf16.gmra.mrb[0].mxu0 %v8607
        %v8872 = vpop.f32.mrb[0].mxu0
        %v8873 = vadd.f32 0.0, %v8872
        %v8874 = vpop.f32.mrb[0].mxu0
        %v8875 = vpop.f32.mrb[0].mxu0
        %v8876 = vpop.f32.mrb[0].mxu0
        %8877 = vdwg.mxu0
        %v8878 = vadd.f32 %v8362, %v8713
        %v8879 = vadd.f32 %v8363, %v8716
        %v8880 = vadd.f32 %v8364, %v8721
        %v8881 = vadd.f32 %v8365, %v8724
        %v8882 = vadd.f32 %v8366, %v8729
        %v8883 = vadd.f32 %v8367, %v8732
        %v8884 = vadd.f32 %v8368, %v8737
        %v8885 = vadd.f32 %v8369, %v8740
        %v8886 = vadd.f32 %v8370, %v8745
        %v8887 = vadd.f32 %v8371, %v8748
        %v8888 = vadd.f32 %v8372, %v8753
        %v8889 = vadd.f32 %v8373, %v8756
        %v8890 = vadd.f32 %v8374, %v8761
        %v8891 = vadd.f32 %v8375, %v8764
        %v8892 = vadd.f32 %v8376, %v8769
        %v8893 = vadd.f32 %v8377, %v8772
        %v8894 = vadd.f32 %v8378, %v8777
        %v8895 = vadd.f32 %v8379, %v8780
        %v8896 = vadd.f32 %v8380, %v8785
        %v8897 = vadd.f32 %v8381, %v8788
        %v8898 = vadd.f32 %v8382, %v8793
        %v8899 = vadd.f32 %v8383, %v8796
        %v8900 = vadd.f32 %v8384, %v8801
        %v8901 = vadd.f32 %v8385, %v8804
        %v8902 = vadd.f32 %v8386, %v8809
        %v8903 = vadd.f32 %v8387, %v8812
        %v8904 = vadd.f32 %v8388, %v8817
        %v8905 = vadd.f32 %v8389, %v8820
        %v8906 = vadd.f32 %v8390, %v8825
        %v8907 = vadd.f32 %v8391, %v8828
        %v8908 = vadd.f32 %v8392, %v8833
        %v8909 = vadd.f32 %v8393, %v8836
        %v8910 = vadd.f32 %v8394, %v8841
        %v8911 = vadd.f32 %v8395, %v8844
        %v8912 = vadd.f32 %v8396, %v8849
        %v8913 = vadd.f32 %v8397, %v8852
        %v8914 = vadd.f32 %v8398, %v8857
        %v8915 = vadd.f32 %v8399, %v8860
        %v8916 = vadd.f32 %v8400, %v8865
        %v8917 = vadd.f32 %v8401, %v8868
        %v8918 = vadd.f32 %v8402, %v8873
        %v8919 = vld [vmem:[#allocation2 + $0x10] sm:$0xf8]
        %s8920 = scalar_lea.vmem [#allocation9], 512
        %v8921 = vld [vmem:[%s8920] sm:$0xf]
        %v8922 = vld [vmem:[%s8920 + $0x4] sm:$0xf]
        %v8923 = vld [vmem:[%s8920 + $0x8] sm:$0xf]
        %v8924 = vld [vmem:[%s8920 + $0xc] sm:$0xf]
        %v8925 = vld [vmem:[%s8920 + $0x10] sm:$0xf]
        %v8926 = vld [vmem:[%s8920 + $0x14] sm:$0xf]
        %v8927 = vld [vmem:[%s8920 + $0x18] sm:$0xf]
        %v8928 = vld [vmem:[%s8920 + $0x1c] sm:$0xf]
        %v8929 = vld [vmem:[%s8920 + $0x20] sm:$0xf]
        %v8930 = vld [vmem:[%s8920 + $0x24] sm:$0xf]
        %v8931 = vld [vmem:[%s8920 + $0x28] sm:$0xf]
        %v8932 = vld [vmem:[%s8920 + $0x2c] sm:$0xf]
        %v8933 = vld [vmem:[%s8920 + $0x30] sm:$0xf]
        %v8934 = vld [vmem:[%s8920 + $0x34] sm:$0xf]
        %v8935 = vld [vmem:[%s8920 + $0x38] sm:$0xf]
        %v8936 = vld [vmem:[%s8920 + $0x3c] sm:$0xf]
        %v8939 = vrot.slane %v8919, 3
        %v8940 = vrot.slane %v7994, 3
        %v8941 = vsel %vm3926, %v8939, %v8940
        %v8942 = vrot.slane %v7995, 3
        %v8943 = vsel %vm3926, %v8940, %v8942
        %v8944 = vrot.slane %v7996, 3
        %v8945 = vsel %vm3926, %v8942, %v8944
        %v8946 = vrot.slane %v7997, 3
        %v8947 = vsel %vm3926, %v8944, %v8946
        %v8948 = vrot.slane %v7998, 3
        %v8949 = vsel %vm3926, %v8946, %v8948
        %v8950 = vrot.slane %v7999, 3
        %v8951 = vsel %vm3926, %v8948, %v8950
        %v8952 = vrot.slane %v8000, 3
        %v8953 = vsel %vm3926, %v8950, %v8952
        %v8954 = vrot.slane %v8001, 3
        %v8955 = vsel %vm3926, %v8952, %v8954
        %v8956 = vrot.slane %v8002, 3
        %v8957 = vsel %vm3926, %v8954, %v8956
        %v8958 = vrot.slane %v8003, 3
        %v8959 = vsel %vm3926, %v8956, %v8958
        %v8960 = vrot.slane %v8004, 3
        %v8961 = vsel %vm3926, %v8958, %v8960
        %v8962 = vrot.slane %v8005, 3
        %v8963 = vsel %vm3926, %v8960, %v8962
        %v8964 = vrot.slane %v8006, 3
        %v8965 = vsel %vm3926, %v8962, %v8964
        %v8966 = vrot.slane %v8007, 3
        %v8967 = vsel %vm3926, %v8964, %v8966
        %v8968 = vrot.slane %v8008, 3
        %v8969 = vsel %vm3926, %v8966, %v8968
        %v8970 = vrot.slane %v8009, 3
        %v8971 = vsel %vm3926, %v8968, %v8970
        %v8972 = vrot.slane %v8010, 3
        %v8973 = vsel %vm3926, %v8970, %v8972
        %v8974 = vrot.slane %v8011, 3
        %v8975 = vsel %vm3926, %v8972, %v8974
        %v8976 = vrot.slane %v8012, 3
        %v8977 = vsel %vm3926, %v8974, %v8976
        %v8978 = vrot.slane %v8403, 3
        %v8979 = vsel %vm3926, %v8976, %v8978
        %v9017 = vunpack.c.l.b16 %v8921
        %v9018 = vunpack.c.l.b16 %v8922
        %v9019 = vunpack.c.l.b16 %v8923
        %v9020 = vunpack.c.l.b16 %v8924
        %v9021 = vunpack.c.l.b16 %v8925
        %v9022 = vunpack.c.l.b16 %v8926
        %v9023 = vunpack.c.l.b16 %v8927
        %v9024 = vunpack.c.l.b16 %v8928
        %v9025 = vunpack.c.l.b16 %v8929
        %v9026 = vunpack.c.l.b16 %v8930
        %v9027 = vunpack.c.l.b16 %v8931
        %v9028 = vunpack.c.l.b16 %v8932
        %v9029 = vunpack.c.l.b16 %v8933
        %v9030 = vunpack.c.l.b16 %v8934
        %v9031 = vunpack.c.l.b16 %v8935
        %v9032 = vunpack.c.l.b16 %v8936
        %v9033 = vpack.c.b16 %v9018, %v9017
        %v9034 = vpack.c.b16 %v9020, %v9019
        %v9035 = vpack.c.b16 %v9022, %v9021
        %v9036 = vpack.c.b16 %v9024, %v9023
        %v9037 = vpack.c.b16 %v9026, %v9025
        %v9038 = vpack.c.b16 %v9028, %v9027
        %v9039 = vpack.c.b16 %v9030, %v9029
        %v9040 = vpack.c.b16 %v9032, %v9031
        %9049 = vmatprep.subr.bf16.mxu0 0
        %9050 = vmatpush1.bf16.msra.mxu0 %v9033
        %9051 = vmatprep.subr.bf16.mxu0 0
        %9052 = vmatpush1.bf16.msra.mxu0 %v9034
        %9053 = vmatprep.subr.bf16.mxu0 0
        %9054 = vmatpush1.bf16.msra.mxu0 %v9035
        %9055 = vmatprep.subr.bf16.mxu0 0
        %9056 = vmatpush1.bf16.msra.mxu0 %v9036
        %9057 = vmatprep.subr.bf16.mxu0 0
        %9058 = vmatpush1.bf16.msra.mxu0 %v9037
        %9059 = vmatprep.subr.bf16.mxu0 0
        %9060 = vmatpush1.bf16.msra.mxu0 %v9038
        %9061 = vmatprep.subr.bf16.mxu0 0
        %9062 = vmatpush1.bf16.msra.mxu0 %v9039
        %9063 = vmatprep.subr.bf16.mxu0 0
        %9064 = vmatpush1.bf16.msra.mxu0 %v9040
        %9065 = vmatprep.subr.bf16.mxu0 0
        %9066 = vmatpush1.bf16.msra.mxu0 0
        %9067 = vmatprep.subr.bf16.mxu0 0
        %9068 = vmatpush1.bf16.msra.mxu0 0
        %9069 = vmatprep.subr.bf16.mxu0 0
        %9070 = vmatpush1.bf16.msra.mxu0 0
        %9071 = vmatprep.subr.bf16.mxu0 0
        %9072 = vmatpush1.bf16.msra.mxu0 0
        %9073 = vmatprep.subr.bf16.mxu0 0
        %9074 = vmatpush1.bf16.msra.mxu0 0
        %9075 = vmatprep.subr.bf16.mxu0 0
        %9076 = vmatpush1.bf16.msra.mxu0 0
        %9077 = vmatprep.subr.bf16.mxu0 0
        %9078 = vmatpush1.bf16.msra.mxu0 0
        %9079 = vmatprep.subr.bf16.mxu0 0
        %9080 = vmatpush1.bf16.msra.mxu0 0
        %9081 = vmatprep.mubr.bf16.mxu0 0
        %9082 = vmatmul.mubr.bf16.gmra.mrb[0].mxu0 %v8941
        %v9083 = vpop.f32.mrb[0].mxu0
        %v9084 = vadd.f32 0.0, %v9083
        %v9085 = vpop.f32.mrb[0].mxu0
        %v9086 = vpop.f32.mrb[0].mxu0
        %v9087 = vadd.f32 0.0, %v9086
        %v9088 = vpop.f32.mrb[0].mxu0
        %9089 = vmatprep.mubr.bf16.mxu0 0
        %9090 = vmatmul.mubr.bf16.gmra.mrb[0].mxu0 %v8943
        %v9091 = vpop.f32.mrb[0].mxu0
        %v9092 = vadd.f32 0.0, %v9091
        %v9093 = vpop.f32.mrb[0].mxu0
        %v9094 = vpop.f32.mrb[0].mxu0
        %v9095 = vadd.f32 0.0, %v9094
        %v9096 = vpop.f32.mrb[0].mxu0
        %9097 = vmatprep.mubr.bf16.mxu0 0
        %9098 = vmatmul.mubr.bf16.gmra.mrb[0].mxu0 %v8945
        %v9099 = vpop.f32.mrb[0].mxu0
        %v9100 = vadd.f32 0.0, %v9099
        %v9101 = vpop.f32.mrb[0].mxu0
        %v9102 = vpop.f32.mrb[0].mxu0
        %v9103 = vadd.f32 0.0, %v9102
        %v9104 = vpop.f32.mrb[0].mxu0
        %9105 = vmatprep.mubr.bf16.mxu0 0
        %9106 = vmatmul.mubr.bf16.gmra.mrb[0].mxu0 %v8947
        %v9107 = vpop.f32.mrb[0].mxu0
        %v9108 = vadd.f32 0.0, %v9107
        %v9109 = vpop.f32.mrb[0].mxu0
        %v9110 = vpop.f32.mrb[0].mxu0
        %v9111 = vadd.f32 0.0, %v9110
        %v9112 = vpop.f32.mrb[0].mxu0
        %9113 = vmatprep.mubr.bf16.mxu0 0
        %9114 = vmatmul.mubr.bf16.gmra.mrb[0].mxu0 %v8949
        %v9115 = vpop.f32.mrb[0].mxu0
        %v9116 = vadd.f32 0.0, %v9115
        %v9117 = vpop.f32.mrb[0].mxu0
        %v9118 = vpop.f32.mrb[0].mxu0
        %v9119 = vadd.f32 0.0, %v9118
        %v9120 = vpop.f32.mrb[0].mxu0
        %9121 = vmatprep.mubr.bf16.mxu0 0
        %9122 = vmatmul.mubr.bf16.gmra.mrb[0].mxu0 %v8951
        %v9123 = vpop.f32.mrb[0].mxu0
        %v9124 = vadd.f32 0.0, %v9123
        %v9125 = vpop.f32.mrb[0].mxu0
        %v9126 = vpop.f32.mrb[0].mxu0
        %v9127 = vadd.f32 0.0, %v9126
        %v9128 = vpop.f32.mrb[0].mxu0
        %9129 = vmatprep.mubr.bf16.mxu0 0
        %9130 = vmatmul.mubr.bf16.gmra.mrb[0].mxu0 %v8953
        %v9131 = vpop.f32.mrb[0].mxu0
        %v9132 = vadd.f32 0.0, %v9131
        %v9133 = vpop.f32.mrb[0].mxu0
        %v9134 = vpop.f32.mrb[0].mxu0
        %v9135 = vadd.f32 0.0, %v9134
        %v9136 = vpop.f32.mrb[0].mxu0
        %9137 = vmatprep.mubr.bf16.mxu0 0
        %9138 = vmatmul.mubr.bf16.gmra.mrb[0].mxu0 %v8955
        %v9139 = vpop.f32.mrb[0].mxu0
        %v9140 = vadd.f32 0.0, %v9139
        %v9141 = vpop.f32.mrb[0].mxu0
        %v9142 = vpop.f32.mrb[0].mxu0
        %v9143 = vadd.f32 0.0, %v9142
        %v9144 = vpop.f32.mrb[0].mxu0
        %9145 = vmatprep.mubr.bf16.mxu0 0
        %9146 = vmatmul.mubr.bf16.gmra.mrb[0].mxu0 %v8957
        %v9147 = vpop.f32.mrb[0].mxu0
        %v9148 = vadd.f32 0.0, %v9147
        %v9149 = vpop.f32.mrb[0].mxu0
        %v9150 = vpop.f32.mrb[0].mxu0
        %v9151 = vadd.f32 0.0, %v9150
        %v9152 = vpop.f32.mrb[0].mxu0
        %9153 = vmatprep.mubr.bf16.mxu0 0
        %9154 = vmatmul.mubr.bf16.gmra.mrb[0].mxu0 %v8959
        %v9155 = vpop.f32.mrb[0].mxu0
        %v9156 = vadd.f32 0.0, %v9155
        %v9157 = vpop.f32.mrb[0].mxu0
        %v9158 = vpop.f32.mrb[0].mxu0
        %v9159 = vadd.f32 0.0, %v9158
        %v9160 = vpop.f32.mrb[0].mxu0
        %9161 = vmatprep.mubr.bf16.mxu0 0
        %9162 = vmatmul.mubr.bf16.gmra.mrb[0].mxu0 %v8961
        %v9163 = vpop.f32.mrb[0].mxu0
        %v9164 = vadd.f32 0.0, %v9163
        %v9165 = vpop.f32.mrb[0].mxu0
        %v9166 = vpop.f32.mrb[0].mxu0
        %v9167 = vadd.f32 0.0, %v9166
        %v9168 = vpop.f32.mrb[0].mxu0
        %9169 = vmatprep.mubr.bf16.mxu0 0
        %9170 = vmatmul.mubr.bf16.gmra.mrb[0].mxu0 %v8963
        %v9171 = vpop.f32.mrb[0].mxu0
        %v9172 = vadd.f32 0.0, %v9171
        %v9173 = vpop.f32.mrb[0].mxu0
        %v9174 = vpop.f32.mrb[0].mxu0
        %v9175 = vadd.f32 0.0, %v9174
        %v9176 = vpop.f32.mrb[0].mxu0
        %9177 = vmatprep.mubr.bf16.mxu0 0
        %9178 = vmatmul.mubr.bf16.gmra.mrb[0].mxu0 %v8965
        %v9179 = vpop.f32.mrb[0].mxu0
        %v9180 = vadd.f32 0.0, %v9179
        %v9181 = vpop.f32.mrb[0].mxu0
        %v9182 = vpop.f32.mrb[0].mxu0
        %v9183 = vadd.f32 0.0, %v9182
        %v9184 = vpop.f32.mrb[0].mxu0
        %9185 = vmatprep.mubr.bf16.mxu0 0
        %9186 = vmatmul.mubr.bf16.gmra.mrb[0].mxu0 %v8967
        %v9187 = vpop.f32.mrb[0].mxu0
        %v9188 = vadd.f32 0.0, %v9187
        %v9189 = vpop.f32.mrb[0].mxu0
        %v9190 = vpop.f32.mrb[0].mxu0
        %v9191 = vadd.f32 0.0, %v9190
        %v9192 = vpop.f32.mrb[0].mxu0
        %9193 = vmatprep.mubr.bf16.mxu0 0
        %9194 = vmatmul.mubr.bf16.gmra.mrb[0].mxu0 %v8969
        %v9195 = vpop.f32.mrb[0].mxu0
        %v9196 = vadd.f32 0.0, %v9195
        %v9197 = vpop.f32.mrb[0].mxu0
        %v9198 = vpop.f32.mrb[0].mxu0
        %v9199 = vadd.f32 0.0, %v9198
        %v9200 = vpop.f32.mrb[0].mxu0
        %9201 = vmatprep.mubr.bf16.mxu0 0
        %9202 = vmatmul.mubr.bf16.gmra.mrb[0].mxu0 %v8971
        %v9203 = vpop.f32.mrb[0].mxu0
        %v9204 = vadd.f32 0.0, %v9203
        %v9205 = vpop.f32.mrb[0].mxu0
        %v9206 = vpop.f32.mrb[0].mxu0
        %v9207 = vadd.f32 0.0, %v9206
        %v9208 = vpop.f32.mrb[0].mxu0
        %9209 = vmatprep.mubr.bf16.mxu0 0
        %9210 = vmatmul.mubr.bf16.gmra.mrb[0].mxu0 %v8973
        %v9211 = vpop.f32.mrb[0].mxu0
        %v9212 = vadd.f32 0.0, %v9211
        %v9213 = vpop.f32.mrb[0].mxu0
        %v9214 = vpop.f32.mrb[0].mxu0
        %v9215 = vadd.f32 0.0, %v9214
        %v9216 = vpop.f32.mrb[0].mxu0
        %9217 = vmatprep.mubr.bf16.mxu0 0
        %9218 = vmatmul.mubr.bf16.gmra.mrb[0].mxu0 %v8975
        %v9219 = vpop.f32.mrb[0].mxu0
        %v9220 = vadd.f32 0.0, %v9219
        %v9221 = vpop.f32.mrb[0].mxu0
        %v9222 = vpop.f32.mrb[0].mxu0
        %v9223 = vadd.f32 0.0, %v9222
        %v9224 = vpop.f32.mrb[0].mxu0
        %9225 = vmatprep.mubr.bf16.mxu0 0
        %9226 = vmatmul.mubr.bf16.gmra.mrb[0].mxu0 %v8977
        %v9227 = vpop.f32.mrb[0].mxu0
        %v9228 = vadd.f32 0.0, %v9227
        %v9229 = vpop.f32.mrb[0].mxu0
        %v9230 = vpop.f32.mrb[0].mxu0
        %v9231 = vadd.f32 0.0, %v9230
        %v9232 = vpop.f32.mrb[0].mxu0
        %9233 = vmatprep.mubr.bf16.mxu0 0
        %9234 = vmatmul.mubr.bf16.gmra.mrb[0].mxu0 %v8979
        %v9235 = vpop.f32.mrb[0].mxu0
        %v9236 = vadd.f32 0.0, %v9235
        %v9237 = vpop.f32.mrb[0].mxu0
        %v9238 = vpop.f32.mrb[0].mxu0
        %v9239 = vadd.f32 0.0, %v9238
        %v9240 = vpop.f32.mrb[0].mxu0
        %9241 = vmatprep.mubr.bf16.mxu0 0
        %9242 = vmatmul.mubr.bf16.gmra.mrb[0].mxu0 %v8978
        %v9243 = vpop.f32.mrb[0].mxu0
        %v9244 = vadd.f32 0.0, %v9243
        %v9245 = vpop.f32.mrb[0].mxu0
        %v9246 = vpop.f32.mrb[0].mxu0
        %v9247 = vpop.f32.mrb[0].mxu0
        %9248 = vdwg.mxu0
        %v9249 = vadd.f32 %v8878, %v9084
        %v9250 = vadd.f32 %v8879, %v9087
        %v9251 = vadd.f32 %v8880, %v9092
        %v9252 = vadd.f32 %v8881, %v9095
        %v9253 = vadd.f32 %v8882, %v9100
        %v9254 = vadd.f32 %v8883, %v9103
        %v9255 = vadd.f32 %v8884, %v9108
        %v9256 = vadd.f32 %v8885, %v9111
        %v9257 = vadd.f32 %v8886, %v9116
        %v9258 = vadd.f32 %v8887, %v9119
        %v9259 = vadd.f32 %v8888, %v9124
        %v9260 = vadd.f32 %v8889, %v9127
        %v9261 = vadd.f32 %v8890, %v9132
        %v9262 = vadd.f32 %v8891, %v9135
        %v9263 = vadd.f32 %v8892, %v9140
        %v9264 = vadd.f32 %v8893, %v9143
        %v9265 = vadd.f32 %v8894, %v9148
        %v9266 = vadd.f32 %v8895, %v9151
        %v9267 = vadd.f32 %v8896, %v9156
        %v9268 = vadd.f32 %v8897, %v9159
        %v9269 = vadd.f32 %v8898, %v9164
        %v9270 = vadd.f32 %v8899, %v9167
        %v9271 = vadd.f32 %v8900, %v9172
        %v9272 = vadd.f32 %v8901, %v9175
        %v9273 = vadd.f32 %v8902, %v9180
        %v9274 = vadd.f32 %v8903, %v9183
        %v9275 = vadd.f32 %v8904, %v9188
        %v9276 = vadd.f32 %v8905, %v9191
        %v9277 = vadd.f32 %v8906, %v9196
        %v9278 = vadd.f32 %v8907, %v9199
        %v9279 = vadd.f32 %v8908, %v9204
        %v9280 = vadd.f32 %v8909, %v9207
        %v9281 = vadd.f32 %v8910, %v9212
        %v9282 = vadd.f32 %v8911, %v9215
        %v9283 = vadd.f32 %v8912, %v9220
        %v9284 = vadd.f32 %v8913, %v9223
        %v9285 = vadd.f32 %v8914, %v9228
        %v9286 = vadd.f32 %v8915, %v9231
        %v9287 = vadd.f32 %v8916, %v9236
        %v9288 = vadd.f32 %v8917, %v9239
        %v9289 = vadd.f32 %v8918, %v9244
        %v9290 = vld [vmem:[#allocation12] sm:$0x1]
        %v9292 = vlaneseq
        %v9293 = vshrl.u32 %v9292, 7
        %v9294 = vsub.s32 0, %v9293
        %v9295 = vrot.slane %v9290, %v9294
        %v9297 = vadd.f32 %v9249, %v9295
        %v9298 = vadd.f32 %v9250, %v9295
        %v9299 = vadd.f32 %v9251, %v9295
        %v9300 = vadd.f32 %v9252, %v9295
        %v9301 = vadd.f32 %v9253, %v9295
        %v9302 = vadd.f32 %v9254, %v9295
        %v9303 = vadd.f32 %v9255, %v9295
        %v9304 = vadd.f32 %v9256, %v9295
        %v9305 = vadd.f32 %v9257, %v9295
        %v9306 = vadd.f32 %v9258, %v9295
        %v9307 = vadd.f32 %v9259, %v9295
        %v9308 = vadd.f32 %v9260, %v9295
        %v9309 = vadd.f32 %v9261, %v9295
        %v9310 = vadd.f32 %v9262, %v9295
        %v9311 = vadd.f32 %v9263, %v9295
        %v9312 = vadd.f32 %v9264, %v9295
        %v9313 = vadd.f32 %v9265, %v9295
        %v9314 = vadd.f32 %v9266, %v9295
        %v9315 = vadd.f32 %v9267, %v9295
        %v9316 = vadd.f32 %v9268, %v9295
        %v9317 = vadd.f32 %v9269, %v9295
        %v9318 = vadd.f32 %v9270, %v9295
        %v9319 = vadd.f32 %v9271, %v9295
        %v9320 = vadd.f32 %v9272, %v9295
        %v9321 = vadd.f32 %v9273, %v9295
        %v9322 = vadd.f32 %v9274, %v9295
        %v9323 = vadd.f32 %v9275, %v9295
        %v9324 = vadd.f32 %v9276, %v9295
        %v9325 = vadd.f32 %v9277, %v9295
        %v9326 = vadd.f32 %v9278, %v9295
        %v9327 = vadd.f32 %v9279, %v9295
        %v9328 = vadd.f32 %v9280, %v9295
        %v9329 = vadd.f32 %v9281, %v9295
        %v9330 = vadd.f32 %v9282, %v9295
        %v9331 = vadd.f32 %v9283, %v9295
        %v9332 = vadd.f32 %v9284, %v9295
        %v9333 = vadd.f32 %v9285, %v9295
        %v9334 = vadd.f32 %v9286, %v9295
        %v9335 = vadd.f32 %v9287, %v9295
        %v9336 = vadd.f32 %v9288, %v9295
        %v9337 = vadd.f32 %v9289, %v9295
        %v9338 = vmax.f32 %v9297, 0.0
        %v9339 = vmax.f32 %v9298, 0.0
        %v9340 = vmax.f32 %v9299, 0.0
        %v9341 = vmax.f32 %v9300, 0.0
        %v9342 = vmax.f32 %v9301, 0.0
        %v9343 = vmax.f32 %v9302, 0.0
        %v9344 = vmax.f32 %v9303, 0.0
        %v9345 = vmax.f32 %v9304, 0.0
        %v9346 = vmax.f32 %v9305, 0.0
        %v9347 = vmax.f32 %v9306, 0.0
        %v9348 = vmax.f32 %v9307, 0.0
        %v9349 = vmax.f32 %v9308, 0.0
        %v9350 = vmax.f32 %v9309, 0.0
        %v9351 = vmax.f32 %v9310, 0.0
        %v9352 = vmax.f32 %v9311, 0.0
        %v9353 = vmax.f32 %v9312, 0.0
        %v9354 = vmax.f32 %v9313, 0.0
        %v9355 = vmax.f32 %v9314, 0.0
        %v9356 = vmax.f32 %v9315, 0.0
        %v9357 = vmax.f32 %v9316, 0.0
        %v9358 = vmax.f32 %v9317, 0.0
        %v9359 = vmax.f32 %v9318, 0.0
        %v9360 = vmax.f32 %v9319, 0.0
        %v9361 = vmax.f32 %v9320, 0.0
        %v9362 = vmax.f32 %v9321, 0.0
        %v9363 = vmax.f32 %v9322, 0.0
        %v9364 = vmax.f32 %v9323, 0.0
        %v9365 = vmax.f32 %v9324, 0.0
        %v9366 = vmax.f32 %v9325, 0.0
        %v9367 = vmax.f32 %v9326, 0.0
        %v9368 = vmax.f32 %v9327, 0.0
        %v9369 = vmax.f32 %v9328, 0.0
        %v9370 = vmax.f32 %v9329, 0.0
        %v9371 = vmax.f32 %v9330, 0.0
        %v9372 = vmax.f32 %v9331, 0.0
        %v9373 = vmax.f32 %v9332, 0.0
        %v9374 = vmax.f32 %v9333, 0.0
        %v9375 = vmax.f32 %v9334, 0.0
        %v9376 = vmax.f32 %v9335, 0.0
        %v9377 = vmax.f32 %v9336, 0.0
        %v9378 = vmax.f32 %v9337, 0.0
        %9379 = vst [vmem:[%s377] sm:$0xff] %v9338
        %9380 = vst [vmem:[%s377 + $0x8] sm:$0xff] %v9339
        %9381 = vst [vmem:[%s377 + $0x10] sm:$0xff] %v9340
        %9382 = vst [vmem:[%s377 + $0x18] sm:$0xff] %v9341
        %9383 = vst [vmem:[%s377 + $0x20] sm:$0xff] %v9342
        %9384 = vst [vmem:[%s377 + $0x28] sm:$0xff] %v9343
        %9385 = vst [vmem:[%s377 + $0x30] sm:$0xff] %v9344
        %9386 = vst [vmem:[%s377 + $0x38] sm:$0xff] %v9345
        %9387 = vst [vmem:[%s377 + $0x40] sm:$0xff] %v9346
        %9388 = vst [vmem:[%s377 + $0x48] sm:$0xff] %v9347
        %9389 = vst [vmem:[%s377 + $0x50] sm:$0xff] %v9348
        %9390 = vst [vmem:[%s377 + $0x58] sm:$0xff] %v9349
        %9391 = vst [vmem:[%s377 + $0x60] sm:$0xff] %v9350
        %9392 = vst [vmem:[%s377 + $0x68] sm:$0xff] %v9351
        %9393 = vst [vmem:[%s377 + $0x70] sm:$0xff] %v9352
        %9394 = vst [vmem:[%s377 + $0x78] sm:$0xff] %v9353
        %9395 = vst [vmem:[%s377 + $0x80] sm:$0xff] %v9354
        %9396 = vst [vmem:[%s377 + $0x88] sm:$0xff] %v9355
        %9397 = vst [vmem:[%s377 + $0x90] sm:$0xff] %v9356
        %9398 = vst [vmem:[%s377 + $0x98] sm:$0xff] %v9357
        %9399 = vst [vmem:[%s377 + $0xa0] sm:$0xff] %v9358
        %9400 = vst [vmem:[%s377 + $0xa8] sm:$0xff] %v9359
        %9401 = vst [vmem:[%s377 + $0xb0] sm:$0xff] %v9360
        %9402 = vst [vmem:[%s377 + $0xb8] sm:$0xff] %v9361
        %9403 = vst [vmem:[%s377 + $0xc0] sm:$0xff] %v9362
        %9404 = vst [vmem:[%s377 + $0xc8] sm:$0xff] %v9363
        %9405 = vst [vmem:[%s377 + $0xd0] sm:$0xff] %v9364
        %9406 = vst [vmem:[%s377 + $0xd8] sm:$0xff] %v9365
        %9407 = vst [vmem:[%s377 + $0xe0] sm:$0xff] %v9366
        %9408 = vst [vmem:[%s377 + $0xe8] sm:$0xff] %v9367
        %9409 = vst [vmem:[%s377 + $0xf0] sm:$0xff] %v9368
        %9410 = vst [vmem:[%s377 + $0xf8] sm:$0xff] %v9369
        %9411 = vst [vmem:[%s377 + $0x100] sm:$0xff] %v9370
        %9412 = vst [vmem:[%s377 + $0x108] sm:$0xff] %v9371
        %9413 = vst [vmem:[%s377 + $0x110] sm:$0xff] %v9372
        %9414 = vst [vmem:[%s377 + $0x118] sm:$0xff] %v9373
        %9415 = vst [vmem:[%s377 + $0x120] sm:$0xff] %v9374
        %9416 = vst [vmem:[%s377 + $0x128] sm:$0xff] %v9375
        %9417 = vst [vmem:[%s377 + $0x130] sm:$0xff] %v9376
        %9418 = vst [vmem:[%s377 + $0x138] sm:$0xff] %v9377
        %9419 = vst [vmem:[%s377 + $0x140] sm:$0xff] %v9378
        %s9420 = sand.u32 %s187, 1
        %s9421 = scalar_lea.sflag [#allocation5], %s9420
        %s9422 = sand.u32 %s187, 1
        %s9423 = smul.addr %s9422, 328
        %s9424 = scalar_lea.vmem [#allocation15], %s9423
        // Predicated region
        $region77: #{tpu_custom_call.1} parent=47 // pred_check
          %p9425 = pneg %p197
        $region78: #{tpu_custom_call.1} parent=47 // pred_check_branch
          %9427 = sbr.rel (%p9425) target = $region80
        $region79: #{tpu_custom_call.1} parent=47 // pred_region
          %s9429 = ssub.s32 5248, 5248
          %9430 = vsyncadd %s9421, %s9429
          %s9431 = smul.addr %s27, 41
          %s9432 = smul.addr %s9431, 128
          %s9433 = scalar_lea.hbm %s7, %s9432
          %s9434 = sshll.u32 %s9424, 4
          %s9435 = int_to_ptr.vmem [resolvable:$true] %s9434
          %9440 = dma.vmem_to_hbm [thread:$0]  %s9435, 5248, %s9433, %s9421, 128, 128, 8
        $region80: #{tpu_custom_call.1} parent=47 // pred_fallthru
          _
      $region48: #{tpu_custom_call.1} parent=5 // pred_fallthru
        _
      %p9441 = scmp.le.s32.totalorder 2, %s22
      // Predicated region
      $region81: #{tpu_custom_call.1} parent=5 // pred_check
        %p9442 = pneg %p9441
      $region82: #{tpu_custom_call.1} parent=5 // pred_check_branch
        %9444 = sbr.rel (%p9442) target = $region84
      $region83: #{tpu_custom_call.1} parent=5 // pred_region
        %s9445 = ssub.s32 %s22, 2
        // Predicated region
        $region85: #{tpu_custom_call.1} parent=83 // pred_check
          %p9446 = pneg %p203
        $region86: #{tpu_custom_call.1} parent=83 // pred_check_branch
          %9448 = sbr.rel (%p9446) target = $region88
        $region87: #{tpu_custom_call.1} parent=83 // pred_region
          %s9449 = sand.u32 %s188, 1
          %s9450 = scalar_lea.sflag [#allocation5], %s9449
          %s9451 = sand.u32 %s188, 1
          %s9452 = smul.addr %s9451, 328
          %s9453 = scalar_lea.vmem [#allocation15], %s9452
          %9454 = dma.done %s9450, 5248
        $region88: #{tpu_custom_call.1} parent=83 // pred_fallthru
          _
      $region84: #{tpu_custom_call.1} parent=5 // pred_fallthru
        _
    $region6: #{tpu_custom_call.1} parent=1 // loop_footer
      %s26 = sadd.s32 1, %s22
    $region7: #{tpu_custom_call.1} parent=1 // loop_footer_branch
      %21 = sbr.rel target = $region3
    $region8: #{tpu_custom_call.1} parent=1 // loop_exit
      _
    %9455 = vsyncpa [#allocation4], 1
    %s9456 = scalar_lea.sflag [#allocation4], 1
    %9457 = vsyncpa %s9456, 1
    %9458 = vsyncpa [#allocation7], 1
    %9459 = vsyncpa [#allocation10], 1
    %9460 = vsyncpa [#allocation13], 1
    %9461 = vsyncpa [#allocation5], 1
    %s9462 = scalar_lea.sflag [#allocation5], 1
    %9463 = vsyncpa %s9462, 1

</llo_original>
